<compile_context>
chip_gen: v7x
topology: tpu7x:2x2x1
jax: 0.10.0
libtpu: 0.0.40
codegen_flags: <defaults>
</compile_context>

<pallas_src>
import functools

import jax
import jax.numpy as jnp
from jax.experimental import pallas as pl
from jax.experimental.pallas import tpu as pltpu


def _toeplitz_weight(w, w_out, wp_in, out_pad=0):
    """Fold a conv's W-axis taps into a lane-dense block ("lowered") weight.

    w: (kh, kw, Cin, Cout)  ->  (kh, wp_in*Cin, (w_out + 2*out_pad)*Cout)
    blk[dy, (wi+dx)*Cin + ci, (wi+out_pad)*Cout + co] = w[dy, dx, ci, co]
    so that   out_row = sum_dy  in_row[dy] @ blk[dy]
    computes the full conv along W for one output row, with K = wp_in*Cin.
    """
    kh, kw, cin, cout = w.shape
    p = jnp.arange(wp_in)[:, None, None]
    wi = jnp.arange(w_out)[None, :, None]
    k = jnp.arange(kw)[None, None, :]
    sel = (p == wi + k).astype(w.dtype)                    # (wp_in, w_out, kw)
    blk = jnp.einsum("pwk,dkio->dpiwo", sel, w)            # (kh,wp_in,Cin,w_out,Cout)
    blk = blk.reshape(kh, wp_in * cin, w_out * cout)
    if out_pad:
        blk = jnp.pad(blk, ((0, 0), (0, 0), (out_pad * cout, out_pad * cout)))
    return blk


def _pick_nb(n, h, mxu_rows=256):
    """Images packed per grid step (rows stacked into the MXU M dimension)."""
    if h % 8 != 0:                      # keep the row-merge reshapes tile-aligned
        return 1
    fits = [d for d in range(1, n + 1) if n % d == 0 and d * h <= mxu_rows]
    if not fits:
        return 1
    # Prefer leaving >= 2 grid steps so both v7x TensorCores get work.
    two_step = [d for d in fits if n // d >= 2]
    return max(two_step) if two_step else max(fits)


def _fused_flow_encoder_kernel(xp_ref, w1_ref, b1_ref, w2_ref, b2_ref,
                               w3_ref, b3_ref, o_ref, h1_ref,
                               *, nb, H, kh1, kh2):
    """nb images per grid step; everything row-packed as (rows, W*C)."""
    ph2 = kh2 // 2
    M = nb * H
    Kin = xp_ref.shape[-1]          # Wp1 * Cin
    K1o = w1_ref.shape[-1]          # (W + 2*pw2) * c1  (conv2's padded width)
    K2o = w2_ref.shape[-1]          # W * c2

    # conv2 SAME padding: zero ONLY the top/bottom halo rows each step.  The
    # interior rows (including their zero border lanes, produced by the
    # zero-padded Toeplitz columns + zero bias + ReLU) are fully overwritten
    # below.  Per-step (NOT program_id-gated): scratch is per-core under
    # "parallel" semantics.
    h1_ref[:, 0:ph2, :] = jnp.zeros((nb, ph2, K1o), h1_ref.dtype)
    h1_ref[:, ph2 + H:ph2 + H + ph2, :] = jnp.zeros((nb, ph2, K1o), h1_ref.dtype)

    # ---- conv1: 7x7, 2 -> c  (bf16 MXU operands, f32 accumulation) + ReLU --
    acc1 = jnp.zeros((M, K1o), jnp.float32)
    for dy in range(kh1):                                   # kh1 sublane taps
        lhs = xp_ref[:, dy:dy + H, :].reshape(M, Kin).astype(jnp.bfloat16)
        acc1 = acc1 + jnp.dot(lhs, w1_ref[dy],
                              preferred_element_type=jnp.float32)
    h1 = jnp.maximum(acc1 + b1_ref[...], 0.0)               # border lanes stay 0
    h1_ref[:, ph2:ph2 + H, :] = h1.reshape(nb, H, K1o)

    # ---- conv2: 3x3, c -> 2c (bf16 MXU operands, f32 accumulation) + ReLU --
    acc2 = jnp.zeros((M, K2o), jnp.float32)
    for dy in range(kh2):
        lhs = h1_ref[:, dy:dy + H, :].reshape(M, K1o).astype(jnp.bfloat16)
        acc2 = acc2 + jnp.dot(lhs, w2_ref[dy],
                              preferred_element_type=jnp.float32)
    acc2 = jnp.maximum(acc2 + b2_ref[...], 0.0)

    # ---- conv3: 1x1, 2c -> c (block-diagonal lowered weight), no ReLU ------
    # TODO(synk): de-inflate to a dense (M*W, 2c) @ (2c, c) matmul once W-tiling
    # is added for real resolutions (block-diag weight is O(W^2) bytes and does
    # ~16x the necessary MXU passes).
    acc3 = jnp.dot(acc2.astype(jnp.bfloat16), w3_ref[0],
                   preferred_element_type=jnp.float32) + b3_ref[...]

    # Lane-dense, unmasked store: (nb, H, W*c3).
    o_ref[...] = acc3.reshape(nb, H, o_ref.shape[-1]).astype(o_ref.dtype)


@jax.jit
def _flow_encoder_forward(x, w1_blk, b1p, w2_blk, b2p, w3_blk, b3p):
    """x: (N,H,W,2) f32 -> (N,H,W,c) f32; fused conv1/relu/conv2/relu/conv3."""
    N, H, W, Cin = x.shape
    kh1 = w1_blk.shape[0]
    kh2 = w2_blk.shape[0]
    ph1, ph2 = kh1 // 2, kh2 // 2            # square kernels (7x7, 3x3)
    Wp1 = w1_blk.shape[1] // Cin
    pw1 = (Wp1 - W) // 2
    Hp1 = H + 2 * ph1
    Hp2 = H + 2 * ph2
    K1o = w1_blk.shape[2]                    # (W + 2*ph2) * c1
    c3 = w3_blk.shape[2] // W

    nb = _pick_nb(N, H)

    # Only the tiny 2-channel conv1 input is padded per call; packed to a
    # lane-dense (N, Hp1, Wp1*Cin) view.  Kept f32 in HBM; cast to bf16
    # per tap right before the MXU inside the kernel.
    xp = jnp.pad(x.astype(jnp.float32),
                 ((0, 0), (ph1, ph1), (pw1, pw1), (0, 0)))
    xp = xp.reshape(N, Hp1, Wp1 * Cin)

    kernel = functools.partial(_fused_flow_encoder_kernel,
                               nb=nb, H=H, kh1=kh1, kh2=kh2)

    # Weights / biases are constant across the grid: pass them as un-blocked,
    # VMEM-resident operands (single copy, no double-buffering, no per-step
    # DMA).  Only xp and the output are pipelined per grid step.
    vmem_spec = pl.BlockSpec(memory_space=pltpu.MemorySpace.VMEM)

    out = pl.pallas_call(
        kernel,
        out_shape=jax.ShapeDtypeStruct((N, H, W * c3), jnp.float32),
        grid_spec=pltpu.PrefetchScalarGridSpec(
            num_scalar_prefetch=0,
            grid=(N // nb,),
            in_specs=[
                pl.BlockSpec((nb, Hp1, Wp1 * Cin), lambda n: (n, 0, 0)),
                vmem_spec, vmem_spec,        # w1_blk, b1p
                vmem_spec, vmem_spec,        # w2_blk, b2p
                vmem_spec, vmem_spec,        # w3_blk, b3p
            ],
            out_specs=pl.BlockSpec((nb, H, W * c3), lambda n: (n, 0, 0)),
            # conv1 -> conv2 intermediate stays in VMEM (with zero halo rows).
            scratch_shapes=[pltpu.VMEM((nb, Hp2, K1o), jnp.float32)],
        ),
        compiler_params=pltpu.CompilerParams(
            dimension_semantics=("parallel",),
            vmem_limit_bytes=32 * 1024 * 1024,
        ),
    )(xp, w1_blk, b1p, w2_blk, b2p, w3_blk, b3p)

    # Free reshape back to NHWC (lanes are W-major, channel-minor).
    return out.reshape(N, H, W, c3)


class FlowEncoderPallas:
    """Pallas equivalent of networks/AccFlow_.py::FlowEncoder (synthetic init)."""

    def __init__(self, c=32, key=jax.random.PRNGKey(0)):
        k = jax.random.split(key, 6)

        def init_w(kk, shape, fan_in):
            return (jax.random.normal(kk, shape, jnp.float32)
                    * (1.0 / jnp.sqrt(float(fan_in))))

        def init_b(kk, shape):
            return 0.01 * jax.random.normal(kk, shape, jnp.float32)

        # HWIO weights (PyTorch stores OIHW; math is equivalent).
        self.w1 = init_w(k[0], (7, 7, 2, c), 7 * 7 * 2)
        self.b1 = init_b(k[1], (c,))
        self.w2 = init_w(k[2], (3, 3, c, 2 * c), 3 * 3 * c)
        self.b2 = init_b(k[3], (2 * c,))
        self.w3 = init_w(k[4], (1, 1, 2 * c, c), 2 * c)
        self.b3 = init_b(k[5], (c,))
        # Lowered (Toeplitz) weights depend on W; build once per distinct W and
        # cache so no weight packing / HBM weight write happens per forward.
        self._packed = {}

    def _packed_params(self, W):
        if W not in self._packed:
            kw1, kw2 = self.w1.shape[1], self.w2.shape[1]
            pw1, pw2 = kw1 // 2, kw2 // 2
            c1, c2, c3 = self.w1.shape[-1], self.w2.shape[-1], self.w3.shape[-1]
            Wp1, Wp2 = W + 2 * pw1, W + 2 * pw2
            # conv1 writes directly into conv2's padded-width layout (out_pad).
            w1_blk = _toeplitz_weight(self.w1, W, Wp1,
                                      out_pad=pw2).astype(jnp.bfloat16)
            w2_blk = _toeplitz_weight(self.w2, W, Wp2).astype(jnp.bfloat16)
            w3_blk = _toeplitz_weight(self.w3, W, W).astype(jnp.bfloat16)
            b1p = jnp.pad(jnp.tile(self.b1, W),
                          (pw2 * c1, pw2 * c1)).reshape(1, Wp2 * c1)
            b2p = jnp.tile(self.b2, W).reshape(1, W * c2)
            b3p = jnp.tile(self.b3, W).reshape(1, W * c3)
            self._packed[W] = tuple(
                jax.block_until_ready(t)
                for t in (w1_blk, b1p, w2_blk, b2p, w3_blk, b3p))
        return self._packed[W]

    def __call__(self, x):
        # Mirrors the tuple/list handling of the PyTorch forward.
        is_list = isinstance(x, (tuple, list))
        if is_list:
            batch_dim = x[0].shape[0]
            x = jnp.concatenate(x, axis=0)
        packed = self._packed_params(x.shape[2])
        h = _flow_encoder_forward(x, *packed)
        if is_list:
            n_splits = h.shape[0] // batch_dim
            h = tuple(
                h[i * batch_dim:(i + 1) * batch_dim] for i in range(n_splits)
            )
        return h


# ----------------------------- reference (XLA) -------------------------------
def _ref_conv(x, w, b, relu):
    y = jax.lax.conv_general_dilated(
        x, w, window_strides=(1, 1), padding="SAME",
        dimension_numbers=("NHWC", "HWIO", "NHWC"),
        precision=jax.lax.Precision.HIGHEST,
    ) + b.reshape(1, 1, 1, -1)
    return jnp.maximum(y, 0.0) if relu else y


def _ref_forward(enc, x):
    # Precision-matched reference: bf16 MXU operands (weights + per-layer
    # activation rounding) with f32 accumulation / bias / ReLU — same numeric
    # pipeline as the kernel, computed with XLA convs.
    r = lambda t: t.astype(jnp.bfloat16).astype(jnp.float32)
    h = _ref_conv(r(x), r(enc.w1), enc.b1, True)
    h = _ref_conv(r(h), r(enc.w2), enc.b2, True)
    return _ref_conv(r(h), r(enc.w3), enc.b3, False)


if __name__ == "__main__":
    key = jax.random.PRNGKey(0)
    kx, kp = jax.random.split(key)

    # Small shapes: batch=2, spatial=16x16, 2 input channels (flow), c=32.
    N, H, W = 2, 16, 16
    x = jax.random.normal(kx, (N, H, W, 2), jnp.float32)   # NHWC

    enc = FlowEncoderPallas(c=32, key=kp)

    # Single-tensor path (N=2 -> nb=1 image per step, grid=(2,)).
    out = jax.block_until_ready(enc(x))
    ref = jax.block_until_ready(_ref_forward(enc, x))
    assert out.shape == (N, H, W, 32), out.shape
    err = float(jnp.max(jnp.abs(out - ref)))
    assert jnp.allclose(out, ref, atol=1e-2, rtol=1e-2), err

    # List path (cat -> encode -> split), as in the PyTorch forward.
    # N=4 -> nb=2 images per grid step (rows stacked into the MXU M dim).
    outs = jax.block_until_ready(enc([x, x]))
    assert isinstance(outs, tuple) and len(outs) == 2
    assert jnp.allclose(outs[0], ref, atol=1e-2, rtol=1e-2)
    assert jnp.allclose(outs[1], ref, atol=1e-2, rtol=1e-2)

    print("KERNEL_OK")
</pallas_src>

<mosaic_0001>
module attributes {stable_mosaic.version = 11 : i64} {
  func.func @_fused_flow_encoder_kernel(%arg0: i32, %arg1: memref<1x22x44xf32, #tpu.memory_space<vmem>>, %arg2: memref<7x44x576xbf16, #tpu.memory_space<vmem>>, %arg3: memref<1x576xf32, #tpu.memory_space<vmem>>, %arg4: memref<3x576x1024xbf16, #tpu.memory_space<vmem>>, %arg5: memref<1x1024xf32, #tpu.memory_space<vmem>>, %arg6: memref<1x1024x512xbf16, #tpu.memory_space<vmem>>, %arg7: memref<1x512xf32, #tpu.memory_space<vmem>>, %arg8: memref<1x16x512xf32, #tpu.memory_space<vmem>>, %arg9: memref<1x18x576xf32, #tpu.memory_space<vmem>>) attributes {dimension_semantics = [#tpu.dimension_semantics<parallel>], iteration_bounds = array<i64: 2>, scalar_prefetch = 0 : i64, scratch_operands = 1 : i64, tpu.core_type = #tpu.core_type<tc>, window_params = [{transform_indices = @transform_0, window_bounds = array<i64: 1, 22, 44>}, {pipeline_mode = #tpu.pipeline_mode<synchronous>, transform_indices = @transform_1, window_bounds = array<i64: 7, 44, 576>}, {pipeline_mode = #tpu.pipeline_mode<synchronous>, transform_indices = @transform_2, window_bounds = array<i64: 1, 576>}, {pipeline_mode = #tpu.pipeline_mode<synchronous>, transform_indices = @transform_3, window_bounds = array<i64: 3, 576, 1024>}, {pipeline_mode = #tpu.pipeline_mode<synchronous>, transform_indices = @transform_4, window_bounds = array<i64: 1, 1024>}, {pipeline_mode = #tpu.pipeline_mode<synchronous>, transform_indices = @transform_5, window_bounds = array<i64: 1, 1024, 512>}, {pipeline_mode = #tpu.pipeline_mode<synchronous>, transform_indices = @transform_6, window_bounds = array<i64: 1, 512>}, {transform_indices = @transform_7, window_bounds = array<i64: 1, 16, 512>}]} {
    %cst = arith.constant 0.000000e+00 : f32
    %0 = vector.broadcast %cst : f32 to vector<1x1x576xf32>
    %c0 = arith.constant 0 : index
    %c0_0 = arith.constant 0 : index
    %c0_1 = arith.constant 0 : index
    %1 = vector.load %arg9[%c0, %c0_0, %c0_1] : memref<1x18x576xf32, #tpu.memory_space<vmem>>, vector<1x1x576xf32>
    tpu.vector_store %arg9[%c0, %c0_0, %c0_1], %0 {strides = array<i32>} : memref<1x18x576xf32, #tpu.memory_space<vmem>>, vector<1x1x576xf32>,
    %cst_2 = arith.constant 0.000000e+00 : f32
    %2 = vector.broadcast %cst_2 : f32 to vector<1x1x576xf32>
    %c0_3 = arith.constant 0 : index
    %c17 = arith.constant 17 : index
    %c0_4 = arith.constant 0 : index
    %3 = vector.load %arg9[%c0_3, %c17, %c0_4] : memref<1x18x576xf32, #tpu.memory_space<vmem>>, vector<1x1x576xf32>
    tpu.vector_store %arg9[%c0_3, %c17, %c0_4], %2 {strides = array<i32>} : memref<1x18x576xf32, #tpu.memory_space<vmem>>, vector<1x1x576xf32>,
    %cst_5 = arith.constant 0.000000e+00 : f32
    %4 = vector.broadcast %cst_5 : f32 to vector<16x576xf32>
    %c0_6 = arith.constant 0 : index
    %c0_7 = arith.constant 0 : index
    %c0_8 = arith.constant 0 : index
    %5 = vector.load %arg1[%c0_6, %c0_7, %c0_8] : memref<1x22x44xf32, #tpu.memory_space<vmem>>, vector<1x16x44xf32>
    %6 = vector.shape_cast %5 : vector<1x16x44xf32> to vector<16x44xf32>
    %7 = arith.truncf %6 : vector<16x44xf32> to vector<16x44xbf16>
    %c0_9 = arith.constant 0 : index
    %c0_10 = arith.constant 0 : index
    %c0_11 = arith.constant 0 : index
    %8 = vector.load %arg2[%c0_9, %c0_10, %c0_11] : memref<7x44x576xbf16, #tpu.memory_space<vmem>>, vector<1x44x576xbf16>
    %9 = vector.shape_cast %8 : vector<1x44x576xbf16> to vector<44x576xbf16>
    %cst_12 = arith.constant dense<0.000000e+00> : vector<16x576xf32>
    %10 = tpu.matmul %7, %9, %cst_12 {dimension_numbers = #tpu.dot_dimension_numbers<[1], [0], [0], [1], [0, 0, 1, 1], [], []>} : vector<16x44xbf16>, vector<44x576xbf16>, vector<16x576xf32> -> vector<16x576xf32>
    %11 = arith.addf %4, %10 : vector<16x576xf32>
    %c0_13 = arith.constant 0 : index
    %c1 = arith.constant 1 : index
    %c0_14 = arith.constant 0 : index
    %12 = vector.load %arg1[%c0_13, %c1, %c0_14] : memref<1x22x44xf32, #tpu.memory_space<vmem>>, vector<1x16x44xf32>
    %13 = vector.shape_cast %12 : vector<1x16x44xf32> to vector<16x44xf32>
    %14 = arith.truncf %13 : vector<16x44xf32> to vector<16x44xbf16>
    %c1_15 = arith.constant 1 : index
    %c0_16 = arith.constant 0 : index
    %c0_17 = arith.constant 0 : index
    %15 = vector.load %arg2[%c1_15, %c0_16, %c0_17] : memref<7x44x576xbf16, #tpu.memory_space<vmem>>, vector<1x44x576xbf16>
    %16 = vector.shape_cast %15 : vector<1x44x576xbf16> to vector<44x576xbf16>
    %cst_18 = arith.constant dense<0.000000e+00> : vector<16x576xf32>
    %17 = tpu.matmul %14, %16, %cst_18 {dimension_numbers = #tpu.dot_dimension_numbers<[1], [0], [0], [1], [0, 0, 1, 1], [], []>} : vector<16x44xbf16>, vector<44x576xbf16>, vector<16x576xf32> -> vector<16x576xf32>
    %18 = arith.addf %11, %17 : vector<16x576xf32>
    %c0_19 = arith.constant 0 : index
    %c2 = arith.constant 2 : index
    %c0_20 = arith.constant 0 : index
    %19 = vector.load %arg1[%c0_19, %c2, %c0_20] : memref<1x22x44xf32, #tpu.memory_space<vmem>>, vector<1x16x44xf32>
    %20 = vector.shape_cast %19 : vector<1x16x44xf32> to vector<16x44xf32>
    %21 = arith.truncf %20 : vector<16x44xf32> to vector<16x44xbf16>
    %c2_21 = arith.constant 2 : index
    %c0_22 = arith.constant 0 : index
    %c0_23 = arith.constant 0 : index
    %22 = vector.load %arg2[%c2_21, %c0_22, %c0_23] : memref<7x44x576xbf16, #tpu.memory_space<vmem>>, vector<1x44x576xbf16>
    %23 = vector.shape_cast %22 : vector<1x44x576xbf16> to vector<44x576xbf16>
    %cst_24 = arith.constant dense<0.000000e+00> : vector<16x576xf32>
    %24 = tpu.matmul %21, %23, %cst_24 {dimension_numbers = #tpu.dot_dimension_numbers<[1], [0], [0], [1], [0, 0, 1, 1], [], []>} : vector<16x44xbf16>, vector<44x576xbf16>, vector<16x576xf32> -> vector<16x576xf32>
    %25 = arith.addf %18, %24 : vector<16x576xf32>
    %c0_25 = arith.constant 0 : index
    %c3 = arith.constant 3 : index
    %c0_26 = arith.constant 0 : index
    %26 = vector.load %arg1[%c0_25, %c3, %c0_26] : memref<1x22x44xf32, #tpu.memory_space<vmem>>, vector<1x16x44xf32>
    %27 = vector.shape_cast %26 : vector<1x16x44xf32> to vector<16x44xf32>
    %28 = arith.truncf %27 : vector<16x44xf32> to vector<16x44xbf16>
    %c3_27 = arith.constant 3 : index
    %c0_28 = arith.constant 0 : index
    %c0_29 = arith.constant 0 : index
    %29 = vector.load %arg2[%c3_27, %c0_28, %c0_29] : memref<7x44x576xbf16, #tpu.memory_space<vmem>>, vector<1x44x576xbf16>
    %30 = vector.shape_cast %29 : vector<1x44x576xbf16> to vector<44x576xbf16>
    %cst_30 = arith.constant dense<0.000000e+00> : vector<16x576xf32>
    %31 = tpu.matmul %28, %30, %cst_30 {dimension_numbers = #tpu.dot_dimension_numbers<[1], [0], [0], [1], [0, 0, 1, 1], [], []>} : vector<16x44xbf16>, vector<44x576xbf16>, vector<16x576xf32> -> vector<16x576xf32>
    %32 = arith.addf %25, %31 : vector<16x576xf32>
    %c0_31 = arith.constant 0 : index
    %c4 = arith.constant 4 : index
    %c0_32 = arith.constant 0 : index
    %33 = vector.load %arg1[%c0_31, %c4, %c0_32] : memref<1x22x44xf32, #tpu.memory_space<vmem>>, vector<1x16x44xf32>
    %34 = vector.shape_cast %33 : vector<1x16x44xf32> to vector<16x44xf32>
    %35 = arith.truncf %34 : vector<16x44xf32> to vector<16x44xbf16>
    %c4_33 = arith.constant 4 : index
    %c0_34 = arith.constant 0 : index
    %c0_35 = arith.constant 0 : index
    %36 = vector.load %arg2[%c4_33, %c0_34, %c0_35] : memref<7x44x576xbf16, #tpu.memory_space<vmem>>, vector<1x44x576xbf16>
    %37 = vector.shape_cast %36 : vector<1x44x576xbf16> to vector<44x576xbf16>
    %cst_36 = arith.constant dense<0.000000e+00> : vector<16x576xf32>
    %38 = tpu.matmul %35, %37, %cst_36 {dimension_numbers = #tpu.dot_dimension_numbers<[1], [0], [0], [1], [0, 0, 1, 1], [], []>} : vector<16x44xbf16>, vector<44x576xbf16>, vector<16x576xf32> -> vector<16x576xf32>
    %39 = arith.addf %32, %38 : vector<16x576xf32>
    %c0_37 = arith.constant 0 : index
    %c5 = arith.constant 5 : index
    %c0_38 = arith.constant 0 : index
    %40 = vector.load %arg1[%c0_37, %c5, %c0_38] : memref<1x22x44xf32, #tpu.memory_space<vmem>>, vector<1x16x44xf32>
    %41 = vector.shape_cast %40 : vector<1x16x44xf32> to vector<16x44xf32>
    %42 = arith.truncf %41 : vector<16x44xf32> to vector<16x44xbf16>
    %c5_39 = arith.constant 5 : index
    %c0_40 = arith.constant 0 : index
    %c0_41 = arith.constant 0 : index
    %43 = vector.load %arg2[%c5_39, %c0_40, %c0_41] : memref<7x44x576xbf16, #tpu.memory_space<vmem>>, vector<1x44x576xbf16>
    %44 = vector.shape_cast %43 : vector<1x44x576xbf16> to vector<44x576xbf16>
    %cst_42 = arith.constant dense<0.000000e+00> : vector<16x576xf32>
    %45 = tpu.matmul %42, %44, %cst_42 {dimension_numbers = #tpu.dot_dimension_numbers<[1], [0], [0], [1], [0, 0, 1, 1], [], []>} : vector<16x44xbf16>, vector<44x576xbf16>, vector<16x576xf32> -> vector<16x576xf32>
    %46 = arith.addf %39, %45 : vector<16x576xf32>
    %c0_43 = arith.constant 0 : index
    %c6 = arith.constant 6 : index
    %c0_44 = arith.constant 0 : index
    %47 = vector.load %arg1[%c0_43, %c6, %c0_44] : memref<1x22x44xf32, #tpu.memory_space<vmem>>, vector<1x16x44xf32>
    %48 = vector.shape_cast %47 : vector<1x16x44xf32> to vector<16x44xf32>
    %49 = arith.truncf %48 : vector<16x44xf32> to vector<16x44xbf16>
    %c6_45 = arith.constant 6 : index
    %c0_46 = arith.constant 0 : index
    %c0_47 = arith.constant 0 : index
    %50 = vector.load %arg2[%c6_45, %c0_46, %c0_47] : memref<7x44x576xbf16, #tpu.memory_space<vmem>>, vector<1x44x576xbf16>
    %51 = vector.shape_cast %50 : vector<1x44x576xbf16> to vector<44x576xbf16>
    %cst_48 = arith.constant dense<0.000000e+00> : vector<16x576xf32>
    %52 = tpu.matmul %49, %51, %cst_48 {dimension_numbers = #tpu.dot_dimension_numbers<[1], [0], [0], [1], [0, 0, 1, 1], [], []>} : vector<16x44xbf16>, vector<44x576xbf16>, vector<16x576xf32> -> vector<16x576xf32>
    %53 = arith.addf %46, %52 : vector<16x576xf32>
    %c0_49 = arith.constant 0 : index
    %c0_50 = arith.constant 0 : index
    %54 = vector.load %arg3[%c0_49, %c0_50] : memref<1x576xf32, #tpu.memory_space<vmem>>, vector<1x576xf32>
    %55 = vector.broadcast %54 : vector<1x576xf32> to vector<16x576xf32>
    %56 = arith.addf %53, %55 : vector<16x576xf32>
    %cst_51 = arith.constant 0.000000e+00 : f32
    %57 = vector.broadcast %cst_51 : f32 to vector<16x576xf32>
    %58 = arith.maximumf %56, %57 : vector<16x576xf32>
    %59 = vector.shape_cast %58 : vector<16x576xf32> to vector<1x16x576xf32>
    %c0_52 = arith.constant 0 : index
    %c1_53 = arith.constant 1 : index
    %c0_54 = arith.constant 0 : index
    %60 = vector.load %arg9[%c0_52, %c1_53, %c0_54] : memref<1x18x576xf32, #tpu.memory_space<vmem>>, vector<1x16x576xf32>
    tpu.vector_store %arg9[%c0_52, %c1_53, %c0_54], %59 {strides = array<i32>} : memref<1x18x576xf32, #tpu.memory_space<vmem>>, vector<1x16x576xf32>,
    %cst_55 = arith.constant 0.000000e+00 : f32
    %61 = vector.broadcast %cst_55 : f32 to vector<16x1024xf32>
    %c0_56 = arith.constant 0 : index
    %c0_57 = arith.constant 0 : index
    %c0_58 = arith.constant 0 : index
    %62 = vector.load %arg9[%c0_56, %c0_57, %c0_58] : memref<1x18x576xf32, #tpu.memory_space<vmem>>, vector<1x16x576xf32>
    %63 = vector.shape_cast %62 : vector<1x16x576xf32> to vector<16x576xf32>
    %64 = arith.truncf %63 : vector<16x576xf32> to vector<16x576xbf16>
    %c0_59 = arith.constant 0 : index
    %c0_60 = arith.constant 0 : index
    %c0_61 = arith.constant 0 : index
    %65 = vector.load %arg4[%c0_59, %c0_60, %c0_61] : memref<3x576x1024xbf16, #tpu.memory_space<vmem>>, vector<1x576x1024xbf16>
    %66 = vector.shape_cast %65 : vector<1x576x1024xbf16> to vector<576x1024xbf16>
    %cst_62 = arith.constant dense<0.000000e+00> : vector<16x1024xf32>
    %67 = tpu.matmul %64, %66, %cst_62 {dimension_numbers = #tpu.dot_dimension_numbers<[1], [0], [0], [1], [0, 0, 1, 1], [], []>} : vector<16x576xbf16>, vector<576x1024xbf16>, vector<16x1024xf32> -> vector<16x1024xf32>
    %68 = arith.addf %61, %67 : vector<16x1024xf32>
    %c0_63 = arith.constant 0 : index
    %c1_64 = arith.constant 1 : index
    %c0_65 = arith.constant 0 : index
    %69 = vector.load %arg9[%c0_63, %c1_64, %c0_65] : memref<1x18x576xf32, #tpu.memory_space<vmem>>, vector<1x16x576xf32>
    %70 = vector.shape_cast %69 : vector<1x16x576xf32> to vector<16x576xf32>
    %71 = arith.truncf %70 : vector<16x576xf32> to vector<16x576xbf16>
    %c1_66 = arith.constant 1 : index
    %c0_67 = arith.constant 0 : index
    %c0_68 = arith.constant 0 : index
    %72 = vector.load %arg4[%c1_66, %c0_67, %c0_68] : memref<3x576x1024xbf16, #tpu.memory_space<vmem>>, vector<1x576x1024xbf16>
    %73 = vector.shape_cast %72 : vector<1x576x1024xbf16> to vector<576x1024xbf16>
    %cst_69 = arith.constant dense<0.000000e+00> : vector<16x1024xf32>
    %74 = tpu.matmul %71, %73, %cst_69 {dimension_numbers = #tpu.dot_dimension_numbers<[1], [0], [0], [1], [0, 0, 1, 1], [], []>} : vector<16x576xbf16>, vector<576x1024xbf16>, vector<16x1024xf32> -> vector<16x1024xf32>
    %75 = arith.addf %68, %74 : vector<16x1024xf32>
    %c0_70 = arith.constant 0 : index
    %c2_71 = arith.constant 2 : index
    %c0_72 = arith.constant 0 : index
    %76 = vector.load %arg9[%c0_70, %c2_71, %c0_72] : memref<1x18x576xf32, #tpu.memory_space<vmem>>, vector<1x16x576xf32>
    %77 = vector.shape_cast %76 : vector<1x16x576xf32> to vector<16x576xf32>
    %78 = arith.truncf %77 : vector<16x576xf32> to vector<16x576xbf16>
    %c2_73 = arith.constant 2 : index
    %c0_74 = arith.constant 0 : index
    %c0_75 = arith.constant 0 : index
    %79 = vector.load %arg4[%c2_73, %c0_74, %c0_75] : memref<3x576x1024xbf16, #tpu.memory_space<vmem>>, vector<1x576x1024xbf16>
    %80 = vector.shape_cast %79 : vector<1x576x1024xbf16> to vector<576x1024xbf16>
    %cst_76 = arith.constant dense<0.000000e+00> : vector<16x1024xf32>
    %81 = tpu.matmul %78, %80, %cst_76 {dimension_numbers = #tpu.dot_dimension_numbers<[1], [0], [0], [1], [0, 0, 1, 1], [], []>} : vector<16x576xbf16>, vector<576x1024xbf16>, vector<16x1024xf32> -> vector<16x1024xf32>
    %82 = arith.addf %75, %81 : vector<16x1024xf32>
    %c0_77 = arith.constant 0 : index
    %c0_78 = arith.constant 0 : index
    %83 = vector.load %arg5[%c0_77, %c0_78] : memref<1x1024xf32, #tpu.memory_space<vmem>>, vector<1x1024xf32>
    %84 = vector.broadcast %83 : vector<1x1024xf32> to vector<16x1024xf32>
    %85 = arith.addf %82, %84 : vector<16x1024xf32>
    %cst_79 = arith.constant 0.000000e+00 : f32
    %86 = vector.broadcast %cst_79 : f32 to vector<16x1024xf32>
    %87 = arith.maximumf %85, %86 : vector<16x1024xf32>
    %88 = arith.truncf %87 : vector<16x1024xf32> to vector<16x1024xbf16>
    %c0_80 = arith.constant 0 : index
    %c0_81 = arith.constant 0 : index
    %c0_82 = arith.constant 0 : index
    %89 = vector.load %arg6[%c0_80, %c0_81, %c0_82] : memref<1x1024x512xbf16, #tpu.memory_space<vmem>>, vector<1x1024x512xbf16>
    %90 = vector.shape_cast %89 : vector<1x1024x512xbf16> to vector<1024x512xbf16>
    %cst_83 = arith.constant dense<0.000000e+00> : vector<16x512xf32>
    %91 = tpu.matmul %88, %90, %cst_83 {dimension_numbers = #tpu.dot_dimension_numbers<[1], [0], [0], [1], [0, 0, 1, 1], [], []>} : vector<16x1024xbf16>, vector<1024x512xbf16>, vector<16x512xf32> -> vector<16x512xf32>
    %c0_84 = arith.constant 0 : index
    %c0_85 = arith.constant 0 : index
    %92 = vector.load %arg7[%c0_84, %c0_85] : memref<1x512xf32, #tpu.memory_space<vmem>>, vector<1x512xf32>
    %93 = vector.broadcast %92 : vector<1x512xf32> to vector<16x512xf32>
    %94 = arith.addf %91, %93 : vector<16x512xf32>
    %95 = vector.shape_cast %94 : vector<16x512xf32> to vector<1x16x512xf32>
    %c0_86 = arith.constant 0 : index
    %c0_87 = arith.constant 0 : index
    %c0_88 = arith.constant 0 : index
    %96 = vector.load %arg8[%c0_86, %c0_87, %c0_88] : memref<1x16x512xf32, #tpu.memory_space<vmem>>, vector<1x16x512xf32>
    tpu.vector_store %arg8[%c0_86, %c0_87, %c0_88], %95 {strides = array<i32>} : memref<1x16x512xf32, #tpu.memory_space<vmem>>, vector<1x16x512xf32>,
    return
  }
  func.func @transform_0(%arg0: i32) -> (i32, i32, i32) {
    %c0_i32 = arith.constant 0 : i32
    %c0_i32_0 = arith.constant 0 : i32
    %c0_i32_1 = arith.constant 0 : i32
    return %arg0, %c0_i32, %c0_i32_0 : i32, i32, i32
  }
  func.func @transform_1(%arg0: i32) -> (i32, i32, i32) {
    %c0_i32 = arith.constant 0 : i32
    %c0_i32_0 = arith.constant 0 : i32
    %c0_i32_1 = arith.constant 0 : i32
    %c0_i32_2 = arith.constant 0 : i32
    return %c0_i32, %c0_i32_0, %c0_i32_1 : i32, i32, i32
  }
  func.func @transform_2(%arg0: i32) -> (i32, i32) {
    %c0_i32 = arith.constant 0 : i32
    %c0_i32_0 = arith.constant 0 : i32
    %c0_i32_1 = arith.constant 0 : i32
    return %c0_i32, %c0_i32_0 : i32, i32
  }
  func.func @transform_3(%arg0: i32) -> (i32, i32, i32) {
    %c0_i32 = arith.constant 0 : i32
    %c0_i32_0 = arith.constant 0 : i32
    %c0_i32_1 = arith.constant 0 : i32
    %c0_i32_2 = arith.constant 0 : i32
    return %c0_i32, %c0_i32_0, %c0_i32_1 : i32, i32, i32
  }
  func.func @transform_4(%arg0: i32) -> (i32, i32) {
    %c0_i32 = arith.constant 0 : i32
    %c0_i32_0 = arith.constant 0 : i32
    %c0_i32_1 = arith.constant 0 : i32
    return %c0_i32, %c0_i32_0 : i32, i32
  }
  func.func @transform_5(%arg0: i32) -> (i32, i32, i32) {
    %c0_i32 = arith.constant 0 : i32
    %c0_i32_0 = arith.constant 0 : i32
    %c0_i32_1 = arith.constant 0 : i32
    %c0_i32_2 = arith.constant 0 : i32
    return %c0_i32, %c0_i32_0, %c0_i32_1 : i32, i32, i32
  }
  func.func @transform_6(%arg0: i32) -> (i32, i32) {
    %c0_i32 = arith.constant 0 : i32
    %c0_i32_0 = arith.constant 0 : i32
    %c0_i32_1 = arith.constant 0 : i32
    return %c0_i32, %c0_i32_0 : i32, i32
  }
  func.func @transform_7(%arg0: i32) -> (i32, i32, i32) {
    %c0_i32 = arith.constant 0 : i32
    %c0_i32_0 = arith.constant 0 : i32
    %c0_i32_1 = arith.constant 0 : i32
    return %arg0, %c0_i32, %c0_i32_0 : i32, i32, i32
  }
}

</mosaic_0001>

<llo_original>
// kernel: _flow_encoder_forward.1
$region0: #{_flow_encoder_forward.1}
  #allocation0 [shape = 'u32[]', space=smem, size = 0x4, offset = 0x4, fixed_abs, tag = 'smem constant byte address 0x4 - core index']
  #allocation1 [shape = 'u32[144,128]{1,0:T(1,128)}', space=vmem, size = 0x12000, scoped, tag = 'internal scratch']
  #allocation2 [shape = 'f32[1,18,576]{2,1,0:T(8,128)}', space=vmem, size = 0xf000, scoped, tag = 'scratch operand']
  %s0 = inlined_call_operand.vmem [shape: f32[2,22,44], index: 0, kind: input, shape index: {}]
  %s1 = inlined_call_operand.hbm [shape: bf16[7,44,576], index: 1, kind: input, shape index: {}]
  %s2 = inlined_call_operand.hbm [shape: f32[1,576], index: 2, kind: input, shape index: {}]
  %s3 = inlined_call_operand.hbm [shape: bf16[3,576,1024], index: 3, kind: input, shape index: {}]
  %s4 = inlined_call_operand.hbm [shape: f32[1,1024], index: 4, kind: input, shape index: {}]
  %s5 = inlined_call_operand.hbm [shape: bf16[1,1024,512], index: 5, kind: input, shape index: {}]
  %s6 = inlined_call_operand.hbm [shape: f32[1,512], index: 6, kind: input, shape index: {}]
  %s7 = inlined_call_operand.vmem [shape: f32[2,16,512], index: 7, kind: output, shape index: {}]
  %s8 = sld [smem:[#allocation0]]
  $region85: #{_flow_encoder_forward.1} parent=0
    _
  %s10 = ssub.s32 1, %s8
  %s11 = scalar_select 0, %s10, %s8
  $region1: #{_flow_encoder_forward.1} parent=0
    #allocation3 [shape = 'u8[430080]{0}', space=vmem, size = 0x69000, scoped, tag = 'input window, operand 1, single buffered']
    #allocation4 [shape = 's32[2]{0}', space=sflag, size = 0x8, scoped, tag = 'scoped memory for _flow_encoder_forward.1']
    #allocation5 [shape = 'u8[2560]{0}', space=vmem, size = 0xc00, scoped, tag = 'input window, operand 2, single buffered']
    #allocation6 [shape = 's32[1]{0}', space=sflag, size = 0x4, scoped, tag = 'scoped memory for _flow_encoder_forward.1']
    #allocation7 [shape = 'u8[3538944]{0}', space=vmem, size = 0x360000, scoped, tag = 'input window, operand 3, single buffered']
    #allocation8 [shape = 'u8[4096]{0}', space=vmem, size = 0x1000, scoped, tag = 'input window, operand 4, single buffered']
    #allocation9 [shape = 's32[1]{0}', space=sflag, size = 0x4, scoped, tag = 'scoped memory for _flow_encoder_forward.1']
    #allocation10 [shape = 'u8[1048576]{0}', space=vmem, size = 0x100000, scoped, tag = 'input window, operand 5, single buffered']
    #allocation11 [shape = 'u8[2048]{0}', space=vmem, size = 0x800, scoped, tag = 'input window, operand 6, single buffered']
    #allocation12 [shape = 's32[1]{0}', space=sflag, size = 0x4, scoped, tag = 'scoped memory for _flow_encoder_forward.1']
    %12 = vsyncpa [#allocation4], 0
    %13 = vsyncpa [#allocation6], 0
    %14 = vsyncpa [#allocation9], 0
    %15 = vsyncpa [#allocation12], 0
    loop: start=0, step=1, limit=4
    $region2: #{_flow_encoder_forward.1} parent=1 // loop_pre_header
      _
    $region3: #{_flow_encoder_forward.1} parent=1 // loop_header
      %s17 = sphi 0, %s21
      %p18 = scmp.ge.s32.totalorder %s17, 4
      %s27 = sphi 0, %s29
      %s30 = sphi 0, %s27
      %s31 = sphi 0, %s30
      %s47 = sphi 0, %s31
      %s51 = sphi 0, %s51
      %s53 = sphi 0, %s51
      %s54 = sphi 0, %s53
      %s68 = sphi 0, %s54
      %s72 = sphi 0, %s72
      %s74 = sphi 0, %s72
      %s75 = sphi 0, %s74
      %s89 = sphi 0, %s75
      %s93 = sphi 0, %s93
      %s95 = sphi 0, %s93
      %s96 = sphi 0, %s95
      %s110 = sphi 0, %s96
      %s114 = sphi 0, %s114
      %s116 = sphi 0, %s114
      %s117 = sphi 0, %s116
      %s131 = sphi 0, %s117
      %s135 = sphi 0, %s135
      %s137 = sphi 0, %s135
      %s138 = sphi 0, %s137
      %s152 = sphi 0, %s138
      %s156 = sphi 0, %s156
      %s158 = sphi 0, %s156
      %s159 = sphi 0, %s158
      %s173 = sphi 0, %s159
      %s179 = sphi 0, %s181
      %s182 = sphi 0, %s179
      %s183 = sphi 0, %s182
      %s199 = sphi 0, %s183
    $region4: #{_flow_encoder_forward.1} parent=1 // loop_header_branch
      %20 = sbr.rel (%p18) target = $region8
    $region5: #{_flow_encoder_forward.1} parent=1 // loop_body
      %s22 = ssub.s32 %s17, 1
      %s23 = ssub.s32 %s17, 2
      %s24 = sadd.s32 %s17, 1
      %s25 = ssub.s32 %s17, %s24
      %p26 = scmp.eq.s32.totalorder %s25, 0
      %s28 = sadd.s32 %s27, 1
      %s29 = scalar_select %p26, %s27, %s28
      %p32 = pneg %p26
      %p33 = scmp.eq.s32.totalorder %s17, 1
      %p34 = por %p32, %p33
      %p35 = scmp.ne.s32.totalorder %s27, %s30
      %p36 = scmp.eq.s32.totalorder %s17, 0
      %p37 = por %p35, %p36
      %p38 = scmp.ne.s32.totalorder %s27, %s30
      %p39 = scmp.eq.s32.totalorder %s22, 1
      %p40 = por %p38, %p39
      %p41 = scmp.ne.s32.totalorder %s30, %s31
      %p42 = scmp.eq.s32.totalorder %s22, 0
      %p43 = por %p41, %p42
      %p44 = scmp.ne.s32.totalorder %s30, %s31
      %p45 = scmp.eq.s32.totalorder %s23, 1
      %p46 = por %p44, %p45
      %p48 = scmp.ne.s32.totalorder %s31, %s47
      %p49 = scmp.eq.s32.totalorder %s23, 0
      %p50 = por %p48, %p49
      %s52 = sadd.s32 %s51, 1
      %p55 = scmp.eq.s32.totalorder %s17, 1
      %p56 = scmp.ne.s32.totalorder %s51, %s53
      %p57 = scmp.eq.s32.totalorder %s17, 0
      %p58 = por %p56, %p57
      %p59 = scmp.ne.s32.totalorder %s51, %s53
      %p60 = scmp.eq.s32.totalorder %s22, 1
      %p61 = por %p59, %p60
      %p62 = scmp.ne.s32.totalorder %s53, %s54
      %p63 = scmp.eq.s32.totalorder %s22, 0
      %p64 = por %p62, %p63
      %p65 = scmp.ne.s32.totalorder %s53, %s54
      %p66 = scmp.eq.s32.totalorder %s23, 1
      %p67 = por %p65, %p66
      %p69 = scmp.ne.s32.totalorder %s54, %s68
      %p70 = scmp.eq.s32.totalorder %s23, 0
      %p71 = por %p69, %p70
      %s73 = sadd.s32 %s72, 1
      %p76 = scmp.eq.s32.totalorder %s17, 1
      %p77 = scmp.ne.s32.totalorder %s72, %s74
      %p78 = scmp.eq.s32.totalorder %s17, 0
      %p79 = por %p77, %p78
      %p80 = scmp.ne.s32.totalorder %s72, %s74
      %p81 = scmp.eq.s32.totalorder %s22, 1
      %p82 = por %p80, %p81
      %p83 = scmp.ne.s32.totalorder %s74, %s75
      %p84 = scmp.eq.s32.totalorder %s22, 0
      %p85 = por %p83, %p84
      %p86 = scmp.ne.s32.totalorder %s74, %s75
      %p87 = scmp.eq.s32.totalorder %s23, 1
      %p88 = por %p86, %p87
      %p90 = scmp.ne.s32.totalorder %s75, %s89
      %p91 = scmp.eq.s32.totalorder %s23, 0
      %p92 = por %p90, %p91
      %s94 = sadd.s32 %s93, 1
      %p97 = scmp.eq.s32.totalorder %s17, 1
      %p98 = scmp.ne.s32.totalorder %s93, %s95
      %p99 = scmp.eq.s32.totalorder %s17, 0
      %p100 = por %p98, %p99
      %p101 = scmp.ne.s32.totalorder %s93, %s95
      %p102 = scmp.eq.s32.totalorder %s22, 1
      %p103 = por %p101, %p102
      %p104 = scmp.ne.s32.totalorder %s95, %s96
      %p105 = scmp.eq.s32.totalorder %s22, 0
      %p106 = por %p104, %p105
      %p107 = scmp.ne.s32.totalorder %s95, %s96
      %p108 = scmp.eq.s32.totalorder %s23, 1
      %p109 = por %p107, %p108
      %p111 = scmp.ne.s32.totalorder %s96, %s110
      %p112 = scmp.eq.s32.totalorder %s23, 0
      %p113 = por %p111, %p112
      %s115 = sadd.s32 %s114, 1
      %p118 = scmp.eq.s32.totalorder %s17, 1
      %p119 = scmp.ne.s32.totalorder %s114, %s116
      %p120 = scmp.eq.s32.totalorder %s17, 0
      %p121 = por %p119, %p120
      %p122 = scmp.ne.s32.totalorder %s114, %s116
      %p123 = scmp.eq.s32.totalorder %s22, 1
      %p124 = por %p122, %p123
      %p125 = scmp.ne.s32.totalorder %s116, %s117
      %p126 = scmp.eq.s32.totalorder %s22, 0
      %p127 = por %p125, %p126
      %p128 = scmp.ne.s32.totalorder %s116, %s117
      %p129 = scmp.eq.s32.totalorder %s23, 1
      %p130 = por %p128, %p129
      %p132 = scmp.ne.s32.totalorder %s117, %s131
      %p133 = scmp.eq.s32.totalorder %s23, 0
      %p134 = por %p132, %p133
      %s136 = sadd.s32 %s135, 1
      %p139 = scmp.eq.s32.totalorder %s17, 1
      %p140 = scmp.ne.s32.totalorder %s135, %s137
      %p141 = scmp.eq.s32.totalorder %s17, 0
      %p142 = por %p140, %p141
      %p143 = scmp.ne.s32.totalorder %s135, %s137
      %p144 = scmp.eq.s32.totalorder %s22, 1
      %p145 = por %p143, %p144
      %p146 = scmp.ne.s32.totalorder %s137, %s138
      %p147 = scmp.eq.s32.totalorder %s22, 0
      %p148 = por %p146, %p147
      %p149 = scmp.ne.s32.totalorder %s137, %s138
      %p150 = scmp.eq.s32.totalorder %s23, 1
      %p151 = por %p149, %p150
      %p153 = scmp.ne.s32.totalorder %s138, %s152
      %p154 = scmp.eq.s32.totalorder %s23, 0
      %p155 = por %p153, %p154
      %s157 = sadd.s32 %s156, 1
      %p160 = scmp.eq.s32.totalorder %s17, 1
      %p161 = scmp.ne.s32.totalorder %s156, %s158
      %p162 = scmp.eq.s32.totalorder %s17, 0
      %p163 = por %p161, %p162
      %p164 = scmp.ne.s32.totalorder %s156, %s158
      %p165 = scmp.eq.s32.totalorder %s22, 1
      %p166 = por %p164, %p165
      %p167 = scmp.ne.s32.totalorder %s158, %s159
      %p168 = scmp.eq.s32.totalorder %s22, 0
      %p169 = por %p167, %p168
      %p170 = scmp.ne.s32.totalorder %s158, %s159
      %p171 = scmp.eq.s32.totalorder %s23, 1
      %p172 = por %p170, %p171
      %p174 = scmp.ne.s32.totalorder %s159, %s173
      %p175 = scmp.eq.s32.totalorder %s23, 0
      %p176 = por %p174, %p175
      %s177 = ssub.s32 %s17, %s24
      %p178 = scmp.eq.s32.totalorder %s177, 0
      %s180 = sadd.s32 %s179, 1
      %s181 = scalar_select %p178, %s179, %s180
      %p184 = pneg %p178
      %p185 = scmp.eq.s32.totalorder %s17, 1
      %p186 = por %p184, %p185
      %p187 = scmp.ne.s32.totalorder %s179, %s182
      %p188 = scmp.eq.s32.totalorder %s17, 0
      %p189 = por %p187, %p188
      %p190 = scmp.ne.s32.totalorder %s179, %s182
      %p191 = scmp.eq.s32.totalorder %s22, 1
      %p192 = por %p190, %p191
      %p193 = scmp.ne.s32.totalorder %s182, %s183
      %p194 = scmp.eq.s32.totalorder %s22, 0
      %p195 = por %p193, %p194
      %p196 = scmp.ne.s32.totalorder %s182, %s183
      %p197 = scmp.eq.s32.totalorder %s23, 1
      %p198 = por %p196, %p197
      %p200 = scmp.ne.s32.totalorder %s183, %s199
      %p201 = scmp.eq.s32.totalorder %s23, 0
      %p202 = por %p200, %p201
      %p203 = scmp.le.s32.totalorder 1, %s17
      %p204 = scmp.lt.s32.totalorder %s17, 3
      %p205 = pnand %p203, %p204
      %p206 = pneg %p205
      // Predicated region
      $region9: #{_flow_encoder_forward.1} parent=5 // pred_check
        _
      $region10: #{_flow_encoder_forward.1} parent=5 // pred_check_branch
        %208 = sbr.rel (%p205) target = $region12
      $region11: #{_flow_encoder_forward.1} parent=5 // pred_region
        %s209 = ssub.s32 %s17, 1
        // Predicated region
        $region13: #{_flow_encoder_forward.1} parent=11 // pred_check
          %p210 = pneg %p64
        $region14: #{_flow_encoder_forward.1} parent=11 // pred_check_branch
          %212 = sbr.rel (%p210) target = $region16
        $region15: #{_flow_encoder_forward.1} parent=11 // pred_region
          %s214 = ssub.s32 13440, 13440
          %215 = vsyncadd [#allocation4], %s214
          %s216 = sshll.u32 [#allocation3], 4
          %s217 = int_to_ptr.vmem [resolvable:$true] %s216
          %222 = dma.hbm_to_vmem [thread:$0]  %s1, 13440, %s217, [#allocation4], 320, 320, 20
        $region16: #{_flow_encoder_forward.1} parent=11 // pred_fallthru
          _
        // Predicated region
        $region17: #{_flow_encoder_forward.1} parent=11 // pred_check
          %p223 = pneg %p85
        $region18: #{_flow_encoder_forward.1} parent=11 // pred_check_branch
          %225 = sbr.rel (%p223) target = $region20
        $region19: #{_flow_encoder_forward.1} parent=11 // pred_region
          %s227 = ssub.s32 80, 80
          %228 = vsyncadd [#allocation6], %s227
          %s230 = sshll.u32 [#allocation5], 4
          %s231 = int_to_ptr.vmem [resolvable:$true] %s230
          %233 = dma.hbm_to_vmem [thread:$0]  %s2, 80, %s231, [#allocation6]
        $region20: #{_flow_encoder_forward.1} parent=11 // pred_fallthru
          _
        // Predicated region
        $region21: #{_flow_encoder_forward.1} parent=11 // pred_check
          %p234 = pneg %p106
        $region22: #{_flow_encoder_forward.1} parent=11 // pred_check_branch
          %236 = sbr.rel (%p234) target = $region24
        $region23: #{_flow_encoder_forward.1} parent=11 // pred_region
          %s238 = ssub.s32 110592, 110592
          %239 = vsyncadd [#allocation6], %s238
          %s240 = sshll.u32 [#allocation7], 4
          %s241 = int_to_ptr.vmem [resolvable:$true] %s240
          %246 = dma.hbm_to_vmem [thread:$0]  %s3, 110592, %s241, [#allocation6], 512, 512, 32
        $region24: #{_flow_encoder_forward.1} parent=11 // pred_fallthru
          _
        // Predicated region
        $region25: #{_flow_encoder_forward.1} parent=11 // pred_check
          %p247 = pneg %p127
        $region26: #{_flow_encoder_forward.1} parent=11 // pred_check_branch
          %249 = sbr.rel (%p247) target = $region28
        $region27: #{_flow_encoder_forward.1} parent=11 // pred_region
          %s251 = ssub.s32 128, 128
          %252 = vsyncadd [#allocation9], %s251
          %s254 = sshll.u32 [#allocation8], 4
          %s255 = int_to_ptr.vmem [resolvable:$true] %s254
          %257 = dma.hbm_to_vmem [thread:$0]  %s4, 128, %s255, [#allocation9]
        $region28: #{_flow_encoder_forward.1} parent=11 // pred_fallthru
          _
        // Predicated region
        $region29: #{_flow_encoder_forward.1} parent=11 // pred_check
          %p258 = pneg %p148
        $region30: #{_flow_encoder_forward.1} parent=11 // pred_check_branch
          %260 = sbr.rel (%p258) target = $region32
        $region31: #{_flow_encoder_forward.1} parent=11 // pred_region
          %s262 = ssub.s32 32768, 32768
          %263 = vsyncadd [#allocation9], %s262
          %s264 = sshll.u32 [#allocation10], 4
          %s265 = int_to_ptr.vmem [resolvable:$true] %s264
          %270 = dma.hbm_to_vmem [thread:$0]  %s5, 32768, %s265, [#allocation9], 256, 256, 16
        $region32: #{_flow_encoder_forward.1} parent=11 // pred_fallthru
          _
        // Predicated region
        $region33: #{_flow_encoder_forward.1} parent=11 // pred_check
          %p271 = pneg %p169
        $region34: #{_flow_encoder_forward.1} parent=11 // pred_check_branch
          %273 = sbr.rel (%p271) target = $region36
        $region35: #{_flow_encoder_forward.1} parent=11 // pred_region
          %s275 = ssub.s32 64, 64
          %276 = vsyncadd [#allocation12], %s275
          %s278 = sshll.u32 [#allocation11], 4
          %s279 = int_to_ptr.vmem [resolvable:$true] %s278
          %281 = dma.hbm_to_vmem [thread:$0]  %s6, 64, %s279, [#allocation12]
        $region36: #{_flow_encoder_forward.1} parent=11 // pred_fallthru
          _
      $region12: #{_flow_encoder_forward.1} parent=5 // pred_fallthru
        _
      %p282 = scmp.lt.s32.totalorder %s17, 2
      // Predicated region
      $region37: #{_flow_encoder_forward.1} parent=5 // pred_check
        %p283 = pneg %p282
      $region38: #{_flow_encoder_forward.1} parent=5 // pred_check_branch
        %285 = sbr.rel (%p283) target = $region40
      $region39: #{_flow_encoder_forward.1} parent=5 // pred_region
        // Predicated region
        $region41: #{_flow_encoder_forward.1} parent=39 // pred_check
          %p286 = pneg %p37
        $region42: #{_flow_encoder_forward.1} parent=39 // pred_check_branch
          %288 = sbr.rel (%p286) target = $region44
        $region43: #{_flow_encoder_forward.1} parent=39 // pred_region
          %p289 = scmp.lt.s32.totalorder %s17, 1
          %s290 = scalar_select %p289, %s17, 1
          %s291 = smul.addr %s290, 3
          %s292 = smul.addr %s291, 8
          %s293 = scalar_lea.vmem %s0, %s292
        $region44: #{_flow_encoder_forward.1} parent=39 // pred_fallthru
          _
      $region40: #{_flow_encoder_forward.1} parent=5 // pred_fallthru
        _
      %p294 = scmp.le.s32.totalorder 1, %s17
      %p295 = scmp.lt.s32.totalorder %s17, 3
      %p296 = pnand %p294, %p295
      %p297 = pneg %p296
      // Predicated region
      $region45: #{_flow_encoder_forward.1} parent=5 // pred_check
        _
      $region46: #{_flow_encoder_forward.1} parent=5 // pred_check_branch
        %299 = sbr.rel (%p296) target = $region48
      $region47: #{_flow_encoder_forward.1} parent=5 // pred_region
        %s300 = ssub.s32 %s17, 1
        // Predicated region
        $region49: #{_flow_encoder_forward.1} parent=47 // pred_check
          %p301 = pneg %p64
        $region50: #{_flow_encoder_forward.1} parent=47 // pred_check_branch
          %303 = sbr.rel (%p301) target = $region52
        $region51: #{_flow_encoder_forward.1} parent=47 // pred_region
          %304 = dma.done [#allocation4], 13440
        $region52: #{_flow_encoder_forward.1} parent=47 // pred_fallthru
          _
        // Predicated region
        $region53: #{_flow_encoder_forward.1} parent=47 // pred_check
          %p305 = pneg %p85
        $region54: #{_flow_encoder_forward.1} parent=47 // pred_check_branch
          %307 = sbr.rel (%p305) target = $region56
        $region55: #{_flow_encoder_forward.1} parent=47 // pred_region
          %308 = dma.done [#allocation6], 80
        $region56: #{_flow_encoder_forward.1} parent=47 // pred_fallthru
          _
        // Predicated region
        $region57: #{_flow_encoder_forward.1} parent=47 // pred_check
          %p309 = pneg %p106
        $region58: #{_flow_encoder_forward.1} parent=47 // pred_check_branch
          %311 = sbr.rel (%p309) target = $region60
        $region59: #{_flow_encoder_forward.1} parent=47 // pred_region
          %312 = dma.done [#allocation6], 110592
        $region60: #{_flow_encoder_forward.1} parent=47 // pred_fallthru
          _
        // Predicated region
        $region61: #{_flow_encoder_forward.1} parent=47 // pred_check
          %p313 = pneg %p127
        $region62: #{_flow_encoder_forward.1} parent=47 // pred_check_branch
          %315 = sbr.rel (%p313) target = $region64
        $region63: #{_flow_encoder_forward.1} parent=47 // pred_region
          %316 = dma.done [#allocation9], 128
        $region64: #{_flow_encoder_forward.1} parent=47 // pred_fallthru
          _
        // Predicated region
        $region65: #{_flow_encoder_forward.1} parent=47 // pred_check
          %p317 = pneg %p148
        $region66: #{_flow_encoder_forward.1} parent=47 // pred_check_branch
          %319 = sbr.rel (%p317) target = $region68
        $region67: #{_flow_encoder_forward.1} parent=47 // pred_region
          %320 = dma.done [#allocation9], 32768
        $region68: #{_flow_encoder_forward.1} parent=47 // pred_fallthru
          _
        // Predicated region
        $region69: #{_flow_encoder_forward.1} parent=47 // pred_check
          %p321 = pneg %p169
        $region70: #{_flow_encoder_forward.1} parent=47 // pred_check_branch
          %323 = sbr.rel (%p321) target = $region72
        $region71: #{_flow_encoder_forward.1} parent=47 // pred_region
          %324 = dma.done [#allocation12], 64
        $region72: #{_flow_encoder_forward.1} parent=47 // pred_fallthru
          _
        %p325 = scmp.lt.s32.totalorder %s22, 1
        %s326 = scalar_select %p325, %s22, 1
        %s327 = smul.addr %s326, 3
        %s328 = smul.addr %s327, 8
        %s329 = scalar_lea.vmem %s0, %s328
        %p330 = pneg %p43
        %p331 = pneg %p40
        %p332 = pneg %p64
        %p333 = pneg %p61
        %p334 = pneg %p85
        %p335 = pneg %p82
        %p336 = pneg %p106
        %p337 = pneg %p103
        %p338 = pneg %p127
        %p339 = pneg %p124
        %p340 = pneg %p148
        %p341 = pneg %p145
        %p342 = pneg %p169
        %p343 = pneg %p166
        %p344 = pneg %p195
        %p345 = pneg %p192
        %p346 = scmp.lt.s32.totalorder %s22, 1
        %s347 = scalar_select %p346, %s22, 1
        %s348 = smul.addr %s347, 8
        %s349 = smul.addr %s348, 8
        %s350 = scalar_lea.vmem %s7, %s349
        %p351 = scmp.lt.s32.totalorder %s22, 1
        %s352 = scalar_select %p351, %s22, 1
        %s353 = smul.addr %s352, 3
        %s354 = smul.addr %s353, 8
        %s355 = scalar_lea.vmem %s0, %s354
        %p356 = scmp.lt.s32.totalorder %s22, 1
        %s357 = scalar_select %p356, %s22, 1
        %s358 = smul.addr %s357, 8
        %s359 = smul.addr %s358, 8
        %s360 = scalar_lea.vmem %s7, %s359
        %v362 = vlaneseq
        %vm363 = vcmp.ge.s32.totalorder %v362, 0
        %vm364 = vcmp.lt.s32.totalorder %v362, 576
        %vm365 = vmand %vm363, %vm364
        %366 = vst.msk [vmem:[#allocation2] ss:$8 sm:$0xf] %vm365, 0.0
        %367 = vst.msk [vmem:[#allocation2] ss:$8 sm:$0x10] %vm365, 0.0
        %s368 = scalar_lea.vmem [#allocation2], 81
        %369 = vst.msk [vmem:[%s368] ss:$8 sm:$0xf] %vm365, 0.0
        %370 = vst.msk [vmem:[%s368] ss:$8 sm:$0x10] %vm365, 0.0
        %v371 = vld [vmem:[%s355] sm:$0xff]
        %v372 = vld [vmem:[%s355 + $0x8] sm:$0xff]
        %v373 = vpack.c.bf16 %v372, %v371
        %v374 = vld [vmem:[#allocation3] sm:$0xff]
        %v375 = vld [vmem:[#allocation3 + $0x8] sm:$0xff]
        %v376 = vld [vmem:[#allocation3 + $0x10] sm:$0xf]
        %v377 = vld [vmem:[#allocation3 + $0x14] sm:$0xff]
        %v378 = vld [vmem:[#allocation3 + $0x1c] sm:$0xff]
        %v379 = vld [vmem:[#allocation3 + $0x24] sm:$0xf]
        %v380 = vld [vmem:[#allocation3 + $0x28] sm:$0xff]
        %v381 = vld [vmem:[#allocation3 + $0x30] sm:$0xff]
        %v382 = vld [vmem:[#allocation3 + $0x38] sm:$0xf]
        %v383 = vld [vmem:[#allocation3 + $0x3c] sm:$0xff]
        %v384 = vld [vmem:[#allocation3 + $0x44] sm:$0xff]
        %v385 = vld [vmem:[#allocation3 + $0x4c] sm:$0xf]
        %v386 = vld [vmem:[#allocation3 + $0x50] sm:$0xff]
        %v387 = vld [vmem:[#allocation3 + $0x58] sm:$0xff]
        %v388 = vld [vmem:[#allocation3 + $0x60] sm:$0xf]
        %v389 = vld [vmem:[#allocation3 + $0x64] sm:$0x33]
        %v390 = vld [vmem:[#allocation3 + $0x6c] sm:$0x33]
        %v391 = vld [vmem:[#allocation3 + $0x74] sm:$0x3]
        %v392 = vld [vmem:[%s355 + $0x1] sm:$0xff]
        %v393 = vld [vmem:[%s355 + $0x9] sm:$0xff]
        %v394 = vpack.c.bf16 %v393, %v392
        %s395 = scalar_lea.vmem [#allocation3], 120
        %v396 = vld [vmem:[%s395] sm:$0xff]
        %v397 = vld [vmem:[%s395 + $0x8] sm:$0xff]
        %v398 = vld [vmem:[%s395 + $0x10] sm:$0xf]
        %v399 = vld [vmem:[%s395 + $0x14] sm:$0xff]
        %v400 = vld [vmem:[%s395 + $0x1c] sm:$0xff]
        %v401 = vld [vmem:[%s395 + $0x24] sm:$0xf]
        %v402 = vld [vmem:[%s395 + $0x28] sm:$0xff]
        %v403 = vld [vmem:[%s395 + $0x30] sm:$0xff]
        %v404 = vld [vmem:[%s395 + $0x38] sm:$0xf]
        %v405 = vld [vmem:[%s395 + $0x3c] sm:$0xff]
        %v406 = vld [vmem:[%s395 + $0x44] sm:$0xff]
        %v407 = vld [vmem:[%s395 + $0x4c] sm:$0xf]
        %v408 = vld [vmem:[%s395 + $0x50] sm:$0xff]
        %v409 = vld [vmem:[%s395 + $0x58] sm:$0xff]
        %v410 = vld [vmem:[%s395 + $0x60] sm:$0xf]
        %v411 = vld [vmem:[%s395 + $0x64] sm:$0x33]
        %v412 = vld [vmem:[%s395 + $0x6c] sm:$0x33]
        %v413 = vld [vmem:[%s395 + $0x74] sm:$0x3]
        %v432 = vunpack.c.l.b16 %v396
        %v433 = vunpack.c.h.b16 %v396
        %v434 = vunpack.c.l.b16 %v397
        %v435 = vunpack.c.h.b16 %v397
        %v436 = vunpack.c.l.b16 %v398
        %v437 = vunpack.c.l.b16 %v399
        %v438 = vunpack.c.h.b16 %v399
        %v439 = vunpack.c.l.b16 %v400
        %v440 = vunpack.c.h.b16 %v400
        %v441 = vunpack.c.l.b16 %v401
        %v442 = vunpack.c.l.b16 %v402
        %v443 = vunpack.c.h.b16 %v402
        %v444 = vunpack.c.l.b16 %v403
        %v445 = vunpack.c.h.b16 %v403
        %v446 = vunpack.c.l.b16 %v404
        %v447 = vunpack.c.l.b16 %v405
        %v448 = vunpack.c.h.b16 %v405
        %v449 = vunpack.c.l.b16 %v406
        %v450 = vunpack.c.h.b16 %v406
        %v451 = vunpack.c.l.b16 %v407
        %v452 = vunpack.c.l.b16 %v408
        %v453 = vunpack.c.h.b16 %v408
        %v454 = vunpack.c.l.b16 %v409
        %v455 = vunpack.c.h.b16 %v409
        %v456 = vunpack.c.l.b16 %v410
        %v457 = vunpack.c.l.b16 %v411
        %v458 = vunpack.c.h.b16 %v411
        %v459 = vunpack.c.l.b16 %v412
        %v460 = vunpack.c.h.b16 %v412
        %v461 = vunpack.c.l.b16 %v413
        %v462 = vpack.c.b16 %v437, %v432
        %v463 = vpack.c.b16 %v438, %v433
        %v464 = vpack.c.b16 %v439, %v434
        %v465 = vpack.c.b16 %v440, %v435
        %v466 = vpack.c.b16 %v441, %v436
        %v467 = vpack.c.b16 %v447, %v442
        %v468 = vpack.c.b16 %v448, %v443
        %v469 = vpack.c.b16 %v449, %v444
        %v470 = vpack.c.b16 %v450, %v445
        %v471 = vpack.c.b16 %v451, %v446
        %v472 = vpack.c.b16 %v457, %v452
        %v473 = vpack.c.b16 %v458, %v453
        %v474 = vpack.c.b16 %v459, %v454
        %v475 = vpack.c.b16 %v460, %v455
        %v476 = vpack.c.b16 %v461, %v456
        %vm487 = vcmask 359424
        %v489 = vsel %vm487, %v394, 0
        %vm491 = vcmask 1045504
        %v493 = vsel %vm491, %v472, 0
        %v496 = vsel %vm491, %v473, 0
        %v499 = vsel %vm491, %v474, 0
        %v502 = vsel %vm491, %v475, 0
        %v505 = vsel %vm491, %v476, 0
        %507 = vmatprep.subr.bf16.mxu0 %v463
        %508 = vmatpush1.bf16.msra.mxu0 %v462
        %509 = vmatprep.subr.bf16.mxu0 %v468
        %510 = vmatpush1.bf16.msra.mxu0 %v467
        %511 = vmatprep.subr.bf16.mxu0 %v496
        %512 = vmatpush1.bf16.msra.mxu0 %v493
        %513 = vmatprep.subr.bf16.mxu0 0
        %514 = vmatpush1.bf16.msra.mxu0 0
        %515 = vmatprep.subr.bf16.mxu0 0
        %516 = vmatpush1.bf16.msra.mxu0 0
        %517 = vmatprep.subr.bf16.mxu0 0
        %518 = vmatpush1.bf16.msra.mxu0 0
        %519 = vmatprep.subr.bf16.mxu0 0
        %520 = vmatpush1.bf16.msra.mxu0 0
        %521 = vmatprep.subr.bf16.mxu0 0
        %522 = vmatpush1.bf16.msra.mxu0 0
        %523 = vmatprep.subr.bf16.mxu0 0
        %524 = vmatpush1.bf16.msra.mxu0 0
        %525 = vmatprep.subr.bf16.mxu0 0
        %526 = vmatpush1.bf16.msra.mxu0 0
        %527 = vmatprep.subr.bf16.mxu0 0
        %528 = vmatpush1.bf16.msra.mxu0 0
        %529 = vmatprep.subr.bf16.mxu0 0
        %530 = vmatpush1.bf16.msra.mxu0 0
        %531 = vmatprep.subr.bf16.mxu0 0
        %532 = vmatpush1.bf16.msra.mxu0 0
        %533 = vmatprep.subr.bf16.mxu0 0
        %534 = vmatpush1.bf16.msra.mxu0 0
        %535 = vmatprep.subr.bf16.mxu0 0
        %536 = vmatpush1.bf16.msra.mxu0 0
        %537 = vmatprep.subr.bf16.mxu0 0
        %538 = vmatpush1.bf16.msra.mxu0 0
        %539 = vmatprep.mubr.bf16.mxu0 0
        %540 = vmatmul.mubr.bf16.gmra.mrb[0].mxu0 %v489
        %v541 = vpop.f32.mrb[0].mxu0
        %v542 = vadd.f32 0.0, %v541
        %v543 = vpop.f32.mrb[0].mxu0
        %v544 = vadd.f32 0.0, %v543
        %v545 = vpop.f32.mrb[0].mxu0
        %v546 = vadd.f32 0.0, %v545
        %v547 = vpop.f32.mrb[0].mxu0
        %v548 = vadd.f32 0.0, %v547
        %549 = vdwg.mxu0
        %550 = vmatprep.subr.bf16.mxu0 %v465
        %551 = vmatpush1.bf16.msra.mxu0 %v464
        %552 = vmatprep.subr.bf16.mxu0 %v470
        %553 = vmatpush1.bf16.msra.mxu0 %v469
        %554 = vmatprep.subr.bf16.mxu0 %v502
        %555 = vmatpush1.bf16.msra.mxu0 %v499
        %556 = vmatprep.subr.bf16.mxu0 0
        %557 = vmatpush1.bf16.msra.mxu0 0
        %558 = vmatprep.subr.bf16.mxu0 0
        %559 = vmatpush1.bf16.msra.mxu0 0
        %560 = vmatprep.subr.bf16.mxu0 0
        %561 = vmatpush1.bf16.msra.mxu0 0
        %562 = vmatprep.subr.bf16.mxu0 0
        %563 = vmatpush1.bf16.msra.mxu0 0
        %564 = vmatprep.subr.bf16.mxu0 0
        %565 = vmatpush1.bf16.msra.mxu0 0
        %566 = vmatprep.subr.bf16.mxu0 0
        %567 = vmatpush1.bf16.msra.mxu0 0
        %568 = vmatprep.subr.bf16.mxu0 0
        %569 = vmatpush1.bf16.msra.mxu0 0
        %570 = vmatprep.subr.bf16.mxu0 0
        %571 = vmatpush1.bf16.msra.mxu0 0
        %572 = vmatprep.subr.bf16.mxu0 0
        %573 = vmatpush1.bf16.msra.mxu0 0
        %574 = vmatprep.subr.bf16.mxu0 0
        %575 = vmatpush1.bf16.msra.mxu0 0
        %576 = vmatprep.subr.bf16.mxu0 0
        %577 = vmatpush1.bf16.msra.mxu0 0
        %578 = vmatprep.subr.bf16.mxu0 0
        %579 = vmatpush1.bf16.msra.mxu0 0
        %580 = vmatprep.subr.bf16.mxu0 0
        %581 = vmatpush1.bf16.msra.mxu0 0
        %582 = vmatprep.mubr.bf16.mxu0 0
        %583 = vmatmul.mubr.bf16.gmra.mrb[0].mxu0 %v489
        %v584 = vpop.f32.mrb[0].mxu0
        %v585 = vadd.f32 0.0, %v584
        %v586 = vpop.f32.mrb[0].mxu0
        %v587 = vadd.f32 0.0, %v586
        %v588 = vpop.f32.mrb[0].mxu0
        %v589 = vadd.f32 0.0, %v588
        %v590 = vpop.f32.mrb[0].mxu0
        %v591 = vadd.f32 0.0, %v590
        %592 = vdwg.mxu0
        %593 = vmatprep.subr.bf16.mxu0 0
        %594 = vmatpush1.bf16.msra.mxu0 %v466
        %595 = vmatprep.subr.bf16.mxu0 0
        %596 = vmatpush1.bf16.msra.mxu0 %v471
        %597 = vmatprep.subr.bf16.mxu0 0
        %598 = vmatpush1.bf16.msra.mxu0 %v505
        %599 = vmatprep.subr.bf16.mxu0 0
        %600 = vmatpush1.bf16.msra.mxu0 0
        %601 = vmatprep.subr.bf16.mxu0 0
        %602 = vmatpush1.bf16.msra.mxu0 0
        %603 = vmatprep.subr.bf16.mxu0 0
        %604 = vmatpush1.bf16.msra.mxu0 0
        %605 = vmatprep.subr.bf16.mxu0 0
        %606 = vmatpush1.bf16.msra.mxu0 0
        %607 = vmatprep.subr.bf16.mxu0 0
        %608 = vmatpush1.bf16.msra.mxu0 0
        %609 = vmatprep.subr.bf16.mxu0 0
        %610 = vmatpush1.bf16.msra.mxu0 0
        %611 = vmatprep.subr.bf16.mxu0 0
        %612 = vmatpush1.bf16.msra.mxu0 0
        %613 = vmatprep.subr.bf16.mxu0 0
        %614 = vmatpush1.bf16.msra.mxu0 0
        %615 = vmatprep.subr.bf16.mxu0 0
        %616 = vmatpush1.bf16.msra.mxu0 0
        %617 = vmatprep.subr.bf16.mxu0 0
        %618 = vmatpush1.bf16.msra.mxu0 0
        %619 = vmatprep.subr.bf16.mxu0 0
        %620 = vmatpush1.bf16.msra.mxu0 0
        %621 = vmatprep.subr.bf16.mxu0 0
        %622 = vmatpush1.bf16.msra.mxu0 0
        %623 = vmatprep.subr.bf16.mxu0 0
        %624 = vmatpush1.bf16.msra.mxu0 0
        %625 = vmatprep.mubr.bf16.mxu0 0
        %626 = vmatmul.mubr.bf16.gmra.mrb[0].mxu0 %v489
        %v627 = vpop.f32.mrb[0].mxu0
        %v628 = vadd.f32 0.0, %v627
        %v629 = vpop.f32.mrb[0].mxu0
        %v630 = vpop.f32.mrb[0].mxu0
        %v631 = vadd.f32 0.0, %v630
        %v632 = vpop.f32.mrb[0].mxu0
        %633 = vdwg.mxu0
        %v652 = vunpack.c.l.b16 %v374
        %v653 = vunpack.c.h.b16 %v374
        %v654 = vunpack.c.l.b16 %v375
        %v655 = vunpack.c.h.b16 %v375
        %v656 = vunpack.c.l.b16 %v376
        %v657 = vunpack.c.l.b16 %v377
        %v658 = vunpack.c.h.b16 %v377
        %v659 = vunpack.c.l.b16 %v378
        %v660 = vunpack.c.h.b16 %v378
        %v661 = vunpack.c.l.b16 %v379
        %v662 = vunpack.c.l.b16 %v380
        %v663 = vunpack.c.h.b16 %v380
        %v664 = vunpack.c.l.b16 %v381
        %v665 = vunpack.c.h.b16 %v381
        %v666 = vunpack.c.l.b16 %v382
        %v667 = vunpack.c.l.b16 %v383
        %v668 = vunpack.c.h.b16 %v383
        %v669 = vunpack.c.l.b16 %v384
        %v670 = vunpack.c.h.b16 %v384
        %v671 = vunpack.c.l.b16 %v385
        %v672 = vunpack.c.l.b16 %v386
        %v673 = vunpack.c.h.b16 %v386
        %v674 = vunpack.c.l.b16 %v387
        %v675 = vunpack.c.h.b16 %v387
        %v676 = vunpack.c.l.b16 %v388
        %v677 = vunpack.c.l.b16 %v389
        %v678 = vunpack.c.h.b16 %v389
        %v679 = vunpack.c.l.b16 %v390
        %v680 = vunpack.c.h.b16 %v390
        %v681 = vunpack.c.l.b16 %v391
        %v682 = vpack.c.b16 %v657, %v652
        %v683 = vpack.c.b16 %v658, %v653
        %v684 = vpack.c.b16 %v659, %v654
        %v685 = vpack.c.b16 %v660, %v655
        %v686 = vpack.c.b16 %v661, %v656
        %v687 = vpack.c.b16 %v667, %v662
        %v688 = vpack.c.b16 %v668, %v663
        %v689 = vpack.c.b16 %v669, %v664
        %v690 = vpack.c.b16 %v670, %v665
        %v691 = vpack.c.b16 %v671, %v666
        %v692 = vpack.c.b16 %v677, %v672
        %v693 = vpack.c.b16 %v678, %v673
        %v694 = vpack.c.b16 %v679, %v674
        %v695 = vpack.c.b16 %v680, %v675
        %v696 = vpack.c.b16 %v681, %v676
        %v708 = vsel %vm487, %v373, 0
        %v711 = vsel %vm491, %v692, 0
        %v714 = vsel %vm491, %v693, 0
        %v717 = vsel %vm491, %v694, 0
        %v720 = vsel %vm491, %v695, 0
        %v723 = vsel %vm491, %v696, 0
        %725 = vmatprep.subr.bf16.mxu0 %v683
        %726 = vmatpush1.bf16.msra.mxu0 %v682
        %727 = vmatprep.subr.bf16.mxu0 %v688
        %728 = vmatpush1.bf16.msra.mxu0 %v687
        %729 = vmatprep.subr.bf16.mxu0 %v714
        %730 = vmatpush1.bf16.msra.mxu0 %v711
        %731 = vmatprep.subr.bf16.mxu0 0
        %732 = vmatpush1.bf16.msra.mxu0 0
        %733 = vmatprep.subr.bf16.mxu0 0
        %734 = vmatpush1.bf16.msra.mxu0 0
        %735 = vmatprep.subr.bf16.mxu0 0
        %736 = vmatpush1.bf16.msra.mxu0 0
        %737 = vmatprep.subr.bf16.mxu0 0
        %738 = vmatpush1.bf16.msra.mxu0 0
        %739 = vmatprep.subr.bf16.mxu0 0
        %740 = vmatpush1.bf16.msra.mxu0 0
        %741 = vmatprep.subr.bf16.mxu0 0
        %742 = vmatpush1.bf16.msra.mxu0 0
        %743 = vmatprep.subr.bf16.mxu0 0
        %744 = vmatpush1.bf16.msra.mxu0 0
        %745 = vmatprep.subr.bf16.mxu0 0
        %746 = vmatpush1.bf16.msra.mxu0 0
        %747 = vmatprep.subr.bf16.mxu0 0
        %748 = vmatpush1.bf16.msra.mxu0 0
        %749 = vmatprep.subr.bf16.mxu0 0
        %750 = vmatpush1.bf16.msra.mxu0 0
        %751 = vmatprep.subr.bf16.mxu0 0
        %752 = vmatpush1.bf16.msra.mxu0 0
        %753 = vmatprep.subr.bf16.mxu0 0
        %754 = vmatpush1.bf16.msra.mxu0 0
        %755 = vmatprep.subr.bf16.mxu0 0
        %756 = vmatpush1.bf16.msra.mxu0 0
        %757 = vmatprep.mubr.bf16.mxu0 0
        %758 = vmatmul.mubr.bf16.gmra.mrb[0].mxu0 %v708
        %v759 = vpop.f32.mrb[0].mxu0
        %v760 = vadd.f32 %v542, %v759
        %v761 = vpop.f32.mrb[0].mxu0
        %v762 = vadd.f32 %v544, %v761
        %v763 = vpop.f32.mrb[0].mxu0
        %v764 = vadd.f32 %v546, %v763
        %v765 = vpop.f32.mrb[0].mxu0
        %v766 = vadd.f32 %v548, %v765
        %767 = vdwg.mxu0
        %768 = vmatprep.subr.bf16.mxu0 %v685
        %769 = vmatpush1.bf16.msra.mxu0 %v684
        %770 = vmatprep.subr.bf16.mxu0 %v690
        %771 = vmatpush1.bf16.msra.mxu0 %v689
        %772 = vmatprep.subr.bf16.mxu0 %v720
        %773 = vmatpush1.bf16.msra.mxu0 %v717
        %774 = vmatprep.subr.bf16.mxu0 0
        %775 = vmatpush1.bf16.msra.mxu0 0
        %776 = vmatprep.subr.bf16.mxu0 0
        %777 = vmatpush1.bf16.msra.mxu0 0
        %778 = vmatprep.subr.bf16.mxu0 0
        %779 = vmatpush1.bf16.msra.mxu0 0
        %780 = vmatprep.subr.bf16.mxu0 0
        %781 = vmatpush1.bf16.msra.mxu0 0
        %782 = vmatprep.subr.bf16.mxu0 0
        %783 = vmatpush1.bf16.msra.mxu0 0
        %784 = vmatprep.subr.bf16.mxu0 0
        %785 = vmatpush1.bf16.msra.mxu0 0
        %786 = vmatprep.subr.bf16.mxu0 0
        %787 = vmatpush1.bf16.msra.mxu0 0
        %788 = vmatprep.subr.bf16.mxu0 0
        %789 = vmatpush1.bf16.msra.mxu0 0
        %790 = vmatprep.subr.bf16.mxu0 0
        %791 = vmatpush1.bf16.msra.mxu0 0
        %792 = vmatprep.subr.bf16.mxu0 0
        %793 = vmatpush1.bf16.msra.mxu0 0
        %794 = vmatprep.subr.bf16.mxu0 0
        %795 = vmatpush1.bf16.msra.mxu0 0
        %796 = vmatprep.subr.bf16.mxu0 0
        %797 = vmatpush1.bf16.msra.mxu0 0
        %798 = vmatprep.subr.bf16.mxu0 0
        %799 = vmatpush1.bf16.msra.mxu0 0
        %800 = vmatprep.mubr.bf16.mxu0 0
        %801 = vmatmul.mubr.bf16.gmra.mrb[0].mxu0 %v708
        %v802 = vpop.f32.mrb[0].mxu0
        %v803 = vadd.f32 %v585, %v802
        %v804 = vpop.f32.mrb[0].mxu0
        %v805 = vadd.f32 %v587, %v804
        %v806 = vpop.f32.mrb[0].mxu0
        %v807 = vadd.f32 %v589, %v806
        %v808 = vpop.f32.mrb[0].mxu0
        %v809 = vadd.f32 %v591, %v808
        %810 = vdwg.mxu0
        %811 = vmatprep.subr.bf16.mxu0 0
        %812 = vmatpush1.bf16.msra.mxu0 %v686
        %813 = vmatprep.subr.bf16.mxu0 0
        %814 = vmatpush1.bf16.msra.mxu0 %v691
        %815 = vmatprep.subr.bf16.mxu0 0
        %816 = vmatpush1.bf16.msra.mxu0 %v723
        %817 = vmatprep.subr.bf16.mxu0 0
        %818 = vmatpush1.bf16.msra.mxu0 0
        %819 = vmatprep.subr.bf16.mxu0 0
        %820 = vmatpush1.bf16.msra.mxu0 0
        %821 = vmatprep.subr.bf16.mxu0 0
        %822 = vmatpush1.bf16.msra.mxu0 0
        %823 = vmatprep.subr.bf16.mxu0 0
        %824 = vmatpush1.bf16.msra.mxu0 0
        %825 = vmatprep.subr.bf16.mxu0 0
        %826 = vmatpush1.bf16.msra.mxu0 0
        %827 = vmatprep.subr.bf16.mxu0 0
        %828 = vmatpush1.bf16.msra.mxu0 0
        %829 = vmatprep.subr.bf16.mxu0 0
        %830 = vmatpush1.bf16.msra.mxu0 0
        %831 = vmatprep.subr.bf16.mxu0 0
        %832 = vmatpush1.bf16.msra.mxu0 0
        %833 = vmatprep.subr.bf16.mxu0 0
        %834 = vmatpush1.bf16.msra.mxu0 0
        %835 = vmatprep.subr.bf16.mxu0 0
        %836 = vmatpush1.bf16.msra.mxu0 0
        %837 = vmatprep.subr.bf16.mxu0 0
        %838 = vmatpush1.bf16.msra.mxu0 0
        %839 = vmatprep.subr.bf16.mxu0 0
        %840 = vmatpush1.bf16.msra.mxu0 0
        %841 = vmatprep.subr.bf16.mxu0 0
        %842 = vmatpush1.bf16.msra.mxu0 0
        %843 = vmatprep.mubr.bf16.mxu0 0
        %844 = vmatmul.mubr.bf16.gmra.mrb[0].mxu0 %v708
        %v845 = vpop.f32.mrb[0].mxu0
        %v846 = vadd.f32 %v628, %v845
        %v847 = vpop.f32.mrb[0].mxu0
        %v848 = vpop.f32.mrb[0].mxu0
        %v849 = vadd.f32 %v631, %v848
        %v850 = vpop.f32.mrb[0].mxu0
        %851 = vdwg.mxu0
        %v852 = vld [vmem:[%s355 + $0x2] sm:$0xff]
        %v853 = vld [vmem:[%s355 + $0xa] sm:$0xff]
        %v854 = vpack.c.bf16 %v853, %v852
        %s855 = scalar_lea.vmem [#allocation3], 240
        %v856 = vld [vmem:[%s855] sm:$0xff]
        %v857 = vld [vmem:[%s855 + $0x8] sm:$0xff]
        %v858 = vld [vmem:[%s855 + $0x10] sm:$0xf]
        %v859 = vld [vmem:[%s855 + $0x14] sm:$0xff]
        %v860 = vld [vmem:[%s855 + $0x1c] sm:$0xff]
        %v861 = vld [vmem:[%s855 + $0x24] sm:$0xf]
        %v862 = vld [vmem:[%s855 + $0x28] sm:$0xff]
        %v863 = vld [vmem:[%s855 + $0x30] sm:$0xff]
        %v864 = vld [vmem:[%s855 + $0x38] sm:$0xf]
        %v865 = vld [vmem:[%s855 + $0x3c] sm:$0xff]
        %v866 = vld [vmem:[%s855 + $0x44] sm:$0xff]
        %v867 = vld [vmem:[%s855 + $0x4c] sm:$0xf]
        %v868 = vld [vmem:[%s855 + $0x50] sm:$0xff]
        %v869 = vld [vmem:[%s855 + $0x58] sm:$0xff]
        %v870 = vld [vmem:[%s855 + $0x60] sm:$0xf]
        %v871 = vld [vmem:[%s855 + $0x64] sm:$0x33]
        %v872 = vld [vmem:[%s855 + $0x6c] sm:$0x33]
        %v873 = vld [vmem:[%s855 + $0x74] sm:$0x3]
        %v892 = vunpack.c.l.b16 %v856
        %v893 = vunpack.c.h.b16 %v856
        %v894 = vunpack.c.l.b16 %v857
        %v895 = vunpack.c.h.b16 %v857
        %v896 = vunpack.c.l.b16 %v858
        %v897 = vunpack.c.l.b16 %v859
        %v898 = vunpack.c.h.b16 %v859
        %v899 = vunpack.c.l.b16 %v860
        %v900 = vunpack.c.h.b16 %v860
        %v901 = vunpack.c.l.b16 %v861
        %v902 = vunpack.c.l.b16 %v862
        %v903 = vunpack.c.h.b16 %v862
        %v904 = vunpack.c.l.b16 %v863
        %v905 = vunpack.c.h.b16 %v863
        %v906 = vunpack.c.l.b16 %v864
        %v907 = vunpack.c.l.b16 %v865
        %v908 = vunpack.c.h.b16 %v865
        %v909 = vunpack.c.l.b16 %v866
        %v910 = vunpack.c.h.b16 %v866
        %v911 = vunpack.c.l.b16 %v867
        %v912 = vunpack.c.l.b16 %v868
        %v913 = vunpack.c.h.b16 %v868
        %v914 = vunpack.c.l.b16 %v869
        %v915 = vunpack.c.h.b16 %v869
        %v916 = vunpack.c.l.b16 %v870
        %v917 = vunpack.c.l.b16 %v871
        %v918 = vunpack.c.h.b16 %v871
        %v919 = vunpack.c.l.b16 %v872
        %v920 = vunpack.c.h.b16 %v872
        %v921 = vunpack.c.l.b16 %v873
        %v922 = vpack.c.b16 %v897, %v892
        %v923 = vpack.c.b16 %v898, %v893
        %v924 = vpack.c.b16 %v899, %v894
        %v925 = vpack.c.b16 %v900, %v895
        %v926 = vpack.c.b16 %v901, %v896
        %v927 = vpack.c.b16 %v907, %v902
        %v928 = vpack.c.b16 %v908, %v903
        %v929 = vpack.c.b16 %v909, %v904
        %v930 = vpack.c.b16 %v910, %v905
        %v931 = vpack.c.b16 %v911, %v906
        %v932 = vpack.c.b16 %v917, %v912
        %v933 = vpack.c.b16 %v918, %v913
        %v934 = vpack.c.b16 %v919, %v914
        %v935 = vpack.c.b16 %v920, %v915
        %v936 = vpack.c.b16 %v921, %v916
        %v948 = vsel %vm487, %v854, 0
        %v951 = vsel %vm491, %v932, 0
        %v954 = vsel %vm491, %v933, 0
        %v957 = vsel %vm491, %v934, 0
        %v960 = vsel %vm491, %v935, 0
        %v963 = vsel %vm491, %v936, 0
        %965 = vmatprep.subr.bf16.mxu0 %v923
        %966 = vmatpush1.bf16.msra.mxu0 %v922
        %967 = vmatprep.subr.bf16.mxu0 %v928
        %968 = vmatpush1.bf16.msra.mxu0 %v927
        %969 = vmatprep.subr.bf16.mxu0 %v954
        %970 = vmatpush1.bf16.msra.mxu0 %v951
        %971 = vmatprep.subr.bf16.mxu0 0
        %972 = vmatpush1.bf16.msra.mxu0 0
        %973 = vmatprep.subr.bf16.mxu0 0
        %974 = vmatpush1.bf16.msra.mxu0 0
        %975 = vmatprep.subr.bf16.mxu0 0
        %976 = vmatpush1.bf16.msra.mxu0 0
        %977 = vmatprep.subr.bf16.mxu0 0
        %978 = vmatpush1.bf16.msra.mxu0 0
        %979 = vmatprep.subr.bf16.mxu0 0
        %980 = vmatpush1.bf16.msra.mxu0 0
        %981 = vmatprep.subr.bf16.mxu0 0
        %982 = vmatpush1.bf16.msra.mxu0 0
        %983 = vmatprep.subr.bf16.mxu0 0
        %984 = vmatpush1.bf16.msra.mxu0 0
        %985 = vmatprep.subr.bf16.mxu0 0
        %986 = vmatpush1.bf16.msra.mxu0 0
        %987 = vmatprep.subr.bf16.mxu0 0
        %988 = vmatpush1.bf16.msra.mxu0 0
        %989 = vmatprep.subr.bf16.mxu0 0
        %990 = vmatpush1.bf16.msra.mxu0 0
        %991 = vmatprep.subr.bf16.mxu0 0
        %992 = vmatpush1.bf16.msra.mxu0 0
        %993 = vmatprep.subr.bf16.mxu0 0
        %994 = vmatpush1.bf16.msra.mxu0 0
        %995 = vmatprep.subr.bf16.mxu0 0
        %996 = vmatpush1.bf16.msra.mxu0 0
        %997 = vmatprep.mubr.bf16.mxu0 0
        %998 = vmatmul.mubr.bf16.gmra.mrb[0].mxu0 %v948
        %v999 = vpop.f32.mrb[0].mxu0
        %v1000 = vadd.f32 0.0, %v999
        %v1001 = vpop.f32.mrb[0].mxu0
        %v1002 = vadd.f32 0.0, %v1001
        %v1003 = vpop.f32.mrb[0].mxu0
        %v1004 = vadd.f32 0.0, %v1003
        %v1005 = vpop.f32.mrb[0].mxu0
        %v1006 = vadd.f32 0.0, %v1005
        %1007 = vdwg.mxu0
        %1008 = vmatprep.subr.bf16.mxu0 %v925
        %1009 = vmatpush1.bf16.msra.mxu0 %v924
        %1010 = vmatprep.subr.bf16.mxu0 %v930
        %1011 = vmatpush1.bf16.msra.mxu0 %v929
        %1012 = vmatprep.subr.bf16.mxu0 %v960
        %1013 = vmatpush1.bf16.msra.mxu0 %v957
        %1014 = vmatprep.subr.bf16.mxu0 0
        %1015 = vmatpush1.bf16.msra.mxu0 0
        %1016 = vmatprep.subr.bf16.mxu0 0
        %1017 = vmatpush1.bf16.msra.mxu0 0
        %1018 = vmatprep.subr.bf16.mxu0 0
        %1019 = vmatpush1.bf16.msra.mxu0 0
        %1020 = vmatprep.subr.bf16.mxu0 0
        %1021 = vmatpush1.bf16.msra.mxu0 0
        %1022 = vmatprep.subr.bf16.mxu0 0
        %1023 = vmatpush1.bf16.msra.mxu0 0
        %1024 = vmatprep.subr.bf16.mxu0 0
        %1025 = vmatpush1.bf16.msra.mxu0 0
        %1026 = vmatprep.subr.bf16.mxu0 0
        %1027 = vmatpush1.bf16.msra.mxu0 0
        %1028 = vmatprep.subr.bf16.mxu0 0
        %1029 = vmatpush1.bf16.msra.mxu0 0
        %1030 = vmatprep.subr.bf16.mxu0 0
        %1031 = vmatpush1.bf16.msra.mxu0 0
        %1032 = vmatprep.subr.bf16.mxu0 0
        %1033 = vmatpush1.bf16.msra.mxu0 0
        %1034 = vmatprep.subr.bf16.mxu0 0
        %1035 = vmatpush1.bf16.msra.mxu0 0
        %1036 = vmatprep.subr.bf16.mxu0 0
        %1037 = vmatpush1.bf16.msra.mxu0 0
        %1038 = vmatprep.subr.bf16.mxu0 0
        %1039 = vmatpush1.bf16.msra.mxu0 0
        %1040 = vmatprep.mubr.bf16.mxu0 0
        %1041 = vmatmul.mubr.bf16.gmra.mrb[0].mxu0 %v948
        %v1042 = vpop.f32.mrb[0].mxu0
        %v1043 = vadd.f32 0.0, %v1042
        %v1044 = vpop.f32.mrb[0].mxu0
        %v1045 = vadd.f32 0.0, %v1044
        %v1046 = vpop.f32.mrb[0].mxu0
        %v1047 = vadd.f32 0.0, %v1046
        %v1048 = vpop.f32.mrb[0].mxu0
        %v1049 = vadd.f32 0.0, %v1048
        %1050 = vdwg.mxu0
        %1051 = vmatprep.subr.bf16.mxu0 0
        %1052 = vmatpush1.bf16.msra.mxu0 %v926
        %1053 = vmatprep.subr.bf16.mxu0 0
        %1054 = vmatpush1.bf16.msra.mxu0 %v931
        %1055 = vmatprep.subr.bf16.mxu0 0
        %1056 = vmatpush1.bf16.msra.mxu0 %v963
        %1057 = vmatprep.subr.bf16.mxu0 0
        %1058 = vmatpush1.bf16.msra.mxu0 0
        %1059 = vmatprep.subr.bf16.mxu0 0
        %1060 = vmatpush1.bf16.msra.mxu0 0
        %1061 = vmatprep.subr.bf16.mxu0 0
        %1062 = vmatpush1.bf16.msra.mxu0 0
        %1063 = vmatprep.subr.bf16.mxu0 0
        %1064 = vmatpush1.bf16.msra.mxu0 0
        %1065 = vmatprep.subr.bf16.mxu0 0
        %1066 = vmatpush1.bf16.msra.mxu0 0
        %1067 = vmatprep.subr.bf16.mxu0 0
        %1068 = vmatpush1.bf16.msra.mxu0 0
        %1069 = vmatprep.subr.bf16.mxu0 0
        %1070 = vmatpush1.bf16.msra.mxu0 0
        %1071 = vmatprep.subr.bf16.mxu0 0
        %1072 = vmatpush1.bf16.msra.mxu0 0
        %1073 = vmatprep.subr.bf16.mxu0 0
        %1074 = vmatpush1.bf16.msra.mxu0 0
        %1075 = vmatprep.subr.bf16.mxu0 0
        %1076 = vmatpush1.bf16.msra.mxu0 0
        %1077 = vmatprep.subr.bf16.mxu0 0
        %1078 = vmatpush1.bf16.msra.mxu0 0
        %1079 = vmatprep.subr.bf16.mxu0 0
        %1080 = vmatpush1.bf16.msra.mxu0 0
        %1081 = vmatprep.subr.bf16.mxu0 0
        %1082 = vmatpush1.bf16.msra.mxu0 0
        %1083 = vmatprep.mubr.bf16.mxu0 0
        %1084 = vmatmul.mubr.bf16.gmra.mrb[0].mxu0 %v948
        %v1085 = vpop.f32.mrb[0].mxu0
        %v1086 = vadd.f32 0.0, %v1085
        %v1087 = vpop.f32.mrb[0].mxu0
        %v1088 = vpop.f32.mrb[0].mxu0
        %v1089 = vadd.f32 0.0, %v1088
        %v1090 = vpop.f32.mrb[0].mxu0
        %1091 = vdwg.mxu0
        %v1092 = vadd.f32 %v760, %v1000
        %v1093 = vadd.f32 %v762, %v1002
        %v1094 = vadd.f32 %v803, %v1043
        %v1095 = vadd.f32 %v805, %v1045
        %v1096 = vadd.f32 %v846, %v1086
        %v1097 = vadd.f32 %v764, %v1004
        %v1098 = vadd.f32 %v766, %v1006
        %v1099 = vadd.f32 %v807, %v1047
        %v1100 = vadd.f32 %v809, %v1049
        %v1101 = vadd.f32 %v849, %v1089
        %v1102 = vld [vmem:[%s355 + $0x3] sm:$0xff]
        %v1103 = vld [vmem:[%s355 + $0xb] sm:$0xff]
        %v1104 = vpack.c.bf16 %v1103, %v1102
        %s1105 = scalar_lea.vmem [#allocation3], 360
        %v1106 = vld [vmem:[%s1105] sm:$0xff]
        %v1107 = vld [vmem:[%s1105 + $0x8] sm:$0xff]
        %v1108 = vld [vmem:[%s1105 + $0x10] sm:$0xf]
        %v1109 = vld [vmem:[%s1105 + $0x14] sm:$0xff]
        %v1110 = vld [vmem:[%s1105 + $0x1c] sm:$0xff]
        %v1111 = vld [vmem:[%s1105 + $0x24] sm:$0xf]
        %v1112 = vld [vmem:[%s1105 + $0x28] sm:$0xff]
        %v1113 = vld [vmem:[%s1105 + $0x30] sm:$0xff]
        %v1114 = vld [vmem:[%s1105 + $0x38] sm:$0xf]
        %v1115 = vld [vmem:[%s1105 + $0x3c] sm:$0xff]
        %v1116 = vld [vmem:[%s1105 + $0x44] sm:$0xff]
        %v1117 = vld [vmem:[%s1105 + $0x4c] sm:$0xf]
        %v1118 = vld [vmem:[%s1105 + $0x50] sm:$0xff]
        %v1119 = vld [vmem:[%s1105 + $0x58] sm:$0xff]
        %v1120 = vld [vmem:[%s1105 + $0x60] sm:$0xf]
        %v1121 = vld [vmem:[%s1105 + $0x64] sm:$0x33]
        %v1122 = vld [vmem:[%s1105 + $0x6c] sm:$0x33]
        %v1123 = vld [vmem:[%s1105 + $0x74] sm:$0x3]
        %v1142 = vunpack.c.l.b16 %v1106
        %v1143 = vunpack.c.h.b16 %v1106
        %v1144 = vunpack.c.l.b16 %v1107
        %v1145 = vunpack.c.h.b16 %v1107
        %v1146 = vunpack.c.l.b16 %v1108
        %v1147 = vunpack.c.l.b16 %v1109
        %v1148 = vunpack.c.h.b16 %v1109
        %v1149 = vunpack.c.l.b16 %v1110
        %v1150 = vunpack.c.h.b16 %v1110
        %v1151 = vunpack.c.l.b16 %v1111
        %v1152 = vunpack.c.l.b16 %v1112
        %v1153 = vunpack.c.h.b16 %v1112
        %v1154 = vunpack.c.l.b16 %v1113
        %v1155 = vunpack.c.h.b16 %v1113
        %v1156 = vunpack.c.l.b16 %v1114
        %v1157 = vunpack.c.l.b16 %v1115
        %v1158 = vunpack.c.h.b16 %v1115
        %v1159 = vunpack.c.l.b16 %v1116
        %v1160 = vunpack.c.h.b16 %v1116
        %v1161 = vunpack.c.l.b16 %v1117
        %v1162 = vunpack.c.l.b16 %v1118
        %v1163 = vunpack.c.h.b16 %v1118
        %v1164 = vunpack.c.l.b16 %v1119
        %v1165 = vunpack.c.h.b16 %v1119
        %v1166 = vunpack.c.l.b16 %v1120
        %v1167 = vunpack.c.l.b16 %v1121
        %v1168 = vunpack.c.h.b16 %v1121
        %v1169 = vunpack.c.l.b16 %v1122
        %v1170 = vunpack.c.h.b16 %v1122
        %v1171 = vunpack.c.l.b16 %v1123
        %v1172 = vpack.c.b16 %v1147, %v1142
        %v1173 = vpack.c.b16 %v1148, %v1143
        %v1174 = vpack.c.b16 %v1149, %v1144
        %v1175 = vpack.c.b16 %v1150, %v1145
        %v1176 = vpack.c.b16 %v1151, %v1146
        %v1177 = vpack.c.b16 %v1157, %v1152
        %v1178 = vpack.c.b16 %v1158, %v1153
        %v1179 = vpack.c.b16 %v1159, %v1154
        %v1180 = vpack.c.b16 %v1160, %v1155
        %v1181 = vpack.c.b16 %v1161, %v1156
        %v1182 = vpack.c.b16 %v1167, %v1162
        %v1183 = vpack.c.b16 %v1168, %v1163
        %v1184 = vpack.c.b16 %v1169, %v1164
        %v1185 = vpack.c.b16 %v1170, %v1165
        %v1186 = vpack.c.b16 %v1171, %v1166
        %v1198 = vsel %vm487, %v1104, 0
        %v1201 = vsel %vm491, %v1182, 0
        %v1204 = vsel %vm491, %v1183, 0
        %v1207 = vsel %vm491, %v1184, 0
        %v1210 = vsel %vm491, %v1185, 0
        %v1213 = vsel %vm491, %v1186, 0
        %1215 = vmatprep.subr.bf16.mxu0 %v1173
        %1216 = vmatpush1.bf16.msra.mxu0 %v1172
        %1217 = vmatprep.subr.bf16.mxu0 %v1178
        %1218 = vmatpush1.bf16.msra.mxu0 %v1177
        %1219 = vmatprep.subr.bf16.mxu0 %v1204
        %1220 = vmatpush1.bf16.msra.mxu0 %v1201
        %1221 = vmatprep.subr.bf16.mxu0 0
        %1222 = vmatpush1.bf16.msra.mxu0 0
        %1223 = vmatprep.subr.bf16.mxu0 0
        %1224 = vmatpush1.bf16.msra.mxu0 0
        %1225 = vmatprep.subr.bf16.mxu0 0
        %1226 = vmatpush1.bf16.msra.mxu0 0
        %1227 = vmatprep.subr.bf16.mxu0 0
        %1228 = vmatpush1.bf16.msra.mxu0 0
        %1229 = vmatprep.subr.bf16.mxu0 0
        %1230 = vmatpush1.bf16.msra.mxu0 0
        %1231 = vmatprep.subr.bf16.mxu0 0
        %1232 = vmatpush1.bf16.msra.mxu0 0
        %1233 = vmatprep.subr.bf16.mxu0 0
        %1234 = vmatpush1.bf16.msra.mxu0 0
        %1235 = vmatprep.subr.bf16.mxu0 0
        %1236 = vmatpush1.bf16.msra.mxu0 0
        %1237 = vmatprep.subr.bf16.mxu0 0
        %1238 = vmatpush1.bf16.msra.mxu0 0
        %1239 = vmatprep.subr.bf16.mxu0 0
        %1240 = vmatpush1.bf16.msra.mxu0 0
        %1241 = vmatprep.subr.bf16.mxu0 0
        %1242 = vmatpush1.bf16.msra.mxu0 0
        %1243 = vmatprep.subr.bf16.mxu0 0
        %1244 = vmatpush1.bf16.msra.mxu0 0
        %1245 = vmatprep.subr.bf16.mxu0 0
        %1246 = vmatpush1.bf16.msra.mxu0 0
        %1247 = vmatprep.mubr.bf16.mxu0 0
        %1248 = vmatmul.mubr.bf16.gmra.mrb[0].mxu0 %v1198
        %v1249 = vpop.f32.mrb[0].mxu0
        %v1250 = vadd.f32 0.0, %v1249
        %v1251 = vpop.f32.mrb[0].mxu0
        %v1252 = vadd.f32 0.0, %v1251
        %v1253 = vpop.f32.mrb[0].mxu0
        %v1254 = vadd.f32 0.0, %v1253
        %v1255 = vpop.f32.mrb[0].mxu0
        %v1256 = vadd.f32 0.0, %v1255
        %1257 = vdwg.mxu0
        %1258 = vmatprep.subr.bf16.mxu0 %v1175
        %1259 = vmatpush1.bf16.msra.mxu0 %v1174
        %1260 = vmatprep.subr.bf16.mxu0 %v1180
        %1261 = vmatpush1.bf16.msra.mxu0 %v1179
        %1262 = vmatprep.subr.bf16.mxu0 %v1210
        %1263 = vmatpush1.bf16.msra.mxu0 %v1207
        %1264 = vmatprep.subr.bf16.mxu0 0
        %1265 = vmatpush1.bf16.msra.mxu0 0
        %1266 = vmatprep.subr.bf16.mxu0 0
        %1267 = vmatpush1.bf16.msra.mxu0 0
        %1268 = vmatprep.subr.bf16.mxu0 0
        %1269 = vmatpush1.bf16.msra.mxu0 0
        %1270 = vmatprep.subr.bf16.mxu0 0
        %1271 = vmatpush1.bf16.msra.mxu0 0
        %1272 = vmatprep.subr.bf16.mxu0 0
        %1273 = vmatpush1.bf16.msra.mxu0 0
        %1274 = vmatprep.subr.bf16.mxu0 0
        %1275 = vmatpush1.bf16.msra.mxu0 0
        %1276 = vmatprep.subr.bf16.mxu0 0
        %1277 = vmatpush1.bf16.msra.mxu0 0
        %1278 = vmatprep.subr.bf16.mxu0 0
        %1279 = vmatpush1.bf16.msra.mxu0 0
        %1280 = vmatprep.subr.bf16.mxu0 0
        %1281 = vmatpush1.bf16.msra.mxu0 0
        %1282 = vmatprep.subr.bf16.mxu0 0
        %1283 = vmatpush1.bf16.msra.mxu0 0
        %1284 = vmatprep.subr.bf16.mxu0 0
        %1285 = vmatpush1.bf16.msra.mxu0 0
        %1286 = vmatprep.subr.bf16.mxu0 0
        %1287 = vmatpush1.bf16.msra.mxu0 0
        %1288 = vmatprep.subr.bf16.mxu0 0
        %1289 = vmatpush1.bf16.msra.mxu0 0
        %1290 = vmatprep.mubr.bf16.mxu0 0
        %1291 = vmatmul.mubr.bf16.gmra.mrb[0].mxu0 %v1198
        %v1292 = vpop.f32.mrb[0].mxu0
        %v1293 = vadd.f32 0.0, %v1292
        %v1294 = vpop.f32.mrb[0].mxu0
        %v1295 = vadd.f32 0.0, %v1294
        %v1296 = vpop.f32.mrb[0].mxu0
        %v1297 = vadd.f32 0.0, %v1296
        %v1298 = vpop.f32.mrb[0].mxu0
        %v1299 = vadd.f32 0.0, %v1298
        %1300 = vdwg.mxu0
        %1301 = vmatprep.subr.bf16.mxu0 0
        %1302 = vmatpush1.bf16.msra.mxu0 %v1176
        %1303 = vmatprep.subr.bf16.mxu0 0
        %1304 = vmatpush1.bf16.msra.mxu0 %v1181
        %1305 = vmatprep.subr.bf16.mxu0 0
        %1306 = vmatpush1.bf16.msra.mxu0 %v1213
        %1307 = vmatprep.subr.bf16.mxu0 0
        %1308 = vmatpush1.bf16.msra.mxu0 0
        %1309 = vmatprep.subr.bf16.mxu0 0
        %1310 = vmatpush1.bf16.msra.mxu0 0
        %1311 = vmatprep.subr.bf16.mxu0 0
        %1312 = vmatpush1.bf16.msra.mxu0 0
        %1313 = vmatprep.subr.bf16.mxu0 0
        %1314 = vmatpush1.bf16.msra.mxu0 0
        %1315 = vmatprep.subr.bf16.mxu0 0
        %1316 = vmatpush1.bf16.msra.mxu0 0
        %1317 = vmatprep.subr.bf16.mxu0 0
        %1318 = vmatpush1.bf16.msra.mxu0 0
        %1319 = vmatprep.subr.bf16.mxu0 0
        %1320 = vmatpush1.bf16.msra.mxu0 0
        %1321 = vmatprep.subr.bf16.mxu0 0
        %1322 = vmatpush1.bf16.msra.mxu0 0
        %1323 = vmatprep.subr.bf16.mxu0 0
        %1324 = vmatpush1.bf16.msra.mxu0 0
        %1325 = vmatprep.subr.bf16.mxu0 0
        %1326 = vmatpush1.bf16.msra.mxu0 0
        %1327 = vmatprep.subr.bf16.mxu0 0
        %1328 = vmatpush1.bf16.msra.mxu0 0
        %1329 = vmatprep.subr.bf16.mxu0 0
        %1330 = vmatpush1.bf16.msra.mxu0 0
        %1331 = vmatprep.subr.bf16.mxu0 0
        %1332 = vmatpush1.bf16.msra.mxu0 0
        %1333 = vmatprep.mubr.bf16.mxu0 0
        %1334 = vmatmul.mubr.bf16.gmra.mrb[0].mxu0 %v1198
        %v1335 = vpop.f32.mrb[0].mxu0
        %v1336 = vadd.f32 0.0, %v1335
        %v1337 = vpop.f32.mrb[0].mxu0
        %v1338 = vpop.f32.mrb[0].mxu0
        %v1339 = vadd.f32 0.0, %v1338
        %v1340 = vpop.f32.mrb[0].mxu0
        %1341 = vdwg.mxu0
        %v1342 = vadd.f32 %v1092, %v1250
        %v1343 = vadd.f32 %v1093, %v1252
        %v1344 = vadd.f32 %v1094, %v1293
        %v1345 = vadd.f32 %v1095, %v1295
        %v1346 = vadd.f32 %v1096, %v1336
        %v1347 = vadd.f32 %v1097, %v1254
        %v1348 = vadd.f32 %v1098, %v1256
        %v1349 = vadd.f32 %v1099, %v1297
        %v1350 = vadd.f32 %v1100, %v1299
        %v1351 = vadd.f32 %v1101, %v1339
        %v1352 = vld [vmem:[%s355 + $0x4] sm:$0xff]
        %v1353 = vld [vmem:[%s355 + $0xc] sm:$0xff]
        %v1354 = vpack.c.bf16 %v1353, %v1352
        %s1355 = scalar_lea.vmem [#allocation3], 480
        %v1356 = vld [vmem:[%s1355] sm:$0xff]
        %v1357 = vld [vmem:[%s1355 + $0x8] sm:$0xff]
        %v1358 = vld [vmem:[%s1355 + $0x10] sm:$0xf]
        %v1359 = vld [vmem:[%s1355 + $0x14] sm:$0xff]
        %v1360 = vld [vmem:[%s1355 + $0x1c] sm:$0xff]
        %v1361 = vld [vmem:[%s1355 + $0x24] sm:$0xf]
        %v1362 = vld [vmem:[%s1355 + $0x28] sm:$0xff]
        %v1363 = vld [vmem:[%s1355 + $0x30] sm:$0xff]
        %v1364 = vld [vmem:[%s1355 + $0x38] sm:$0xf]
        %v1365 = vld [vmem:[%s1355 + $0x3c] sm:$0xff]
        %v1366 = vld [vmem:[%s1355 + $0x44] sm:$0xff]
        %v1367 = vld [vmem:[%s1355 + $0x4c] sm:$0xf]
        %v1368 = vld [vmem:[%s1355 + $0x50] sm:$0xff]
        %v1369 = vld [vmem:[%s1355 + $0x58] sm:$0xff]
        %v1370 = vld [vmem:[%s1355 + $0x60] sm:$0xf]
        %v1371 = vld [vmem:[%s1355 + $0x64] sm:$0x33]
        %v1372 = vld [vmem:[%s1355 + $0x6c] sm:$0x33]
        %v1373 = vld [vmem:[%s1355 + $0x74] sm:$0x3]
        %v1392 = vunpack.c.l.b16 %v1356
        %v1393 = vunpack.c.h.b16 %v1356
        %v1394 = vunpack.c.l.b16 %v1357
        %v1395 = vunpack.c.h.b16 %v1357
        %v1396 = vunpack.c.l.b16 %v1358
        %v1397 = vunpack.c.l.b16 %v1359
        %v1398 = vunpack.c.h.b16 %v1359
        %v1399 = vunpack.c.l.b16 %v1360
        %v1400 = vunpack.c.h.b16 %v1360
        %v1401 = vunpack.c.l.b16 %v1361
        %v1402 = vunpack.c.l.b16 %v1362
        %v1403 = vunpack.c.h.b16 %v1362
        %v1404 = vunpack.c.l.b16 %v1363
        %v1405 = vunpack.c.h.b16 %v1363
        %v1406 = vunpack.c.l.b16 %v1364
        %v1407 = vunpack.c.l.b16 %v1365
        %v1408 = vunpack.c.h.b16 %v1365
        %v1409 = vunpack.c.l.b16 %v1366
        %v1410 = vunpack.c.h.b16 %v1366
        %v1411 = vunpack.c.l.b16 %v1367
        %v1412 = vunpack.c.l.b16 %v1368
        %v1413 = vunpack.c.h.b16 %v1368
        %v1414 = vunpack.c.l.b16 %v1369
        %v1415 = vunpack.c.h.b16 %v1369
        %v1416 = vunpack.c.l.b16 %v1370
        %v1417 = vunpack.c.l.b16 %v1371
        %v1418 = vunpack.c.h.b16 %v1371
        %v1419 = vunpack.c.l.b16 %v1372
        %v1420 = vunpack.c.h.b16 %v1372
        %v1421 = vunpack.c.l.b16 %v1373
        %v1422 = vpack.c.b16 %v1397, %v1392
        %v1423 = vpack.c.b16 %v1398, %v1393
        %v1424 = vpack.c.b16 %v1399, %v1394
        %v1425 = vpack.c.b16 %v1400, %v1395
        %v1426 = vpack.c.b16 %v1401, %v1396
        %v1427 = vpack.c.b16 %v1407, %v1402
        %v1428 = vpack.c.b16 %v1408, %v1403
        %v1429 = vpack.c.b16 %v1409, %v1404
        %v1430 = vpack.c.b16 %v1410, %v1405
        %v1431 = vpack.c.b16 %v1411, %v1406
        %v1432 = vpack.c.b16 %v1417, %v1412
        %v1433 = vpack.c.b16 %v1418, %v1413
        %v1434 = vpack.c.b16 %v1419, %v1414
        %v1435 = vpack.c.b16 %v1420, %v1415
        %v1436 = vpack.c.b16 %v1421, %v1416
        %v1448 = vsel %vm487, %v1354, 0
        %v1451 = vsel %vm491, %v1432, 0
        %v1454 = vsel %vm491, %v1433, 0
        %v1457 = vsel %vm491, %v1434, 0
        %v1460 = vsel %vm491, %v1435, 0
        %v1463 = vsel %vm491, %v1436, 0
        %1465 = vmatprep.subr.bf16.mxu0 %v1423
        %1466 = vmatpush1.bf16.msra.mxu0 %v1422
        %1467 = vmatprep.subr.bf16.mxu0 %v1428
        %1468 = vmatpush1.bf16.msra.mxu0 %v1427
        %1469 = vmatprep.subr.bf16.mxu0 %v1454
        %1470 = vmatpush1.bf16.msra.mxu0 %v1451
        %1471 = vmatprep.subr.bf16.mxu0 0
        %1472 = vmatpush1.bf16.msra.mxu0 0
        %1473 = vmatprep.subr.bf16.mxu0 0
        %1474 = vmatpush1.bf16.msra.mxu0 0
        %1475 = vmatprep.subr.bf16.mxu0 0
        %1476 = vmatpush1.bf16.msra.mxu0 0
        %1477 = vmatprep.subr.bf16.mxu0 0
        %1478 = vmatpush1.bf16.msra.mxu0 0
        %1479 = vmatprep.subr.bf16.mxu0 0
        %1480 = vmatpush1.bf16.msra.mxu0 0
        %1481 = vmatprep.subr.bf16.mxu0 0
        %1482 = vmatpush1.bf16.msra.mxu0 0
        %1483 = vmatprep.subr.bf16.mxu0 0
        %1484 = vmatpush1.bf16.msra.mxu0 0
        %1485 = vmatprep.subr.bf16.mxu0 0
        %1486 = vmatpush1.bf16.msra.mxu0 0
        %1487 = vmatprep.subr.bf16.mxu0 0
        %1488 = vmatpush1.bf16.msra.mxu0 0
        %1489 = vmatprep.subr.bf16.mxu0 0
        %1490 = vmatpush1.bf16.msra.mxu0 0
        %1491 = vmatprep.subr.bf16.mxu0 0
        %1492 = vmatpush1.bf16.msra.mxu0 0
        %1493 = vmatprep.subr.bf16.mxu0 0
        %1494 = vmatpush1.bf16.msra.mxu0 0
        %1495 = vmatprep.subr.bf16.mxu0 0
        %1496 = vmatpush1.bf16.msra.mxu0 0
        %1497 = vmatprep.mubr.bf16.mxu0 0
        %1498 = vmatmul.mubr.bf16.gmra.mrb[0].mxu0 %v1448
        %v1499 = vpop.f32.mrb[0].mxu0
        %v1500 = vadd.f32 0.0, %v1499
        %v1501 = vpop.f32.mrb[0].mxu0
        %v1502 = vadd.f32 0.0, %v1501
        %v1503 = vpop.f32.mrb[0].mxu0
        %v1504 = vadd.f32 0.0, %v1503
        %v1505 = vpop.f32.mrb[0].mxu0
        %v1506 = vadd.f32 0.0, %v1505
        %1507 = vdwg.mxu0
        %1508 = vmatprep.subr.bf16.mxu0 %v1425
        %1509 = vmatpush1.bf16.msra.mxu0 %v1424
        %1510 = vmatprep.subr.bf16.mxu0 %v1430
        %1511 = vmatpush1.bf16.msra.mxu0 %v1429
        %1512 = vmatprep.subr.bf16.mxu0 %v1460
        %1513 = vmatpush1.bf16.msra.mxu0 %v1457
        %1514 = vmatprep.subr.bf16.mxu0 0
        %1515 = vmatpush1.bf16.msra.mxu0 0
        %1516 = vmatprep.subr.bf16.mxu0 0
        %1517 = vmatpush1.bf16.msra.mxu0 0
        %1518 = vmatprep.subr.bf16.mxu0 0
        %1519 = vmatpush1.bf16.msra.mxu0 0
        %1520 = vmatprep.subr.bf16.mxu0 0
        %1521 = vmatpush1.bf16.msra.mxu0 0
        %1522 = vmatprep.subr.bf16.mxu0 0
        %1523 = vmatpush1.bf16.msra.mxu0 0
        %1524 = vmatprep.subr.bf16.mxu0 0
        %1525 = vmatpush1.bf16.msra.mxu0 0
        %1526 = vmatprep.subr.bf16.mxu0 0
        %1527 = vmatpush1.bf16.msra.mxu0 0
        %1528 = vmatprep.subr.bf16.mxu0 0
        %1529 = vmatpush1.bf16.msra.mxu0 0
        %1530 = vmatprep.subr.bf16.mxu0 0
        %1531 = vmatpush1.bf16.msra.mxu0 0
        %1532 = vmatprep.subr.bf16.mxu0 0
        %1533 = vmatpush1.bf16.msra.mxu0 0
        %1534 = vmatprep.subr.bf16.mxu0 0
        %1535 = vmatpush1.bf16.msra.mxu0 0
        %1536 = vmatprep.subr.bf16.mxu0 0
        %1537 = vmatpush1.bf16.msra.mxu0 0
        %1538 = vmatprep.subr.bf16.mxu0 0
        %1539 = vmatpush1.bf16.msra.mxu0 0
        %1540 = vmatprep.mubr.bf16.mxu0 0
        %1541 = vmatmul.mubr.bf16.gmra.mrb[0].mxu0 %v1448
        %v1542 = vpop.f32.mrb[0].mxu0
        %v1543 = vadd.f32 0.0, %v1542
        %v1544 = vpop.f32.mrb[0].mxu0
        %v1545 = vadd.f32 0.0, %v1544
        %v1546 = vpop.f32.mrb[0].mxu0
        %v1547 = vadd.f32 0.0, %v1546
        %v1548 = vpop.f32.mrb[0].mxu0
        %v1549 = vadd.f32 0.0, %v1548
        %1550 = vdwg.mxu0
        %1551 = vmatprep.subr.bf16.mxu0 0
        %1552 = vmatpush1.bf16.msra.mxu0 %v1426
        %1553 = vmatprep.subr.bf16.mxu0 0
        %1554 = vmatpush1.bf16.msra.mxu0 %v1431
        %1555 = vmatprep.subr.bf16.mxu0 0
        %1556 = vmatpush1.bf16.msra.mxu0 %v1463
        %1557 = vmatprep.subr.bf16.mxu0 0
        %1558 = vmatpush1.bf16.msra.mxu0 0
        %1559 = vmatprep.subr.bf16.mxu0 0
        %1560 = vmatpush1.bf16.msra.mxu0 0
        %1561 = vmatprep.subr.bf16.mxu0 0
        %1562 = vmatpush1.bf16.msra.mxu0 0
        %1563 = vmatprep.subr.bf16.mxu0 0
        %1564 = vmatpush1.bf16.msra.mxu0 0
        %1565 = vmatprep.subr.bf16.mxu0 0
        %1566 = vmatpush1.bf16.msra.mxu0 0
        %1567 = vmatprep.subr.bf16.mxu0 0
        %1568 = vmatpush1.bf16.msra.mxu0 0
        %1569 = vmatprep.subr.bf16.mxu0 0
        %1570 = vmatpush1.bf16.msra.mxu0 0
        %1571 = vmatprep.subr.bf16.mxu0 0
        %1572 = vmatpush1.bf16.msra.mxu0 0
        %1573 = vmatprep.subr.bf16.mxu0 0
        %1574 = vmatpush1.bf16.msra.mxu0 0
        %1575 = vmatprep.subr.bf16.mxu0 0
        %1576 = vmatpush1.bf16.msra.mxu0 0
        %1577 = vmatprep.subr.bf16.mxu0 0
        %1578 = vmatpush1.bf16.msra.mxu0 0
        %1579 = vmatprep.subr.bf16.mxu0 0
        %1580 = vmatpush1.bf16.msra.mxu0 0
        %1581 = vmatprep.subr.bf16.mxu0 0
        %1582 = vmatpush1.bf16.msra.mxu0 0
        %1583 = vmatprep.mubr.bf16.mxu0 0
        %1584 = vmatmul.mubr.bf16.gmra.mrb[0].mxu0 %v1448
        %v1585 = vpop.f32.mrb[0].mxu0
        %v1586 = vadd.f32 0.0, %v1585
        %v1587 = vpop.f32.mrb[0].mxu0
        %v1588 = vpop.f32.mrb[0].mxu0
        %v1589 = vadd.f32 0.0, %v1588
        %v1590 = vpop.f32.mrb[0].mxu0
        %1591 = vdwg.mxu0
        %v1592 = vadd.f32 %v1342, %v1500
        %v1593 = vadd.f32 %v1343, %v1502
        %v1594 = vadd.f32 %v1344, %v1543
        %v1595 = vadd.f32 %v1345, %v1545
        %v1596 = vadd.f32 %v1346, %v1586
        %v1597 = vadd.f32 %v1347, %v1504
        %v1598 = vadd.f32 %v1348, %v1506
        %v1599 = vadd.f32 %v1349, %v1547
        %v1600 = vadd.f32 %v1350, %v1549
        %v1601 = vadd.f32 %v1351, %v1589
        %v1602 = vld [vmem:[%s355 + $0x5] sm:$0xff]
        %v1603 = vld [vmem:[%s355 + $0xd] sm:$0xff]
        %v1604 = vpack.c.bf16 %v1603, %v1602
        %s1605 = scalar_lea.vmem [#allocation3], 600
        %v1606 = vld [vmem:[%s1605] sm:$0xff]
        %v1607 = vld [vmem:[%s1605 + $0x8] sm:$0xff]
        %v1608 = vld [vmem:[%s1605 + $0x10] sm:$0xf]
        %v1609 = vld [vmem:[%s1605 + $0x14] sm:$0xff]
        %v1610 = vld [vmem:[%s1605 + $0x1c] sm:$0xff]
        %v1611 = vld [vmem:[%s1605 + $0x24] sm:$0xf]
        %v1612 = vld [vmem:[%s1605 + $0x28] sm:$0xff]
        %v1613 = vld [vmem:[%s1605 + $0x30] sm:$0xff]
        %v1614 = vld [vmem:[%s1605 + $0x38] sm:$0xf]
        %v1615 = vld [vmem:[%s1605 + $0x3c] sm:$0xff]
        %v1616 = vld [vmem:[%s1605 + $0x44] sm:$0xff]
        %v1617 = vld [vmem:[%s1605 + $0x4c] sm:$0xf]
        %v1618 = vld [vmem:[%s1605 + $0x50] sm:$0xff]
        %v1619 = vld [vmem:[%s1605 + $0x58] sm:$0xff]
        %v1620 = vld [vmem:[%s1605 + $0x60] sm:$0xf]
        %v1621 = vld [vmem:[%s1605 + $0x64] sm:$0x33]
        %v1622 = vld [vmem:[%s1605 + $0x6c] sm:$0x33]
        %v1623 = vld [vmem:[%s1605 + $0x74] sm:$0x3]
        %v1642 = vunpack.c.l.b16 %v1606
        %v1643 = vunpack.c.h.b16 %v1606
        %v1644 = vunpack.c.l.b16 %v1607
        %v1645 = vunpack.c.h.b16 %v1607
        %v1646 = vunpack.c.l.b16 %v1608
        %v1647 = vunpack.c.l.b16 %v1609
        %v1648 = vunpack.c.h.b16 %v1609
        %v1649 = vunpack.c.l.b16 %v1610
        %v1650 = vunpack.c.h.b16 %v1610
        %v1651 = vunpack.c.l.b16 %v1611
        %v1652 = vunpack.c.l.b16 %v1612
        %v1653 = vunpack.c.h.b16 %v1612
        %v1654 = vunpack.c.l.b16 %v1613
        %v1655 = vunpack.c.h.b16 %v1613
        %v1656 = vunpack.c.l.b16 %v1614
        %v1657 = vunpack.c.l.b16 %v1615
        %v1658 = vunpack.c.h.b16 %v1615
        %v1659 = vunpack.c.l.b16 %v1616
        %v1660 = vunpack.c.h.b16 %v1616
        %v1661 = vunpack.c.l.b16 %v1617
        %v1662 = vunpack.c.l.b16 %v1618
        %v1663 = vunpack.c.h.b16 %v1618
        %v1664 = vunpack.c.l.b16 %v1619
        %v1665 = vunpack.c.h.b16 %v1619
        %v1666 = vunpack.c.l.b16 %v1620
        %v1667 = vunpack.c.l.b16 %v1621
        %v1668 = vunpack.c.h.b16 %v1621
        %v1669 = vunpack.c.l.b16 %v1622
        %v1670 = vunpack.c.h.b16 %v1622
        %v1671 = vunpack.c.l.b16 %v1623
        %v1672 = vpack.c.b16 %v1647, %v1642
        %v1673 = vpack.c.b16 %v1648, %v1643
        %v1674 = vpack.c.b16 %v1649, %v1644
        %v1675 = vpack.c.b16 %v1650, %v1645
        %v1676 = vpack.c.b16 %v1651, %v1646
        %v1677 = vpack.c.b16 %v1657, %v1652
        %v1678 = vpack.c.b16 %v1658, %v1653
        %v1679 = vpack.c.b16 %v1659, %v1654
        %v1680 = vpack.c.b16 %v1660, %v1655
        %v1681 = vpack.c.b16 %v1661, %v1656
        %v1682 = vpack.c.b16 %v1667, %v1662
        %v1683 = vpack.c.b16 %v1668, %v1663
        %v1684 = vpack.c.b16 %v1669, %v1664
        %v1685 = vpack.c.b16 %v1670, %v1665
        %v1686 = vpack.c.b16 %v1671, %v1666
        %v1698 = vsel %vm487, %v1604, 0
        %v1701 = vsel %vm491, %v1682, 0
        %v1704 = vsel %vm491, %v1683, 0
        %v1707 = vsel %vm491, %v1684, 0
        %v1710 = vsel %vm491, %v1685, 0
        %v1713 = vsel %vm491, %v1686, 0
        %1715 = vmatprep.subr.bf16.mxu0 %v1673
        %1716 = vmatpush1.bf16.msra.mxu0 %v1672
        %1717 = vmatprep.subr.bf16.mxu0 %v1678
        %1718 = vmatpush1.bf16.msra.mxu0 %v1677
        %1719 = vmatprep.subr.bf16.mxu0 %v1704
        %1720 = vmatpush1.bf16.msra.mxu0 %v1701
        %1721 = vmatprep.subr.bf16.mxu0 0
        %1722 = vmatpush1.bf16.msra.mxu0 0
        %1723 = vmatprep.subr.bf16.mxu0 0
        %1724 = vmatpush1.bf16.msra.mxu0 0
        %1725 = vmatprep.subr.bf16.mxu0 0
        %1726 = vmatpush1.bf16.msra.mxu0 0
        %1727 = vmatprep.subr.bf16.mxu0 0
        %1728 = vmatpush1.bf16.msra.mxu0 0
        %1729 = vmatprep.subr.bf16.mxu0 0
        %1730 = vmatpush1.bf16.msra.mxu0 0
        %1731 = vmatprep.subr.bf16.mxu0 0
        %1732 = vmatpush1.bf16.msra.mxu0 0
        %1733 = vmatprep.subr.bf16.mxu0 0
        %1734 = vmatpush1.bf16.msra.mxu0 0
        %1735 = vmatprep.subr.bf16.mxu0 0
        %1736 = vmatpush1.bf16.msra.mxu0 0
        %1737 = vmatprep.subr.bf16.mxu0 0
        %1738 = vmatpush1.bf16.msra.mxu0 0
        %1739 = vmatprep.subr.bf16.mxu0 0
        %1740 = vmatpush1.bf16.msra.mxu0 0
        %1741 = vmatprep.subr.bf16.mxu0 0
        %1742 = vmatpush1.bf16.msra.mxu0 0
        %1743 = vmatprep.subr.bf16.mxu0 0
        %1744 = vmatpush1.bf16.msra.mxu0 0
        %1745 = vmatprep.subr.bf16.mxu0 0
        %1746 = vmatpush1.bf16.msra.mxu0 0
        %1747 = vmatprep.mubr.bf16.mxu0 0
        %1748 = vmatmul.mubr.bf16.gmra.mrb[0].mxu0 %v1698
        %v1749 = vpop.f32.mrb[0].mxu0
        %v1750 = vadd.f32 0.0, %v1749
        %v1751 = vpop.f32.mrb[0].mxu0
        %v1752 = vadd.f32 0.0, %v1751
        %v1753 = vpop.f32.mrb[0].mxu0
        %v1754 = vadd.f32 0.0, %v1753
        %v1755 = vpop.f32.mrb[0].mxu0
        %v1756 = vadd.f32 0.0, %v1755
        %1757 = vdwg.mxu0
        %1758 = vmatprep.subr.bf16.mxu0 %v1675
        %1759 = vmatpush1.bf16.msra.mxu0 %v1674
        %1760 = vmatprep.subr.bf16.mxu0 %v1680
        %1761 = vmatpush1.bf16.msra.mxu0 %v1679
        %1762 = vmatprep.subr.bf16.mxu0 %v1710
        %1763 = vmatpush1.bf16.msra.mxu0 %v1707
        %1764 = vmatprep.subr.bf16.mxu0 0
        %1765 = vmatpush1.bf16.msra.mxu0 0
        %1766 = vmatprep.subr.bf16.mxu0 0
        %1767 = vmatpush1.bf16.msra.mxu0 0
        %1768 = vmatprep.subr.bf16.mxu0 0
        %1769 = vmatpush1.bf16.msra.mxu0 0
        %1770 = vmatprep.subr.bf16.mxu0 0
        %1771 = vmatpush1.bf16.msra.mxu0 0
        %1772 = vmatprep.subr.bf16.mxu0 0
        %1773 = vmatpush1.bf16.msra.mxu0 0
        %1774 = vmatprep.subr.bf16.mxu0 0
        %1775 = vmatpush1.bf16.msra.mxu0 0
        %1776 = vmatprep.subr.bf16.mxu0 0
        %1777 = vmatpush1.bf16.msra.mxu0 0
        %1778 = vmatprep.subr.bf16.mxu0 0
        %1779 = vmatpush1.bf16.msra.mxu0 0
        %1780 = vmatprep.subr.bf16.mxu0 0
        %1781 = vmatpush1.bf16.msra.mxu0 0
        %1782 = vmatprep.subr.bf16.mxu0 0
        %1783 = vmatpush1.bf16.msra.mxu0 0
        %1784 = vmatprep.subr.bf16.mxu0 0
        %1785 = vmatpush1.bf16.msra.mxu0 0
        %1786 = vmatprep.subr.bf16.mxu0 0
        %1787 = vmatpush1.bf16.msra.mxu0 0
        %1788 = vmatprep.subr.bf16.mxu0 0
        %1789 = vmatpush1.bf16.msra.mxu0 0
        %1790 = vmatprep.mubr.bf16.mxu0 0
        %1791 = vmatmul.mubr.bf16.gmra.mrb[0].mxu0 %v1698
        %v1792 = vpop.f32.mrb[0].mxu0
        %v1793 = vadd.f32 0.0, %v1792
        %v1794 = vpop.f32.mrb[0].mxu0
        %v1795 = vadd.f32 0.0, %v1794
        %v1796 = vpop.f32.mrb[0].mxu0
        %v1797 = vadd.f32 0.0, %v1796
        %v1798 = vpop.f32.mrb[0].mxu0
        %v1799 = vadd.f32 0.0, %v1798
        %1800 = vdwg.mxu0
        %1801 = vmatprep.subr.bf16.mxu0 0
        %1802 = vmatpush1.bf16.msra.mxu0 %v1676
        %1803 = vmatprep.subr.bf16.mxu0 0
        %1804 = vmatpush1.bf16.msra.mxu0 %v1681
        %1805 = vmatprep.subr.bf16.mxu0 0
        %1806 = vmatpush1.bf16.msra.mxu0 %v1713
        %1807 = vmatprep.subr.bf16.mxu0 0
        %1808 = vmatpush1.bf16.msra.mxu0 0
        %1809 = vmatprep.subr.bf16.mxu0 0
        %1810 = vmatpush1.bf16.msra.mxu0 0
        %1811 = vmatprep.subr.bf16.mxu0 0
        %1812 = vmatpush1.bf16.msra.mxu0 0
        %1813 = vmatprep.subr.bf16.mxu0 0
        %1814 = vmatpush1.bf16.msra.mxu0 0
        %1815 = vmatprep.subr.bf16.mxu0 0
        %1816 = vmatpush1.bf16.msra.mxu0 0
        %1817 = vmatprep.subr.bf16.mxu0 0
        %1818 = vmatpush1.bf16.msra.mxu0 0
        %1819 = vmatprep.subr.bf16.mxu0 0
        %1820 = vmatpush1.bf16.msra.mxu0 0
        %1821 = vmatprep.subr.bf16.mxu0 0
        %1822 = vmatpush1.bf16.msra.mxu0 0
        %1823 = vmatprep.subr.bf16.mxu0 0
        %1824 = vmatpush1.bf16.msra.mxu0 0
        %1825 = vmatprep.subr.bf16.mxu0 0
        %1826 = vmatpush1.bf16.msra.mxu0 0
        %1827 = vmatprep.subr.bf16.mxu0 0
        %1828 = vmatpush1.bf16.msra.mxu0 0
        %1829 = vmatprep.subr.bf16.mxu0 0
        %1830 = vmatpush1.bf16.msra.mxu0 0
        %1831 = vmatprep.subr.bf16.mxu0 0
        %1832 = vmatpush1.bf16.msra.mxu0 0
        %1833 = vmatprep.mubr.bf16.mxu0 0
        %1834 = vmatmul.mubr.bf16.gmra.mrb[0].mxu0 %v1698
        %v1835 = vpop.f32.mrb[0].mxu0
        %v1836 = vadd.f32 0.0, %v1835
        %v1837 = vpop.f32.mrb[0].mxu0
        %v1838 = vpop.f32.mrb[0].mxu0
        %v1839 = vadd.f32 0.0, %v1838
        %v1840 = vpop.f32.mrb[0].mxu0
        %1841 = vdwg.mxu0
        %v1842 = vadd.f32 %v1592, %v1750
        %v1843 = vadd.f32 %v1593, %v1752
        %v1844 = vadd.f32 %v1594, %v1793
        %v1845 = vadd.f32 %v1595, %v1795
        %v1846 = vadd.f32 %v1596, %v1836
        %v1847 = vadd.f32 %v1597, %v1754
        %v1848 = vadd.f32 %v1598, %v1756
        %v1849 = vadd.f32 %v1599, %v1797
        %v1850 = vadd.f32 %v1600, %v1799
        %v1851 = vadd.f32 %v1601, %v1839
        %v1852 = vld [vmem:[%s355 + $0x6] sm:$0xff]
        %v1853 = vld [vmem:[%s355 + $0xe] sm:$0xff]
        %v1854 = vpack.c.bf16 %v1853, %v1852
        %s1855 = scalar_lea.vmem [#allocation3], 720
        %v1856 = vld [vmem:[%s1855] sm:$0xff]
        %v1857 = vld [vmem:[%s1855 + $0x8] sm:$0xff]
        %v1858 = vld [vmem:[%s1855 + $0x10] sm:$0xf]
        %v1859 = vld [vmem:[%s1855 + $0x14] sm:$0xff]
        %v1860 = vld [vmem:[%s1855 + $0x1c] sm:$0xff]
        %v1861 = vld [vmem:[%s1855 + $0x24] sm:$0xf]
        %v1862 = vld [vmem:[%s1855 + $0x28] sm:$0xff]
        %v1863 = vld [vmem:[%s1855 + $0x30] sm:$0xff]
        %v1864 = vld [vmem:[%s1855 + $0x38] sm:$0xf]
        %v1865 = vld [vmem:[%s1855 + $0x3c] sm:$0xff]
        %v1866 = vld [vmem:[%s1855 + $0x44] sm:$0xff]
        %v1867 = vld [vmem:[%s1855 + $0x4c] sm:$0xf]
        %v1868 = vld [vmem:[%s1855 + $0x50] sm:$0xff]
        %v1869 = vld [vmem:[%s1855 + $0x58] sm:$0xff]
        %v1870 = vld [vmem:[%s1855 + $0x60] sm:$0xf]
        %v1871 = vld [vmem:[%s1855 + $0x64] sm:$0x33]
        %v1872 = vld [vmem:[%s1855 + $0x6c] sm:$0x33]
        %v1873 = vld [vmem:[%s1855 + $0x74] sm:$0x3]
        %v1892 = vunpack.c.l.b16 %v1856
        %v1893 = vunpack.c.h.b16 %v1856
        %v1894 = vunpack.c.l.b16 %v1857
        %v1895 = vunpack.c.h.b16 %v1857
        %v1896 = vunpack.c.l.b16 %v1858
        %v1897 = vunpack.c.l.b16 %v1859
        %v1898 = vunpack.c.h.b16 %v1859
        %v1899 = vunpack.c.l.b16 %v1860
        %v1900 = vunpack.c.h.b16 %v1860
        %v1901 = vunpack.c.l.b16 %v1861
        %v1902 = vunpack.c.l.b16 %v1862
        %v1903 = vunpack.c.h.b16 %v1862
        %v1904 = vunpack.c.l.b16 %v1863
        %v1905 = vunpack.c.h.b16 %v1863
        %v1906 = vunpack.c.l.b16 %v1864
        %v1907 = vunpack.c.l.b16 %v1865
        %v1908 = vunpack.c.h.b16 %v1865
        %v1909 = vunpack.c.l.b16 %v1866
        %v1910 = vunpack.c.h.b16 %v1866
        %v1911 = vunpack.c.l.b16 %v1867
        %v1912 = vunpack.c.l.b16 %v1868
        %v1913 = vunpack.c.h.b16 %v1868
        %v1914 = vunpack.c.l.b16 %v1869
        %v1915 = vunpack.c.h.b16 %v1869
        %v1916 = vunpack.c.l.b16 %v1870
        %v1917 = vunpack.c.l.b16 %v1871
        %v1918 = vunpack.c.h.b16 %v1871
        %v1919 = vunpack.c.l.b16 %v1872
        %v1920 = vunpack.c.h.b16 %v1872
        %v1921 = vunpack.c.l.b16 %v1873
        %v1922 = vpack.c.b16 %v1897, %v1892
        %v1923 = vpack.c.b16 %v1898, %v1893
        %v1924 = vpack.c.b16 %v1899, %v1894
        %v1925 = vpack.c.b16 %v1900, %v1895
        %v1926 = vpack.c.b16 %v1901, %v1896
        %v1927 = vpack.c.b16 %v1907, %v1902
        %v1928 = vpack.c.b16 %v1908, %v1903
        %v1929 = vpack.c.b16 %v1909, %v1904
        %v1930 = vpack.c.b16 %v1910, %v1905
        %v1931 = vpack.c.b16 %v1911, %v1906
        %v1932 = vpack.c.b16 %v1917, %v1912
        %v1933 = vpack.c.b16 %v1918, %v1913
        %v1934 = vpack.c.b16 %v1919, %v1914
        %v1935 = vpack.c.b16 %v1920, %v1915
        %v1936 = vpack.c.b16 %v1921, %v1916
        %v1948 = vsel %vm487, %v1854, 0
        %v1951 = vsel %vm491, %v1932, 0
        %v1954 = vsel %vm491, %v1933, 0
        %v1957 = vsel %vm491, %v1934, 0
        %v1960 = vsel %vm491, %v1935, 0
        %v1963 = vsel %vm491, %v1936, 0
        %1965 = vmatprep.subr.bf16.mxu0 %v1923
        %1966 = vmatpush1.bf16.msra.mxu0 %v1922
        %1967 = vmatprep.subr.bf16.mxu0 %v1928
        %1968 = vmatpush1.bf16.msra.mxu0 %v1927
        %1969 = vmatprep.subr.bf16.mxu0 %v1954
        %1970 = vmatpush1.bf16.msra.mxu0 %v1951
        %1971 = vmatprep.subr.bf16.mxu0 0
        %1972 = vmatpush1.bf16.msra.mxu0 0
        %1973 = vmatprep.subr.bf16.mxu0 0
        %1974 = vmatpush1.bf16.msra.mxu0 0
        %1975 = vmatprep.subr.bf16.mxu0 0
        %1976 = vmatpush1.bf16.msra.mxu0 0
        %1977 = vmatprep.subr.bf16.mxu0 0
        %1978 = vmatpush1.bf16.msra.mxu0 0
        %1979 = vmatprep.subr.bf16.mxu0 0
        %1980 = vmatpush1.bf16.msra.mxu0 0
        %1981 = vmatprep.subr.bf16.mxu0 0
        %1982 = vmatpush1.bf16.msra.mxu0 0
        %1983 = vmatprep.subr.bf16.mxu0 0
        %1984 = vmatpush1.bf16.msra.mxu0 0
        %1985 = vmatprep.subr.bf16.mxu0 0
        %1986 = vmatpush1.bf16.msra.mxu0 0
        %1987 = vmatprep.subr.bf16.mxu0 0
        %1988 = vmatpush1.bf16.msra.mxu0 0
        %1989 = vmatprep.subr.bf16.mxu0 0
        %1990 = vmatpush1.bf16.msra.mxu0 0
        %1991 = vmatprep.subr.bf16.mxu0 0
        %1992 = vmatpush1.bf16.msra.mxu0 0
        %1993 = vmatprep.subr.bf16.mxu0 0
        %1994 = vmatpush1.bf16.msra.mxu0 0
        %1995 = vmatprep.subr.bf16.mxu0 0
        %1996 = vmatpush1.bf16.msra.mxu0 0
        %1997 = vmatprep.mubr.bf16.mxu0 0
        %1998 = vmatmul.mubr.bf16.gmra.mrb[0].mxu0 %v1948
        %v1999 = vpop.f32.mrb[0].mxu0
        %v2000 = vadd.f32 0.0, %v1999
        %v2001 = vpop.f32.mrb[0].mxu0
        %v2002 = vadd.f32 0.0, %v2001
        %v2003 = vpop.f32.mrb[0].mxu0
        %v2004 = vadd.f32 0.0, %v2003
        %v2005 = vpop.f32.mrb[0].mxu0
        %v2006 = vadd.f32 0.0, %v2005
        %2007 = vdwg.mxu0
        %2008 = vmatprep.subr.bf16.mxu0 %v1925
        %2009 = vmatpush1.bf16.msra.mxu0 %v1924
        %2010 = vmatprep.subr.bf16.mxu0 %v1930
        %2011 = vmatpush1.bf16.msra.mxu0 %v1929
        %2012 = vmatprep.subr.bf16.mxu0 %v1960
        %2013 = vmatpush1.bf16.msra.mxu0 %v1957
        %2014 = vmatprep.subr.bf16.mxu0 0
        %2015 = vmatpush1.bf16.msra.mxu0 0
        %2016 = vmatprep.subr.bf16.mxu0 0
        %2017 = vmatpush1.bf16.msra.mxu0 0
        %2018 = vmatprep.subr.bf16.mxu0 0
        %2019 = vmatpush1.bf16.msra.mxu0 0
        %2020 = vmatprep.subr.bf16.mxu0 0
        %2021 = vmatpush1.bf16.msra.mxu0 0
        %2022 = vmatprep.subr.bf16.mxu0 0
        %2023 = vmatpush1.bf16.msra.mxu0 0
        %2024 = vmatprep.subr.bf16.mxu0 0
        %2025 = vmatpush1.bf16.msra.mxu0 0
        %2026 = vmatprep.subr.bf16.mxu0 0
        %2027 = vmatpush1.bf16.msra.mxu0 0
        %2028 = vmatprep.subr.bf16.mxu0 0
        %2029 = vmatpush1.bf16.msra.mxu0 0
        %2030 = vmatprep.subr.bf16.mxu0 0
        %2031 = vmatpush1.bf16.msra.mxu0 0
        %2032 = vmatprep.subr.bf16.mxu0 0
        %2033 = vmatpush1.bf16.msra.mxu0 0
        %2034 = vmatprep.subr.bf16.mxu0 0
        %2035 = vmatpush1.bf16.msra.mxu0 0
        %2036 = vmatprep.subr.bf16.mxu0 0
        %2037 = vmatpush1.bf16.msra.mxu0 0
        %2038 = vmatprep.subr.bf16.mxu0 0
        %2039 = vmatpush1.bf16.msra.mxu0 0
        %2040 = vmatprep.mubr.bf16.mxu0 0
        %2041 = vmatmul.mubr.bf16.gmra.mrb[0].mxu0 %v1948
        %v2042 = vpop.f32.mrb[0].mxu0
        %v2043 = vadd.f32 0.0, %v2042
        %v2044 = vpop.f32.mrb[0].mxu0
        %v2045 = vadd.f32 0.0, %v2044
        %v2046 = vpop.f32.mrb[0].mxu0
        %v2047 = vadd.f32 0.0, %v2046
        %v2048 = vpop.f32.mrb[0].mxu0
        %v2049 = vadd.f32 0.0, %v2048
        %2050 = vdwg.mxu0
        %2051 = vmatprep.subr.bf16.mxu0 0
        %2052 = vmatpush1.bf16.msra.mxu0 %v1926
        %2053 = vmatprep.subr.bf16.mxu0 0
        %2054 = vmatpush1.bf16.msra.mxu0 %v1931
        %2055 = vmatprep.subr.bf16.mxu0 0
        %2056 = vmatpush1.bf16.msra.mxu0 %v1963
        %2057 = vmatprep.subr.bf16.mxu0 0
        %2058 = vmatpush1.bf16.msra.mxu0 0
        %2059 = vmatprep.subr.bf16.mxu0 0
        %2060 = vmatpush1.bf16.msra.mxu0 0
        %2061 = vmatprep.subr.bf16.mxu0 0
        %2062 = vmatpush1.bf16.msra.mxu0 0
        %2063 = vmatprep.subr.bf16.mxu0 0
        %2064 = vmatpush1.bf16.msra.mxu0 0
        %2065 = vmatprep.subr.bf16.mxu0 0
        %2066 = vmatpush1.bf16.msra.mxu0 0
        %2067 = vmatprep.subr.bf16.mxu0 0
        %2068 = vmatpush1.bf16.msra.mxu0 0
        %2069 = vmatprep.subr.bf16.mxu0 0
        %2070 = vmatpush1.bf16.msra.mxu0 0
        %2071 = vmatprep.subr.bf16.mxu0 0
        %2072 = vmatpush1.bf16.msra.mxu0 0
        %2073 = vmatprep.subr.bf16.mxu0 0
        %2074 = vmatpush1.bf16.msra.mxu0 0
        %2075 = vmatprep.subr.bf16.mxu0 0
        %2076 = vmatpush1.bf16.msra.mxu0 0
        %2077 = vmatprep.subr.bf16.mxu0 0
        %2078 = vmatpush1.bf16.msra.mxu0 0
        %2079 = vmatprep.subr.bf16.mxu0 0
        %2080 = vmatpush1.bf16.msra.mxu0 0
        %2081 = vmatprep.subr.bf16.mxu0 0
        %2082 = vmatpush1.bf16.msra.mxu0 0
        %2083 = vmatprep.mubr.bf16.mxu0 0
        %2084 = vmatmul.mubr.bf16.gmra.mrb[0].mxu0 %v1948
        %v2085 = vpop.f32.mrb[0].mxu0
        %v2086 = vadd.f32 0.0, %v2085
        %v2087 = vpop.f32.mrb[0].mxu0
        %v2088 = vpop.f32.mrb[0].mxu0
        %v2089 = vadd.f32 0.0, %v2088
        %v2090 = vpop.f32.mrb[0].mxu0
        %2091 = vdwg.mxu0
        %v2092 = vadd.f32 %v1842, %v2000
        %v2093 = vadd.f32 %v1843, %v2002
        %v2094 = vadd.f32 %v1844, %v2043
        %v2095 = vadd.f32 %v1845, %v2045
        %v2096 = vadd.f32 %v1846, %v2086
        %v2097 = vadd.f32 %v1847, %v2004
        %v2098 = vadd.f32 %v1848, %v2006
        %v2099 = vadd.f32 %v1849, %v2047
        %v2100 = vadd.f32 %v1850, %v2049
        %v2101 = vadd.f32 %v1851, %v2089
        %v2102 = vld [vmem:[#allocation5] sm:$0x1f]
        %v2104 = vlaneseq
        %v2105 = vshrl.u32 %v2104, 7
        %v2106 = vsub.s32 0, %v2105
        %v2107 = vrot.slane %v2102, %v2106
        %v2108 = vlaneseq
        %v2109 = vshrl.u32 %v2108, 7
        %v2110 = vsub.s32 1, %v2109
        %v2111 = vrot.slane %v2102, %v2110
        %v2112 = vlaneseq
        %v2113 = vshrl.u32 %v2112, 7
        %v2114 = vsub.s32 2, %v2113
        %v2115 = vrot.slane %v2102, %v2114
        %v2116 = vlaneseq
        %v2117 = vshrl.u32 %v2116, 7
        %v2118 = vsub.s32 3, %v2117
        %v2119 = vrot.slane %v2102, %v2118
        %v2120 = vlaneseq
        %v2121 = vshrl.u32 %v2120, 7
        %v2122 = vsub.s32 4, %v2121
        %v2123 = vrot.slane %v2102, %v2122
        %v2129 = vadd.f32 %v2092, %v2107
        %v2130 = vadd.f32 %v2093, %v2111
        %v2131 = vadd.f32 %v2094, %v2115
        %v2132 = vadd.f32 %v2095, %v2119
        %v2133 = vadd.f32 %v2096, %v2123
        %v2134 = vadd.f32 %v2097, %v2107
        %v2135 = vadd.f32 %v2098, %v2111
        %v2136 = vadd.f32 %v2099, %v2115
        %v2137 = vadd.f32 %v2100, %v2119
        %v2138 = vadd.f32 %v2101, %v2123
        %v2139 = vmax.f32 %v2129, 0.0
        %v2140 = vmax.f32 %v2130, 0.0
        %v2141 = vmax.f32 %v2131, 0.0
        %v2142 = vmax.f32 %v2132, 0.0
        %v2143 = vmax.f32 %v2133, 0.0
        %v2144 = vmax.f32 %v2134, 0.0
        %v2145 = vmax.f32 %v2135, 0.0
        %v2146 = vmax.f32 %v2136, 0.0
        %v2147 = vmax.f32 %v2137, 0.0
        %v2148 = vmax.f32 %v2138, 0.0
        %vm2159 = vcmask 1040384
        %v2160 = vrot.slane %v2139, 7
        %v2161 = vrot.slane %v2140, 7
        %v2162 = vrot.slane %v2141, 7
        %v2163 = vrot.slane %v2142, 7
        %v2164 = vrot.slane %v2143, 7
        %v2165 = vrot.slane %v2144, 7
        %v2166 = vsel %vm2159, %v2160, %v2165
        %v2167 = vrot.slane %v2145, 7
        %v2168 = vsel %vm2159, %v2161, %v2167
        %v2169 = vrot.slane %v2146, 7
        %v2170 = vsel %vm2159, %v2162, %v2169
        %v2171 = vrot.slane %v2147, 7
        %v2172 = vsel %vm2159, %v2163, %v2171
        %v2173 = vrot.slane %v2148, 7
        %v2174 = vsel %vm2159, %v2164, %v2173
        %2190 = vst [vmem:[#allocation2] sm:$0xfe] %v2160
        %2191 = vst [vmem:[#allocation2 + $0x8] sm:$0xfe] %v2161
        %2192 = vst [vmem:[#allocation2 + $0x10] sm:$0xfe] %v2162
        %2193 = vst [vmem:[#allocation2 + $0x18] sm:$0xfe] %v2163
        %vm2194 = vcmask 523265
        %2195 = vst.msk [vmem:[#allocation2 + $0x20] sm:$0xfe] %vm2194, %v2164
        %2196 = vst [vmem:[#allocation2 + $0x28] sm:$0xff] %v2166
        %2197 = vst [vmem:[#allocation2 + $0x30] sm:$0xff] %v2168
        %2198 = vst [vmem:[#allocation2 + $0x38] sm:$0xff] %v2170
        %2199 = vst [vmem:[#allocation2 + $0x40] sm:$0xff] %v2172
        %vm2200 = vcmask 523264
        %2201 = vst.msk [vmem:[#allocation2 + $0x48] sm:$0xff] %vm2200, %v2174
        %2202 = vst [vmem:[#allocation2 + $0x50] sm:$0x1] %v2165
        %2203 = vst [vmem:[#allocation2 + $0x58] sm:$0x1] %v2167
        %2204 = vst [vmem:[#allocation2 + $0x60] sm:$0x1] %v2169
        %2205 = vst [vmem:[#allocation2 + $0x68] sm:$0x1] %v2171
        %vm2206 = vcmask 516096
        %2207 = vst.msk [vmem:[#allocation2 + $0x70] sm:$0x1] %vm2206, %v2173
        %v2208 = vld [vmem:[#allocation2] sm:$0xff]
        %v2209 = vld [vmem:[#allocation2 + $0x8] sm:$0xff]
        %v2210 = vld [vmem:[#allocation2 + $0x10] sm:$0xff]
        %v2211 = vld [vmem:[#allocation2 + $0x18] sm:$0xff]
        %v2212 = vld [vmem:[#allocation2 + $0x20] sm:$0xff]
        %v2213 = vld [vmem:[#allocation2 + $0x28] sm:$0xff]
        %v2214 = vld [vmem:[#allocation2 + $0x30] sm:$0xff]
        %v2215 = vld [vmem:[#allocation2 + $0x38] sm:$0xff]
        %v2216 = vld [vmem:[#allocation2 + $0x40] sm:$0xff]
        %v2217 = vld [vmem:[#allocation2 + $0x48] sm:$0xff]
        %v2218 = vpack.c.bf16 %v2213, %v2208
        %v2219 = vpack.c.bf16 %v2214, %v2209
        %v2220 = vpack.c.bf16 %v2215, %v2210
        %v2221 = vpack.c.bf16 %v2216, %v2211
        %v2222 = vpack.c.bf16 %v2217, %v2212
        %v2223 = vld [vmem:[#allocation7] sm:$0xff]
        %v2224 = vld [vmem:[#allocation7 + $0x8] sm:$0xff]
        %v2225 = vld [vmem:[#allocation7 + $0x10] sm:$0xff]
        %v2226 = vld [vmem:[#allocation7 + $0x18] sm:$0xff]
        %v2227 = vld [vmem:[#allocation7 + $0x20] sm:$0xff]
        %v2228 = vld [vmem:[#allocation7 + $0x28] sm:$0xff]
        %v2229 = vld [vmem:[#allocation7 + $0x30] sm:$0xff]
        %v2230 = vld [vmem:[#allocation7 + $0x38] sm:$0xff]
        %v2231 = vld [vmem:[#allocation7 + $0x40] sm:$0xff]
        %v2232 = vld [vmem:[#allocation7 + $0x48] sm:$0xff]
        %v2233 = vld [vmem:[#allocation7 + $0x50] sm:$0xff]
        %v2234 = vld [vmem:[#allocation7 + $0x58] sm:$0xff]
        %v2235 = vld [vmem:[#allocation7 + $0x60] sm:$0xff]
        %v2236 = vld [vmem:[#allocation7 + $0x68] sm:$0xff]
        %v2237 = vld [vmem:[#allocation7 + $0x70] sm:$0xff]
        %v2238 = vld [vmem:[#allocation7 + $0x78] sm:$0xff]
        %v2239 = vld [vmem:[#allocation7 + $0x80] sm:$0xff]
        %v2240 = vld [vmem:[#allocation7 + $0x88] sm:$0xff]
        %v2241 = vld [vmem:[#allocation7 + $0x90] sm:$0xff]
        %v2242 = vld [vmem:[#allocation7 + $0x98] sm:$0xff]
        %v2243 = vld [vmem:[#allocation7 + $0xa0] sm:$0xff]
        %v2244 = vld [vmem:[#allocation7 + $0xa8] sm:$0xff]
        %v2245 = vld [vmem:[#allocation7 + $0xb0] sm:$0xff]
        %v2246 = vld [vmem:[#allocation7 + $0xb8] sm:$0xff]
        %v2247 = vld [vmem:[#allocation7 + $0xc0] sm:$0xff]
        %v2248 = vld [vmem:[#allocation7 + $0xc8] sm:$0xff]
        %v2249 = vld [vmem:[#allocation7 + $0xd0] sm:$0xff]
        %v2250 = vld [vmem:[#allocation7 + $0xd8] sm:$0xff]
        %v2251 = vld [vmem:[#allocation7 + $0xe0] sm:$0xff]
        %v2252 = vld [vmem:[#allocation7 + $0xe8] sm:$0xff]
        %v2253 = vld [vmem:[#allocation7 + $0xf0] sm:$0xff]
        %v2254 = vld [vmem:[#allocation7 + $0xf8] sm:$0xff]
        %v2255 = vld [vmem:[#allocation7 + $0x100] sm:$0xff]
        %v2256 = vld [vmem:[#allocation7 + $0x108] sm:$0xff]
        %v2257 = vld [vmem:[#allocation7 + $0x110] sm:$0xff]
        %v2258 = vld [vmem:[#allocation7 + $0x118] sm:$0xff]
        %v2259 = vld [vmem:[#allocation7 + $0x120] sm:$0xff]
        %v2260 = vld [vmem:[#allocation7 + $0x128] sm:$0xff]
        %v2261 = vld [vmem:[#allocation7 + $0x130] sm:$0xff]
        %v2262 = vld [vmem:[#allocation7 + $0x138] sm:$0xff]
        %v2263 = vld [vmem:[#allocation7 + $0x140] sm:$0xff]
        %v2264 = vld [vmem:[#allocation7 + $0x148] sm:$0xff]
        %v2265 = vld [vmem:[#allocation7 + $0x150] sm:$0xff]
        %v2266 = vld [vmem:[#allocation7 + $0x158] sm:$0xff]
        %v2267 = vld [vmem:[#allocation7 + $0x160] sm:$0xff]
        %v2268 = vld [vmem:[#allocation7 + $0x168] sm:$0xff]
        %v2269 = vld [vmem:[#allocation7 + $0x170] sm:$0xff]
        %v2270 = vld [vmem:[#allocation7 + $0x178] sm:$0xff]
        %v2271 = vld [vmem:[#allocation7 + $0x180] sm:$0xff]
        %v2272 = vld [vmem:[#allocation7 + $0x188] sm:$0xff]
        %v2273 = vld [vmem:[#allocation7 + $0x190] sm:$0xff]
        %v2274 = vld [vmem:[#allocation7 + $0x198] sm:$0xff]
        %v2275 = vld [vmem:[#allocation7 + $0x1a0] sm:$0xff]
        %v2276 = vld [vmem:[#allocation7 + $0x1a8] sm:$0xff]
        %v2277 = vld [vmem:[#allocation7 + $0x1b0] sm:$0xff]
        %v2278 = vld [vmem:[#allocation7 + $0x1b8] sm:$0xff]
        %v2279 = vld [vmem:[#allocation7 + $0x1c0] sm:$0xff]
        %v2280 = vld [vmem:[#allocation7 + $0x1c8] sm:$0xff]
        %v2281 = vld [vmem:[#allocation7 + $0x1d0] sm:$0xff]
        %v2282 = vld [vmem:[#allocation7 + $0x1d8] sm:$0xff]
        %v2283 = vld [vmem:[#allocation7 + $0x1e0] sm:$0xff]
        %v2284 = vld [vmem:[#allocation7 + $0x1e8] sm:$0xff]
        %v2285 = vld [vmem:[#allocation7 + $0x1f0] sm:$0xff]
        %v2286 = vld [vmem:[#allocation7 + $0x1f8] sm:$0xff]
        %v2287 = vld [vmem:[#allocation7 + $0x200] sm:$0xff]
        %v2288 = vld [vmem:[#allocation7 + $0x208] sm:$0xff]
        %v2289 = vld [vmem:[#allocation7 + $0x210] sm:$0xff]
        %v2290 = vld [vmem:[#allocation7 + $0x218] sm:$0xff]
        %v2291 = vld [vmem:[#allocation7 + $0x220] sm:$0xff]
        %v2292 = vld [vmem:[#allocation7 + $0x228] sm:$0xff]
        %v2293 = vld [vmem:[#allocation7 + $0x230] sm:$0xff]
        %v2294 = vld [vmem:[#allocation7 + $0x238] sm:$0xff]
        %v2295 = vld [vmem:[#allocation7 + $0x240] sm:$0xff]
        %v2296 = vld [vmem:[#allocation7 + $0x248] sm:$0xff]
        %v2297 = vld [vmem:[#allocation7 + $0x250] sm:$0xff]
        %v2298 = vld [vmem:[#allocation7 + $0x258] sm:$0xff]
        %v2299 = vld [vmem:[#allocation7 + $0x260] sm:$0xff]
        %v2300 = vld [vmem:[#allocation7 + $0x268] sm:$0xff]
        %v2301 = vld [vmem:[#allocation7 + $0x270] sm:$0xff]
        %v2302 = vld [vmem:[#allocation7 + $0x278] sm:$0xff]
        %v2303 = vld [vmem:[#allocation7 + $0x280] sm:$0xff]
        %v2304 = vld [vmem:[#allocation7 + $0x288] sm:$0xff]
        %v2305 = vld [vmem:[#allocation7 + $0x290] sm:$0xff]
        %v2306 = vld [vmem:[#allocation7 + $0x298] sm:$0xff]
        %v2307 = vld [vmem:[#allocation7 + $0x2a0] sm:$0xff]
        %v2308 = vld [vmem:[#allocation7 + $0x2a8] sm:$0xff]
        %v2309 = vld [vmem:[#allocation7 + $0x2b0] sm:$0xff]
        %v2310 = vld [vmem:[#allocation7 + $0x2b8] sm:$0xff]
        %v2311 = vld [vmem:[#allocation7 + $0x2c0] sm:$0xff]
        %v2312 = vld [vmem:[#allocation7 + $0x2c8] sm:$0xff]
        %v2313 = vld [vmem:[#allocation7 + $0x2d0] sm:$0xff]
        %v2314 = vld [vmem:[#allocation7 + $0x2d8] sm:$0xff]
        %v2315 = vld [vmem:[#allocation7 + $0x2e0] sm:$0xff]
        %v2316 = vld [vmem:[#allocation7 + $0x2e8] sm:$0xff]
        %v2317 = vld [vmem:[#allocation7 + $0x2f0] sm:$0xff]
        %v2318 = vld [vmem:[#allocation7 + $0x2f8] sm:$0xff]
        %v2319 = vld [vmem:[#allocation7 + $0x300] sm:$0xff]
        %v2320 = vld [vmem:[#allocation7 + $0x308] sm:$0xff]
        %v2321 = vld [vmem:[#allocation7 + $0x310] sm:$0xff]
        %v2322 = vld [vmem:[#allocation7 + $0x318] sm:$0xff]
        %v2323 = vld [vmem:[#allocation7 + $0x320] sm:$0xff]
        %v2324 = vld [vmem:[#allocation7 + $0x328] sm:$0xff]
        %v2325 = vld [vmem:[#allocation7 + $0x330] sm:$0xff]
        %v2326 = vld [vmem:[#allocation7 + $0x338] sm:$0xff]
        %v2327 = vld [vmem:[#allocation7 + $0x340] sm:$0xff]
        %v2328 = vld [vmem:[#allocation7 + $0x348] sm:$0xff]
        %v2329 = vld [vmem:[#allocation7 + $0x350] sm:$0xff]
        %v2330 = vld [vmem:[#allocation7 + $0x358] sm:$0xff]
        %v2331 = vld [vmem:[#allocation7 + $0x360] sm:$0xff]
        %v2332 = vld [vmem:[#allocation7 + $0x368] sm:$0xff]
        %v2333 = vld [vmem:[#allocation7 + $0x370] sm:$0xff]
        %v2334 = vld [vmem:[#allocation7 + $0x378] sm:$0xff]
        %v2335 = vld [vmem:[#allocation7 + $0x380] sm:$0xff]
        %v2336 = vld [vmem:[#allocation7 + $0x388] sm:$0xff]
        %v2337 = vld [vmem:[#allocation7 + $0x390] sm:$0xff]
        %v2338 = vld [vmem:[#allocation7 + $0x398] sm:$0xff]
        %v2339 = vld [vmem:[#allocation7 + $0x3a0] sm:$0xff]
        %v2340 = vld [vmem:[#allocation7 + $0x3a8] sm:$0xff]
        %v2341 = vld [vmem:[#allocation7 + $0x3b0] sm:$0xff]
        %v2342 = vld [vmem:[#allocation7 + $0x3b8] sm:$0xff]
        %v2343 = vld [vmem:[#allocation7 + $0x3c0] sm:$0xff]
        %v2344 = vld [vmem:[#allocation7 + $0x3c8] sm:$0xff]
        %v2345 = vld [vmem:[#allocation7 + $0x3d0] sm:$0xff]
        %v2346 = vld [vmem:[#allocation7 + $0x3d8] sm:$0xff]
        %v2347 = vld [vmem:[#allocation7 + $0x3e0] sm:$0xff]
        %v2348 = vld [vmem:[#allocation7 + $0x3e8] sm:$0xff]
        %v2349 = vld [vmem:[#allocation7 + $0x3f0] sm:$0xff]
        %v2350 = vld [vmem:[#allocation7 + $0x3f8] sm:$0xff]
        %v2351 = vld [vmem:[#allocation7 + $0x400] sm:$0xff]
        %v2352 = vld [vmem:[#allocation7 + $0x408] sm:$0xff]
        %v2353 = vld [vmem:[#allocation7 + $0x410] sm:$0xff]
        %v2354 = vld [vmem:[#allocation7 + $0x418] sm:$0xff]
        %v2355 = vld [vmem:[#allocation7 + $0x420] sm:$0xff]
        %v2356 = vld [vmem:[#allocation7 + $0x428] sm:$0xff]
        %v2357 = vld [vmem:[#allocation7 + $0x430] sm:$0xff]
        %v2358 = vld [vmem:[#allocation7 + $0x438] sm:$0xff]
        %v2359 = vld [vmem:[#allocation7 + $0x440] sm:$0xff]
        %v2360 = vld [vmem:[#allocation7 + $0x448] sm:$0xff]
        %v2361 = vld [vmem:[#allocation7 + $0x450] sm:$0xff]
        %v2362 = vld [vmem:[#allocation7 + $0x458] sm:$0xff]
        %v2363 = vld [vmem:[#allocation7 + $0x460] sm:$0xff]
        %v2364 = vld [vmem:[#allocation7 + $0x468] sm:$0xff]
        %v2365 = vld [vmem:[#allocation7 + $0x470] sm:$0xff]
        %v2366 = vld [vmem:[#allocation7 + $0x478] sm:$0xff]
        %v2367 = vld [vmem:[#allocation7 + $0x480] sm:$0xff]
        %v2368 = vld [vmem:[#allocation7 + $0x488] sm:$0xff]
        %v2369 = vld [vmem:[#allocation7 + $0x490] sm:$0xff]
        %v2370 = vld [vmem:[#allocation7 + $0x498] sm:$0xff]
        %v2371 = vld [vmem:[#allocation7 + $0x4a0] sm:$0xff]
        %v2372 = vld [vmem:[#allocation7 + $0x4a8] sm:$0xff]
        %v2373 = vld [vmem:[#allocation7 + $0x4b0] sm:$0xff]
        %v2374 = vld [vmem:[#allocation7 + $0x4b8] sm:$0xff]
        %v2375 = vld [vmem:[#allocation7 + $0x4c0] sm:$0xff]
        %v2376 = vld [vmem:[#allocation7 + $0x4c8] sm:$0xff]
        %v2377 = vld [vmem:[#allocation7 + $0x4d0] sm:$0xff]
        %v2378 = vld [vmem:[#allocation7 + $0x4d8] sm:$0xff]
        %v2379 = vld [vmem:[#allocation7 + $0x4e0] sm:$0xff]
        %v2380 = vld [vmem:[#allocation7 + $0x4e8] sm:$0xff]
        %v2381 = vld [vmem:[#allocation7 + $0x4f0] sm:$0xff]
        %v2382 = vld [vmem:[#allocation7 + $0x4f8] sm:$0xff]
        %v2383 = vld [vmem:[#allocation7 + $0x500] sm:$0xff]
        %v2384 = vld [vmem:[#allocation7 + $0x508] sm:$0xff]
        %v2385 = vld [vmem:[#allocation7 + $0x510] sm:$0xff]
        %v2386 = vld [vmem:[#allocation7 + $0x518] sm:$0xff]
        %v2387 = vld [vmem:[#allocation7 + $0x520] sm:$0xff]
        %v2388 = vld [vmem:[#allocation7 + $0x528] sm:$0xff]
        %v2389 = vld [vmem:[#allocation7 + $0x530] sm:$0xff]
        %v2390 = vld [vmem:[#allocation7 + $0x538] sm:$0xff]
        %v2391 = vld [vmem:[#allocation7 + $0x540] sm:$0xff]
        %v2392 = vld [vmem:[#allocation7 + $0x548] sm:$0xff]
        %v2393 = vld [vmem:[#allocation7 + $0x550] sm:$0xff]
        %v2394 = vld [vmem:[#allocation7 + $0x558] sm:$0xff]
        %v2395 = vld [vmem:[#allocation7 + $0x560] sm:$0xff]
        %v2396 = vld [vmem:[#allocation7 + $0x568] sm:$0xff]
        %v2397 = vld [vmem:[#allocation7 + $0x570] sm:$0xff]
        %v2398 = vld [vmem:[#allocation7 + $0x578] sm:$0xff]
        %v2399 = vld [vmem:[#allocation7 + $0x580] sm:$0xff]
        %v2400 = vld [vmem:[#allocation7 + $0x588] sm:$0xff]
        %v2401 = vld [vmem:[#allocation7 + $0x590] sm:$0xff]
        %v2402 = vld [vmem:[#allocation7 + $0x598] sm:$0xff]
        %v2403 = vld [vmem:[#allocation7 + $0x5a0] sm:$0xff]
        %v2404 = vld [vmem:[#allocation7 + $0x5a8] sm:$0xff]
        %v2405 = vld [vmem:[#allocation7 + $0x5b0] sm:$0xff]
        %v2406 = vld [vmem:[#allocation7 + $0x5b8] sm:$0xff]
        %v2407 = vld [vmem:[#allocation7 + $0x5c0] sm:$0xff]
        %v2408 = vld [vmem:[#allocation7 + $0x5c8] sm:$0xff]
        %v2409 = vld [vmem:[#allocation7 + $0x5d0] sm:$0xff]
        %v2410 = vld [vmem:[#allocation7 + $0x5d8] sm:$0xff]
        %v2411 = vld [vmem:[#allocation7 + $0x5e0] sm:$0xff]
        %v2412 = vld [vmem:[#allocation7 + $0x5e8] sm:$0xff]
        %v2413 = vld [vmem:[#allocation7 + $0x5f0] sm:$0xff]
        %v2414 = vld [vmem:[#allocation7 + $0x5f8] sm:$0xff]
        %v2415 = vld [vmem:[#allocation7 + $0x600] sm:$0xff]
        %v2416 = vld [vmem:[#allocation7 + $0x608] sm:$0xff]
        %v2417 = vld [vmem:[#allocation7 + $0x610] sm:$0xff]
        %v2418 = vld [vmem:[#allocation7 + $0x618] sm:$0xff]
        %v2419 = vld [vmem:[#allocation7 + $0x620] sm:$0xff]
        %v2420 = vld [vmem:[#allocation7 + $0x628] sm:$0xff]
        %v2421 = vld [vmem:[#allocation7 + $0x630] sm:$0xff]
        %v2422 = vld [vmem:[#allocation7 + $0x638] sm:$0xff]
        %v2423 = vld [vmem:[#allocation7 + $0x640] sm:$0xff]
        %v2424 = vld [vmem:[#allocation7 + $0x648] sm:$0xff]
        %v2425 = vld [vmem:[#allocation7 + $0x650] sm:$0xff]
        %v2426 = vld [vmem:[#allocation7 + $0x658] sm:$0xff]
        %v2427 = vld [vmem:[#allocation7 + $0x660] sm:$0xff]
        %v2428 = vld [vmem:[#allocation7 + $0x668] sm:$0xff]
        %v2429 = vld [vmem:[#allocation7 + $0x670] sm:$0xff]
        %v2430 = vld [vmem:[#allocation7 + $0x678] sm:$0xff]
        %v2431 = vld [vmem:[#allocation7 + $0x680] sm:$0xff]
        %v2432 = vld [vmem:[#allocation7 + $0x688] sm:$0xff]
        %v2433 = vld [vmem:[#allocation7 + $0x690] sm:$0xff]
        %v2434 = vld [vmem:[#allocation7 + $0x698] sm:$0xff]
        %v2435 = vld [vmem:[#allocation7 + $0x6a0] sm:$0xff]
        %v2436 = vld [vmem:[#allocation7 + $0x6a8] sm:$0xff]
        %v2437 = vld [vmem:[#allocation7 + $0x6b0] sm:$0xff]
        %v2438 = vld [vmem:[#allocation7 + $0x6b8] sm:$0xff]
        %v2439 = vld [vmem:[#allocation7 + $0x6c0] sm:$0xff]
        %v2440 = vld [vmem:[#allocation7 + $0x6c8] sm:$0xff]
        %v2441 = vld [vmem:[#allocation7 + $0x6d0] sm:$0xff]
        %v2442 = vld [vmem:[#allocation7 + $0x6d8] sm:$0xff]
        %v2443 = vld [vmem:[#allocation7 + $0x6e0] sm:$0xff]
        %v2444 = vld [vmem:[#allocation7 + $0x6e8] sm:$0xff]
        %v2445 = vld [vmem:[#allocation7 + $0x6f0] sm:$0xff]
        %v2446 = vld [vmem:[#allocation7 + $0x6f8] sm:$0xff]
        %v2447 = vld [vmem:[#allocation7 + $0x700] sm:$0xff]
        %v2448 = vld [vmem:[#allocation7 + $0x708] sm:$0xff]
        %v2449 = vld [vmem:[#allocation7 + $0x710] sm:$0xff]
        %v2450 = vld [vmem:[#allocation7 + $0x718] sm:$0xff]
        %v2451 = vld [vmem:[#allocation7 + $0x720] sm:$0xff]
        %v2452 = vld [vmem:[#allocation7 + $0x728] sm:$0xff]
        %v2453 = vld [vmem:[#allocation7 + $0x730] sm:$0xff]
        %v2454 = vld [vmem:[#allocation7 + $0x738] sm:$0xff]
        %v2455 = vld [vmem:[#allocation7 + $0x740] sm:$0xff]
        %v2456 = vld [vmem:[#allocation7 + $0x748] sm:$0xff]
        %v2457 = vld [vmem:[#allocation7 + $0x750] sm:$0xff]
        %v2458 = vld [vmem:[#allocation7 + $0x758] sm:$0xff]
        %v2459 = vld [vmem:[#allocation7 + $0x760] sm:$0xff]
        %v2460 = vld [vmem:[#allocation7 + $0x768] sm:$0xff]
        %v2461 = vld [vmem:[#allocation7 + $0x770] sm:$0xff]
        %v2462 = vld [vmem:[#allocation7 + $0x778] sm:$0xff]
        %v2463 = vld [vmem:[#allocation7 + $0x780] sm:$0xff]
        %v2464 = vld [vmem:[#allocation7 + $0x788] sm:$0xff]
        %v2465 = vld [vmem:[#allocation7 + $0x790] sm:$0xff]
        %v2466 = vld [vmem:[#allocation7 + $0x798] sm:$0xff]
        %v2467 = vld [vmem:[#allocation7 + $0x7a0] sm:$0xff]
        %v2468 = vld [vmem:[#allocation7 + $0x7a8] sm:$0xff]
        %v2469 = vld [vmem:[#allocation7 + $0x7b0] sm:$0xff]
        %v2470 = vld [vmem:[#allocation7 + $0x7b8] sm:$0xff]
        %v2471 = vld [vmem:[#allocation7 + $0x7c0] sm:$0xff]
        %v2472 = vld [vmem:[#allocation7 + $0x7c8] sm:$0xff]
        %v2473 = vld [vmem:[#allocation7 + $0x7d0] sm:$0xff]
        %v2474 = vld [vmem:[#allocation7 + $0x7d8] sm:$0xff]
        %v2475 = vld [vmem:[#allocation7 + $0x7e0] sm:$0xff]
        %v2476 = vld [vmem:[#allocation7 + $0x7e8] sm:$0xff]
        %v2477 = vld [vmem:[#allocation7 + $0x7f0] sm:$0xff]
        %v2478 = vld [vmem:[#allocation7 + $0x7f8] sm:$0xff]
        %v2479 = vld [vmem:[#allocation7 + $0x800] sm:$0xff]
        %v2480 = vld [vmem:[#allocation7 + $0x808] sm:$0xff]
        %v2481 = vld [vmem:[#allocation7 + $0x810] sm:$0xff]
        %v2482 = vld [vmem:[#allocation7 + $0x818] sm:$0xff]
        %v2483 = vld [vmem:[#allocation7 + $0x820] sm:$0xff]
        %v2484 = vld [vmem:[#allocation7 + $0x828] sm:$0xff]
        %v2485 = vld [vmem:[#allocation7 + $0x830] sm:$0xff]
        %v2486 = vld [vmem:[#allocation7 + $0x838] sm:$0xff]
        %v2487 = vld [vmem:[#allocation7 + $0x840] sm:$0xff]
        %v2488 = vld [vmem:[#allocation7 + $0x848] sm:$0xff]
        %v2489 = vld [vmem:[#allocation7 + $0x850] sm:$0xff]
        %v2490 = vld [vmem:[#allocation7 + $0x858] sm:$0xff]
        %v2491 = vld [vmem:[#allocation7 + $0x860] sm:$0xff]
        %v2492 = vld [vmem:[#allocation7 + $0x868] sm:$0xff]
        %v2493 = vld [vmem:[#allocation7 + $0x870] sm:$0xff]
        %v2494 = vld [vmem:[#allocation7 + $0x878] sm:$0xff]
        %v2495 = vld [vmem:[#allocation7 + $0x880] sm:$0xff]
        %v2496 = vld [vmem:[#allocation7 + $0x888] sm:$0xff]
        %v2497 = vld [vmem:[#allocation7 + $0x890] sm:$0xff]
        %v2498 = vld [vmem:[#allocation7 + $0x898] sm:$0xff]
        %v2499 = vld [vmem:[#allocation7 + $0x8a0] sm:$0xff]
        %v2500 = vld [vmem:[#allocation7 + $0x8a8] sm:$0xff]
        %v2501 = vld [vmem:[#allocation7 + $0x8b0] sm:$0xff]
        %v2502 = vld [vmem:[#allocation7 + $0x8b8] sm:$0xff]
        %v2503 = vld [vmem:[#allocation7 + $0x8c0] sm:$0xff]
        %v2504 = vld [vmem:[#allocation7 + $0x8c8] sm:$0xff]
        %v2505 = vld [vmem:[#allocation7 + $0x8d0] sm:$0xff]
        %v2506 = vld [vmem:[#allocation7 + $0x8d8] sm:$0xff]
        %v2507 = vld [vmem:[#allocation7 + $0x8e0] sm:$0xff]
        %v2508 = vld [vmem:[#allocation7 + $0x8e8] sm:$0xff]
        %v2509 = vld [vmem:[#allocation7 + $0x8f0] sm:$0xff]
        %v2510 = vld [vmem:[#allocation7 + $0x8f8] sm:$0xff]
        %v2511 = vld [vmem:[#allocation2] sm:$0xfe]
        %v2512 = vld [vmem:[#allocation2 + $0x8] sm:$0xfe]
        %v2513 = vld [vmem:[#allocation2 + $0x10] sm:$0xfe]
        %v2514 = vld [vmem:[#allocation2 + $0x18] sm:$0xfe]
        %v2515 = vld [vmem:[#allocation2 + $0x20] sm:$0xfe]
        %v2516 = vld [vmem:[#allocation2 + $0x50] sm:$0x1]
        %v2517 = vld [vmem:[#allocation2 + $0x58] sm:$0x1]
        %v2518 = vld [vmem:[#allocation2 + $0x60] sm:$0x1]
        %v2519 = vld [vmem:[#allocation2 + $0x68] sm:$0x1]
        %v2520 = vld [vmem:[#allocation2 + $0x70] sm:$0x1]
        %v2521 = vpack.c.bf16 %v2213, %v2511
        %v2522 = vpack.c.bf16 %v2214, %v2512
        %v2523 = vpack.c.bf16 %v2215, %v2513
        %v2524 = vpack.c.bf16 %v2216, %v2514
        %v2525 = vpack.c.bf16 %v2217, %v2515
        %v2526 = vpack.c.bf16 %v2516, %v2516
        %v2527 = vpack.c.bf16 %v2517, %v2517
        %v2528 = vpack.c.bf16 %v2518, %v2518
        %v2529 = vpack.c.bf16 %v2519, %v2519
        %v2530 = vpack.c.bf16 %v2520, %v2520
        %s2531 = scalar_lea.vmem [#allocation7], 2304
        %v2532 = vld [vmem:[%s2531] sm:$0xff]
        %v2533 = vld [vmem:[%s2531 + $0x8] sm:$0xff]
        %v2534 = vld [vmem:[%s2531 + $0x10] sm:$0xff]
        %v2535 = vld [vmem:[%s2531 + $0x18] sm:$0xff]
        %v2536 = vld [vmem:[%s2531 + $0x20] sm:$0xff]
        %v2537 = vld [vmem:[%s2531 + $0x28] sm:$0xff]
        %v2538 = vld [vmem:[%s2531 + $0x30] sm:$0xff]
        %v2539 = vld [vmem:[%s2531 + $0x38] sm:$0xff]
        %v2540 = vld [vmem:[%s2531 + $0x40] sm:$0xff]
        %v2541 = vld [vmem:[%s2531 + $0x48] sm:$0xff]
        %v2542 = vld [vmem:[%s2531 + $0x50] sm:$0xff]
        %v2543 = vld [vmem:[%s2531 + $0x58] sm:$0xff]
        %v2544 = vld [vmem:[%s2531 + $0x60] sm:$0xff]
        %v2545 = vld [vmem:[%s2531 + $0x68] sm:$0xff]
        %v2546 = vld [vmem:[%s2531 + $0x70] sm:$0xff]
        %v2547 = vld [vmem:[%s2531 + $0x78] sm:$0xff]
        %v2548 = vld [vmem:[%s2531 + $0x80] sm:$0xff]
        %v2549 = vld [vmem:[%s2531 + $0x88] sm:$0xff]
        %v2550 = vld [vmem:[%s2531 + $0x90] sm:$0xff]
        %v2551 = vld [vmem:[%s2531 + $0x98] sm:$0xff]
        %v2552 = vld [vmem:[%s2531 + $0xa0] sm:$0xff]
        %v2553 = vld [vmem:[%s2531 + $0xa8] sm:$0xff]
        %v2554 = vld [vmem:[%s2531 + $0xb0] sm:$0xff]
        %v2555 = vld [vmem:[%s2531 + $0xb8] sm:$0xff]
        %v2556 = vld [vmem:[%s2531 + $0xc0] sm:$0xff]
        %v2557 = vld [vmem:[%s2531 + $0xc8] sm:$0xff]
        %v2558 = vld [vmem:[%s2531 + $0xd0] sm:$0xff]
        %v2559 = vld [vmem:[%s2531 + $0xd8] sm:$0xff]
        %v2560 = vld [vmem:[%s2531 + $0xe0] sm:$0xff]
        %v2561 = vld [vmem:[%s2531 + $0xe8] sm:$0xff]
        %v2562 = vld [vmem:[%s2531 + $0xf0] sm:$0xff]
        %v2563 = vld [vmem:[%s2531 + $0xf8] sm:$0xff]
        %v2564 = vld [vmem:[%s2531 + $0x100] sm:$0xff]
        %v2565 = vld [vmem:[%s2531 + $0x108] sm:$0xff]
        %v2566 = vld [vmem:[%s2531 + $0x110] sm:$0xff]
        %v2567 = vld [vmem:[%s2531 + $0x118] sm:$0xff]
        %v2568 = vld [vmem:[%s2531 + $0x120] sm:$0xff]
        %v2569 = vld [vmem:[%s2531 + $0x128] sm:$0xff]
        %v2570 = vld [vmem:[%s2531 + $0x130] sm:$0xff]
        %v2571 = vld [vmem:[%s2531 + $0x138] sm:$0xff]
        %v2572 = vld [vmem:[%s2531 + $0x140] sm:$0xff]
        %v2573 = vld [vmem:[%s2531 + $0x148] sm:$0xff]
        %v2574 = vld [vmem:[%s2531 + $0x150] sm:$0xff]
        %v2575 = vld [vmem:[%s2531 + $0x158] sm:$0xff]
        %v2576 = vld [vmem:[%s2531 + $0x160] sm:$0xff]
        %v2577 = vld [vmem:[%s2531 + $0x168] sm:$0xff]
        %v2578 = vld [vmem:[%s2531 + $0x170] sm:$0xff]
        %v2579 = vld [vmem:[%s2531 + $0x178] sm:$0xff]
        %v2580 = vld [vmem:[%s2531 + $0x180] sm:$0xff]
        %v2581 = vld [vmem:[%s2531 + $0x188] sm:$0xff]
        %v2582 = vld [vmem:[%s2531 + $0x190] sm:$0xff]
        %v2583 = vld [vmem:[%s2531 + $0x198] sm:$0xff]
        %v2584 = vld [vmem:[%s2531 + $0x1a0] sm:$0xff]
        %v2585 = vld [vmem:[%s2531 + $0x1a8] sm:$0xff]
        %v2586 = vld [vmem:[%s2531 + $0x1b0] sm:$0xff]
        %v2587 = vld [vmem:[%s2531 + $0x1b8] sm:$0xff]
        %v2588 = vld [vmem:[%s2531 + $0x1c0] sm:$0xff]
        %v2589 = vld [vmem:[%s2531 + $0x1c8] sm:$0xff]
        %v2590 = vld [vmem:[%s2531 + $0x1d0] sm:$0xff]
        %v2591 = vld [vmem:[%s2531 + $0x1d8] sm:$0xff]
        %v2592 = vld [vmem:[%s2531 + $0x1e0] sm:$0xff]
        %v2593 = vld [vmem:[%s2531 + $0x1e8] sm:$0xff]
        %v2594 = vld [vmem:[%s2531 + $0x1f0] sm:$0xff]
        %v2595 = vld [vmem:[%s2531 + $0x1f8] sm:$0xff]
        %v2596 = vld [vmem:[%s2531 + $0x200] sm:$0xff]
        %v2597 = vld [vmem:[%s2531 + $0x208] sm:$0xff]
        %v2598 = vld [vmem:[%s2531 + $0x210] sm:$0xff]
        %v2599 = vld [vmem:[%s2531 + $0x218] sm:$0xff]
        %v2600 = vld [vmem:[%s2531 + $0x220] sm:$0xff]
        %v2601 = vld [vmem:[%s2531 + $0x228] sm:$0xff]
        %v2602 = vld [vmem:[%s2531 + $0x230] sm:$0xff]
        %v2603 = vld [vmem:[%s2531 + $0x238] sm:$0xff]
        %v2604 = vld [vmem:[%s2531 + $0x240] sm:$0xff]
        %v2605 = vld [vmem:[%s2531 + $0x248] sm:$0xff]
        %v2606 = vld [vmem:[%s2531 + $0x250] sm:$0xff]
        %v2607 = vld [vmem:[%s2531 + $0x258] sm:$0xff]
        %v2608 = vld [vmem:[%s2531 + $0x260] sm:$0xff]
        %v2609 = vld [vmem:[%s2531 + $0x268] sm:$0xff]
        %v2610 = vld [vmem:[%s2531 + $0x270] sm:$0xff]
        %v2611 = vld [vmem:[%s2531 + $0x278] sm:$0xff]
        %v2612 = vld [vmem:[%s2531 + $0x280] sm:$0xff]
        %v2613 = vld [vmem:[%s2531 + $0x288] sm:$0xff]
        %v2614 = vld [vmem:[%s2531 + $0x290] sm:$0xff]
        %v2615 = vld [vmem:[%s2531 + $0x298] sm:$0xff]
        %v2616 = vld [vmem:[%s2531 + $0x2a0] sm:$0xff]
        %v2617 = vld [vmem:[%s2531 + $0x2a8] sm:$0xff]
        %v2618 = vld [vmem:[%s2531 + $0x2b0] sm:$0xff]
        %v2619 = vld [vmem:[%s2531 + $0x2b8] sm:$0xff]
        %v2620 = vld [vmem:[%s2531 + $0x2c0] sm:$0xff]
        %v2621 = vld [vmem:[%s2531 + $0x2c8] sm:$0xff]
        %v2622 = vld [vmem:[%s2531 + $0x2d0] sm:$0xff]
        %v2623 = vld [vmem:[%s2531 + $0x2d8] sm:$0xff]
        %v2624 = vld [vmem:[%s2531 + $0x2e0] sm:$0xff]
        %v2625 = vld [vmem:[%s2531 + $0x2e8] sm:$0xff]
        %v2626 = vld [vmem:[%s2531 + $0x2f0] sm:$0xff]
        %v2627 = vld [vmem:[%s2531 + $0x2f8] sm:$0xff]
        %v2628 = vld [vmem:[%s2531 + $0x300] sm:$0xff]
        %v2629 = vld [vmem:[%s2531 + $0x308] sm:$0xff]
        %v2630 = vld [vmem:[%s2531 + $0x310] sm:$0xff]
        %v2631 = vld [vmem:[%s2531 + $0x318] sm:$0xff]
        %v2632 = vld [vmem:[%s2531 + $0x320] sm:$0xff]
        %v2633 = vld [vmem:[%s2531 + $0x328] sm:$0xff]
        %v2634 = vld [vmem:[%s2531 + $0x330] sm:$0xff]
        %v2635 = vld [vmem:[%s2531 + $0x338] sm:$0xff]
        %v2636 = vld [vmem:[%s2531 + $0x340] sm:$0xff]
        %v2637 = vld [vmem:[%s2531 + $0x348] sm:$0xff]
        %v2638 = vld [vmem:[%s2531 + $0x350] sm:$0xff]
        %v2639 = vld [vmem:[%s2531 + $0x358] sm:$0xff]
        %v2640 = vld [vmem:[%s2531 + $0x360] sm:$0xff]
        %v2641 = vld [vmem:[%s2531 + $0x368] sm:$0xff]
        %v2642 = vld [vmem:[%s2531 + $0x370] sm:$0xff]
        %v2643 = vld [vmem:[%s2531 + $0x378] sm:$0xff]
        %v2644 = vld [vmem:[%s2531 + $0x380] sm:$0xff]
        %v2645 = vld [vmem:[%s2531 + $0x388] sm:$0xff]
        %v2646 = vld [vmem:[%s2531 + $0x390] sm:$0xff]
        %v2647 = vld [vmem:[%s2531 + $0x398] sm:$0xff]
        %v2648 = vld [vmem:[%s2531 + $0x3a0] sm:$0xff]
        %v2649 = vld [vmem:[%s2531 + $0x3a8] sm:$0xff]
        %v2650 = vld [vmem:[%s2531 + $0x3b0] sm:$0xff]
        %v2651 = vld [vmem:[%s2531 + $0x3b8] sm:$0xff]
        %v2652 = vld [vmem:[%s2531 + $0x3c0] sm:$0xff]
        %v2653 = vld [vmem:[%s2531 + $0x3c8] sm:$0xff]
        %v2654 = vld [vmem:[%s2531 + $0x3d0] sm:$0xff]
        %v2655 = vld [vmem:[%s2531 + $0x3d8] sm:$0xff]
        %v2656 = vld [vmem:[%s2531 + $0x3e0] sm:$0xff]
        %v2657 = vld [vmem:[%s2531 + $0x3e8] sm:$0xff]
        %v2658 = vld [vmem:[%s2531 + $0x3f0] sm:$0xff]
        %v2659 = vld [vmem:[%s2531 + $0x3f8] sm:$0xff]
        %v2660 = vld [vmem:[%s2531 + $0x400] sm:$0xff]
        %v2661 = vld [vmem:[%s2531 + $0x408] sm:$0xff]
        %v2662 = vld [vmem:[%s2531 + $0x410] sm:$0xff]
        %v2663 = vld [vmem:[%s2531 + $0x418] sm:$0xff]
        %v2664 = vld [vmem:[%s2531 + $0x420] sm:$0xff]
        %v2665 = vld [vmem:[%s2531 + $0x428] sm:$0xff]
        %v2666 = vld [vmem:[%s2531 + $0x430] sm:$0xff]
        %v2667 = vld [vmem:[%s2531 + $0x438] sm:$0xff]
        %v2668 = vld [vmem:[%s2531 + $0x440] sm:$0xff]
        %v2669 = vld [vmem:[%s2531 + $0x448] sm:$0xff]
        %v2670 = vld [vmem:[%s2531 + $0x450] sm:$0xff]
        %v2671 = vld [vmem:[%s2531 + $0x458] sm:$0xff]
        %v2672 = vld [vmem:[%s2531 + $0x460] sm:$0xff]
        %v2673 = vld [vmem:[%s2531 + $0x468] sm:$0xff]
        %v2674 = vld [vmem:[%s2531 + $0x470] sm:$0xff]
        %v2675 = vld [vmem:[%s2531 + $0x478] sm:$0xff]
        %v2676 = vld [vmem:[%s2531 + $0x480] sm:$0xff]
        %v2677 = vld [vmem:[%s2531 + $0x488] sm:$0xff]
        %v2678 = vld [vmem:[%s2531 + $0x490] sm:$0xff]
        %v2679 = vld [vmem:[%s2531 + $0x498] sm:$0xff]
        %v2680 = vld [vmem:[%s2531 + $0x4a0] sm:$0xff]
        %v2681 = vld [vmem:[%s2531 + $0x4a8] sm:$0xff]
        %v2682 = vld [vmem:[%s2531 + $0x4b0] sm:$0xff]
        %v2683 = vld [vmem:[%s2531 + $0x4b8] sm:$0xff]
        %v2684 = vld [vmem:[%s2531 + $0x4c0] sm:$0xff]
        %v2685 = vld [vmem:[%s2531 + $0x4c8] sm:$0xff]
        %v2686 = vld [vmem:[%s2531 + $0x4d0] sm:$0xff]
        %v2687 = vld [vmem:[%s2531 + $0x4d8] sm:$0xff]
        %v2688 = vld [vmem:[%s2531 + $0x4e0] sm:$0xff]
        %v2689 = vld [vmem:[%s2531 + $0x4e8] sm:$0xff]
        %v2690 = vld [vmem:[%s2531 + $0x4f0] sm:$0xff]
        %v2691 = vld [vmem:[%s2531 + $0x4f8] sm:$0xff]
        %v2692 = vld [vmem:[%s2531 + $0x500] sm:$0xff]
        %v2693 = vld [vmem:[%s2531 + $0x508] sm:$0xff]
        %v2694 = vld [vmem:[%s2531 + $0x510] sm:$0xff]
        %v2695 = vld [vmem:[%s2531 + $0x518] sm:$0xff]
        %v2696 = vld [vmem:[%s2531 + $0x520] sm:$0xff]
        %v2697 = vld [vmem:[%s2531 + $0x528] sm:$0xff]
        %v2698 = vld [vmem:[%s2531 + $0x530] sm:$0xff]
        %v2699 = vld [vmem:[%s2531 + $0x538] sm:$0xff]
        %v2700 = vld [vmem:[%s2531 + $0x540] sm:$0xff]
        %v2701 = vld [vmem:[%s2531 + $0x548] sm:$0xff]
        %v2702 = vld [vmem:[%s2531 + $0x550] sm:$0xff]
        %v2703 = vld [vmem:[%s2531 + $0x558] sm:$0xff]
        %v2704 = vld [vmem:[%s2531 + $0x560] sm:$0xff]
        %v2705 = vld [vmem:[%s2531 + $0x568] sm:$0xff]
        %v2706 = vld [vmem:[%s2531 + $0x570] sm:$0xff]
        %v2707 = vld [vmem:[%s2531 + $0x578] sm:$0xff]
        %v2708 = vld [vmem:[%s2531 + $0x580] sm:$0xff]
        %v2709 = vld [vmem:[%s2531 + $0x588] sm:$0xff]
        %v2710 = vld [vmem:[%s2531 + $0x590] sm:$0xff]
        %v2711 = vld [vmem:[%s2531 + $0x598] sm:$0xff]
        %v2712 = vld [vmem:[%s2531 + $0x5a0] sm:$0xff]
        %v2713 = vld [vmem:[%s2531 + $0x5a8] sm:$0xff]
        %v2714 = vld [vmem:[%s2531 + $0x5b0] sm:$0xff]
        %v2715 = vld [vmem:[%s2531 + $0x5b8] sm:$0xff]
        %v2716 = vld [vmem:[%s2531 + $0x5c0] sm:$0xff]
        %v2717 = vld [vmem:[%s2531 + $0x5c8] sm:$0xff]
        %v2718 = vld [vmem:[%s2531 + $0x5d0] sm:$0xff]
        %v2719 = vld [vmem:[%s2531 + $0x5d8] sm:$0xff]
        %v2720 = vld [vmem:[%s2531 + $0x5e0] sm:$0xff]
        %v2721 = vld [vmem:[%s2531 + $0x5e8] sm:$0xff]
        %v2722 = vld [vmem:[%s2531 + $0x5f0] sm:$0xff]
        %v2723 = vld [vmem:[%s2531 + $0x5f8] sm:$0xff]
        %v2724 = vld [vmem:[%s2531 + $0x600] sm:$0xff]
        %v2725 = vld [vmem:[%s2531 + $0x608] sm:$0xff]
        %v2726 = vld [vmem:[%s2531 + $0x610] sm:$0xff]
        %v2727 = vld [vmem:[%s2531 + $0x618] sm:$0xff]
        %v2728 = vld [vmem:[%s2531 + $0x620] sm:$0xff]
        %v2729 = vld [vmem:[%s2531 + $0x628] sm:$0xff]
        %v2730 = vld [vmem:[%s2531 + $0x630] sm:$0xff]
        %v2731 = vld [vmem:[%s2531 + $0x638] sm:$0xff]
        %v2732 = vld [vmem:[%s2531 + $0x640] sm:$0xff]
        %v2733 = vld [vmem:[%s2531 + $0x648] sm:$0xff]
        %v2734 = vld [vmem:[%s2531 + $0x650] sm:$0xff]
        %v2735 = vld [vmem:[%s2531 + $0x658] sm:$0xff]
        %v2736 = vld [vmem:[%s2531 + $0x660] sm:$0xff]
        %v2737 = vld [vmem:[%s2531 + $0x668] sm:$0xff]
        %v2738 = vld [vmem:[%s2531 + $0x670] sm:$0xff]
        %v2739 = vld [vmem:[%s2531 + $0x678] sm:$0xff]
        %v2740 = vld [vmem:[%s2531 + $0x680] sm:$0xff]
        %v2741 = vld [vmem:[%s2531 + $0x688] sm:$0xff]
        %v2742 = vld [vmem:[%s2531 + $0x690] sm:$0xff]
        %v2743 = vld [vmem:[%s2531 + $0x698] sm:$0xff]
        %v2744 = vld [vmem:[%s2531 + $0x6a0] sm:$0xff]
        %v2745 = vld [vmem:[%s2531 + $0x6a8] sm:$0xff]
        %v2746 = vld [vmem:[%s2531 + $0x6b0] sm:$0xff]
        %v2747 = vld [vmem:[%s2531 + $0x6b8] sm:$0xff]
        %v2748 = vld [vmem:[%s2531 + $0x6c0] sm:$0xff]
        %v2749 = vld [vmem:[%s2531 + $0x6c8] sm:$0xff]
        %v2750 = vld [vmem:[%s2531 + $0x6d0] sm:$0xff]
        %v2751 = vld [vmem:[%s2531 + $0x6d8] sm:$0xff]
        %v2752 = vld [vmem:[%s2531 + $0x6e0] sm:$0xff]
        %v2753 = vld [vmem:[%s2531 + $0x6e8] sm:$0xff]
        %v2754 = vld [vmem:[%s2531 + $0x6f0] sm:$0xff]
        %v2755 = vld [vmem:[%s2531 + $0x6f8] sm:$0xff]
        %v2756 = vld [vmem:[%s2531 + $0x700] sm:$0xff]
        %v2757 = vld [vmem:[%s2531 + $0x708] sm:$0xff]
        %v2758 = vld [vmem:[%s2531 + $0x710] sm:$0xff]
        %v2759 = vld [vmem:[%s2531 + $0x718] sm:$0xff]
        %v2760 = vld [vmem:[%s2531 + $0x720] sm:$0xff]
        %v2761 = vld [vmem:[%s2531 + $0x728] sm:$0xff]
        %v2762 = vld [vmem:[%s2531 + $0x730] sm:$0xff]
        %v2763 = vld [vmem:[%s2531 + $0x738] sm:$0xff]
        %v2764 = vld [vmem:[%s2531 + $0x740] sm:$0xff]
        %v2765 = vld [vmem:[%s2531 + $0x748] sm:$0xff]
        %v2766 = vld [vmem:[%s2531 + $0x750] sm:$0xff]
        %v2767 = vld [vmem:[%s2531 + $0x758] sm:$0xff]
        %v2768 = vld [vmem:[%s2531 + $0x760] sm:$0xff]
        %v2769 = vld [vmem:[%s2531 + $0x768] sm:$0xff]
        %v2770 = vld [vmem:[%s2531 + $0x770] sm:$0xff]
        %v2771 = vld [vmem:[%s2531 + $0x778] sm:$0xff]
        %v2772 = vld [vmem:[%s2531 + $0x780] sm:$0xff]
        %v2773 = vld [vmem:[%s2531 + $0x788] sm:$0xff]
        %v2774 = vld [vmem:[%s2531 + $0x790] sm:$0xff]
        %v2775 = vld [vmem:[%s2531 + $0x798] sm:$0xff]
        %v2776 = vld [vmem:[%s2531 + $0x7a0] sm:$0xff]
        %v2777 = vld [vmem:[%s2531 + $0x7a8] sm:$0xff]
        %v2778 = vld [vmem:[%s2531 + $0x7b0] sm:$0xff]
        %v2779 = vld [vmem:[%s2531 + $0x7b8] sm:$0xff]
        %v2780 = vld [vmem:[%s2531 + $0x7c0] sm:$0xff]
        %v2781 = vld [vmem:[%s2531 + $0x7c8] sm:$0xff]
        %v2782 = vld [vmem:[%s2531 + $0x7d0] sm:$0xff]
        %v2783 = vld [vmem:[%s2531 + $0x7d8] sm:$0xff]
        %v2784 = vld [vmem:[%s2531 + $0x7e0] sm:$0xff]
        %v2785 = vld [vmem:[%s2531 + $0x7e8] sm:$0xff]
        %v2786 = vld [vmem:[%s2531 + $0x7f0] sm:$0xff]
        %v2787 = vld [vmem:[%s2531 + $0x7f8] sm:$0xff]
        %v2788 = vld [vmem:[%s2531 + $0x800] sm:$0xff]
        %v2789 = vld [vmem:[%s2531 + $0x808] sm:$0xff]
        %v2790 = vld [vmem:[%s2531 + $0x810] sm:$0xff]
        %v2791 = vld [vmem:[%s2531 + $0x818] sm:$0xff]
        %v2792 = vld [vmem:[%s2531 + $0x820] sm:$0xff]
        %v2793 = vld [vmem:[%s2531 + $0x828] sm:$0xff]
        %v2794 = vld [vmem:[%s2531 + $0x830] sm:$0xff]
        %v2795 = vld [vmem:[%s2531 + $0x838] sm:$0xff]
        %v2796 = vld [vmem:[%s2531 + $0x840] sm:$0xff]
        %v2797 = vld [vmem:[%s2531 + $0x848] sm:$0xff]
        %v2798 = vld [vmem:[%s2531 + $0x850] sm:$0xff]
        %v2799 = vld [vmem:[%s2531 + $0x858] sm:$0xff]
        %v2800 = vld [vmem:[%s2531 + $0x860] sm:$0xff]
        %v2801 = vld [vmem:[%s2531 + $0x868] sm:$0xff]
        %v2802 = vld [vmem:[%s2531 + $0x870] sm:$0xff]
        %v2803 = vld [vmem:[%s2531 + $0x878] sm:$0xff]
        %v2804 = vld [vmem:[%s2531 + $0x880] sm:$0xff]
        %v2805 = vld [vmem:[%s2531 + $0x888] sm:$0xff]
        %v2806 = vld [vmem:[%s2531 + $0x890] sm:$0xff]
        %v2807 = vld [vmem:[%s2531 + $0x898] sm:$0xff]
        %v2808 = vld [vmem:[%s2531 + $0x8a0] sm:$0xff]
        %v2809 = vld [vmem:[%s2531 + $0x8a8] sm:$0xff]
        %v2810 = vld [vmem:[%s2531 + $0x8b0] sm:$0xff]
        %v2811 = vld [vmem:[%s2531 + $0x8b8] sm:$0xff]
        %v2812 = vld [vmem:[%s2531 + $0x8c0] sm:$0xff]
        %v2813 = vld [vmem:[%s2531 + $0x8c8] sm:$0xff]
        %v2814 = vld [vmem:[%s2531 + $0x8d0] sm:$0xff]
        %v2815 = vld [vmem:[%s2531 + $0x8d8] sm:$0xff]
        %v2816 = vld [vmem:[%s2531 + $0x8e0] sm:$0xff]
        %v2817 = vld [vmem:[%s2531 + $0x8e8] sm:$0xff]
        %v2818 = vld [vmem:[%s2531 + $0x8f0] sm:$0xff]
        %v2819 = vld [vmem:[%s2531 + $0x8f8] sm:$0xff]
        %vm2820 = vsmask.f32 7424
        %v2822 = vshrl.u32 %v2521, 16
        %v2824 = vshll.u32 %v2521, 16
        %v2826 = vrot.slane %v2824, 1
        %v2827 = vor.u32 %v2822, %v2826
        %v2829 = vshll.u32 %v2526, 16
        %v2831 = vrot.slane %v2829, 1
        %v2832 = vsel %vm2820, %v2827, %v2831
        %v2834 = vshrl.u32 %v2522, 16
        %v2836 = vshll.u32 %v2522, 16
        %v2838 = vrot.slane %v2836, 1
        %v2839 = vor.u32 %v2834, %v2838
        %v2841 = vshll.u32 %v2527, 16
        %v2843 = vrot.slane %v2841, 1
        %v2844 = vsel %vm2820, %v2839, %v2843
        %v2846 = vshrl.u32 %v2523, 16
        %v2848 = vshll.u32 %v2523, 16
        %v2850 = vrot.slane %v2848, 1
        %v2851 = vor.u32 %v2846, %v2850
        %v2853 = vshll.u32 %v2528, 16
        %v2855 = vrot.slane %v2853, 1
        %v2856 = vsel %vm2820, %v2851, %v2855
        %v2858 = vshrl.u32 %v2524, 16
        %v2860 = vshll.u32 %v2524, 16
        %v2862 = vrot.slane %v2860, 1
        %v2863 = vor.u32 %v2858, %v2862
        %v2865 = vshll.u32 %v2529, 16
        %v2867 = vrot.slane %v2865, 1
        %v2868 = vsel %vm2820, %v2863, %v2867
        %v2870 = vshrl.u32 %v2525, 16
        %v2872 = vshll.u32 %v2525, 16
        %v2874 = vrot.slane %v2872, 1
        %v2875 = vor.u32 %v2870, %v2874
        %v2877 = vshll.u32 %v2530, 16
        %v2879 = vrot.slane %v2877, 1
        %v2880 = vsel %vm2820, %v2875, %v2879
        %v3173 = vunpack.c.l.b16 %v2532
        %v3174 = vunpack.c.h.b16 %v2532
        %v3175 = vunpack.c.l.b16 %v2533
        %v3176 = vunpack.c.h.b16 %v2533
        %v3177 = vunpack.c.l.b16 %v2534
        %v3178 = vunpack.c.h.b16 %v2534
        %v3179 = vunpack.c.l.b16 %v2535
        %v3180 = vunpack.c.h.b16 %v2535
        %v3181 = vunpack.c.l.b16 %v2536
        %v3182 = vunpack.c.h.b16 %v2536
        %v3183 = vunpack.c.l.b16 %v2537
        %v3184 = vunpack.c.h.b16 %v2537
        %v3185 = vunpack.c.l.b16 %v2538
        %v3186 = vunpack.c.h.b16 %v2538
        %v3187 = vunpack.c.l.b16 %v2539
        %v3188 = vunpack.c.h.b16 %v2539
        %v3189 = vunpack.c.l.b16 %v2540
        %v3190 = vunpack.c.h.b16 %v2540
        %v3191 = vunpack.c.l.b16 %v2541
        %v3192 = vunpack.c.h.b16 %v2541
        %v3193 = vunpack.c.l.b16 %v2542
        %v3194 = vunpack.c.h.b16 %v2542
        %v3195 = vunpack.c.l.b16 %v2543
        %v3196 = vunpack.c.h.b16 %v2543
        %v3197 = vunpack.c.l.b16 %v2544
        %v3198 = vunpack.c.h.b16 %v2544
        %v3199 = vunpack.c.l.b16 %v2545
        %v3200 = vunpack.c.h.b16 %v2545
        %v3201 = vunpack.c.l.b16 %v2546
        %v3202 = vunpack.c.h.b16 %v2546
        %v3203 = vunpack.c.l.b16 %v2547
        %v3204 = vunpack.c.h.b16 %v2547
        %v3205 = vunpack.c.l.b16 %v2548
        %v3206 = vunpack.c.h.b16 %v2548
        %v3207 = vunpack.c.l.b16 %v2549
        %v3208 = vunpack.c.h.b16 %v2549
        %v3209 = vunpack.c.l.b16 %v2550
        %v3210 = vunpack.c.h.b16 %v2550
        %v3211 = vunpack.c.l.b16 %v2551
        %v3212 = vunpack.c.h.b16 %v2551
        %v3213 = vunpack.c.l.b16 %v2552
        %v3214 = vunpack.c.h.b16 %v2552
        %v3215 = vunpack.c.l.b16 %v2553
        %v3216 = vunpack.c.h.b16 %v2553
        %v3217 = vunpack.c.l.b16 %v2554
        %v3218 = vunpack.c.h.b16 %v2554
        %v3219 = vunpack.c.l.b16 %v2555
        %v3220 = vunpack.c.h.b16 %v2555
        %v3221 = vunpack.c.l.b16 %v2556
        %v3222 = vunpack.c.h.b16 %v2556
        %v3223 = vunpack.c.l.b16 %v2557
        %v3224 = vunpack.c.h.b16 %v2557
        %v3225 = vunpack.c.l.b16 %v2558
        %v3226 = vunpack.c.h.b16 %v2558
        %v3227 = vunpack.c.l.b16 %v2559
        %v3228 = vunpack.c.h.b16 %v2559
        %v3229 = vunpack.c.l.b16 %v2560
        %v3230 = vunpack.c.h.b16 %v2560
        %v3231 = vunpack.c.l.b16 %v2561
        %v3232 = vunpack.c.h.b16 %v2561
        %v3233 = vunpack.c.l.b16 %v2562
        %v3234 = vunpack.c.h.b16 %v2562
        %v3235 = vunpack.c.l.b16 %v2563
        %v3236 = vunpack.c.h.b16 %v2563
        %v3237 = vunpack.c.l.b16 %v2564
        %v3238 = vunpack.c.h.b16 %v2564
        %v3239 = vunpack.c.l.b16 %v2565
        %v3240 = vunpack.c.h.b16 %v2565
        %v3241 = vunpack.c.l.b16 %v2566
        %v3242 = vunpack.c.h.b16 %v2566
        %v3243 = vunpack.c.l.b16 %v2567
        %v3244 = vunpack.c.h.b16 %v2567
        %v3245 = vunpack.c.l.b16 %v2568
        %v3246 = vunpack.c.h.b16 %v2568
        %v3247 = vunpack.c.l.b16 %v2569
        %v3248 = vunpack.c.h.b16 %v2569
        %v3249 = vunpack.c.l.b16 %v2570
        %v3250 = vunpack.c.h.b16 %v2570
        %v3251 = vunpack.c.l.b16 %v2571
        %v3252 = vunpack.c.h.b16 %v2571
        %v3253 = vunpack.c.l.b16 %v2572
        %v3254 = vunpack.c.h.b16 %v2572
        %v3255 = vunpack.c.l.b16 %v2573
        %v3256 = vunpack.c.h.b16 %v2573
        %v3257 = vunpack.c.l.b16 %v2574
        %v3258 = vunpack.c.h.b16 %v2574
        %v3259 = vunpack.c.l.b16 %v2575
        %v3260 = vunpack.c.h.b16 %v2575
        %v3261 = vunpack.c.l.b16 %v2576
        %v3262 = vunpack.c.h.b16 %v2576
        %v3263 = vunpack.c.l.b16 %v2577
        %v3264 = vunpack.c.h.b16 %v2577
        %v3265 = vunpack.c.l.b16 %v2578
        %v3266 = vunpack.c.h.b16 %v2578
        %v3267 = vunpack.c.l.b16 %v2579
        %v3268 = vunpack.c.h.b16 %v2579
        %v3269 = vunpack.c.l.b16 %v2580
        %v3270 = vunpack.c.h.b16 %v2580
        %v3271 = vunpack.c.l.b16 %v2581
        %v3272 = vunpack.c.h.b16 %v2581
        %v3273 = vunpack.c.l.b16 %v2582
        %v3274 = vunpack.c.h.b16 %v2582
        %v3275 = vunpack.c.l.b16 %v2583
        %v3276 = vunpack.c.h.b16 %v2583
        %v3277 = vunpack.c.l.b16 %v2584
        %v3278 = vunpack.c.h.b16 %v2584
        %v3279 = vunpack.c.l.b16 %v2585
        %v3280 = vunpack.c.h.b16 %v2585
        %v3281 = vunpack.c.l.b16 %v2586
        %v3282 = vunpack.c.h.b16 %v2586
        %v3283 = vunpack.c.l.b16 %v2587
        %v3284 = vunpack.c.h.b16 %v2587
        %v3285 = vunpack.c.l.b16 %v2588
        %v3286 = vunpack.c.h.b16 %v2588
        %v3287 = vunpack.c.l.b16 %v2589
        %v3288 = vunpack.c.h.b16 %v2589
        %v3289 = vunpack.c.l.b16 %v2590
        %v3290 = vunpack.c.h.b16 %v2590
        %v3291 = vunpack.c.l.b16 %v2591
        %v3292 = vunpack.c.h.b16 %v2591
        %v3293 = vunpack.c.l.b16 %v2592
        %v3294 = vunpack.c.h.b16 %v2592
        %v3295 = vunpack.c.l.b16 %v2593
        %v3296 = vunpack.c.h.b16 %v2593
        %v3297 = vunpack.c.l.b16 %v2594
        %v3298 = vunpack.c.h.b16 %v2594
        %v3299 = vunpack.c.l.b16 %v2595
        %v3300 = vunpack.c.h.b16 %v2595
        %v3301 = vunpack.c.l.b16 %v2596
        %v3302 = vunpack.c.h.b16 %v2596
        %v3303 = vunpack.c.l.b16 %v2597
        %v3304 = vunpack.c.h.b16 %v2597
        %v3305 = vunpack.c.l.b16 %v2598
        %v3306 = vunpack.c.h.b16 %v2598
        %v3307 = vunpack.c.l.b16 %v2599
        %v3308 = vunpack.c.h.b16 %v2599
        %v3309 = vunpack.c.l.b16 %v2600
        %v3310 = vunpack.c.h.b16 %v2600
        %v3311 = vunpack.c.l.b16 %v2601
        %v3312 = vunpack.c.h.b16 %v2601
        %v3313 = vunpack.c.l.b16 %v2602
        %v3314 = vunpack.c.h.b16 %v2602
        %v3315 = vunpack.c.l.b16 %v2603
        %v3316 = vunpack.c.h.b16 %v2603
        %v3317 = vunpack.c.l.b16 %v2604
        %v3318 = vunpack.c.h.b16 %v2604
        %v3319 = vunpack.c.l.b16 %v2605
        %v3320 = vunpack.c.h.b16 %v2605
        %v3321 = vunpack.c.l.b16 %v2606
        %v3322 = vunpack.c.h.b16 %v2606
        %v3323 = vunpack.c.l.b16 %v2607
        %v3324 = vunpack.c.h.b16 %v2607
        %v3325 = vunpack.c.l.b16 %v2608
        %v3326 = vunpack.c.h.b16 %v2608
        %v3327 = vunpack.c.l.b16 %v2609
        %v3328 = vunpack.c.h.b16 %v2609
        %v3329 = vunpack.c.l.b16 %v2610
        %v3330 = vunpack.c.h.b16 %v2610
        %v3331 = vunpack.c.l.b16 %v2611
        %v3332 = vunpack.c.h.b16 %v2611
        %v3333 = vunpack.c.l.b16 %v2612
        %v3334 = vunpack.c.h.b16 %v2612
        %v3335 = vunpack.c.l.b16 %v2613
        %v3336 = vunpack.c.h.b16 %v2613
        %v3337 = vunpack.c.l.b16 %v2614
        %v3338 = vunpack.c.h.b16 %v2614
        %v3339 = vunpack.c.l.b16 %v2615
        %v3340 = vunpack.c.h.b16 %v2615
        %v3341 = vunpack.c.l.b16 %v2616
        %v3342 = vunpack.c.h.b16 %v2616
        %v3343 = vunpack.c.l.b16 %v2617
        %v3344 = vunpack.c.h.b16 %v2617
        %v3345 = vunpack.c.l.b16 %v2618
        %v3346 = vunpack.c.h.b16 %v2618
        %v3347 = vunpack.c.l.b16 %v2619
        %v3348 = vunpack.c.h.b16 %v2619
        %v3349 = vunpack.c.l.b16 %v2620
        %v3350 = vunpack.c.h.b16 %v2620
        %v3351 = vunpack.c.l.b16 %v2621
        %v3352 = vunpack.c.h.b16 %v2621
        %v3353 = vunpack.c.l.b16 %v2622
        %v3354 = vunpack.c.h.b16 %v2622
        %v3355 = vunpack.c.l.b16 %v2623
        %v3356 = vunpack.c.h.b16 %v2623
        %v3357 = vunpack.c.l.b16 %v2624
        %v3358 = vunpack.c.h.b16 %v2624
        %v3359 = vunpack.c.l.b16 %v2625
        %v3360 = vunpack.c.h.b16 %v2625
        %v3361 = vunpack.c.l.b16 %v2626
        %v3362 = vunpack.c.h.b16 %v2626
        %v3363 = vunpack.c.l.b16 %v2627
        %v3364 = vunpack.c.h.b16 %v2627
        %v3365 = vunpack.c.l.b16 %v2628
        %v3366 = vunpack.c.h.b16 %v2628
        %v3367 = vunpack.c.l.b16 %v2629
        %v3368 = vunpack.c.h.b16 %v2629
        %v3369 = vunpack.c.l.b16 %v2630
        %v3370 = vunpack.c.h.b16 %v2630
        %v3371 = vunpack.c.l.b16 %v2631
        %v3372 = vunpack.c.h.b16 %v2631
        %v3373 = vunpack.c.l.b16 %v2632
        %v3374 = vunpack.c.h.b16 %v2632
        %v3375 = vunpack.c.l.b16 %v2633
        %v3376 = vunpack.c.h.b16 %v2633
        %v3377 = vunpack.c.l.b16 %v2634
        %v3378 = vunpack.c.h.b16 %v2634
        %v3379 = vunpack.c.l.b16 %v2635
        %v3380 = vunpack.c.h.b16 %v2635
        %v3381 = vunpack.c.l.b16 %v2636
        %v3382 = vunpack.c.h.b16 %v2636
        %v3383 = vunpack.c.l.b16 %v2637
        %v3384 = vunpack.c.h.b16 %v2637
        %v3385 = vunpack.c.l.b16 %v2638
        %v3386 = vunpack.c.h.b16 %v2638
        %v3387 = vunpack.c.l.b16 %v2639
        %v3388 = vunpack.c.h.b16 %v2639
        %v3389 = vunpack.c.l.b16 %v2640
        %v3390 = vunpack.c.h.b16 %v2640
        %v3391 = vunpack.c.l.b16 %v2641
        %v3392 = vunpack.c.h.b16 %v2641
        %v3393 = vunpack.c.l.b16 %v2642
        %v3394 = vunpack.c.h.b16 %v2642
        %v3395 = vunpack.c.l.b16 %v2643
        %v3396 = vunpack.c.h.b16 %v2643
        %v3397 = vunpack.c.l.b16 %v2644
        %v3398 = vunpack.c.h.b16 %v2644
        %v3399 = vunpack.c.l.b16 %v2645
        %v3400 = vunpack.c.h.b16 %v2645
        %v3401 = vunpack.c.l.b16 %v2646
        %v3402 = vunpack.c.h.b16 %v2646
        %v3403 = vunpack.c.l.b16 %v2647
        %v3404 = vunpack.c.h.b16 %v2647
        %v3405 = vunpack.c.l.b16 %v2648
        %v3406 = vunpack.c.h.b16 %v2648
        %v3407 = vunpack.c.l.b16 %v2649
        %v3408 = vunpack.c.h.b16 %v2649
        %v3409 = vunpack.c.l.b16 %v2650
        %v3410 = vunpack.c.h.b16 %v2650
        %v3411 = vunpack.c.l.b16 %v2651
        %v3412 = vunpack.c.h.b16 %v2651
        %v3413 = vunpack.c.l.b16 %v2652
        %v3414 = vunpack.c.h.b16 %v2652
        %v3415 = vunpack.c.l.b16 %v2653
        %v3416 = vunpack.c.h.b16 %v2653
        %v3417 = vunpack.c.l.b16 %v2654
        %v3418 = vunpack.c.h.b16 %v2654
        %v3419 = vunpack.c.l.b16 %v2655
        %v3420 = vunpack.c.h.b16 %v2655
        %v3421 = vunpack.c.l.b16 %v2656
        %v3422 = vunpack.c.h.b16 %v2656
        %v3423 = vunpack.c.l.b16 %v2657
        %v3424 = vunpack.c.h.b16 %v2657
        %v3425 = vunpack.c.l.b16 %v2658
        %v3426 = vunpack.c.h.b16 %v2658
        %v3427 = vunpack.c.l.b16 %v2659
        %v3428 = vunpack.c.h.b16 %v2659
        %v3429 = vunpack.c.l.b16 %v2660
        %v3430 = vunpack.c.h.b16 %v2660
        %v3431 = vunpack.c.l.b16 %v2661
        %v3432 = vunpack.c.h.b16 %v2661
        %v3433 = vunpack.c.l.b16 %v2662
        %v3434 = vunpack.c.h.b16 %v2662
        %v3435 = vunpack.c.l.b16 %v2663
        %v3436 = vunpack.c.h.b16 %v2663
        %v3437 = vunpack.c.l.b16 %v2664
        %v3438 = vunpack.c.h.b16 %v2664
        %v3439 = vunpack.c.l.b16 %v2665
        %v3440 = vunpack.c.h.b16 %v2665
        %v3441 = vunpack.c.l.b16 %v2666
        %v3442 = vunpack.c.h.b16 %v2666
        %v3443 = vunpack.c.l.b16 %v2667
        %v3444 = vunpack.c.h.b16 %v2667
        %v3445 = vunpack.c.l.b16 %v2668
        %v3446 = vunpack.c.h.b16 %v2668
        %v3447 = vunpack.c.l.b16 %v2669
        %v3448 = vunpack.c.h.b16 %v2669
        %v3449 = vunpack.c.l.b16 %v2670
        %v3450 = vunpack.c.h.b16 %v2670
        %v3451 = vunpack.c.l.b16 %v2671
        %v3452 = vunpack.c.h.b16 %v2671
        %v3453 = vunpack.c.l.b16 %v2672
        %v3454 = vunpack.c.h.b16 %v2672
        %v3455 = vunpack.c.l.b16 %v2673
        %v3456 = vunpack.c.h.b16 %v2673
        %v3457 = vunpack.c.l.b16 %v2674
        %v3458 = vunpack.c.h.b16 %v2674
        %v3459 = vunpack.c.l.b16 %v2675
        %v3460 = vunpack.c.h.b16 %v2675
        %v3461 = vunpack.c.l.b16 %v2676
        %v3462 = vunpack.c.h.b16 %v2676
        %v3463 = vunpack.c.l.b16 %v2677
        %v3464 = vunpack.c.h.b16 %v2677
        %v3465 = vunpack.c.l.b16 %v2678
        %v3466 = vunpack.c.h.b16 %v2678
        %v3467 = vunpack.c.l.b16 %v2679
        %v3468 = vunpack.c.h.b16 %v2679
        %v3469 = vunpack.c.l.b16 %v2680
        %v3470 = vunpack.c.h.b16 %v2680
        %v3471 = vunpack.c.l.b16 %v2681
        %v3472 = vunpack.c.h.b16 %v2681
        %v3473 = vunpack.c.l.b16 %v2682
        %v3474 = vunpack.c.h.b16 %v2682
        %v3475 = vunpack.c.l.b16 %v2683
        %v3476 = vunpack.c.h.b16 %v2683
        %v3477 = vunpack.c.l.b16 %v2684
        %v3478 = vunpack.c.h.b16 %v2684
        %v3479 = vunpack.c.l.b16 %v2685
        %v3480 = vunpack.c.h.b16 %v2685
        %v3481 = vunpack.c.l.b16 %v2686
        %v3482 = vunpack.c.h.b16 %v2686
        %v3483 = vunpack.c.l.b16 %v2687
        %v3484 = vunpack.c.h.b16 %v2687
        %v3485 = vunpack.c.l.b16 %v2688
        %v3486 = vunpack.c.h.b16 %v2688
        %v3487 = vunpack.c.l.b16 %v2689
        %v3488 = vunpack.c.h.b16 %v2689
        %v3489 = vunpack.c.l.b16 %v2690
        %v3490 = vunpack.c.h.b16 %v2690
        %v3491 = vunpack.c.l.b16 %v2691
        %v3492 = vunpack.c.h.b16 %v2691
        %v3493 = vunpack.c.l.b16 %v2692
        %v3494 = vunpack.c.h.b16 %v2692
        %v3495 = vunpack.c.l.b16 %v2693
        %v3496 = vunpack.c.h.b16 %v2693
        %v3497 = vunpack.c.l.b16 %v2694
        %v3498 = vunpack.c.h.b16 %v2694
        %v3499 = vunpack.c.l.b16 %v2695
        %v3500 = vunpack.c.h.b16 %v2695
        %v3501 = vunpack.c.l.b16 %v2696
        %v3502 = vunpack.c.h.b16 %v2696
        %v3503 = vunpack.c.l.b16 %v2697
        %v3504 = vunpack.c.h.b16 %v2697
        %v3505 = vunpack.c.l.b16 %v2698
        %v3506 = vunpack.c.h.b16 %v2698
        %v3507 = vunpack.c.l.b16 %v2699
        %v3508 = vunpack.c.h.b16 %v2699
        %v3509 = vunpack.c.l.b16 %v2700
        %v3510 = vunpack.c.h.b16 %v2700
        %v3511 = vunpack.c.l.b16 %v2701
        %v3512 = vunpack.c.h.b16 %v2701
        %v3513 = vunpack.c.l.b16 %v2702
        %v3514 = vunpack.c.h.b16 %v2702
        %v3515 = vunpack.c.l.b16 %v2703
        %v3516 = vunpack.c.h.b16 %v2703
        %v3517 = vunpack.c.l.b16 %v2704
        %v3518 = vunpack.c.h.b16 %v2704
        %v3519 = vunpack.c.l.b16 %v2705
        %v3520 = vunpack.c.h.b16 %v2705
        %v3521 = vunpack.c.l.b16 %v2706
        %v3522 = vunpack.c.h.b16 %v2706
        %v3523 = vunpack.c.l.b16 %v2707
        %v3524 = vunpack.c.h.b16 %v2707
        %v3525 = vunpack.c.l.b16 %v2708
        %v3526 = vunpack.c.h.b16 %v2708
        %v3527 = vunpack.c.l.b16 %v2709
        %v3528 = vunpack.c.h.b16 %v2709
        %v3529 = vunpack.c.l.b16 %v2710
        %v3530 = vunpack.c.h.b16 %v2710
        %v3531 = vunpack.c.l.b16 %v2711
        %v3532 = vunpack.c.h.b16 %v2711
        %v3533 = vunpack.c.l.b16 %v2712
        %v3534 = vunpack.c.h.b16 %v2712
        %v3535 = vunpack.c.l.b16 %v2713
        %v3536 = vunpack.c.h.b16 %v2713
        %v3537 = vunpack.c.l.b16 %v2714
        %v3538 = vunpack.c.h.b16 %v2714
        %v3539 = vunpack.c.l.b16 %v2715
        %v3540 = vunpack.c.h.b16 %v2715
        %v3541 = vunpack.c.l.b16 %v2716
        %v3542 = vunpack.c.h.b16 %v2716
        %v3543 = vunpack.c.l.b16 %v2717
        %v3544 = vunpack.c.h.b16 %v2717
        %v3545 = vunpack.c.l.b16 %v2718
        %v3546 = vunpack.c.h.b16 %v2718
        %v3547 = vunpack.c.l.b16 %v2719
        %v3548 = vunpack.c.h.b16 %v2719
        %v3549 = vunpack.c.l.b16 %v2720
        %v3550 = vunpack.c.h.b16 %v2720
        %v3551 = vunpack.c.l.b16 %v2721
        %v3552 = vunpack.c.h.b16 %v2721
        %v3553 = vunpack.c.l.b16 %v2722
        %v3554 = vunpack.c.h.b16 %v2722
        %v3555 = vunpack.c.l.b16 %v2723
        %v3556 = vunpack.c.h.b16 %v2723
        %v3557 = vunpack.c.l.b16 %v2724
        %v3558 = vunpack.c.h.b16 %v2724
        %v3559 = vunpack.c.l.b16 %v2725
        %v3560 = vunpack.c.h.b16 %v2725
        %v3561 = vunpack.c.l.b16 %v2726
        %v3562 = vunpack.c.h.b16 %v2726
        %v3563 = vunpack.c.l.b16 %v2727
        %v3564 = vunpack.c.h.b16 %v2727
        %v3565 = vunpack.c.l.b16 %v2728
        %v3566 = vunpack.c.h.b16 %v2728
        %v3567 = vunpack.c.l.b16 %v2729
        %v3568 = vunpack.c.h.b16 %v2729
        %v3569 = vunpack.c.l.b16 %v2730
        %v3570 = vunpack.c.h.b16 %v2730
        %v3571 = vunpack.c.l.b16 %v2731
        %v3572 = vunpack.c.h.b16 %v2731
        %v3573 = vunpack.c.l.b16 %v2732
        %v3574 = vunpack.c.h.b16 %v2732
        %v3575 = vunpack.c.l.b16 %v2733
        %v3576 = vunpack.c.h.b16 %v2733
        %v3577 = vunpack.c.l.b16 %v2734
        %v3578 = vunpack.c.h.b16 %v2734
        %v3579 = vunpack.c.l.b16 %v2735
        %v3580 = vunpack.c.h.b16 %v2735
        %v3581 = vunpack.c.l.b16 %v2736
        %v3582 = vunpack.c.h.b16 %v2736
        %v3583 = vunpack.c.l.b16 %v2737
        %v3584 = vunpack.c.h.b16 %v2737
        %v3585 = vunpack.c.l.b16 %v2738
        %v3586 = vunpack.c.h.b16 %v2738
        %v3587 = vunpack.c.l.b16 %v2739
        %v3588 = vunpack.c.h.b16 %v2739
        %v3589 = vunpack.c.l.b16 %v2740
        %v3590 = vunpack.c.h.b16 %v2740
        %v3591 = vunpack.c.l.b16 %v2741
        %v3592 = vunpack.c.h.b16 %v2741
        %v3593 = vunpack.c.l.b16 %v2742
        %v3594 = vunpack.c.h.b16 %v2742
        %v3595 = vunpack.c.l.b16 %v2743
        %v3596 = vunpack.c.h.b16 %v2743
        %v3597 = vunpack.c.l.b16 %v2744
        %v3598 = vunpack.c.h.b16 %v2744
        %v3599 = vunpack.c.l.b16 %v2745
        %v3600 = vunpack.c.h.b16 %v2745
        %v3601 = vunpack.c.l.b16 %v2746
        %v3602 = vunpack.c.h.b16 %v2746
        %v3603 = vunpack.c.l.b16 %v2747
        %v3604 = vunpack.c.h.b16 %v2747
        %v3605 = vunpack.c.l.b16 %v2748
        %v3606 = vunpack.c.h.b16 %v2748
        %v3607 = vunpack.c.l.b16 %v2749
        %v3608 = vunpack.c.h.b16 %v2749
        %v3609 = vunpack.c.l.b16 %v2750
        %v3610 = vunpack.c.h.b16 %v2750
        %v3611 = vunpack.c.l.b16 %v2751
        %v3612 = vunpack.c.h.b16 %v2751
        %v3613 = vunpack.c.l.b16 %v2752
        %v3614 = vunpack.c.h.b16 %v2752
        %v3615 = vunpack.c.l.b16 %v2753
        %v3616 = vunpack.c.h.b16 %v2753
        %v3617 = vunpack.c.l.b16 %v2754
        %v3618 = vunpack.c.h.b16 %v2754
        %v3619 = vunpack.c.l.b16 %v2755
        %v3620 = vunpack.c.h.b16 %v2755
        %v3621 = vunpack.c.l.b16 %v2756
        %v3622 = vunpack.c.h.b16 %v2756
        %v3623 = vunpack.c.l.b16 %v2757
        %v3624 = vunpack.c.h.b16 %v2757
        %v3625 = vunpack.c.l.b16 %v2758
        %v3626 = vunpack.c.h.b16 %v2758
        %v3627 = vunpack.c.l.b16 %v2759
        %v3628 = vunpack.c.h.b16 %v2759
        %v3629 = vunpack.c.l.b16 %v2760
        %v3630 = vunpack.c.h.b16 %v2760
        %v3631 = vunpack.c.l.b16 %v2761
        %v3632 = vunpack.c.h.b16 %v2761
        %v3633 = vunpack.c.l.b16 %v2762
        %v3634 = vunpack.c.h.b16 %v2762
        %v3635 = vunpack.c.l.b16 %v2763
        %v3636 = vunpack.c.h.b16 %v2763
        %v3637 = vunpack.c.l.b16 %v2764
        %v3638 = vunpack.c.h.b16 %v2764
        %v3639 = vunpack.c.l.b16 %v2765
        %v3640 = vunpack.c.h.b16 %v2765
        %v3641 = vunpack.c.l.b16 %v2766
        %v3642 = vunpack.c.h.b16 %v2766
        %v3643 = vunpack.c.l.b16 %v2767
        %v3644 = vunpack.c.h.b16 %v2767
        %v3645 = vunpack.c.l.b16 %v2768
        %v3646 = vunpack.c.h.b16 %v2768
        %v3647 = vunpack.c.l.b16 %v2769
        %v3648 = vunpack.c.h.b16 %v2769
        %v3649 = vunpack.c.l.b16 %v2770
        %v3650 = vunpack.c.h.b16 %v2770
        %v3651 = vunpack.c.l.b16 %v2771
        %v3652 = vunpack.c.h.b16 %v2771
        %v3653 = vunpack.c.l.b16 %v2772
        %v3654 = vunpack.c.h.b16 %v2772
        %v3655 = vunpack.c.l.b16 %v2773
        %v3656 = vunpack.c.h.b16 %v2773
        %v3657 = vunpack.c.l.b16 %v2774
        %v3658 = vunpack.c.h.b16 %v2774
        %v3659 = vunpack.c.l.b16 %v2775
        %v3660 = vunpack.c.h.b16 %v2775
        %v3661 = vunpack.c.l.b16 %v2776
        %v3662 = vunpack.c.h.b16 %v2776
        %v3663 = vunpack.c.l.b16 %v2777
        %v3664 = vunpack.c.h.b16 %v2777
        %v3665 = vunpack.c.l.b16 %v2778
        %v3666 = vunpack.c.h.b16 %v2778
        %v3667 = vunpack.c.l.b16 %v2779
        %v3668 = vunpack.c.h.b16 %v2779
        %v3669 = vunpack.c.l.b16 %v2780
        %v3670 = vunpack.c.h.b16 %v2780
        %v3671 = vunpack.c.l.b16 %v2781
        %v3672 = vunpack.c.h.b16 %v2781
        %v3673 = vunpack.c.l.b16 %v2782
        %v3674 = vunpack.c.h.b16 %v2782
        %v3675 = vunpack.c.l.b16 %v2783
        %v3676 = vunpack.c.h.b16 %v2783
        %v3677 = vunpack.c.l.b16 %v2784
        %v3678 = vunpack.c.h.b16 %v2784
        %v3679 = vunpack.c.l.b16 %v2785
        %v3680 = vunpack.c.h.b16 %v2785
        %v3681 = vunpack.c.l.b16 %v2786
        %v3682 = vunpack.c.h.b16 %v2786
        %v3683 = vunpack.c.l.b16 %v2787
        %v3684 = vunpack.c.h.b16 %v2787
        %v3685 = vunpack.c.l.b16 %v2788
        %v3686 = vunpack.c.h.b16 %v2788
        %v3687 = vunpack.c.l.b16 %v2789
        %v3688 = vunpack.c.h.b16 %v2789
        %v3689 = vunpack.c.l.b16 %v2790
        %v3690 = vunpack.c.h.b16 %v2790
        %v3691 = vunpack.c.l.b16 %v2791
        %v3692 = vunpack.c.h.b16 %v2791
        %v3693 = vunpack.c.l.b16 %v2792
        %v3694 = vunpack.c.h.b16 %v2792
        %v3695 = vunpack.c.l.b16 %v2793
        %v3696 = vunpack.c.h.b16 %v2793
        %v3697 = vunpack.c.l.b16 %v2794
        %v3698 = vunpack.c.h.b16 %v2794
        %v3699 = vunpack.c.l.b16 %v2795
        %v3700 = vunpack.c.h.b16 %v2795
        %v3701 = vunpack.c.l.b16 %v2796
        %v3702 = vunpack.c.h.b16 %v2796
        %v3703 = vunpack.c.l.b16 %v2797
        %v3704 = vunpack.c.h.b16 %v2797
        %v3705 = vunpack.c.l.b16 %v2798
        %v3706 = vunpack.c.h.b16 %v2798
        %v3707 = vunpack.c.l.b16 %v2799
        %v3708 = vunpack.c.h.b16 %v2799
        %v3709 = vunpack.c.l.b16 %v2800
        %v3710 = vunpack.c.h.b16 %v2800
        %v3711 = vunpack.c.l.b16 %v2801
        %v3712 = vunpack.c.h.b16 %v2801
        %v3713 = vunpack.c.l.b16 %v2802
        %v3714 = vunpack.c.h.b16 %v2802
        %v3715 = vunpack.c.l.b16 %v2803
        %v3716 = vunpack.c.h.b16 %v2803
        %v3717 = vunpack.c.l.b16 %v2804
        %v3718 = vunpack.c.h.b16 %v2804
        %v3719 = vunpack.c.l.b16 %v2805
        %v3720 = vunpack.c.h.b16 %v2805
        %v3721 = vunpack.c.l.b16 %v2806
        %v3722 = vunpack.c.h.b16 %v2806
        %v3723 = vunpack.c.l.b16 %v2807
        %v3724 = vunpack.c.h.b16 %v2807
        %v3725 = vunpack.c.l.b16 %v2808
        %v3726 = vunpack.c.h.b16 %v2808
        %v3727 = vunpack.c.l.b16 %v2809
        %v3728 = vunpack.c.h.b16 %v2809
        %v3729 = vunpack.c.l.b16 %v2810
        %v3730 = vunpack.c.h.b16 %v2810
        %v3731 = vunpack.c.l.b16 %v2811
        %v3732 = vunpack.c.h.b16 %v2811
        %v3733 = vunpack.c.l.b16 %v2812
        %v3734 = vunpack.c.h.b16 %v2812
        %v3735 = vunpack.c.l.b16 %v2813
        %v3736 = vunpack.c.h.b16 %v2813
        %v3737 = vunpack.c.l.b16 %v2814
        %v3738 = vunpack.c.h.b16 %v2814
        %v3739 = vunpack.c.l.b16 %v2815
        %v3740 = vunpack.c.h.b16 %v2815
        %v3741 = vunpack.c.l.b16 %v2816
        %v3742 = vunpack.c.h.b16 %v2816
        %v3743 = vunpack.c.l.b16 %v2817
        %v3744 = vunpack.c.h.b16 %v2817
        %v3745 = vunpack.c.l.b16 %v2818
        %v3746 = vunpack.c.h.b16 %v2818
        %v3747 = vunpack.c.l.b16 %v2819
        %v3748 = vunpack.c.h.b16 %v2819
        %v3749 = vpack.c.b16 %v3181, %v3173
        %v3750 = vpack.c.b16 %v3182, %v3174
        %v3751 = vpack.c.b16 %v3183, %v3175
        %v3752 = vpack.c.b16 %v3184, %v3176
        %v3753 = vpack.c.b16 %v3185, %v3177
        %v3754 = vpack.c.b16 %v3186, %v3178
        %v3755 = vpack.c.b16 %v3187, %v3179
        %v3756 = vpack.c.b16 %v3188, %v3180
        %v3757 = vpack.c.b16 %v3197, %v3189
        %v3758 = vpack.c.b16 %v3198, %v3190
        %v3759 = vpack.c.b16 %v3199, %v3191
        %v3760 = vpack.c.b16 %v3200, %v3192
        %v3761 = vpack.c.b16 %v3201, %v3193
        %v3762 = vpack.c.b16 %v3202, %v3194
        %v3763 = vpack.c.b16 %v3203, %v3195
        %v3764 = vpack.c.b16 %v3204, %v3196
        %v3765 = vpack.c.b16 %v3213, %v3205
        %v3766 = vpack.c.b16 %v3214, %v3206
        %v3767 = vpack.c.b16 %v3215, %v3207
        %v3768 = vpack.c.b16 %v3216, %v3208
        %v3769 = vpack.c.b16 %v3217, %v3209
        %v3770 = vpack.c.b16 %v3218, %v3210
        %v3771 = vpack.c.b16 %v3219, %v3211
        %v3772 = vpack.c.b16 %v3220, %v3212
        %v3773 = vpack.c.b16 %v3229, %v3221
        %v3774 = vpack.c.b16 %v3230, %v3222
        %v3775 = vpack.c.b16 %v3231, %v3223
        %v3776 = vpack.c.b16 %v3232, %v3224
        %v3777 = vpack.c.b16 %v3233, %v3225
        %v3778 = vpack.c.b16 %v3234, %v3226
        %v3779 = vpack.c.b16 %v3235, %v3227
        %v3780 = vpack.c.b16 %v3236, %v3228
        %v3781 = vpack.c.b16 %v3245, %v3237
        %v3782 = vpack.c.b16 %v3246, %v3238
        %v3783 = vpack.c.b16 %v3247, %v3239
        %v3784 = vpack.c.b16 %v3248, %v3240
        %v3785 = vpack.c.b16 %v3249, %v3241
        %v3786 = vpack.c.b16 %v3250, %v3242
        %v3787 = vpack.c.b16 %v3251, %v3243
        %v3788 = vpack.c.b16 %v3252, %v3244
        %v3789 = vpack.c.b16 %v3261, %v3253
        %v3790 = vpack.c.b16 %v3262, %v3254
        %v3791 = vpack.c.b16 %v3263, %v3255
        %v3792 = vpack.c.b16 %v3264, %v3256
        %v3793 = vpack.c.b16 %v3265, %v3257
        %v3794 = vpack.c.b16 %v3266, %v3258
        %v3795 = vpack.c.b16 %v3267, %v3259
        %v3796 = vpack.c.b16 %v3268, %v3260
        %v3797 = vpack.c.b16 %v3277, %v3269
        %v3798 = vpack.c.b16 %v3278, %v3270
        %v3799 = vpack.c.b16 %v3279, %v3271
        %v3800 = vpack.c.b16 %v3280, %v3272
        %v3801 = vpack.c.b16 %v3281, %v3273
        %v3802 = vpack.c.b16 %v3282, %v3274
        %v3803 = vpack.c.b16 %v3283, %v3275
        %v3804 = vpack.c.b16 %v3284, %v3276
        %v3805 = vpack.c.b16 %v3293, %v3285
        %v3806 = vpack.c.b16 %v3294, %v3286
        %v3807 = vpack.c.b16 %v3295, %v3287
        %v3808 = vpack.c.b16 %v3296, %v3288
        %v3809 = vpack.c.b16 %v3297, %v3289
        %v3810 = vpack.c.b16 %v3298, %v3290
        %v3811 = vpack.c.b16 %v3299, %v3291
        %v3812 = vpack.c.b16 %v3300, %v3292
        %v3813 = vpack.c.b16 %v3309, %v3301
        %v3814 = vpack.c.b16 %v3310, %v3302
        %v3815 = vpack.c.b16 %v3311, %v3303
        %v3816 = vpack.c.b16 %v3312, %v3304
        %v3817 = vpack.c.b16 %v3313, %v3305
        %v3818 = vpack.c.b16 %v3314, %v3306
        %v3819 = vpack.c.b16 %v3315, %v3307
        %v3820 = vpack.c.b16 %v3316, %v3308
        %v3821 = vpack.c.b16 %v3325, %v3317
        %v3822 = vpack.c.b16 %v3326, %v3318
        %v3823 = vpack.c.b16 %v3327, %v3319
        %v3824 = vpack.c.b16 %v3328, %v3320
        %v3825 = vpack.c.b16 %v3329, %v3321
        %v3826 = vpack.c.b16 %v3330, %v3322
        %v3827 = vpack.c.b16 %v3331, %v3323
        %v3828 = vpack.c.b16 %v3332, %v3324
        %v3829 = vpack.c.b16 %v3341, %v3333
        %v3830 = vpack.c.b16 %v3342, %v3334
        %v3831 = vpack.c.b16 %v3343, %v3335
        %v3832 = vpack.c.b16 %v3344, %v3336
        %v3833 = vpack.c.b16 %v3345, %v3337
        %v3834 = vpack.c.b16 %v3346, %v3338
        %v3835 = vpack.c.b16 %v3347, %v3339
        %v3836 = vpack.c.b16 %v3348, %v3340
        %v3837 = vpack.c.b16 %v3357, %v3349
        %v3838 = vpack.c.b16 %v3358, %v3350
        %v3839 = vpack.c.b16 %v3359, %v3351
        %v3840 = vpack.c.b16 %v3360, %v3352
        %v3841 = vpack.c.b16 %v3361, %v3353
        %v3842 = vpack.c.b16 %v3362, %v3354
        %v3843 = vpack.c.b16 %v3363, %v3355
        %v3844 = vpack.c.b16 %v3364, %v3356
        %v3845 = vpack.c.b16 %v3373, %v3365
        %v3846 = vpack.c.b16 %v3374, %v3366
        %v3847 = vpack.c.b16 %v3375, %v3367
        %v3848 = vpack.c.b16 %v3376, %v3368
        %v3849 = vpack.c.b16 %v3377, %v3369
        %v3850 = vpack.c.b16 %v3378, %v3370
        %v3851 = vpack.c.b16 %v3379, %v3371
        %v3852 = vpack.c.b16 %v3380, %v3372
        %v3853 = vpack.c.b16 %v3389, %v3381
        %v3854 = vpack.c.b16 %v3390, %v3382
        %v3855 = vpack.c.b16 %v3391, %v3383
        %v3856 = vpack.c.b16 %v3392, %v3384
        %v3857 = vpack.c.b16 %v3393, %v3385
        %v3858 = vpack.c.b16 %v3394, %v3386
        %v3859 = vpack.c.b16 %v3395, %v3387
        %v3860 = vpack.c.b16 %v3396, %v3388
        %v3861 = vpack.c.b16 %v3405, %v3397
        %v3862 = vpack.c.b16 %v3406, %v3398
        %v3863 = vpack.c.b16 %v3407, %v3399
        %v3864 = vpack.c.b16 %v3408, %v3400
        %v3865 = vpack.c.b16 %v3409, %v3401
        %v3866 = vpack.c.b16 %v3410, %v3402
        %v3867 = vpack.c.b16 %v3411, %v3403
        %v3868 = vpack.c.b16 %v3412, %v3404
        %v3869 = vpack.c.b16 %v3421, %v3413
        %v3870 = vpack.c.b16 %v3422, %v3414
        %v3871 = vpack.c.b16 %v3423, %v3415
        %v3872 = vpack.c.b16 %v3424, %v3416
        %v3873 = vpack.c.b16 %v3425, %v3417
        %v3874 = vpack.c.b16 %v3426, %v3418
        %v3875 = vpack.c.b16 %v3427, %v3419
        %v3876 = vpack.c.b16 %v3428, %v3420
        %v3877 = vpack.c.b16 %v3437, %v3429
        %v3878 = vpack.c.b16 %v3438, %v3430
        %v3879 = vpack.c.b16 %v3439, %v3431
        %v3880 = vpack.c.b16 %v3440, %v3432
        %v3881 = vpack.c.b16 %v3441, %v3433
        %v3882 = vpack.c.b16 %v3442, %v3434
        %v3883 = vpack.c.b16 %v3443, %v3435
        %v3884 = vpack.c.b16 %v3444, %v3436
        %v3885 = vpack.c.b16 %v3453, %v3445
        %v3886 = vpack.c.b16 %v3454, %v3446
        %v3887 = vpack.c.b16 %v3455, %v3447
        %v3888 = vpack.c.b16 %v3456, %v3448
        %v3889 = vpack.c.b16 %v3457, %v3449
        %v3890 = vpack.c.b16 %v3458, %v3450
        %v3891 = vpack.c.b16 %v3459, %v3451
        %v3892 = vpack.c.b16 %v3460, %v3452
        %v3893 = vpack.c.b16 %v3469, %v3461
        %v3894 = vpack.c.b16 %v3470, %v3462
        %v3895 = vpack.c.b16 %v3471, %v3463
        %v3896 = vpack.c.b16 %v3472, %v3464
        %v3897 = vpack.c.b16 %v3473, %v3465
        %v3898 = vpack.c.b16 %v3474, %v3466
        %v3899 = vpack.c.b16 %v3475, %v3467
        %v3900 = vpack.c.b16 %v3476, %v3468
        %v3901 = vpack.c.b16 %v3485, %v3477
        %v3902 = vpack.c.b16 %v3486, %v3478
        %v3903 = vpack.c.b16 %v3487, %v3479
        %v3904 = vpack.c.b16 %v3488, %v3480
        %v3905 = vpack.c.b16 %v3489, %v3481
        %v3906 = vpack.c.b16 %v3490, %v3482
        %v3907 = vpack.c.b16 %v3491, %v3483
        %v3908 = vpack.c.b16 %v3492, %v3484
        %v3909 = vpack.c.b16 %v3501, %v3493
        %v3910 = vpack.c.b16 %v3502, %v3494
        %v3911 = vpack.c.b16 %v3503, %v3495
        %v3912 = vpack.c.b16 %v3504, %v3496
        %v3913 = vpack.c.b16 %v3505, %v3497
        %v3914 = vpack.c.b16 %v3506, %v3498
        %v3915 = vpack.c.b16 %v3507, %v3499
        %v3916 = vpack.c.b16 %v3508, %v3500
        %v3917 = vpack.c.b16 %v3517, %v3509
        %v3918 = vpack.c.b16 %v3518, %v3510
        %v3919 = vpack.c.b16 %v3519, %v3511
        %v3920 = vpack.c.b16 %v3520, %v3512
        %v3921 = vpack.c.b16 %v3521, %v3513
        %v3922 = vpack.c.b16 %v3522, %v3514
        %v3923 = vpack.c.b16 %v3523, %v3515
        %v3924 = vpack.c.b16 %v3524, %v3516
        %v3925 = vpack.c.b16 %v3533, %v3525
        %v3926 = vpack.c.b16 %v3534, %v3526
        %v3927 = vpack.c.b16 %v3535, %v3527
        %v3928 = vpack.c.b16 %v3536, %v3528
        %v3929 = vpack.c.b16 %v3537, %v3529
        %v3930 = vpack.c.b16 %v3538, %v3530
        %v3931 = vpack.c.b16 %v3539, %v3531
        %v3932 = vpack.c.b16 %v3540, %v3532
        %v3933 = vpack.c.b16 %v3549, %v3541
        %v3934 = vpack.c.b16 %v3550, %v3542
        %v3935 = vpack.c.b16 %v3551, %v3543
        %v3936 = vpack.c.b16 %v3552, %v3544
        %v3937 = vpack.c.b16 %v3553, %v3545
        %v3938 = vpack.c.b16 %v3554, %v3546
        %v3939 = vpack.c.b16 %v3555, %v3547
        %v3940 = vpack.c.b16 %v3556, %v3548
        %v3941 = vpack.c.b16 %v3565, %v3557
        %v3942 = vpack.c.b16 %v3566, %v3558
        %v3943 = vpack.c.b16 %v3567, %v3559
        %v3944 = vpack.c.b16 %v3568, %v3560
        %v3945 = vpack.c.b16 %v3569, %v3561
        %v3946 = vpack.c.b16 %v3570, %v3562
        %v3947 = vpack.c.b16 %v3571, %v3563
        %v3948 = vpack.c.b16 %v3572, %v3564
        %v3949 = vpack.c.b16 %v3581, %v3573
        %v3950 = vpack.c.b16 %v3582, %v3574
        %v3951 = vpack.c.b16 %v3583, %v3575
        %v3952 = vpack.c.b16 %v3584, %v3576
        %v3953 = vpack.c.b16 %v3585, %v3577
        %v3954 = vpack.c.b16 %v3586, %v3578
        %v3955 = vpack.c.b16 %v3587, %v3579
        %v3956 = vpack.c.b16 %v3588, %v3580
        %v3957 = vpack.c.b16 %v3597, %v3589
        %v3958 = vpack.c.b16 %v3598, %v3590
        %v3959 = vpack.c.b16 %v3599, %v3591
        %v3960 = vpack.c.b16 %v3600, %v3592
        %v3961 = vpack.c.b16 %v3601, %v3593
        %v3962 = vpack.c.b16 %v3602, %v3594
        %v3963 = vpack.c.b16 %v3603, %v3595
        %v3964 = vpack.c.b16 %v3604, %v3596
        %v3965 = vpack.c.b16 %v3613, %v3605
        %v3966 = vpack.c.b16 %v3614, %v3606
        %v3967 = vpack.c.b16 %v3615, %v3607
        %v3968 = vpack.c.b16 %v3616, %v3608
        %v3969 = vpack.c.b16 %v3617, %v3609
        %v3970 = vpack.c.b16 %v3618, %v3610
        %v3971 = vpack.c.b16 %v3619, %v3611
        %v3972 = vpack.c.b16 %v3620, %v3612
        %v3973 = vpack.c.b16 %v3629, %v3621
        %v3974 = vpack.c.b16 %v3630, %v3622
        %v3975 = vpack.c.b16 %v3631, %v3623
        %v3976 = vpack.c.b16 %v3632, %v3624
        %v3977 = vpack.c.b16 %v3633, %v3625
        %v3978 = vpack.c.b16 %v3634, %v3626
        %v3979 = vpack.c.b16 %v3635, %v3627
        %v3980 = vpack.c.b16 %v3636, %v3628
        %v3981 = vpack.c.b16 %v3645, %v3637
        %v3982 = vpack.c.b16 %v3646, %v3638
        %v3983 = vpack.c.b16 %v3647, %v3639
        %v3984 = vpack.c.b16 %v3648, %v3640
        %v3985 = vpack.c.b16 %v3649, %v3641
        %v3986 = vpack.c.b16 %v3650, %v3642
        %v3987 = vpack.c.b16 %v3651, %v3643
        %v3988 = vpack.c.b16 %v3652, %v3644
        %v3989 = vpack.c.b16 %v3661, %v3653
        %v3990 = vpack.c.b16 %v3662, %v3654
        %v3991 = vpack.c.b16 %v3663, %v3655
        %v3992 = vpack.c.b16 %v3664, %v3656
        %v3993 = vpack.c.b16 %v3665, %v3657
        %v3994 = vpack.c.b16 %v3666, %v3658
        %v3995 = vpack.c.b16 %v3667, %v3659
        %v3996 = vpack.c.b16 %v3668, %v3660
        %v3997 = vpack.c.b16 %v3677, %v3669
        %v3998 = vpack.c.b16 %v3678, %v3670
        %v3999 = vpack.c.b16 %v3679, %v3671
        %v4000 = vpack.c.b16 %v3680, %v3672
        %v4001 = vpack.c.b16 %v3681, %v3673
        %v4002 = vpack.c.b16 %v3682, %v3674
        %v4003 = vpack.c.b16 %v3683, %v3675
        %v4004 = vpack.c.b16 %v3684, %v3676
        %v4005 = vpack.c.b16 %v3693, %v3685
        %v4006 = vpack.c.b16 %v3694, %v3686
        %v4007 = vpack.c.b16 %v3695, %v3687
        %v4008 = vpack.c.b16 %v3696, %v3688
        %v4009 = vpack.c.b16 %v3697, %v3689
        %v4010 = vpack.c.b16 %v3698, %v3690
        %v4011 = vpack.c.b16 %v3699, %v3691
        %v4012 = vpack.c.b16 %v3700, %v3692
        %v4013 = vpack.c.b16 %v3709, %v3701
        %v4014 = vpack.c.b16 %v3710, %v3702
        %v4015 = vpack.c.b16 %v3711, %v3703
        %v4016 = vpack.c.b16 %v3712, %v3704
        %v4017 = vpack.c.b16 %v3713, %v3705
        %v4018 = vpack.c.b16 %v3714, %v3706
        %v4019 = vpack.c.b16 %v3715, %v3707
        %v4020 = vpack.c.b16 %v3716, %v3708
        %v4021 = vpack.c.b16 %v3725, %v3717
        %v4022 = vpack.c.b16 %v3726, %v3718
        %v4023 = vpack.c.b16 %v3727, %v3719
        %v4024 = vpack.c.b16 %v3728, %v3720
        %v4025 = vpack.c.b16 %v3729, %v3721
        %v4026 = vpack.c.b16 %v3730, %v3722
        %v4027 = vpack.c.b16 %v3731, %v3723
        %v4028 = vpack.c.b16 %v3732, %v3724
        %v4029 = vpack.c.b16 %v3741, %v3733
        %v4030 = vpack.c.b16 %v3742, %v3734
        %v4031 = vpack.c.b16 %v3743, %v3735
        %v4032 = vpack.c.b16 %v3744, %v3736
        %v4033 = vpack.c.b16 %v3745, %v3737
        %v4034 = vpack.c.b16 %v3746, %v3738
        %v4035 = vpack.c.b16 %v3747, %v3739
        %v4036 = vpack.c.b16 %v3748, %v3740
        %v4326 = vsel %vm2200, %v2880, 0
        %4328 = vmatprep.subr.bf16.mxu0 %v3750
        %4329 = vmatpush1.bf16.msra.mxu0 %v3749
        %4330 = vmatprep.subr.bf16.mxu0 %v3758
        %4331 = vmatpush1.bf16.msra.mxu0 %v3757
        %4332 = vmatprep.subr.bf16.mxu0 %v3766
        %4333 = vmatpush1.bf16.msra.mxu0 %v3765
        %4334 = vmatprep.subr.bf16.mxu0 %v3774
        %4335 = vmatpush1.bf16.msra.mxu0 %v3773
        %4336 = vmatprep.subr.bf16.mxu0 %v3782
        %4337 = vmatpush1.bf16.msra.mxu0 %v3781
        %4338 = vmatprep.subr.bf16.mxu0 %v3790
        %4339 = vmatpush1.bf16.msra.mxu0 %v3789
        %4340 = vmatprep.subr.bf16.mxu0 %v3798
        %4341 = vmatpush1.bf16.msra.mxu0 %v3797
        %4342 = vmatprep.subr.bf16.mxu0 %v3806
        %4343 = vmatpush1.bf16.msra.mxu0 %v3805
        %4344 = vmatprep.subr.bf16.mxu0 %v3814
        %4345 = vmatpush1.bf16.msra.mxu0 %v3813
        %4346 = vmatprep.subr.bf16.mxu0 %v3822
        %4347 = vmatpush1.bf16.msra.mxu0 %v3821
        %4348 = vmatprep.subr.bf16.mxu0 %v3830
        %4349 = vmatpush1.bf16.msra.mxu0 %v3829
        %4350 = vmatprep.subr.bf16.mxu0 %v3838
        %4351 = vmatpush1.bf16.msra.mxu0 %v3837
        %4352 = vmatprep.subr.bf16.mxu0 %v3846
        %4353 = vmatpush1.bf16.msra.mxu0 %v3845
        %4354 = vmatprep.subr.bf16.mxu0 %v3854
        %4355 = vmatpush1.bf16.msra.mxu0 %v3853
        %4356 = vmatprep.subr.bf16.mxu0 %v3862
        %4357 = vmatpush1.bf16.msra.mxu0 %v3861
        %4358 = vmatprep.subr.bf16.mxu0 %v3870
        %4359 = vmatpush1.bf16.msra.mxu0 %v3869
        %4360 = vmatprep.mubr.bf16.mxu0 %v2844
        %4361 = vmatmul.mubr.bf16.gmra.mrb[0].mxu0 %v2832
        %v4362 = vpop.f32.mrb[0].mxu0
        %v4363 = vadd.f32 0.0, %v4362
        %v4364 = vpop.f32.mrb[0].mxu0
        %v4365 = vadd.f32 0.0, %v4364
        %v4366 = vpop.f32.mrb[0].mxu0
        %v4367 = vadd.f32 0.0, %v4366
        %v4368 = vpop.f32.mrb[0].mxu0
        %v4369 = vadd.f32 0.0, %v4368
        %4370 = vdwg.mxu0
        %4371 = vmatprep.subr.bf16.mxu0 %v3878
        %4372 = vmatpush1.bf16.msra.mxu0 %v3877
        %4373 = vmatprep.subr.bf16.mxu0 %v3886
        %4374 = vmatpush1.bf16.msra.mxu0 %v3885
        %4375 = vmatprep.subr.bf16.mxu0 %v3894
        %4376 = vmatpush1.bf16.msra.mxu0 %v3893
        %4377 = vmatprep.subr.bf16.mxu0 %v3902
        %4378 = vmatpush1.bf16.msra.mxu0 %v3901
        %4379 = vmatprep.subr.bf16.mxu0 %v3910
        %4380 = vmatpush1.bf16.msra.mxu0 %v3909
        %4381 = vmatprep.subr.bf16.mxu0 %v3918
        %4382 = vmatpush1.bf16.msra.mxu0 %v3917
        %4383 = vmatprep.subr.bf16.mxu0 %v3926
        %4384 = vmatpush1.bf16.msra.mxu0 %v3925
        %4385 = vmatprep.subr.bf16.mxu0 %v3934
        %4386 = vmatpush1.bf16.msra.mxu0 %v3933
        %4387 = vmatprep.subr.bf16.mxu0 %v3942
        %4388 = vmatpush1.bf16.msra.mxu0 %v3941
        %4389 = vmatprep.subr.bf16.mxu0 %v3950
        %4390 = vmatpush1.bf16.msra.mxu0 %v3949
        %4391 = vmatprep.subr.bf16.mxu0 %v3958
        %4392 = vmatpush1.bf16.msra.mxu0 %v3957
        %4393 = vmatprep.subr.bf16.mxu0 %v3966
        %4394 = vmatpush1.bf16.msra.mxu0 %v3965
        %4395 = vmatprep.subr.bf16.mxu0 %v3974
        %4396 = vmatpush1.bf16.msra.mxu0 %v3973
        %4397 = vmatprep.subr.bf16.mxu0 %v3982
        %4398 = vmatpush1.bf16.msra.mxu0 %v3981
        %4399 = vmatprep.subr.bf16.mxu0 %v3990
        %4400 = vmatpush1.bf16.msra.mxu0 %v3989
        %4401 = vmatprep.subr.bf16.mxu0 %v3998
        %4402 = vmatpush1.bf16.msra.mxu0 %v3997
        %4403 = vmatprep.mubr.bf16.mxu0 %v2868
        %4404 = vmatmul.mubr.bf16.gmra.mrb[0].mxu0 %v2856
        %v4405 = vpop.f32.mrb[0].mxu0
        %v4406 = vadd.f32 %v4363, %v4405
        %v4407 = vpop.f32.mrb[0].mxu0
        %v4408 = vadd.f32 %v4365, %v4407
        %v4409 = vpop.f32.mrb[0].mxu0
        %v4410 = vadd.f32 %v4367, %v4409
        %v4411 = vpop.f32.mrb[0].mxu0
        %v4412 = vadd.f32 %v4369, %v4411
        %4413 = vdwg.mxu0
        %4414 = vmatprep.subr.bf16.mxu0 %v4006
        %4415 = vmatpush1.bf16.msra.mxu0 %v4005
        %4416 = vmatprep.subr.bf16.mxu0 %v4014
        %4417 = vmatpush1.bf16.msra.mxu0 %v4013
        %4418 = vmatprep.subr.bf16.mxu0 %v4022
        %4419 = vmatpush1.bf16.msra.mxu0 %v4021
        %4420 = vmatprep.subr.bf16.mxu0 %v4030
        %4421 = vmatpush1.bf16.msra.mxu0 %v4029
        %4422 = vmatprep.subr.bf16.mxu0 0
        %4423 = vmatpush1.bf16.msra.mxu0 0
        %4424 = vmatprep.subr.bf16.mxu0 0
        %4425 = vmatpush1.bf16.msra.mxu0 0
        %4426 = vmatprep.subr.bf16.mxu0 0
        %4427 = vmatpush1.bf16.msra.mxu0 0
        %4428 = vmatprep.subr.bf16.mxu0 0
        %4429 = vmatpush1.bf16.msra.mxu0 0
        %4430 = vmatprep.subr.bf16.mxu0 0
        %4431 = vmatpush1.bf16.msra.mxu0 0
        %4432 = vmatprep.subr.bf16.mxu0 0
        %4433 = vmatpush1.bf16.msra.mxu0 0
        %4434 = vmatprep.subr.bf16.mxu0 0
        %4435 = vmatpush1.bf16.msra.mxu0 0
        %4436 = vmatprep.subr.bf16.mxu0 0
        %4437 = vmatpush1.bf16.msra.mxu0 0
        %4438 = vmatprep.subr.bf16.mxu0 0
        %4439 = vmatpush1.bf16.msra.mxu0 0
        %4440 = vmatprep.subr.bf16.mxu0 0
        %4441 = vmatpush1.bf16.msra.mxu0 0
        %4442 = vmatprep.subr.bf16.mxu0 0
        %4443 = vmatpush1.bf16.msra.mxu0 0
        %4444 = vmatprep.subr.bf16.mxu0 0
        %4445 = vmatpush1.bf16.msra.mxu0 0
        %4446 = vmatprep.mubr.bf16.mxu0 0
        %4447 = vmatmul.mubr.bf16.gmra.mrb[0].mxu0 %v4326
        %v4448 = vpop.f32.mrb[0].mxu0
        %v4449 = vadd.f32 %v4406, %v4448
        %v4450 = vpop.f32.mrb[0].mxu0
        %v4451 = vadd.f32 %v4408, %v4450
        %v4452 = vpop.f32.mrb[0].mxu0
        %v4453 = vadd.f32 %v4410, %v4452
        %v4454 = vpop.f32.mrb[0].mxu0
        %v4455 = vadd.f32 %v4412, %v4454
        %4456 = vdwg.mxu0
        %4457 = vmatprep.subr.bf16.mxu0 %v3752
        %4458 = vmatpush1.bf16.msra.mxu0 %v3751
        %4459 = vmatprep.subr.bf16.mxu0 %v3760
        %4460 = vmatpush1.bf16.msra.mxu0 %v3759
        %4461 = vmatprep.subr.bf16.mxu0 %v3768
        %4462 = vmatpush1.bf16.msra.mxu0 %v3767
        %4463 = vmatprep.subr.bf16.mxu0 %v3776
        %4464 = vmatpush1.bf16.msra.mxu0 %v3775
        %4465 = vmatprep.subr.bf16.mxu0 %v3784
        %4466 = vmatpush1.bf16.msra.mxu0 %v3783
        %4467 = vmatprep.subr.bf16.mxu0 %v3792
        %4468 = vmatpush1.bf16.msra.mxu0 %v3791
        %4469 = vmatprep.subr.bf16.mxu0 %v3800
        %4470 = vmatpush1.bf16.msra.mxu0 %v3799
        %4471 = vmatprep.subr.bf16.mxu0 %v3808
        %4472 = vmatpush1.bf16.msra.mxu0 %v3807
        %4473 = vmatprep.subr.bf16.mxu0 %v3816
        %4474 = vmatpush1.bf16.msra.mxu0 %v3815
        %4475 = vmatprep.subr.bf16.mxu0 %v3824
        %4476 = vmatpush1.bf16.msra.mxu0 %v3823
        %4477 = vmatprep.subr.bf16.mxu0 %v3832
        %4478 = vmatpush1.bf16.msra.mxu0 %v3831
        %4479 = vmatprep.subr.bf16.mxu0 %v3840
        %4480 = vmatpush1.bf16.msra.mxu0 %v3839
        %4481 = vmatprep.subr.bf16.mxu0 %v3848
        %4482 = vmatpush1.bf16.msra.mxu0 %v3847
        %4483 = vmatprep.subr.bf16.mxu0 %v3856
        %4484 = vmatpush1.bf16.msra.mxu0 %v3855
        %4485 = vmatprep.subr.bf16.mxu0 %v3864
        %4486 = vmatpush1.bf16.msra.mxu0 %v3863
        %4487 = vmatprep.subr.bf16.mxu0 %v3872
        %4488 = vmatpush1.bf16.msra.mxu0 %v3871
        %4489 = vmatprep.mubr.bf16.mxu0 %v2844
        %4490 = vmatmul.mubr.bf16.gmra.mrb[0].mxu0 %v2832
        %v4491 = vpop.f32.mrb[0].mxu0
        %v4492 = vadd.f32 0.0, %v4491
        %v4493 = vpop.f32.mrb[0].mxu0
        %v4494 = vadd.f32 0.0, %v4493
        %v4495 = vpop.f32.mrb[0].mxu0
        %v4496 = vadd.f32 0.0, %v4495
        %v4497 = vpop.f32.mrb[0].mxu0
        %v4498 = vadd.f32 0.0, %v4497
        %4499 = vdwg.mxu0
        %4500 = vmatprep.subr.bf16.mxu0 %v3880
        %4501 = vmatpush1.bf16.msra.mxu0 %v3879
        %4502 = vmatprep.subr.bf16.mxu0 %v3888
        %4503 = vmatpush1.bf16.msra.mxu0 %v3887
        %4504 = vmatprep.subr.bf16.mxu0 %v3896
        %4505 = vmatpush1.bf16.msra.mxu0 %v3895
        %4506 = vmatprep.subr.bf16.mxu0 %v3904
        %4507 = vmatpush1.bf16.msra.mxu0 %v3903
        %4508 = vmatprep.subr.bf16.mxu0 %v3912
        %4509 = vmatpush1.bf16.msra.mxu0 %v3911
        %4510 = vmatprep.subr.bf16.mxu0 %v3920
        %4511 = vmatpush1.bf16.msra.mxu0 %v3919
        %4512 = vmatprep.subr.bf16.mxu0 %v3928
        %4513 = vmatpush1.bf16.msra.mxu0 %v3927
        %4514 = vmatprep.subr.bf16.mxu0 %v3936
        %4515 = vmatpush1.bf16.msra.mxu0 %v3935
        %4516 = vmatprep.subr.bf16.mxu0 %v3944
        %4517 = vmatpush1.bf16.msra.mxu0 %v3943
        %4518 = vmatprep.subr.bf16.mxu0 %v3952
        %4519 = vmatpush1.bf16.msra.mxu0 %v3951
        %4520 = vmatprep.subr.bf16.mxu0 %v3960
        %4521 = vmatpush1.bf16.msra.mxu0 %v3959
        %4522 = vmatprep.subr.bf16.mxu0 %v3968
        %4523 = vmatpush1.bf16.msra.mxu0 %v3967
        %4524 = vmatprep.subr.bf16.mxu0 %v3976
        %4525 = vmatpush1.bf16.msra.mxu0 %v3975
        %4526 = vmatprep.subr.bf16.mxu0 %v3984
        %4527 = vmatpush1.bf16.msra.mxu0 %v3983
        %4528 = vmatprep.subr.bf16.mxu0 %v3992
        %4529 = vmatpush1.bf16.msra.mxu0 %v3991
        %4530 = vmatprep.subr.bf16.mxu0 %v4000
        %4531 = vmatpush1.bf16.msra.mxu0 %v3999
        %4532 = vmatprep.mubr.bf16.mxu0 %v2868
        %4533 = vmatmul.mubr.bf16.gmra.mrb[0].mxu0 %v2856
        %v4534 = vpop.f32.mrb[0].mxu0
        %v4535 = vadd.f32 %v4492, %v4534
        %v4536 = vpop.f32.mrb[0].mxu0
        %v4537 = vadd.f32 %v4494, %v4536
        %v4538 = vpop.f32.mrb[0].mxu0
        %v4539 = vadd.f32 %v4496, %v4538
        %v4540 = vpop.f32.mrb[0].mxu0
        %v4541 = vadd.f32 %v4498, %v4540
        %4542 = vdwg.mxu0
        %4543 = vmatprep.subr.bf16.mxu0 %v4008
        %4544 = vmatpush1.bf16.msra.mxu0 %v4007
        %4545 = vmatprep.subr.bf16.mxu0 %v4016
        %4546 = vmatpush1.bf16.msra.mxu0 %v4015
        %4547 = vmatprep.subr.bf16.mxu0 %v4024
        %4548 = vmatpush1.bf16.msra.mxu0 %v4023
        %4549 = vmatprep.subr.bf16.mxu0 %v4032
        %4550 = vmatpush1.bf16.msra.mxu0 %v4031
        %4551 = vmatprep.subr.bf16.mxu0 0
        %4552 = vmatpush1.bf16.msra.mxu0 0
        %4553 = vmatprep.subr.bf16.mxu0 0
        %4554 = vmatpush1.bf16.msra.mxu0 0
        %4555 = vmatprep.subr.bf16.mxu0 0
        %4556 = vmatpush1.bf16.msra.mxu0 0
        %4557 = vmatprep.subr.bf16.mxu0 0
        %4558 = vmatpush1.bf16.msra.mxu0 0
        %4559 = vmatprep.subr.bf16.mxu0 0
        %4560 = vmatpush1.bf16.msra.mxu0 0
        %4561 = vmatprep.subr.bf16.mxu0 0
        %4562 = vmatpush1.bf16.msra.mxu0 0
        %4563 = vmatprep.subr.bf16.mxu0 0
        %4564 = vmatpush1.bf16.msra.mxu0 0
        %4565 = vmatprep.subr.bf16.mxu0 0
        %4566 = vmatpush1.bf16.msra.mxu0 0
        %4567 = vmatprep.subr.bf16.mxu0 0
        %4568 = vmatpush1.bf16.msra.mxu0 0
        %4569 = vmatprep.subr.bf16.mxu0 0
        %4570 = vmatpush1.bf16.msra.mxu0 0
        %4571 = vmatprep.subr.bf16.mxu0 0
        %4572 = vmatpush1.bf16.msra.mxu0 0
        %4573 = vmatprep.subr.bf16.mxu0 0
        %4574 = vmatpush1.bf16.msra.mxu0 0
        %4575 = vmatprep.mubr.bf16.mxu0 0
        %4576 = vmatmul.mubr.bf16.gmra.mrb[0].mxu0 %v4326
        %v4577 = vpop.f32.mrb[0].mxu0
        %v4578 = vadd.f32 %v4535, %v4577
        %v4579 = vpop.f32.mrb[0].mxu0
        %v4580 = vadd.f32 %v4537, %v4579
        %v4581 = vpop.f32.mrb[0].mxu0
        %v4582 = vadd.f32 %v4539, %v4581
        %v4583 = vpop.f32.mrb[0].mxu0
        %v4584 = vadd.f32 %v4541, %v4583
        %4585 = vdwg.mxu0
        %4586 = vmatprep.subr.bf16.mxu0 %v3754
        %4587 = vmatpush1.bf16.msra.mxu0 %v3753
        %4588 = vmatprep.subr.bf16.mxu0 %v3762
        %4589 = vmatpush1.bf16.msra.mxu0 %v3761
        %4590 = vmatprep.subr.bf16.mxu0 %v3770
        %4591 = vmatpush1.bf16.msra.mxu0 %v3769
        %4592 = vmatprep.subr.bf16.mxu0 %v3778
        %4593 = vmatpush1.bf16.msra.mxu0 %v3777
        %4594 = vmatprep.subr.bf16.mxu0 %v3786
        %4595 = vmatpush1.bf16.msra.mxu0 %v3785
        %4596 = vmatprep.subr.bf16.mxu0 %v3794
        %4597 = vmatpush1.bf16.msra.mxu0 %v3793
        %4598 = vmatprep.subr.bf16.mxu0 %v3802
        %4599 = vmatpush1.bf16.msra.mxu0 %v3801
        %4600 = vmatprep.subr.bf16.mxu0 %v3810
        %4601 = vmatpush1.bf16.msra.mxu0 %v3809
        %4602 = vmatprep.subr.bf16.mxu0 %v3818
        %4603 = vmatpush1.bf16.msra.mxu0 %v3817
        %4604 = vmatprep.subr.bf16.mxu0 %v3826
        %4605 = vmatpush1.bf16.msra.mxu0 %v3825
        %4606 = vmatprep.subr.bf16.mxu0 %v3834
        %4607 = vmatpush1.bf16.msra.mxu0 %v3833
        %4608 = vmatprep.subr.bf16.mxu0 %v3842
        %4609 = vmatpush1.bf16.msra.mxu0 %v3841
        %4610 = vmatprep.subr.bf16.mxu0 %v3850
        %4611 = vmatpush1.bf16.msra.mxu0 %v3849
        %4612 = vmatprep.subr.bf16.mxu0 %v3858
        %4613 = vmatpush1.bf16.msra.mxu0 %v3857
        %4614 = vmatprep.subr.bf16.mxu0 %v3866
        %4615 = vmatpush1.bf16.msra.mxu0 %v3865
        %4616 = vmatprep.subr.bf16.mxu0 %v3874
        %4617 = vmatpush1.bf16.msra.mxu0 %v3873
        %4618 = vmatprep.mubr.bf16.mxu0 %v2844
        %4619 = vmatmul.mubr.bf16.gmra.mrb[0].mxu0 %v2832
        %v4620 = vpop.f32.mrb[0].mxu0
        %v4621 = vadd.f32 0.0, %v4620
        %v4622 = vpop.f32.mrb[0].mxu0
        %v4623 = vadd.f32 0.0, %v4622
        %v4624 = vpop.f32.mrb[0].mxu0
        %v4625 = vadd.f32 0.0, %v4624
        %v4626 = vpop.f32.mrb[0].mxu0
        %v4627 = vadd.f32 0.0, %v4626
        %4628 = vdwg.mxu0
        %4629 = vmatprep.subr.bf16.mxu0 %v3882
        %4630 = vmatpush1.bf16.msra.mxu0 %v3881
        %4631 = vmatprep.subr.bf16.mxu0 %v3890
        %4632 = vmatpush1.bf16.msra.mxu0 %v3889
        %4633 = vmatprep.subr.bf16.mxu0 %v3898
        %4634 = vmatpush1.bf16.msra.mxu0 %v3897
        %4635 = vmatprep.subr.bf16.mxu0 %v3906
        %4636 = vmatpush1.bf16.msra.mxu0 %v3905
        %4637 = vmatprep.subr.bf16.mxu0 %v3914
        %4638 = vmatpush1.bf16.msra.mxu0 %v3913
        %4639 = vmatprep.subr.bf16.mxu0 %v3922
        %4640 = vmatpush1.bf16.msra.mxu0 %v3921
        %4641 = vmatprep.subr.bf16.mxu0 %v3930
        %4642 = vmatpush1.bf16.msra.mxu0 %v3929
        %4643 = vmatprep.subr.bf16.mxu0 %v3938
        %4644 = vmatpush1.bf16.msra.mxu0 %v3937
        %4645 = vmatprep.subr.bf16.mxu0 %v3946
        %4646 = vmatpush1.bf16.msra.mxu0 %v3945
        %4647 = vmatprep.subr.bf16.mxu0 %v3954
        %4648 = vmatpush1.bf16.msra.mxu0 %v3953
        %4649 = vmatprep.subr.bf16.mxu0 %v3962
        %4650 = vmatpush1.bf16.msra.mxu0 %v3961
        %4651 = vmatprep.subr.bf16.mxu0 %v3970
        %4652 = vmatpush1.bf16.msra.mxu0 %v3969
        %4653 = vmatprep.subr.bf16.mxu0 %v3978
        %4654 = vmatpush1.bf16.msra.mxu0 %v3977
        %4655 = vmatprep.subr.bf16.mxu0 %v3986
        %4656 = vmatpush1.bf16.msra.mxu0 %v3985
        %4657 = vmatprep.subr.bf16.mxu0 %v3994
        %4658 = vmatpush1.bf16.msra.mxu0 %v3993
        %4659 = vmatprep.subr.bf16.mxu0 %v4002
        %4660 = vmatpush1.bf16.msra.mxu0 %v4001
        %4661 = vmatprep.mubr.bf16.mxu0 %v2868
        %4662 = vmatmul.mubr.bf16.gmra.mrb[0].mxu0 %v2856
        %v4663 = vpop.f32.mrb[0].mxu0
        %v4664 = vadd.f32 %v4621, %v4663
        %v4665 = vpop.f32.mrb[0].mxu0
        %v4666 = vadd.f32 %v4623, %v4665
        %v4667 = vpop.f32.mrb[0].mxu0
        %v4668 = vadd.f32 %v4625, %v4667
        %v4669 = vpop.f32.mrb[0].mxu0
        %v4670 = vadd.f32 %v4627, %v4669
        %4671 = vdwg.mxu0
        %4672 = vmatprep.subr.bf16.mxu0 %v4010
        %4673 = vmatpush1.bf16.msra.mxu0 %v4009
        %4674 = vmatprep.subr.bf16.mxu0 %v4018
        %4675 = vmatpush1.bf16.msra.mxu0 %v4017
        %4676 = vmatprep.subr.bf16.mxu0 %v4026
        %4677 = vmatpush1.bf16.msra.mxu0 %v4025
        %4678 = vmatprep.subr.bf16.mxu0 %v4034
        %4679 = vmatpush1.bf16.msra.mxu0 %v4033
        %4680 = vmatprep.subr.bf16.mxu0 0
        %4681 = vmatpush1.bf16.msra.mxu0 0
        %4682 = vmatprep.subr.bf16.mxu0 0
        %4683 = vmatpush1.bf16.msra.mxu0 0
        %4684 = vmatprep.subr.bf16.mxu0 0
        %4685 = vmatpush1.bf16.msra.mxu0 0
        %4686 = vmatprep.subr.bf16.mxu0 0
        %4687 = vmatpush1.bf16.msra.mxu0 0
        %4688 = vmatprep.subr.bf16.mxu0 0
        %4689 = vmatpush1.bf16.msra.mxu0 0
        %4690 = vmatprep.subr.bf16.mxu0 0
        %4691 = vmatpush1.bf16.msra.mxu0 0
        %4692 = vmatprep.subr.bf16.mxu0 0
        %4693 = vmatpush1.bf16.msra.mxu0 0
        %4694 = vmatprep.subr.bf16.mxu0 0
        %4695 = vmatpush1.bf16.msra.mxu0 0
        %4696 = vmatprep.subr.bf16.mxu0 0
        %4697 = vmatpush1.bf16.msra.mxu0 0
        %4698 = vmatprep.subr.bf16.mxu0 0
        %4699 = vmatpush1.bf16.msra.mxu0 0
        %4700 = vmatprep.subr.bf16.mxu0 0
        %4701 = vmatpush1.bf16.msra.mxu0 0
        %4702 = vmatprep.subr.bf16.mxu0 0
        %4703 = vmatpush1.bf16.msra.mxu0 0
        %4704 = vmatprep.mubr.bf16.mxu0 0
        %4705 = vmatmul.mubr.bf16.gmra.mrb[0].mxu0 %v4326
        %v4706 = vpop.f32.mrb[0].mxu0
        %v4707 = vadd.f32 %v4664, %v4706
        %v4708 = vpop.f32.mrb[0].mxu0
        %v4709 = vadd.f32 %v4666, %v4708
        %v4710 = vpop.f32.mrb[0].mxu0
        %v4711 = vadd.f32 %v4668, %v4710
        %v4712 = vpop.f32.mrb[0].mxu0
        %v4713 = vadd.f32 %v4670, %v4712
        %4714 = vdwg.mxu0
        %4715 = vmatprep.subr.bf16.mxu0 %v3756
        %4716 = vmatpush1.bf16.msra.mxu0 %v3755
        %4717 = vmatprep.subr.bf16.mxu0 %v3764
        %4718 = vmatpush1.bf16.msra.mxu0 %v3763
        %4719 = vmatprep.subr.bf16.mxu0 %v3772
        %4720 = vmatpush1.bf16.msra.mxu0 %v3771
        %4721 = vmatprep.subr.bf16.mxu0 %v3780
        %4722 = vmatpush1.bf16.msra.mxu0 %v3779
        %4723 = vmatprep.subr.bf16.mxu0 %v3788
        %4724 = vmatpush1.bf16.msra.mxu0 %v3787
        %4725 = vmatprep.subr.bf16.mxu0 %v3796
        %4726 = vmatpush1.bf16.msra.mxu0 %v3795
        %4727 = vmatprep.subr.bf16.mxu0 %v3804
        %4728 = vmatpush1.bf16.msra.mxu0 %v3803
        %4729 = vmatprep.subr.bf16.mxu0 %v3812
        %4730 = vmatpush1.bf16.msra.mxu0 %v3811
        %4731 = vmatprep.subr.bf16.mxu0 %v3820
        %4732 = vmatpush1.bf16.msra.mxu0 %v3819
        %4733 = vmatprep.subr.bf16.mxu0 %v3828
        %4734 = vmatpush1.bf16.msra.mxu0 %v3827
        %4735 = vmatprep.subr.bf16.mxu0 %v3836
        %4736 = vmatpush1.bf16.msra.mxu0 %v3835
        %4737 = vmatprep.subr.bf16.mxu0 %v3844
        %4738 = vmatpush1.bf16.msra.mxu0 %v3843
        %4739 = vmatprep.subr.bf16.mxu0 %v3852
        %4740 = vmatpush1.bf16.msra.mxu0 %v3851
        %4741 = vmatprep.subr.bf16.mxu0 %v3860
        %4742 = vmatpush1.bf16.msra.mxu0 %v3859
        %4743 = vmatprep.subr.bf16.mxu0 %v3868
        %4744 = vmatpush1.bf16.msra.mxu0 %v3867
        %4745 = vmatprep.subr.bf16.mxu0 %v3876
        %4746 = vmatpush1.bf16.msra.mxu0 %v3875
        %4747 = vmatprep.mubr.bf16.mxu0 %v2844
        %4748 = vmatmul.mubr.bf16.gmra.mrb[0].mxu0 %v2832
        %v4749 = vpop.f32.mrb[0].mxu0
        %v4750 = vadd.f32 0.0, %v4749
        %v4751 = vpop.f32.mrb[0].mxu0
        %v4752 = vadd.f32 0.0, %v4751
        %v4753 = vpop.f32.mrb[0].mxu0
        %v4754 = vadd.f32 0.0, %v4753
        %v4755 = vpop.f32.mrb[0].mxu0
        %v4756 = vadd.f32 0.0, %v4755
        %4757 = vdwg.mxu0
        %4758 = vmatprep.subr.bf16.mxu0 %v3884
        %4759 = vmatpush1.bf16.msra.mxu0 %v3883
        %4760 = vmatprep.subr.bf16.mxu0 %v3892
        %4761 = vmatpush1.bf16.msra.mxu0 %v3891
        %4762 = vmatprep.subr.bf16.mxu0 %v3900
        %4763 = vmatpush1.bf16.msra.mxu0 %v3899
        %4764 = vmatprep.subr.bf16.mxu0 %v3908
        %4765 = vmatpush1.bf16.msra.mxu0 %v3907
        %4766 = vmatprep.subr.bf16.mxu0 %v3916
        %4767 = vmatpush1.bf16.msra.mxu0 %v3915
        %4768 = vmatprep.subr.bf16.mxu0 %v3924
        %4769 = vmatpush1.bf16.msra.mxu0 %v3923
        %4770 = vmatprep.subr.bf16.mxu0 %v3932
        %4771 = vmatpush1.bf16.msra.mxu0 %v3931
        %4772 = vmatprep.subr.bf16.mxu0 %v3940
        %4773 = vmatpush1.bf16.msra.mxu0 %v3939
        %4774 = vmatprep.subr.bf16.mxu0 %v3948
        %4775 = vmatpush1.bf16.msra.mxu0 %v3947
        %4776 = vmatprep.subr.bf16.mxu0 %v3956
        %4777 = vmatpush1.bf16.msra.mxu0 %v3955
        %4778 = vmatprep.subr.bf16.mxu0 %v3964
        %4779 = vmatpush1.bf16.msra.mxu0 %v3963
        %4780 = vmatprep.subr.bf16.mxu0 %v3972
        %4781 = vmatpush1.bf16.msra.mxu0 %v3971
        %4782 = vmatprep.subr.bf16.mxu0 %v3980
        %4783 = vmatpush1.bf16.msra.mxu0 %v3979
        %4784 = vmatprep.subr.bf16.mxu0 %v3988
        %4785 = vmatpush1.bf16.msra.mxu0 %v3987
        %4786 = vmatprep.subr.bf16.mxu0 %v3996
        %4787 = vmatpush1.bf16.msra.mxu0 %v3995
        %4788 = vmatprep.subr.bf16.mxu0 %v4004
        %4789 = vmatpush1.bf16.msra.mxu0 %v4003
        %4790 = vmatprep.mubr.bf16.mxu0 %v2868
        %4791 = vmatmul.mubr.bf16.gmra.mrb[0].mxu0 %v2856
        %v4792 = vpop.f32.mrb[0].mxu0
        %v4793 = vadd.f32 %v4750, %v4792
        %v4794 = vpop.f32.mrb[0].mxu0
        %v4795 = vadd.f32 %v4752, %v4794
        %v4796 = vpop.f32.mrb[0].mxu0
        %v4797 = vadd.f32 %v4754, %v4796
        %v4798 = vpop.f32.mrb[0].mxu0
        %v4799 = vadd.f32 %v4756, %v4798
        %4800 = vdwg.mxu0
        %4801 = vmatprep.subr.bf16.mxu0 %v4012
        %4802 = vmatpush1.bf16.msra.mxu0 %v4011
        %4803 = vmatprep.subr.bf16.mxu0 %v4020
        %4804 = vmatpush1.bf16.msra.mxu0 %v4019
        %4805 = vmatprep.subr.bf16.mxu0 %v4028
        %4806 = vmatpush1.bf16.msra.mxu0 %v4027
        %4807 = vmatprep.subr.bf16.mxu0 %v4036
        %4808 = vmatpush1.bf16.msra.mxu0 %v4035
        %4809 = vmatprep.subr.bf16.mxu0 0
        %4810 = vmatpush1.bf16.msra.mxu0 0
        %4811 = vmatprep.subr.bf16.mxu0 0
        %4812 = vmatpush1.bf16.msra.mxu0 0
        %4813 = vmatprep.subr.bf16.mxu0 0
        %4814 = vmatpush1.bf16.msra.mxu0 0
        %4815 = vmatprep.subr.bf16.mxu0 0
        %4816 = vmatpush1.bf16.msra.mxu0 0
        %4817 = vmatprep.subr.bf16.mxu0 0
        %4818 = vmatpush1.bf16.msra.mxu0 0
        %4819 = vmatprep.subr.bf16.mxu0 0
        %4820 = vmatpush1.bf16.msra.mxu0 0
        %4821 = vmatprep.subr.bf16.mxu0 0
        %4822 = vmatpush1.bf16.msra.mxu0 0
        %4823 = vmatprep.subr.bf16.mxu0 0
        %4824 = vmatpush1.bf16.msra.mxu0 0
        %4825 = vmatprep.subr.bf16.mxu0 0
        %4826 = vmatpush1.bf16.msra.mxu0 0
        %4827 = vmatprep.subr.bf16.mxu0 0
        %4828 = vmatpush1.bf16.msra.mxu0 0
        %4829 = vmatprep.subr.bf16.mxu0 0
        %4830 = vmatpush1.bf16.msra.mxu0 0
        %4831 = vmatprep.subr.bf16.mxu0 0
        %4832 = vmatpush1.bf16.msra.mxu0 0
        %4833 = vmatprep.mubr.bf16.mxu0 0
        %4834 = vmatmul.mubr.bf16.gmra.mrb[0].mxu0 %v4326
        %v4835 = vpop.f32.mrb[0].mxu0
        %v4836 = vadd.f32 %v4793, %v4835
        %v4837 = vpop.f32.mrb[0].mxu0
        %v4838 = vadd.f32 %v4795, %v4837
        %v4839 = vpop.f32.mrb[0].mxu0
        %v4840 = vadd.f32 %v4797, %v4839
        %v4841 = vpop.f32.mrb[0].mxu0
        %v4842 = vadd.f32 %v4799, %v4841
        %4843 = vdwg.mxu0
        %v5132 = vunpack.c.l.b16 %v2223
        %v5133 = vunpack.c.h.b16 %v2223
        %v5134 = vunpack.c.l.b16 %v2224
        %v5135 = vunpack.c.h.b16 %v2224
        %v5136 = vunpack.c.l.b16 %v2225
        %v5137 = vunpack.c.h.b16 %v2225
        %v5138 = vunpack.c.l.b16 %v2226
        %v5139 = vunpack.c.h.b16 %v2226
        %v5140 = vunpack.c.l.b16 %v2227
        %v5141 = vunpack.c.h.b16 %v2227
        %v5142 = vunpack.c.l.b16 %v2228
        %v5143 = vunpack.c.h.b16 %v2228
        %v5144 = vunpack.c.l.b16 %v2229
        %v5145 = vunpack.c.h.b16 %v2229
        %v5146 = vunpack.c.l.b16 %v2230
        %v5147 = vunpack.c.h.b16 %v2230
        %v5148 = vunpack.c.l.b16 %v2231
        %v5149 = vunpack.c.h.b16 %v2231
        %v5150 = vunpack.c.l.b16 %v2232
        %v5151 = vunpack.c.h.b16 %v2232
        %v5152 = vunpack.c.l.b16 %v2233
        %v5153 = vunpack.c.h.b16 %v2233
        %v5154 = vunpack.c.l.b16 %v2234
        %v5155 = vunpack.c.h.b16 %v2234
        %v5156 = vunpack.c.l.b16 %v2235
        %v5157 = vunpack.c.h.b16 %v2235
        %v5158 = vunpack.c.l.b16 %v2236
        %v5159 = vunpack.c.h.b16 %v2236
        %v5160 = vunpack.c.l.b16 %v2237
        %v5161 = vunpack.c.h.b16 %v2237
        %v5162 = vunpack.c.l.b16 %v2238
        %v5163 = vunpack.c.h.b16 %v2238
        %v5164 = vunpack.c.l.b16 %v2239
        %v5165 = vunpack.c.h.b16 %v2239
        %v5166 = vunpack.c.l.b16 %v2240
        %v5167 = vunpack.c.h.b16 %v2240
        %v5168 = vunpack.c.l.b16 %v2241
        %v5169 = vunpack.c.h.b16 %v2241
        %v5170 = vunpack.c.l.b16 %v2242
        %v5171 = vunpack.c.h.b16 %v2242
        %v5172 = vunpack.c.l.b16 %v2243
        %v5173 = vunpack.c.h.b16 %v2243
        %v5174 = vunpack.c.l.b16 %v2244
        %v5175 = vunpack.c.h.b16 %v2244
        %v5176 = vunpack.c.l.b16 %v2245
        %v5177 = vunpack.c.h.b16 %v2245
        %v5178 = vunpack.c.l.b16 %v2246
        %v5179 = vunpack.c.h.b16 %v2246
        %v5180 = vunpack.c.l.b16 %v2247
        %v5181 = vunpack.c.h.b16 %v2247
        %v5182 = vunpack.c.l.b16 %v2248
        %v5183 = vunpack.c.h.b16 %v2248
        %v5184 = vunpack.c.l.b16 %v2249
        %v5185 = vunpack.c.h.b16 %v2249
        %v5186 = vunpack.c.l.b16 %v2250
        %v5187 = vunpack.c.h.b16 %v2250
        %v5188 = vunpack.c.l.b16 %v2251
        %v5189 = vunpack.c.h.b16 %v2251
        %v5190 = vunpack.c.l.b16 %v2252
        %v5191 = vunpack.c.h.b16 %v2252
        %v5192 = vunpack.c.l.b16 %v2253
        %v5193 = vunpack.c.h.b16 %v2253
        %v5194 = vunpack.c.l.b16 %v2254
        %v5195 = vunpack.c.h.b16 %v2254
        %v5196 = vunpack.c.l.b16 %v2255
        %v5197 = vunpack.c.h.b16 %v2255
        %v5198 = vunpack.c.l.b16 %v2256
        %v5199 = vunpack.c.h.b16 %v2256
        %v5200 = vunpack.c.l.b16 %v2257
        %v5201 = vunpack.c.h.b16 %v2257
        %v5202 = vunpack.c.l.b16 %v2258
        %v5203 = vunpack.c.h.b16 %v2258
        %v5204 = vunpack.c.l.b16 %v2259
        %v5205 = vunpack.c.h.b16 %v2259
        %v5206 = vunpack.c.l.b16 %v2260
        %v5207 = vunpack.c.h.b16 %v2260
        %v5208 = vunpack.c.l.b16 %v2261
        %v5209 = vunpack.c.h.b16 %v2261
        %v5210 = vunpack.c.l.b16 %v2262
        %v5211 = vunpack.c.h.b16 %v2262
        %v5212 = vunpack.c.l.b16 %v2263
        %v5213 = vunpack.c.h.b16 %v2263
        %v5214 = vunpack.c.l.b16 %v2264
        %v5215 = vunpack.c.h.b16 %v2264
        %v5216 = vunpack.c.l.b16 %v2265
        %v5217 = vunpack.c.h.b16 %v2265
        %v5218 = vunpack.c.l.b16 %v2266
        %v5219 = vunpack.c.h.b16 %v2266
        %v5220 = vunpack.c.l.b16 %v2267
        %v5221 = vunpack.c.h.b16 %v2267
        %v5222 = vunpack.c.l.b16 %v2268
        %v5223 = vunpack.c.h.b16 %v2268
        %v5224 = vunpack.c.l.b16 %v2269
        %v5225 = vunpack.c.h.b16 %v2269
        %v5226 = vunpack.c.l.b16 %v2270
        %v5227 = vunpack.c.h.b16 %v2270
        %v5228 = vunpack.c.l.b16 %v2271
        %v5229 = vunpack.c.h.b16 %v2271
        %v5230 = vunpack.c.l.b16 %v2272
        %v5231 = vunpack.c.h.b16 %v2272
        %v5232 = vunpack.c.l.b16 %v2273
        %v5233 = vunpack.c.h.b16 %v2273
        %v5234 = vunpack.c.l.b16 %v2274
        %v5235 = vunpack.c.h.b16 %v2274
        %v5236 = vunpack.c.l.b16 %v2275
        %v5237 = vunpack.c.h.b16 %v2275
        %v5238 = vunpack.c.l.b16 %v2276
        %v5239 = vunpack.c.h.b16 %v2276
        %v5240 = vunpack.c.l.b16 %v2277
        %v5241 = vunpack.c.h.b16 %v2277
        %v5242 = vunpack.c.l.b16 %v2278
        %v5243 = vunpack.c.h.b16 %v2278
        %v5244 = vunpack.c.l.b16 %v2279
        %v5245 = vunpack.c.h.b16 %v2279
        %v5246 = vunpack.c.l.b16 %v2280
        %v5247 = vunpack.c.h.b16 %v2280
        %v5248 = vunpack.c.l.b16 %v2281
        %v5249 = vunpack.c.h.b16 %v2281
        %v5250 = vunpack.c.l.b16 %v2282
        %v5251 = vunpack.c.h.b16 %v2282
        %v5252 = vunpack.c.l.b16 %v2283
        %v5253 = vunpack.c.h.b16 %v2283
        %v5254 = vunpack.c.l.b16 %v2284
        %v5255 = vunpack.c.h.b16 %v2284
        %v5256 = vunpack.c.l.b16 %v2285
        %v5257 = vunpack.c.h.b16 %v2285
        %v5258 = vunpack.c.l.b16 %v2286
        %v5259 = vunpack.c.h.b16 %v2286
        %v5260 = vunpack.c.l.b16 %v2287
        %v5261 = vunpack.c.h.b16 %v2287
        %v5262 = vunpack.c.l.b16 %v2288
        %v5263 = vunpack.c.h.b16 %v2288
        %v5264 = vunpack.c.l.b16 %v2289
        %v5265 = vunpack.c.h.b16 %v2289
        %v5266 = vunpack.c.l.b16 %v2290
        %v5267 = vunpack.c.h.b16 %v2290
        %v5268 = vunpack.c.l.b16 %v2291
        %v5269 = vunpack.c.h.b16 %v2291
        %v5270 = vunpack.c.l.b16 %v2292
        %v5271 = vunpack.c.h.b16 %v2292
        %v5272 = vunpack.c.l.b16 %v2293
        %v5273 = vunpack.c.h.b16 %v2293
        %v5274 = vunpack.c.l.b16 %v2294
        %v5275 = vunpack.c.h.b16 %v2294
        %v5276 = vunpack.c.l.b16 %v2295
        %v5277 = vunpack.c.h.b16 %v2295
        %v5278 = vunpack.c.l.b16 %v2296
        %v5279 = vunpack.c.h.b16 %v2296
        %v5280 = vunpack.c.l.b16 %v2297
        %v5281 = vunpack.c.h.b16 %v2297
        %v5282 = vunpack.c.l.b16 %v2298
        %v5283 = vunpack.c.h.b16 %v2298
        %v5284 = vunpack.c.l.b16 %v2299
        %v5285 = vunpack.c.h.b16 %v2299
        %v5286 = vunpack.c.l.b16 %v2300
        %v5287 = vunpack.c.h.b16 %v2300
        %v5288 = vunpack.c.l.b16 %v2301
        %v5289 = vunpack.c.h.b16 %v2301
        %v5290 = vunpack.c.l.b16 %v2302
        %v5291 = vunpack.c.h.b16 %v2302
        %v5292 = vunpack.c.l.b16 %v2303
        %v5293 = vunpack.c.h.b16 %v2303
        %v5294 = vunpack.c.l.b16 %v2304
        %v5295 = vunpack.c.h.b16 %v2304
        %v5296 = vunpack.c.l.b16 %v2305
        %v5297 = vunpack.c.h.b16 %v2305
        %v5298 = vunpack.c.l.b16 %v2306
        %v5299 = vunpack.c.h.b16 %v2306
        %v5300 = vunpack.c.l.b16 %v2307
        %v5301 = vunpack.c.h.b16 %v2307
        %v5302 = vunpack.c.l.b16 %v2308
        %v5303 = vunpack.c.h.b16 %v2308
        %v5304 = vunpack.c.l.b16 %v2309
        %v5305 = vunpack.c.h.b16 %v2309
        %v5306 = vunpack.c.l.b16 %v2310
        %v5307 = vunpack.c.h.b16 %v2310
        %v5308 = vunpack.c.l.b16 %v2311
        %v5309 = vunpack.c.h.b16 %v2311
        %v5310 = vunpack.c.l.b16 %v2312
        %v5311 = vunpack.c.h.b16 %v2312
        %v5312 = vunpack.c.l.b16 %v2313
        %v5313 = vunpack.c.h.b16 %v2313
        %v5314 = vunpack.c.l.b16 %v2314
        %v5315 = vunpack.c.h.b16 %v2314
        %v5316 = vunpack.c.l.b16 %v2315
        %v5317 = vunpack.c.h.b16 %v2315
        %v5318 = vunpack.c.l.b16 %v2316
        %v5319 = vunpack.c.h.b16 %v2316
        %v5320 = vunpack.c.l.b16 %v2317
        %v5321 = vunpack.c.h.b16 %v2317
        %v5322 = vunpack.c.l.b16 %v2318
        %v5323 = vunpack.c.h.b16 %v2318
        %v5324 = vunpack.c.l.b16 %v2319
        %v5325 = vunpack.c.h.b16 %v2319
        %v5326 = vunpack.c.l.b16 %v2320
        %v5327 = vunpack.c.h.b16 %v2320
        %v5328 = vunpack.c.l.b16 %v2321
        %v5329 = vunpack.c.h.b16 %v2321
        %v5330 = vunpack.c.l.b16 %v2322
        %v5331 = vunpack.c.h.b16 %v2322
        %v5332 = vunpack.c.l.b16 %v2323
        %v5333 = vunpack.c.h.b16 %v2323
        %v5334 = vunpack.c.l.b16 %v2324
        %v5335 = vunpack.c.h.b16 %v2324
        %v5336 = vunpack.c.l.b16 %v2325
        %v5337 = vunpack.c.h.b16 %v2325
        %v5338 = vunpack.c.l.b16 %v2326
        %v5339 = vunpack.c.h.b16 %v2326
        %v5340 = vunpack.c.l.b16 %v2327
        %v5341 = vunpack.c.h.b16 %v2327
        %v5342 = vunpack.c.l.b16 %v2328
        %v5343 = vunpack.c.h.b16 %v2328
        %v5344 = vunpack.c.l.b16 %v2329
        %v5345 = vunpack.c.h.b16 %v2329
        %v5346 = vunpack.c.l.b16 %v2330
        %v5347 = vunpack.c.h.b16 %v2330
        %v5348 = vunpack.c.l.b16 %v2331
        %v5349 = vunpack.c.h.b16 %v2331
        %v5350 = vunpack.c.l.b16 %v2332
        %v5351 = vunpack.c.h.b16 %v2332
        %v5352 = vunpack.c.l.b16 %v2333
        %v5353 = vunpack.c.h.b16 %v2333
        %v5354 = vunpack.c.l.b16 %v2334
        %v5355 = vunpack.c.h.b16 %v2334
        %v5356 = vunpack.c.l.b16 %v2335
        %v5357 = vunpack.c.h.b16 %v2335
        %v5358 = vunpack.c.l.b16 %v2336
        %v5359 = vunpack.c.h.b16 %v2336
        %v5360 = vunpack.c.l.b16 %v2337
        %v5361 = vunpack.c.h.b16 %v2337
        %v5362 = vunpack.c.l.b16 %v2338
        %v5363 = vunpack.c.h.b16 %v2338
        %v5364 = vunpack.c.l.b16 %v2339
        %v5365 = vunpack.c.h.b16 %v2339
        %v5366 = vunpack.c.l.b16 %v2340
        %v5367 = vunpack.c.h.b16 %v2340
        %v5368 = vunpack.c.l.b16 %v2341
        %v5369 = vunpack.c.h.b16 %v2341
        %v5370 = vunpack.c.l.b16 %v2342
        %v5371 = vunpack.c.h.b16 %v2342
        %v5372 = vunpack.c.l.b16 %v2343
        %v5373 = vunpack.c.h.b16 %v2343
        %v5374 = vunpack.c.l.b16 %v2344
        %v5375 = vunpack.c.h.b16 %v2344
        %v5376 = vunpack.c.l.b16 %v2345
        %v5377 = vunpack.c.h.b16 %v2345
        %v5378 = vunpack.c.l.b16 %v2346
        %v5379 = vunpack.c.h.b16 %v2346
        %v5380 = vunpack.c.l.b16 %v2347
        %v5381 = vunpack.c.h.b16 %v2347
        %v5382 = vunpack.c.l.b16 %v2348
        %v5383 = vunpack.c.h.b16 %v2348
        %v5384 = vunpack.c.l.b16 %v2349
        %v5385 = vunpack.c.h.b16 %v2349
        %v5386 = vunpack.c.l.b16 %v2350
        %v5387 = vunpack.c.h.b16 %v2350
        %v5388 = vunpack.c.l.b16 %v2351
        %v5389 = vunpack.c.h.b16 %v2351
        %v5390 = vunpack.c.l.b16 %v2352
        %v5391 = vunpack.c.h.b16 %v2352
        %v5392 = vunpack.c.l.b16 %v2353
        %v5393 = vunpack.c.h.b16 %v2353
        %v5394 = vunpack.c.l.b16 %v2354
        %v5395 = vunpack.c.h.b16 %v2354
        %v5396 = vunpack.c.l.b16 %v2355
        %v5397 = vunpack.c.h.b16 %v2355
        %v5398 = vunpack.c.l.b16 %v2356
        %v5399 = vunpack.c.h.b16 %v2356
        %v5400 = vunpack.c.l.b16 %v2357
        %v5401 = vunpack.c.h.b16 %v2357
        %v5402 = vunpack.c.l.b16 %v2358
        %v5403 = vunpack.c.h.b16 %v2358
        %v5404 = vunpack.c.l.b16 %v2359
        %v5405 = vunpack.c.h.b16 %v2359
        %v5406 = vunpack.c.l.b16 %v2360
        %v5407 = vunpack.c.h.b16 %v2360
        %v5408 = vunpack.c.l.b16 %v2361
        %v5409 = vunpack.c.h.b16 %v2361
        %v5410 = vunpack.c.l.b16 %v2362
        %v5411 = vunpack.c.h.b16 %v2362
        %v5412 = vunpack.c.l.b16 %v2363
        %v5413 = vunpack.c.h.b16 %v2363
        %v5414 = vunpack.c.l.b16 %v2364
        %v5415 = vunpack.c.h.b16 %v2364
        %v5416 = vunpack.c.l.b16 %v2365
        %v5417 = vunpack.c.h.b16 %v2365
        %v5418 = vunpack.c.l.b16 %v2366
        %v5419 = vunpack.c.h.b16 %v2366
        %v5420 = vunpack.c.l.b16 %v2367
        %v5421 = vunpack.c.h.b16 %v2367
        %v5422 = vunpack.c.l.b16 %v2368
        %v5423 = vunpack.c.h.b16 %v2368
        %v5424 = vunpack.c.l.b16 %v2369
        %v5425 = vunpack.c.h.b16 %v2369
        %v5426 = vunpack.c.l.b16 %v2370
        %v5427 = vunpack.c.h.b16 %v2370
        %v5428 = vunpack.c.l.b16 %v2371
        %v5429 = vunpack.c.h.b16 %v2371
        %v5430 = vunpack.c.l.b16 %v2372
        %v5431 = vunpack.c.h.b16 %v2372
        %v5432 = vunpack.c.l.b16 %v2373
        %v5433 = vunpack.c.h.b16 %v2373
        %v5434 = vunpack.c.l.b16 %v2374
        %v5435 = vunpack.c.h.b16 %v2374
        %v5436 = vunpack.c.l.b16 %v2375
        %v5437 = vunpack.c.h.b16 %v2375
        %v5438 = vunpack.c.l.b16 %v2376
        %v5439 = vunpack.c.h.b16 %v2376
        %v5440 = vunpack.c.l.b16 %v2377
        %v5441 = vunpack.c.h.b16 %v2377
        %v5442 = vunpack.c.l.b16 %v2378
        %v5443 = vunpack.c.h.b16 %v2378
        %v5444 = vunpack.c.l.b16 %v2379
        %v5445 = vunpack.c.h.b16 %v2379
        %v5446 = vunpack.c.l.b16 %v2380
        %v5447 = vunpack.c.h.b16 %v2380
        %v5448 = vunpack.c.l.b16 %v2381
        %v5449 = vunpack.c.h.b16 %v2381
        %v5450 = vunpack.c.l.b16 %v2382
        %v5451 = vunpack.c.h.b16 %v2382
        %v5452 = vunpack.c.l.b16 %v2383
        %v5453 = vunpack.c.h.b16 %v2383
        %v5454 = vunpack.c.l.b16 %v2384
        %v5455 = vunpack.c.h.b16 %v2384
        %v5456 = vunpack.c.l.b16 %v2385
        %v5457 = vunpack.c.h.b16 %v2385
        %v5458 = vunpack.c.l.b16 %v2386
        %v5459 = vunpack.c.h.b16 %v2386
        %v5460 = vunpack.c.l.b16 %v2387
        %v5461 = vunpack.c.h.b16 %v2387
        %v5462 = vunpack.c.l.b16 %v2388
        %v5463 = vunpack.c.h.b16 %v2388
        %v5464 = vunpack.c.l.b16 %v2389
        %v5465 = vunpack.c.h.b16 %v2389
        %v5466 = vunpack.c.l.b16 %v2390
        %v5467 = vunpack.c.h.b16 %v2390
        %v5468 = vunpack.c.l.b16 %v2391
        %v5469 = vunpack.c.h.b16 %v2391
        %v5470 = vunpack.c.l.b16 %v2392
        %v5471 = vunpack.c.h.b16 %v2392
        %v5472 = vunpack.c.l.b16 %v2393
        %v5473 = vunpack.c.h.b16 %v2393
        %v5474 = vunpack.c.l.b16 %v2394
        %v5475 = vunpack.c.h.b16 %v2394
        %v5476 = vunpack.c.l.b16 %v2395
        %v5477 = vunpack.c.h.b16 %v2395
        %v5478 = vunpack.c.l.b16 %v2396
        %v5479 = vunpack.c.h.b16 %v2396
        %v5480 = vunpack.c.l.b16 %v2397
        %v5481 = vunpack.c.h.b16 %v2397
        %v5482 = vunpack.c.l.b16 %v2398
        %v5483 = vunpack.c.h.b16 %v2398
        %v5484 = vunpack.c.l.b16 %v2399
        %v5485 = vunpack.c.h.b16 %v2399
        %v5486 = vunpack.c.l.b16 %v2400
        %v5487 = vunpack.c.h.b16 %v2400
        %v5488 = vunpack.c.l.b16 %v2401
        %v5489 = vunpack.c.h.b16 %v2401
        %v5490 = vunpack.c.l.b16 %v2402
        %v5491 = vunpack.c.h.b16 %v2402
        %v5492 = vunpack.c.l.b16 %v2403
        %v5493 = vunpack.c.h.b16 %v2403
        %v5494 = vunpack.c.l.b16 %v2404
        %v5495 = vunpack.c.h.b16 %v2404
        %v5496 = vunpack.c.l.b16 %v2405
        %v5497 = vunpack.c.h.b16 %v2405
        %v5498 = vunpack.c.l.b16 %v2406
        %v5499 = vunpack.c.h.b16 %v2406
        %v5500 = vunpack.c.l.b16 %v2407
        %v5501 = vunpack.c.h.b16 %v2407
        %v5502 = vunpack.c.l.b16 %v2408
        %v5503 = vunpack.c.h.b16 %v2408
        %v5504 = vunpack.c.l.b16 %v2409
        %v5505 = vunpack.c.h.b16 %v2409
        %v5506 = vunpack.c.l.b16 %v2410
        %v5507 = vunpack.c.h.b16 %v2410
        %v5508 = vunpack.c.l.b16 %v2411
        %v5509 = vunpack.c.h.b16 %v2411
        %v5510 = vunpack.c.l.b16 %v2412
        %v5511 = vunpack.c.h.b16 %v2412
        %v5512 = vunpack.c.l.b16 %v2413
        %v5513 = vunpack.c.h.b16 %v2413
        %v5514 = vunpack.c.l.b16 %v2414
        %v5515 = vunpack.c.h.b16 %v2414
        %v5516 = vunpack.c.l.b16 %v2415
        %v5517 = vunpack.c.h.b16 %v2415
        %v5518 = vunpack.c.l.b16 %v2416
        %v5519 = vunpack.c.h.b16 %v2416
        %v5520 = vunpack.c.l.b16 %v2417
        %v5521 = vunpack.c.h.b16 %v2417
        %v5522 = vunpack.c.l.b16 %v2418
        %v5523 = vunpack.c.h.b16 %v2418
        %v5524 = vunpack.c.l.b16 %v2419
        %v5525 = vunpack.c.h.b16 %v2419
        %v5526 = vunpack.c.l.b16 %v2420
        %v5527 = vunpack.c.h.b16 %v2420
        %v5528 = vunpack.c.l.b16 %v2421
        %v5529 = vunpack.c.h.b16 %v2421
        %v5530 = vunpack.c.l.b16 %v2422
        %v5531 = vunpack.c.h.b16 %v2422
        %v5532 = vunpack.c.l.b16 %v2423
        %v5533 = vunpack.c.h.b16 %v2423
        %v5534 = vunpack.c.l.b16 %v2424
        %v5535 = vunpack.c.h.b16 %v2424
        %v5536 = vunpack.c.l.b16 %v2425
        %v5537 = vunpack.c.h.b16 %v2425
        %v5538 = vunpack.c.l.b16 %v2426
        %v5539 = vunpack.c.h.b16 %v2426
        %v5540 = vunpack.c.l.b16 %v2427
        %v5541 = vunpack.c.h.b16 %v2427
        %v5542 = vunpack.c.l.b16 %v2428
        %v5543 = vunpack.c.h.b16 %v2428
        %v5544 = vunpack.c.l.b16 %v2429
        %v5545 = vunpack.c.h.b16 %v2429
        %v5546 = vunpack.c.l.b16 %v2430
        %v5547 = vunpack.c.h.b16 %v2430
        %v5548 = vunpack.c.l.b16 %v2431
        %v5549 = vunpack.c.h.b16 %v2431
        %v5550 = vunpack.c.l.b16 %v2432
        %v5551 = vunpack.c.h.b16 %v2432
        %v5552 = vunpack.c.l.b16 %v2433
        %v5553 = vunpack.c.h.b16 %v2433
        %v5554 = vunpack.c.l.b16 %v2434
        %v5555 = vunpack.c.h.b16 %v2434
        %v5556 = vunpack.c.l.b16 %v2435
        %v5557 = vunpack.c.h.b16 %v2435
        %v5558 = vunpack.c.l.b16 %v2436
        %v5559 = vunpack.c.h.b16 %v2436
        %v5560 = vunpack.c.l.b16 %v2437
        %v5561 = vunpack.c.h.b16 %v2437
        %v5562 = vunpack.c.l.b16 %v2438
        %v5563 = vunpack.c.h.b16 %v2438
        %v5564 = vunpack.c.l.b16 %v2439
        %v5565 = vunpack.c.h.b16 %v2439
        %v5566 = vunpack.c.l.b16 %v2440
        %v5567 = vunpack.c.h.b16 %v2440
        %v5568 = vunpack.c.l.b16 %v2441
        %v5569 = vunpack.c.h.b16 %v2441
        %v5570 = vunpack.c.l.b16 %v2442
        %v5571 = vunpack.c.h.b16 %v2442
        %v5572 = vunpack.c.l.b16 %v2443
        %v5573 = vunpack.c.h.b16 %v2443
        %v5574 = vunpack.c.l.b16 %v2444
        %v5575 = vunpack.c.h.b16 %v2444
        %v5576 = vunpack.c.l.b16 %v2445
        %v5577 = vunpack.c.h.b16 %v2445
        %v5578 = vunpack.c.l.b16 %v2446
        %v5579 = vunpack.c.h.b16 %v2446
        %v5580 = vunpack.c.l.b16 %v2447
        %v5581 = vunpack.c.h.b16 %v2447
        %v5582 = vunpack.c.l.b16 %v2448
        %v5583 = vunpack.c.h.b16 %v2448
        %v5584 = vunpack.c.l.b16 %v2449
        %v5585 = vunpack.c.h.b16 %v2449
        %v5586 = vunpack.c.l.b16 %v2450
        %v5587 = vunpack.c.h.b16 %v2450
        %v5588 = vunpack.c.l.b16 %v2451
        %v5589 = vunpack.c.h.b16 %v2451
        %v5590 = vunpack.c.l.b16 %v2452
        %v5591 = vunpack.c.h.b16 %v2452
        %v5592 = vunpack.c.l.b16 %v2453
        %v5593 = vunpack.c.h.b16 %v2453
        %v5594 = vunpack.c.l.b16 %v2454
        %v5595 = vunpack.c.h.b16 %v2454
        %v5596 = vunpack.c.l.b16 %v2455
        %v5597 = vunpack.c.h.b16 %v2455
        %v5598 = vunpack.c.l.b16 %v2456
        %v5599 = vunpack.c.h.b16 %v2456
        %v5600 = vunpack.c.l.b16 %v2457
        %v5601 = vunpack.c.h.b16 %v2457
        %v5602 = vunpack.c.l.b16 %v2458
        %v5603 = vunpack.c.h.b16 %v2458
        %v5604 = vunpack.c.l.b16 %v2459
        %v5605 = vunpack.c.h.b16 %v2459
        %v5606 = vunpack.c.l.b16 %v2460
        %v5607 = vunpack.c.h.b16 %v2460
        %v5608 = vunpack.c.l.b16 %v2461
        %v5609 = vunpack.c.h.b16 %v2461
        %v5610 = vunpack.c.l.b16 %v2462
        %v5611 = vunpack.c.h.b16 %v2462
        %v5612 = vunpack.c.l.b16 %v2463
        %v5613 = vunpack.c.h.b16 %v2463
        %v5614 = vunpack.c.l.b16 %v2464
        %v5615 = vunpack.c.h.b16 %v2464
        %v5616 = vunpack.c.l.b16 %v2465
        %v5617 = vunpack.c.h.b16 %v2465
        %v5618 = vunpack.c.l.b16 %v2466
        %v5619 = vunpack.c.h.b16 %v2466
        %v5620 = vunpack.c.l.b16 %v2467
        %v5621 = vunpack.c.h.b16 %v2467
        %v5622 = vunpack.c.l.b16 %v2468
        %v5623 = vunpack.c.h.b16 %v2468
        %v5624 = vunpack.c.l.b16 %v2469
        %v5625 = vunpack.c.h.b16 %v2469
        %v5626 = vunpack.c.l.b16 %v2470
        %v5627 = vunpack.c.h.b16 %v2470
        %v5628 = vunpack.c.l.b16 %v2471
        %v5629 = vunpack.c.h.b16 %v2471
        %v5630 = vunpack.c.l.b16 %v2472
        %v5631 = vunpack.c.h.b16 %v2472
        %v5632 = vunpack.c.l.b16 %v2473
        %v5633 = vunpack.c.h.b16 %v2473
        %v5634 = vunpack.c.l.b16 %v2474
        %v5635 = vunpack.c.h.b16 %v2474
        %v5636 = vunpack.c.l.b16 %v2475
        %v5637 = vunpack.c.h.b16 %v2475
        %v5638 = vunpack.c.l.b16 %v2476
        %v5639 = vunpack.c.h.b16 %v2476
        %v5640 = vunpack.c.l.b16 %v2477
        %v5641 = vunpack.c.h.b16 %v2477
        %v5642 = vunpack.c.l.b16 %v2478
        %v5643 = vunpack.c.h.b16 %v2478
        %v5644 = vunpack.c.l.b16 %v2479
        %v5645 = vunpack.c.h.b16 %v2479
        %v5646 = vunpack.c.l.b16 %v2480
        %v5647 = vunpack.c.h.b16 %v2480
        %v5648 = vunpack.c.l.b16 %v2481
        %v5649 = vunpack.c.h.b16 %v2481
        %v5650 = vunpack.c.l.b16 %v2482
        %v5651 = vunpack.c.h.b16 %v2482
        %v5652 = vunpack.c.l.b16 %v2483
        %v5653 = vunpack.c.h.b16 %v2483
        %v5654 = vunpack.c.l.b16 %v2484
        %v5655 = vunpack.c.h.b16 %v2484
        %v5656 = vunpack.c.l.b16 %v2485
        %v5657 = vunpack.c.h.b16 %v2485
        %v5658 = vunpack.c.l.b16 %v2486
        %v5659 = vunpack.c.h.b16 %v2486
        %v5660 = vunpack.c.l.b16 %v2487
        %v5661 = vunpack.c.h.b16 %v2487
        %v5662 = vunpack.c.l.b16 %v2488
        %v5663 = vunpack.c.h.b16 %v2488
        %v5664 = vunpack.c.l.b16 %v2489
        %v5665 = vunpack.c.h.b16 %v2489
        %v5666 = vunpack.c.l.b16 %v2490
        %v5667 = vunpack.c.h.b16 %v2490
        %v5668 = vunpack.c.l.b16 %v2491
        %v5669 = vunpack.c.h.b16 %v2491
        %v5670 = vunpack.c.l.b16 %v2492
        %v5671 = vunpack.c.h.b16 %v2492
        %v5672 = vunpack.c.l.b16 %v2493
        %v5673 = vunpack.c.h.b16 %v2493
        %v5674 = vunpack.c.l.b16 %v2494
        %v5675 = vunpack.c.h.b16 %v2494
        %v5676 = vunpack.c.l.b16 %v2495
        %v5677 = vunpack.c.h.b16 %v2495
        %v5678 = vunpack.c.l.b16 %v2496
        %v5679 = vunpack.c.h.b16 %v2496
        %v5680 = vunpack.c.l.b16 %v2497
        %v5681 = vunpack.c.h.b16 %v2497
        %v5682 = vunpack.c.l.b16 %v2498
        %v5683 = vunpack.c.h.b16 %v2498
        %v5684 = vunpack.c.l.b16 %v2499
        %v5685 = vunpack.c.h.b16 %v2499
        %v5686 = vunpack.c.l.b16 %v2500
        %v5687 = vunpack.c.h.b16 %v2500
        %v5688 = vunpack.c.l.b16 %v2501
        %v5689 = vunpack.c.h.b16 %v2501
        %v5690 = vunpack.c.l.b16 %v2502
        %v5691 = vunpack.c.h.b16 %v2502
        %v5692 = vunpack.c.l.b16 %v2503
        %v5693 = vunpack.c.h.b16 %v2503
        %v5694 = vunpack.c.l.b16 %v2504
        %v5695 = vunpack.c.h.b16 %v2504
        %v5696 = vunpack.c.l.b16 %v2505
        %v5697 = vunpack.c.h.b16 %v2505
        %v5698 = vunpack.c.l.b16 %v2506
        %v5699 = vunpack.c.h.b16 %v2506
        %v5700 = vunpack.c.l.b16 %v2507
        %v5701 = vunpack.c.h.b16 %v2507
        %v5702 = vunpack.c.l.b16 %v2508
        %v5703 = vunpack.c.h.b16 %v2508
        %v5704 = vunpack.c.l.b16 %v2509
        %v5705 = vunpack.c.h.b16 %v2509
        %v5706 = vunpack.c.l.b16 %v2510
        %v5707 = vunpack.c.h.b16 %v2510
        %v5708 = vpack.c.b16 %v5140, %v5132
        %v5709 = vpack.c.b16 %v5141, %v5133
        %v5710 = vpack.c.b16 %v5142, %v5134
        %v5711 = vpack.c.b16 %v5143, %v5135
        %v5712 = vpack.c.b16 %v5144, %v5136
        %v5713 = vpack.c.b16 %v5145, %v5137
        %v5714 = vpack.c.b16 %v5146, %v5138
        %v5715 = vpack.c.b16 %v5147, %v5139
        %v5716 = vpack.c.b16 %v5156, %v5148
        %v5717 = vpack.c.b16 %v5157, %v5149
        %v5718 = vpack.c.b16 %v5158, %v5150
        %v5719 = vpack.c.b16 %v5159, %v5151
        %v5720 = vpack.c.b16 %v5160, %v5152
        %v5721 = vpack.c.b16 %v5161, %v5153
        %v5722 = vpack.c.b16 %v5162, %v5154
        %v5723 = vpack.c.b16 %v5163, %v5155
        %v5724 = vpack.c.b16 %v5172, %v5164
        %v5725 = vpack.c.b16 %v5173, %v5165
        %v5726 = vpack.c.b16 %v5174, %v5166
        %v5727 = vpack.c.b16 %v5175, %v5167
        %v5728 = vpack.c.b16 %v5176, %v5168
        %v5729 = vpack.c.b16 %v5177, %v5169
        %v5730 = vpack.c.b16 %v5178, %v5170
        %v5731 = vpack.c.b16 %v5179, %v5171
        %v5732 = vpack.c.b16 %v5188, %v5180
        %v5733 = vpack.c.b16 %v5189, %v5181
        %v5734 = vpack.c.b16 %v5190, %v5182
        %v5735 = vpack.c.b16 %v5191, %v5183
        %v5736 = vpack.c.b16 %v5192, %v5184
        %v5737 = vpack.c.b16 %v5193, %v5185
        %v5738 = vpack.c.b16 %v5194, %v5186
        %v5739 = vpack.c.b16 %v5195, %v5187
        %v5740 = vpack.c.b16 %v5204, %v5196
        %v5741 = vpack.c.b16 %v5205, %v5197
        %v5742 = vpack.c.b16 %v5206, %v5198
        %v5743 = vpack.c.b16 %v5207, %v5199
        %v5744 = vpack.c.b16 %v5208, %v5200
        %v5745 = vpack.c.b16 %v5209, %v5201
        %v5746 = vpack.c.b16 %v5210, %v5202
        %v5747 = vpack.c.b16 %v5211, %v5203
        %v5748 = vpack.c.b16 %v5220, %v5212
        %v5749 = vpack.c.b16 %v5221, %v5213
        %v5750 = vpack.c.b16 %v5222, %v5214
        %v5751 = vpack.c.b16 %v5223, %v5215
        %v5752 = vpack.c.b16 %v5224, %v5216
        %v5753 = vpack.c.b16 %v5225, %v5217
        %v5754 = vpack.c.b16 %v5226, %v5218
        %v5755 = vpack.c.b16 %v5227, %v5219
        %v5756 = vpack.c.b16 %v5236, %v5228
        %v5757 = vpack.c.b16 %v5237, %v5229
        %v5758 = vpack.c.b16 %v5238, %v5230
        %v5759 = vpack.c.b16 %v5239, %v5231
        %v5760 = vpack.c.b16 %v5240, %v5232
        %v5761 = vpack.c.b16 %v5241, %v5233
        %v5762 = vpack.c.b16 %v5242, %v5234
        %v5763 = vpack.c.b16 %v5243, %v5235
        %v5764 = vpack.c.b16 %v5252, %v5244
        %v5765 = vpack.c.b16 %v5253, %v5245
        %v5766 = vpack.c.b16 %v5254, %v5246
        %v5767 = vpack.c.b16 %v5255, %v5247
        %v5768 = vpack.c.b16 %v5256, %v5248
        %v5769 = vpack.c.b16 %v5257, %v5249
        %v5770 = vpack.c.b16 %v5258, %v5250
        %v5771 = vpack.c.b16 %v5259, %v5251
        %v5772 = vpack.c.b16 %v5268, %v5260
        %v5773 = vpack.c.b16 %v5269, %v5261
        %v5774 = vpack.c.b16 %v5270, %v5262
        %v5775 = vpack.c.b16 %v5271, %v5263
        %v5776 = vpack.c.b16 %v5272, %v5264
        %v5777 = vpack.c.b16 %v5273, %v5265
        %v5778 = vpack.c.b16 %v5274, %v5266
        %v5779 = vpack.c.b16 %v5275, %v5267
        %v5780 = vpack.c.b16 %v5284, %v5276
        %v5781 = vpack.c.b16 %v5285, %v5277
        %v5782 = vpack.c.b16 %v5286, %v5278
        %v5783 = vpack.c.b16 %v5287, %v5279
        %v5784 = vpack.c.b16 %v5288, %v5280
        %v5785 = vpack.c.b16 %v5289, %v5281
        %v5786 = vpack.c.b16 %v5290, %v5282
        %v5787 = vpack.c.b16 %v5291, %v5283
        %v5788 = vpack.c.b16 %v5300, %v5292
        %v5789 = vpack.c.b16 %v5301, %v5293
        %v5790 = vpack.c.b16 %v5302, %v5294
        %v5791 = vpack.c.b16 %v5303, %v5295
        %v5792 = vpack.c.b16 %v5304, %v5296
        %v5793 = vpack.c.b16 %v5305, %v5297
        %v5794 = vpack.c.b16 %v5306, %v5298
        %v5795 = vpack.c.b16 %v5307, %v5299
        %v5796 = vpack.c.b16 %v5316, %v5308
        %v5797 = vpack.c.b16 %v5317, %v5309
        %v5798 = vpack.c.b16 %v5318, %v5310
        %v5799 = vpack.c.b16 %v5319, %v5311
        %v5800 = vpack.c.b16 %v5320, %v5312
        %v5801 = vpack.c.b16 %v5321, %v5313
        %v5802 = vpack.c.b16 %v5322, %v5314
        %v5803 = vpack.c.b16 %v5323, %v5315
        %v5804 = vpack.c.b16 %v5332, %v5324
        %v5805 = vpack.c.b16 %v5333, %v5325
        %v5806 = vpack.c.b16 %v5334, %v5326
        %v5807 = vpack.c.b16 %v5335, %v5327
        %v5808 = vpack.c.b16 %v5336, %v5328
        %v5809 = vpack.c.b16 %v5337, %v5329
        %v5810 = vpack.c.b16 %v5338, %v5330
        %v5811 = vpack.c.b16 %v5339, %v5331
        %v5812 = vpack.c.b16 %v5348, %v5340
        %v5813 = vpack.c.b16 %v5349, %v5341
        %v5814 = vpack.c.b16 %v5350, %v5342
        %v5815 = vpack.c.b16 %v5351, %v5343
        %v5816 = vpack.c.b16 %v5352, %v5344
        %v5817 = vpack.c.b16 %v5353, %v5345
        %v5818 = vpack.c.b16 %v5354, %v5346
        %v5819 = vpack.c.b16 %v5355, %v5347
        %v5820 = vpack.c.b16 %v5364, %v5356
        %v5821 = vpack.c.b16 %v5365, %v5357
        %v5822 = vpack.c.b16 %v5366, %v5358
        %v5823 = vpack.c.b16 %v5367, %v5359
        %v5824 = vpack.c.b16 %v5368, %v5360
        %v5825 = vpack.c.b16 %v5369, %v5361
        %v5826 = vpack.c.b16 %v5370, %v5362
        %v5827 = vpack.c.b16 %v5371, %v5363
        %v5828 = vpack.c.b16 %v5380, %v5372
        %v5829 = vpack.c.b16 %v5381, %v5373
        %v5830 = vpack.c.b16 %v5382, %v5374
        %v5831 = vpack.c.b16 %v5383, %v5375
        %v5832 = vpack.c.b16 %v5384, %v5376
        %v5833 = vpack.c.b16 %v5385, %v5377
        %v5834 = vpack.c.b16 %v5386, %v5378
        %v5835 = vpack.c.b16 %v5387, %v5379
        %v5836 = vpack.c.b16 %v5396, %v5388
        %v5837 = vpack.c.b16 %v5397, %v5389
        %v5838 = vpack.c.b16 %v5398, %v5390
        %v5839 = vpack.c.b16 %v5399, %v5391
        %v5840 = vpack.c.b16 %v5400, %v5392
        %v5841 = vpack.c.b16 %v5401, %v5393
        %v5842 = vpack.c.b16 %v5402, %v5394
        %v5843 = vpack.c.b16 %v5403, %v5395
        %v5844 = vpack.c.b16 %v5412, %v5404
        %v5845 = vpack.c.b16 %v5413, %v5405
        %v5846 = vpack.c.b16 %v5414, %v5406
        %v5847 = vpack.c.b16 %v5415, %v5407
        %v5848 = vpack.c.b16 %v5416, %v5408
        %v5849 = vpack.c.b16 %v5417, %v5409
        %v5850 = vpack.c.b16 %v5418, %v5410
        %v5851 = vpack.c.b16 %v5419, %v5411
        %v5852 = vpack.c.b16 %v5428, %v5420
        %v5853 = vpack.c.b16 %v5429, %v5421
        %v5854 = vpack.c.b16 %v5430, %v5422
        %v5855 = vpack.c.b16 %v5431, %v5423
        %v5856 = vpack.c.b16 %v5432, %v5424
        %v5857 = vpack.c.b16 %v5433, %v5425
        %v5858 = vpack.c.b16 %v5434, %v5426
        %v5859 = vpack.c.b16 %v5435, %v5427
        %v5860 = vpack.c.b16 %v5444, %v5436
        %v5861 = vpack.c.b16 %v5445, %v5437
        %v5862 = vpack.c.b16 %v5446, %v5438
        %v5863 = vpack.c.b16 %v5447, %v5439
        %v5864 = vpack.c.b16 %v5448, %v5440
        %v5865 = vpack.c.b16 %v5449, %v5441
        %v5866 = vpack.c.b16 %v5450, %v5442
        %v5867 = vpack.c.b16 %v5451, %v5443
        %v5868 = vpack.c.b16 %v5460, %v5452
        %v5869 = vpack.c.b16 %v5461, %v5453
        %v5870 = vpack.c.b16 %v5462, %v5454
        %v5871 = vpack.c.b16 %v5463, %v5455
        %v5872 = vpack.c.b16 %v5464, %v5456
        %v5873 = vpack.c.b16 %v5465, %v5457
        %v5874 = vpack.c.b16 %v5466, %v5458
        %v5875 = vpack.c.b16 %v5467, %v5459
        %v5876 = vpack.c.b16 %v5476, %v5468
        %v5877 = vpack.c.b16 %v5477, %v5469
        %v5878 = vpack.c.b16 %v5478, %v5470
        %v5879 = vpack.c.b16 %v5479, %v5471
        %v5880 = vpack.c.b16 %v5480, %v5472
        %v5881 = vpack.c.b16 %v5481, %v5473
        %v5882 = vpack.c.b16 %v5482, %v5474
        %v5883 = vpack.c.b16 %v5483, %v5475
        %v5884 = vpack.c.b16 %v5492, %v5484
        %v5885 = vpack.c.b16 %v5493, %v5485
        %v5886 = vpack.c.b16 %v5494, %v5486
        %v5887 = vpack.c.b16 %v5495, %v5487
        %v5888 = vpack.c.b16 %v5496, %v5488
        %v5889 = vpack.c.b16 %v5497, %v5489
        %v5890 = vpack.c.b16 %v5498, %v5490
        %v5891 = vpack.c.b16 %v5499, %v5491
        %v5892 = vpack.c.b16 %v5508, %v5500
        %v5893 = vpack.c.b16 %v5509, %v5501
        %v5894 = vpack.c.b16 %v5510, %v5502
        %v5895 = vpack.c.b16 %v5511, %v5503
        %v5896 = vpack.c.b16 %v5512, %v5504
        %v5897 = vpack.c.b16 %v5513, %v5505
        %v5898 = vpack.c.b16 %v5514, %v5506
        %v5899 = vpack.c.b16 %v5515, %v5507
        %v5900 = vpack.c.b16 %v5524, %v5516
        %v5901 = vpack.c.b16 %v5525, %v5517
        %v5902 = vpack.c.b16 %v5526, %v5518
        %v5903 = vpack.c.b16 %v5527, %v5519
        %v5904 = vpack.c.b16 %v5528, %v5520
        %v5905 = vpack.c.b16 %v5529, %v5521
        %v5906 = vpack.c.b16 %v5530, %v5522
        %v5907 = vpack.c.b16 %v5531, %v5523
        %v5908 = vpack.c.b16 %v5540, %v5532
        %v5909 = vpack.c.b16 %v5541, %v5533
        %v5910 = vpack.c.b16 %v5542, %v5534
        %v5911 = vpack.c.b16 %v5543, %v5535
        %v5912 = vpack.c.b16 %v5544, %v5536
        %v5913 = vpack.c.b16 %v5545, %v5537
        %v5914 = vpack.c.b16 %v5546, %v5538
        %v5915 = vpack.c.b16 %v5547, %v5539
        %v5916 = vpack.c.b16 %v5556, %v5548
        %v5917 = vpack.c.b16 %v5557, %v5549
        %v5918 = vpack.c.b16 %v5558, %v5550
        %v5919 = vpack.c.b16 %v5559, %v5551
        %v5920 = vpack.c.b16 %v5560, %v5552
        %v5921 = vpack.c.b16 %v5561, %v5553
        %v5922 = vpack.c.b16 %v5562, %v5554
        %v5923 = vpack.c.b16 %v5563, %v5555
        %v5924 = vpack.c.b16 %v5572, %v5564
        %v5925 = vpack.c.b16 %v5573, %v5565
        %v5926 = vpack.c.b16 %v5574, %v5566
        %v5927 = vpack.c.b16 %v5575, %v5567
        %v5928 = vpack.c.b16 %v5576, %v5568
        %v5929 = vpack.c.b16 %v5577, %v5569
        %v5930 = vpack.c.b16 %v5578, %v5570
        %v5931 = vpack.c.b16 %v5579, %v5571
        %v5932 = vpack.c.b16 %v5588, %v5580
        %v5933 = vpack.c.b16 %v5589, %v5581
        %v5934 = vpack.c.b16 %v5590, %v5582
        %v5935 = vpack.c.b16 %v5591, %v5583
        %v5936 = vpack.c.b16 %v5592, %v5584
        %v5937 = vpack.c.b16 %v5593, %v5585
        %v5938 = vpack.c.b16 %v5594, %v5586
        %v5939 = vpack.c.b16 %v5595, %v5587
        %v5940 = vpack.c.b16 %v5604, %v5596
        %v5941 = vpack.c.b16 %v5605, %v5597
        %v5942 = vpack.c.b16 %v5606, %v5598
        %v5943 = vpack.c.b16 %v5607, %v5599
        %v5944 = vpack.c.b16 %v5608, %v5600
        %v5945 = vpack.c.b16 %v5609, %v5601
        %v5946 = vpack.c.b16 %v5610, %v5602
        %v5947 = vpack.c.b16 %v5611, %v5603
        %v5948 = vpack.c.b16 %v5620, %v5612
        %v5949 = vpack.c.b16 %v5621, %v5613
        %v5950 = vpack.c.b16 %v5622, %v5614
        %v5951 = vpack.c.b16 %v5623, %v5615
        %v5952 = vpack.c.b16 %v5624, %v5616
        %v5953 = vpack.c.b16 %v5625, %v5617
        %v5954 = vpack.c.b16 %v5626, %v5618
        %v5955 = vpack.c.b16 %v5627, %v5619
        %v5956 = vpack.c.b16 %v5636, %v5628
        %v5957 = vpack.c.b16 %v5637, %v5629
        %v5958 = vpack.c.b16 %v5638, %v5630
        %v5959 = vpack.c.b16 %v5639, %v5631
        %v5960 = vpack.c.b16 %v5640, %v5632
        %v5961 = vpack.c.b16 %v5641, %v5633
        %v5962 = vpack.c.b16 %v5642, %v5634
        %v5963 = vpack.c.b16 %v5643, %v5635
        %v5964 = vpack.c.b16 %v5652, %v5644
        %v5965 = vpack.c.b16 %v5653, %v5645
        %v5966 = vpack.c.b16 %v5654, %v5646
        %v5967 = vpack.c.b16 %v5655, %v5647
        %v5968 = vpack.c.b16 %v5656, %v5648
        %v5969 = vpack.c.b16 %v5657, %v5649
        %v5970 = vpack.c.b16 %v5658, %v5650
        %v5971 = vpack.c.b16 %v5659, %v5651
        %v5972 = vpack.c.b16 %v5668, %v5660
        %v5973 = vpack.c.b16 %v5669, %v5661
        %v5974 = vpack.c.b16 %v5670, %v5662
        %v5975 = vpack.c.b16 %v5671, %v5663
        %v5976 = vpack.c.b16 %v5672, %v5664
        %v5977 = vpack.c.b16 %v5673, %v5665
        %v5978 = vpack.c.b16 %v5674, %v5666
        %v5979 = vpack.c.b16 %v5675, %v5667
        %v5980 = vpack.c.b16 %v5684, %v5676
        %v5981 = vpack.c.b16 %v5685, %v5677
        %v5982 = vpack.c.b16 %v5686, %v5678
        %v5983 = vpack.c.b16 %v5687, %v5679
        %v5984 = vpack.c.b16 %v5688, %v5680
        %v5985 = vpack.c.b16 %v5689, %v5681
        %v5986 = vpack.c.b16 %v5690, %v5682
        %v5987 = vpack.c.b16 %v5691, %v5683
        %v5988 = vpack.c.b16 %v5700, %v5692
        %v5989 = vpack.c.b16 %v5701, %v5693
        %v5990 = vpack.c.b16 %v5702, %v5694
        %v5991 = vpack.c.b16 %v5703, %v5695
        %v5992 = vpack.c.b16 %v5704, %v5696
        %v5993 = vpack.c.b16 %v5705, %v5697
        %v5994 = vpack.c.b16 %v5706, %v5698
        %v5995 = vpack.c.b16 %v5707, %v5699
        %v6285 = vsel %vm2200, %v2222, 0
        %6287 = vmatprep.subr.bf16.mxu0 %v5709
        %6288 = vmatpush1.bf16.msra.mxu0 %v5708
        %6289 = vmatprep.subr.bf16.mxu0 %v5717
        %6290 = vmatpush1.bf16.msra.mxu0 %v5716
        %6291 = vmatprep.subr.bf16.mxu0 %v5725
        %6292 = vmatpush1.bf16.msra.mxu0 %v5724
        %6293 = vmatprep.subr.bf16.mxu0 %v5733
        %6294 = vmatpush1.bf16.msra.mxu0 %v5732
        %6295 = vmatprep.subr.bf16.mxu0 %v5741
        %6296 = vmatpush1.bf16.msra.mxu0 %v5740
        %6297 = vmatprep.subr.bf16.mxu0 %v5749
        %6298 = vmatpush1.bf16.msra.mxu0 %v5748
        %6299 = vmatprep.subr.bf16.mxu0 %v5757
        %6300 = vmatpush1.bf16.msra.mxu0 %v5756
        %6301 = vmatprep.subr.bf16.mxu0 %v5765
        %6302 = vmatpush1.bf16.msra.mxu0 %v5764
        %6303 = vmatprep.subr.bf16.mxu0 %v5773
        %6304 = vmatpush1.bf16.msra.mxu0 %v5772
        %6305 = vmatprep.subr.bf16.mxu0 %v5781
        %6306 = vmatpush1.bf16.msra.mxu0 %v5780
        %6307 = vmatprep.subr.bf16.mxu0 %v5789
        %6308 = vmatpush1.bf16.msra.mxu0 %v5788
        %6309 = vmatprep.subr.bf16.mxu0 %v5797
        %6310 = vmatpush1.bf16.msra.mxu0 %v5796
        %6311 = vmatprep.subr.bf16.mxu0 %v5805
        %6312 = vmatpush1.bf16.msra.mxu0 %v5804
        %6313 = vmatprep.subr.bf16.mxu0 %v5813
        %6314 = vmatpush1.bf16.msra.mxu0 %v5812
        %6315 = vmatprep.subr.bf16.mxu0 %v5821
        %6316 = vmatpush1.bf16.msra.mxu0 %v5820
        %6317 = vmatprep.subr.bf16.mxu0 %v5829
        %6318 = vmatpush1.bf16.msra.mxu0 %v5828
        %6319 = vmatprep.mubr.bf16.mxu0 %v2219
        %6320 = vmatmul.mubr.bf16.gmra.mrb[0].mxu0 %v2218
        %v6321 = vpop.f32.mrb[0].mxu0
        %v6322 = vadd.f32 %v4449, %v6321
        %v6323 = vpop.f32.mrb[0].mxu0
        %v6324 = vadd.f32 %v4451, %v6323
        %v6325 = vpop.f32.mrb[0].mxu0
        %v6326 = vadd.f32 %v4453, %v6325
        %v6327 = vpop.f32.mrb[0].mxu0
        %v6328 = vadd.f32 %v4455, %v6327
        %6329 = vdwg.mxu0
        %6330 = vmatprep.subr.bf16.mxu0 %v5837
        %6331 = vmatpush1.bf16.msra.mxu0 %v5836
        %6332 = vmatprep.subr.bf16.mxu0 %v5845
        %6333 = vmatpush1.bf16.msra.mxu0 %v5844
        %6334 = vmatprep.subr.bf16.mxu0 %v5853
        %6335 = vmatpush1.bf16.msra.mxu0 %v5852
        %6336 = vmatprep.subr.bf16.mxu0 %v5861
        %6337 = vmatpush1.bf16.msra.mxu0 %v5860
        %6338 = vmatprep.subr.bf16.mxu0 %v5869
        %6339 = vmatpush1.bf16.msra.mxu0 %v5868
        %6340 = vmatprep.subr.bf16.mxu0 %v5877
        %6341 = vmatpush1.bf16.msra.mxu0 %v5876
        %6342 = vmatprep.subr.bf16.mxu0 %v5885
        %6343 = vmatpush1.bf16.msra.mxu0 %v5884
        %6344 = vmatprep.subr.bf16.mxu0 %v5893
        %6345 = vmatpush1.bf16.msra.mxu0 %v5892
        %6346 = vmatprep.subr.bf16.mxu0 %v5901
        %6347 = vmatpush1.bf16.msra.mxu0 %v5900
        %6348 = vmatprep.subr.bf16.mxu0 %v5909
        %6349 = vmatpush1.bf16.msra.mxu0 %v5908
        %6350 = vmatprep.subr.bf16.mxu0 %v5917
        %6351 = vmatpush1.bf16.msra.mxu0 %v5916
        %6352 = vmatprep.subr.bf16.mxu0 %v5925
        %6353 = vmatpush1.bf16.msra.mxu0 %v5924
        %6354 = vmatprep.subr.bf16.mxu0 %v5933
        %6355 = vmatpush1.bf16.msra.mxu0 %v5932
        %6356 = vmatprep.subr.bf16.mxu0 %v5941
        %6357 = vmatpush1.bf16.msra.mxu0 %v5940
        %6358 = vmatprep.subr.bf16.mxu0 %v5949
        %6359 = vmatpush1.bf16.msra.mxu0 %v5948
        %6360 = vmatprep.subr.bf16.mxu0 %v5957
        %6361 = vmatpush1.bf16.msra.mxu0 %v5956
        %6362 = vmatprep.mubr.bf16.mxu0 %v2221
        %6363 = vmatmul.mubr.bf16.gmra.mrb[0].mxu0 %v2220
        %v6364 = vpop.f32.mrb[0].mxu0
        %v6365 = vadd.f32 %v6322, %v6364
        %v6366 = vpop.f32.mrb[0].mxu0
        %v6367 = vadd.f32 %v6324, %v6366
        %v6368 = vpop.f32.mrb[0].mxu0
        %v6369 = vadd.f32 %v6326, %v6368
        %v6370 = vpop.f32.mrb[0].mxu0
        %v6371 = vadd.f32 %v6328, %v6370
        %6372 = vdwg.mxu0
        %6373 = vmatprep.subr.bf16.mxu0 %v5965
        %6374 = vmatpush1.bf16.msra.mxu0 %v5964
        %6375 = vmatprep.subr.bf16.mxu0 %v5973
        %6376 = vmatpush1.bf16.msra.mxu0 %v5972
        %6377 = vmatprep.subr.bf16.mxu0 %v5981
        %6378 = vmatpush1.bf16.msra.mxu0 %v5980
        %6379 = vmatprep.subr.bf16.mxu0 %v5989
        %6380 = vmatpush1.bf16.msra.mxu0 %v5988
        %6381 = vmatprep.subr.bf16.mxu0 0
        %6382 = vmatpush1.bf16.msra.mxu0 0
        %6383 = vmatprep.subr.bf16.mxu0 0
        %6384 = vmatpush1.bf16.msra.mxu0 0
        %6385 = vmatprep.subr.bf16.mxu0 0
        %6386 = vmatpush1.bf16.msra.mxu0 0
        %6387 = vmatprep.subr.bf16.mxu0 0
        %6388 = vmatpush1.bf16.msra.mxu0 0
        %6389 = vmatprep.subr.bf16.mxu0 0
        %6390 = vmatpush1.bf16.msra.mxu0 0
        %6391 = vmatprep.subr.bf16.mxu0 0
        %6392 = vmatpush1.bf16.msra.mxu0 0
        %6393 = vmatprep.subr.bf16.mxu0 0
        %6394 = vmatpush1.bf16.msra.mxu0 0
        %6395 = vmatprep.subr.bf16.mxu0 0
        %6396 = vmatpush1.bf16.msra.mxu0 0
        %6397 = vmatprep.subr.bf16.mxu0 0
        %6398 = vmatpush1.bf16.msra.mxu0 0
        %6399 = vmatprep.subr.bf16.mxu0 0
        %6400 = vmatpush1.bf16.msra.mxu0 0
        %6401 = vmatprep.subr.bf16.mxu0 0
        %6402 = vmatpush1.bf16.msra.mxu0 0
        %6403 = vmatprep.subr.bf16.mxu0 0
        %6404 = vmatpush1.bf16.msra.mxu0 0
        %6405 = vmatprep.mubr.bf16.mxu0 0
        %6406 = vmatmul.mubr.bf16.gmra.mrb[0].mxu0 %v6285
        %v6407 = vpop.f32.mrb[0].mxu0
        %v6408 = vadd.f32 %v6365, %v6407
        %v6409 = vpop.f32.mrb[0].mxu0
        %v6410 = vadd.f32 %v6367, %v6409
        %v6411 = vpop.f32.mrb[0].mxu0
        %v6412 = vadd.f32 %v6369, %v6411
        %v6413 = vpop.f32.mrb[0].mxu0
        %v6414 = vadd.f32 %v6371, %v6413
        %6415 = vdwg.mxu0
        %6416 = vmatprep.subr.bf16.mxu0 %v5711
        %6417 = vmatpush1.bf16.msra.mxu0 %v5710
        %6418 = vmatprep.subr.bf16.mxu0 %v5719
        %6419 = vmatpush1.bf16.msra.mxu0 %v5718
        %6420 = vmatprep.subr.bf16.mxu0 %v5727
        %6421 = vmatpush1.bf16.msra.mxu0 %v5726
        %6422 = vmatprep.subr.bf16.mxu0 %v5735
        %6423 = vmatpush1.bf16.msra.mxu0 %v5734
        %6424 = vmatprep.subr.bf16.mxu0 %v5743
        %6425 = vmatpush1.bf16.msra.mxu0 %v5742
        %6426 = vmatprep.subr.bf16.mxu0 %v5751
        %6427 = vmatpush1.bf16.msra.mxu0 %v5750
        %6428 = vmatprep.subr.bf16.mxu0 %v5759
        %6429 = vmatpush1.bf16.msra.mxu0 %v5758
        %6430 = vmatprep.subr.bf16.mxu0 %v5767
        %6431 = vmatpush1.bf16.msra.mxu0 %v5766
        %6432 = vmatprep.subr.bf16.mxu0 %v5775
        %6433 = vmatpush1.bf16.msra.mxu0 %v5774
        %6434 = vmatprep.subr.bf16.mxu0 %v5783
        %6435 = vmatpush1.bf16.msra.mxu0 %v5782
        %6436 = vmatprep.subr.bf16.mxu0 %v5791
        %6437 = vmatpush1.bf16.msra.mxu0 %v5790
        %6438 = vmatprep.subr.bf16.mxu0 %v5799
        %6439 = vmatpush1.bf16.msra.mxu0 %v5798
        %6440 = vmatprep.subr.bf16.mxu0 %v5807
        %6441 = vmatpush1.bf16.msra.mxu0 %v5806
        %6442 = vmatprep.subr.bf16.mxu0 %v5815
        %6443 = vmatpush1.bf16.msra.mxu0 %v5814
        %6444 = vmatprep.subr.bf16.mxu0 %v5823
        %6445 = vmatpush1.bf16.msra.mxu0 %v5822
        %6446 = vmatprep.subr.bf16.mxu0 %v5831
        %6447 = vmatpush1.bf16.msra.mxu0 %v5830
        %6448 = vmatprep.mubr.bf16.mxu0 %v2219
        %6449 = vmatmul.mubr.bf16.gmra.mrb[0].mxu0 %v2218
        %v6450 = vpop.f32.mrb[0].mxu0
        %v6451 = vadd.f32 %v4578, %v6450
        %v6452 = vpop.f32.mrb[0].mxu0
        %v6453 = vadd.f32 %v4580, %v6452
        %v6454 = vpop.f32.mrb[0].mxu0
        %v6455 = vadd.f32 %v4582, %v6454
        %v6456 = vpop.f32.mrb[0].mxu0
        %v6457 = vadd.f32 %v4584, %v6456
        %6458 = vdwg.mxu0
        %6459 = vmatprep.subr.bf16.mxu0 %v5839
        %6460 = vmatpush1.bf16.msra.mxu0 %v5838
        %6461 = vmatprep.subr.bf16.mxu0 %v5847
        %6462 = vmatpush1.bf16.msra.mxu0 %v5846
        %6463 = vmatprep.subr.bf16.mxu0 %v5855
        %6464 = vmatpush1.bf16.msra.mxu0 %v5854
        %6465 = vmatprep.subr.bf16.mxu0 %v5863
        %6466 = vmatpush1.bf16.msra.mxu0 %v5862
        %6467 = vmatprep.subr.bf16.mxu0 %v5871
        %6468 = vmatpush1.bf16.msra.mxu0 %v5870
        %6469 = vmatprep.subr.bf16.mxu0 %v5879
        %6470 = vmatpush1.bf16.msra.mxu0 %v5878
        %6471 = vmatprep.subr.bf16.mxu0 %v5887
        %6472 = vmatpush1.bf16.msra.mxu0 %v5886
        %6473 = vmatprep.subr.bf16.mxu0 %v5895
        %6474 = vmatpush1.bf16.msra.mxu0 %v5894
        %6475 = vmatprep.subr.bf16.mxu0 %v5903
        %6476 = vmatpush1.bf16.msra.mxu0 %v5902
        %6477 = vmatprep.subr.bf16.mxu0 %v5911
        %6478 = vmatpush1.bf16.msra.mxu0 %v5910
        %6479 = vmatprep.subr.bf16.mxu0 %v5919
        %6480 = vmatpush1.bf16.msra.mxu0 %v5918
        %6481 = vmatprep.subr.bf16.mxu0 %v5927
        %6482 = vmatpush1.bf16.msra.mxu0 %v5926
        %6483 = vmatprep.subr.bf16.mxu0 %v5935
        %6484 = vmatpush1.bf16.msra.mxu0 %v5934
        %6485 = vmatprep.subr.bf16.mxu0 %v5943
        %6486 = vmatpush1.bf16.msra.mxu0 %v5942
        %6487 = vmatprep.subr.bf16.mxu0 %v5951
        %6488 = vmatpush1.bf16.msra.mxu0 %v5950
        %6489 = vmatprep.subr.bf16.mxu0 %v5959
        %6490 = vmatpush1.bf16.msra.mxu0 %v5958
        %6491 = vmatprep.mubr.bf16.mxu0 %v2221
        %6492 = vmatmul.mubr.bf16.gmra.mrb[0].mxu0 %v2220
        %v6493 = vpop.f32.mrb[0].mxu0
        %v6494 = vadd.f32 %v6451, %v6493
        %v6495 = vpop.f32.mrb[0].mxu0
        %v6496 = vadd.f32 %v6453, %v6495
        %v6497 = vpop.f32.mrb[0].mxu0
        %v6498 = vadd.f32 %v6455, %v6497
        %v6499 = vpop.f32.mrb[0].mxu0
        %v6500 = vadd.f32 %v6457, %v6499
        %6501 = vdwg.mxu0
        %6502 = vmatprep.subr.bf16.mxu0 %v5967
        %6503 = vmatpush1.bf16.msra.mxu0 %v5966
        %6504 = vmatprep.subr.bf16.mxu0 %v5975
        %6505 = vmatpush1.bf16.msra.mxu0 %v5974
        %6506 = vmatprep.subr.bf16.mxu0 %v5983
        %6507 = vmatpush1.bf16.msra.mxu0 %v5982
        %6508 = vmatprep.subr.bf16.mxu0 %v5991
        %6509 = vmatpush1.bf16.msra.mxu0 %v5990
        %6510 = vmatprep.subr.bf16.mxu0 0
        %6511 = vmatpush1.bf16.msra.mxu0 0
        %6512 = vmatprep.subr.bf16.mxu0 0
        %6513 = vmatpush1.bf16.msra.mxu0 0
        %6514 = vmatprep.subr.bf16.mxu0 0
        %6515 = vmatpush1.bf16.msra.mxu0 0
        %6516 = vmatprep.subr.bf16.mxu0 0
        %6517 = vmatpush1.bf16.msra.mxu0 0
        %6518 = vmatprep.subr.bf16.mxu0 0
        %6519 = vmatpush1.bf16.msra.mxu0 0
        %6520 = vmatprep.subr.bf16.mxu0 0
        %6521 = vmatpush1.bf16.msra.mxu0 0
        %6522 = vmatprep.subr.bf16.mxu0 0
        %6523 = vmatpush1.bf16.msra.mxu0 0
        %6524 = vmatprep.subr.bf16.mxu0 0
        %6525 = vmatpush1.bf16.msra.mxu0 0
        %6526 = vmatprep.subr.bf16.mxu0 0
        %6527 = vmatpush1.bf16.msra.mxu0 0
        %6528 = vmatprep.subr.bf16.mxu0 0
        %6529 = vmatpush1.bf16.msra.mxu0 0
        %6530 = vmatprep.subr.bf16.mxu0 0
        %6531 = vmatpush1.bf16.msra.mxu0 0
        %6532 = vmatprep.subr.bf16.mxu0 0
        %6533 = vmatpush1.bf16.msra.mxu0 0
        %6534 = vmatprep.mubr.bf16.mxu0 0
        %6535 = vmatmul.mubr.bf16.gmra.mrb[0].mxu0 %v6285
        %v6536 = vpop.f32.mrb[0].mxu0
        %v6537 = vadd.f32 %v6494, %v6536
        %v6538 = vpop.f32.mrb[0].mxu0
        %v6539 = vadd.f32 %v6496, %v6538
        %v6540 = vpop.f32.mrb[0].mxu0
        %v6541 = vadd.f32 %v6498, %v6540
        %v6542 = vpop.f32.mrb[0].mxu0
        %v6543 = vadd.f32 %v6500, %v6542
        %6544 = vdwg.mxu0
        %6545 = vmatprep.subr.bf16.mxu0 %v5713
        %6546 = vmatpush1.bf16.msra.mxu0 %v5712
        %6547 = vmatprep.subr.bf16.mxu0 %v5721
        %6548 = vmatpush1.bf16.msra.mxu0 %v5720
        %6549 = vmatprep.subr.bf16.mxu0 %v5729
        %6550 = vmatpush1.bf16.msra.mxu0 %v5728
        %6551 = vmatprep.subr.bf16.mxu0 %v5737
        %6552 = vmatpush1.bf16.msra.mxu0 %v5736
        %6553 = vmatprep.subr.bf16.mxu0 %v5745
        %6554 = vmatpush1.bf16.msra.mxu0 %v5744
        %6555 = vmatprep.subr.bf16.mxu0 %v5753
        %6556 = vmatpush1.bf16.msra.mxu0 %v5752
        %6557 = vmatprep.subr.bf16.mxu0 %v5761
        %6558 = vmatpush1.bf16.msra.mxu0 %v5760
        %6559 = vmatprep.subr.bf16.mxu0 %v5769
        %6560 = vmatpush1.bf16.msra.mxu0 %v5768
        %6561 = vmatprep.subr.bf16.mxu0 %v5777
        %6562 = vmatpush1.bf16.msra.mxu0 %v5776
        %6563 = vmatprep.subr.bf16.mxu0 %v5785
        %6564 = vmatpush1.bf16.msra.mxu0 %v5784
        %6565 = vmatprep.subr.bf16.mxu0 %v5793
        %6566 = vmatpush1.bf16.msra.mxu0 %v5792
        %6567 = vmatprep.subr.bf16.mxu0 %v5801
        %6568 = vmatpush1.bf16.msra.mxu0 %v5800
        %6569 = vmatprep.subr.bf16.mxu0 %v5809
        %6570 = vmatpush1.bf16.msra.mxu0 %v5808
        %6571 = vmatprep.subr.bf16.mxu0 %v5817
        %6572 = vmatpush1.bf16.msra.mxu0 %v5816
        %6573 = vmatprep.subr.bf16.mxu0 %v5825
        %6574 = vmatpush1.bf16.msra.mxu0 %v5824
        %6575 = vmatprep.subr.bf16.mxu0 %v5833
        %6576 = vmatpush1.bf16.msra.mxu0 %v5832
        %6577 = vmatprep.mubr.bf16.mxu0 %v2219
        %6578 = vmatmul.mubr.bf16.gmra.mrb[0].mxu0 %v2218
        %v6579 = vpop.f32.mrb[0].mxu0
        %v6580 = vadd.f32 %v4707, %v6579
        %v6581 = vpop.f32.mrb[0].mxu0
        %v6582 = vadd.f32 %v4709, %v6581
        %v6583 = vpop.f32.mrb[0].mxu0
        %v6584 = vadd.f32 %v4711, %v6583
        %v6585 = vpop.f32.mrb[0].mxu0
        %v6586 = vadd.f32 %v4713, %v6585
        %6587 = vdwg.mxu0
        %6588 = vmatprep.subr.bf16.mxu0 %v5841
        %6589 = vmatpush1.bf16.msra.mxu0 %v5840
        %6590 = vmatprep.subr.bf16.mxu0 %v5849
        %6591 = vmatpush1.bf16.msra.mxu0 %v5848
        %6592 = vmatprep.subr.bf16.mxu0 %v5857
        %6593 = vmatpush1.bf16.msra.mxu0 %v5856
        %6594 = vmatprep.subr.bf16.mxu0 %v5865
        %6595 = vmatpush1.bf16.msra.mxu0 %v5864
        %6596 = vmatprep.subr.bf16.mxu0 %v5873
        %6597 = vmatpush1.bf16.msra.mxu0 %v5872
        %6598 = vmatprep.subr.bf16.mxu0 %v5881
        %6599 = vmatpush1.bf16.msra.mxu0 %v5880
        %6600 = vmatprep.subr.bf16.mxu0 %v5889
        %6601 = vmatpush1.bf16.msra.mxu0 %v5888
        %6602 = vmatprep.subr.bf16.mxu0 %v5897
        %6603 = vmatpush1.bf16.msra.mxu0 %v5896
        %6604 = vmatprep.subr.bf16.mxu0 %v5905
        %6605 = vmatpush1.bf16.msra.mxu0 %v5904
        %6606 = vmatprep.subr.bf16.mxu0 %v5913
        %6607 = vmatpush1.bf16.msra.mxu0 %v5912
        %6608 = vmatprep.subr.bf16.mxu0 %v5921
        %6609 = vmatpush1.bf16.msra.mxu0 %v5920
        %6610 = vmatprep.subr.bf16.mxu0 %v5929
        %6611 = vmatpush1.bf16.msra.mxu0 %v5928
        %6612 = vmatprep.subr.bf16.mxu0 %v5937
        %6613 = vmatpush1.bf16.msra.mxu0 %v5936
        %6614 = vmatprep.subr.bf16.mxu0 %v5945
        %6615 = vmatpush1.bf16.msra.mxu0 %v5944
        %6616 = vmatprep.subr.bf16.mxu0 %v5953
        %6617 = vmatpush1.bf16.msra.mxu0 %v5952
        %6618 = vmatprep.subr.bf16.mxu0 %v5961
        %6619 = vmatpush1.bf16.msra.mxu0 %v5960
        %6620 = vmatprep.mubr.bf16.mxu0 %v2221
        %6621 = vmatmul.mubr.bf16.gmra.mrb[0].mxu0 %v2220
        %v6622 = vpop.f32.mrb[0].mxu0
        %v6623 = vadd.f32 %v6580, %v6622
        %v6624 = vpop.f32.mrb[0].mxu0
        %v6625 = vadd.f32 %v6582, %v6624
        %v6626 = vpop.f32.mrb[0].mxu0
        %v6627 = vadd.f32 %v6584, %v6626
        %v6628 = vpop.f32.mrb[0].mxu0
        %v6629 = vadd.f32 %v6586, %v6628
        %6630 = vdwg.mxu0
        %6631 = vmatprep.subr.bf16.mxu0 %v5969
        %6632 = vmatpush1.bf16.msra.mxu0 %v5968
        %6633 = vmatprep.subr.bf16.mxu0 %v5977
        %6634 = vmatpush1.bf16.msra.mxu0 %v5976
        %6635 = vmatprep.subr.bf16.mxu0 %v5985
        %6636 = vmatpush1.bf16.msra.mxu0 %v5984
        %6637 = vmatprep.subr.bf16.mxu0 %v5993
        %6638 = vmatpush1.bf16.msra.mxu0 %v5992
        %6639 = vmatprep.subr.bf16.mxu0 0
        %6640 = vmatpush1.bf16.msra.mxu0 0
        %6641 = vmatprep.subr.bf16.mxu0 0
        %6642 = vmatpush1.bf16.msra.mxu0 0
        %6643 = vmatprep.subr.bf16.mxu0 0
        %6644 = vmatpush1.bf16.msra.mxu0 0
        %6645 = vmatprep.subr.bf16.mxu0 0
        %6646 = vmatpush1.bf16.msra.mxu0 0
        %6647 = vmatprep.subr.bf16.mxu0 0
        %6648 = vmatpush1.bf16.msra.mxu0 0
        %6649 = vmatprep.subr.bf16.mxu0 0
        %6650 = vmatpush1.bf16.msra.mxu0 0
        %6651 = vmatprep.subr.bf16.mxu0 0
        %6652 = vmatpush1.bf16.msra.mxu0 0
        %6653 = vmatprep.subr.bf16.mxu0 0
        %6654 = vmatpush1.bf16.msra.mxu0 0
        %6655 = vmatprep.subr.bf16.mxu0 0
        %6656 = vmatpush1.bf16.msra.mxu0 0
        %6657 = vmatprep.subr.bf16.mxu0 0
        %6658 = vmatpush1.bf16.msra.mxu0 0
        %6659 = vmatprep.subr.bf16.mxu0 0
        %6660 = vmatpush1.bf16.msra.mxu0 0
        %6661 = vmatprep.subr.bf16.mxu0 0
        %6662 = vmatpush1.bf16.msra.mxu0 0
        %6663 = vmatprep.mubr.bf16.mxu0 0
        %6664 = vmatmul.mubr.bf16.gmra.mrb[0].mxu0 %v6285
        %v6665 = vpop.f32.mrb[0].mxu0
        %v6666 = vadd.f32 %v6623, %v6665
        %v6667 = vpop.f32.mrb[0].mxu0
        %v6668 = vadd.f32 %v6625, %v6667
        %v6669 = vpop.f32.mrb[0].mxu0
        %v6670 = vadd.f32 %v6627, %v6669
        %v6671 = vpop.f32.mrb[0].mxu0
        %v6672 = vadd.f32 %v6629, %v6671
        %6673 = vdwg.mxu0
        %6674 = vmatprep.subr.bf16.mxu0 %v5715
        %6675 = vmatpush1.bf16.msra.mxu0 %v5714
        %6676 = vmatprep.subr.bf16.mxu0 %v5723
        %6677 = vmatpush1.bf16.msra.mxu0 %v5722
        %6678 = vmatprep.subr.bf16.mxu0 %v5731
        %6679 = vmatpush1.bf16.msra.mxu0 %v5730
        %6680 = vmatprep.subr.bf16.mxu0 %v5739
        %6681 = vmatpush1.bf16.msra.mxu0 %v5738
        %6682 = vmatprep.subr.bf16.mxu0 %v5747
        %6683 = vmatpush1.bf16.msra.mxu0 %v5746
        %6684 = vmatprep.subr.bf16.mxu0 %v5755
        %6685 = vmatpush1.bf16.msra.mxu0 %v5754
        %6686 = vmatprep.subr.bf16.mxu0 %v5763
        %6687 = vmatpush1.bf16.msra.mxu0 %v5762
        %6688 = vmatprep.subr.bf16.mxu0 %v5771
        %6689 = vmatpush1.bf16.msra.mxu0 %v5770
        %6690 = vmatprep.subr.bf16.mxu0 %v5779
        %6691 = vmatpush1.bf16.msra.mxu0 %v5778
        %6692 = vmatprep.subr.bf16.mxu0 %v5787
        %6693 = vmatpush1.bf16.msra.mxu0 %v5786
        %6694 = vmatprep.subr.bf16.mxu0 %v5795
        %6695 = vmatpush1.bf16.msra.mxu0 %v5794
        %6696 = vmatprep.subr.bf16.mxu0 %v5803
        %6697 = vmatpush1.bf16.msra.mxu0 %v5802
        %6698 = vmatprep.subr.bf16.mxu0 %v5811
        %6699 = vmatpush1.bf16.msra.mxu0 %v5810
        %6700 = vmatprep.subr.bf16.mxu0 %v5819
        %6701 = vmatpush1.bf16.msra.mxu0 %v5818
        %6702 = vmatprep.subr.bf16.mxu0 %v5827
        %6703 = vmatpush1.bf16.msra.mxu0 %v5826
        %6704 = vmatprep.subr.bf16.mxu0 %v5835
        %6705 = vmatpush1.bf16.msra.mxu0 %v5834
        %6706 = vmatprep.mubr.bf16.mxu0 %v2219
        %6707 = vmatmul.mubr.bf16.gmra.mrb[0].mxu0 %v2218
        %v6708 = vpop.f32.mrb[0].mxu0
        %v6709 = vadd.f32 %v4836, %v6708
        %v6710 = vpop.f32.mrb[0].mxu0
        %v6711 = vadd.f32 %v4838, %v6710
        %v6712 = vpop.f32.mrb[0].mxu0
        %v6713 = vadd.f32 %v4840, %v6712
        %v6714 = vpop.f32.mrb[0].mxu0
        %v6715 = vadd.f32 %v4842, %v6714
        %6716 = vdwg.mxu0
        %6717 = vmatprep.subr.bf16.mxu0 %v5843
        %6718 = vmatpush1.bf16.msra.mxu0 %v5842
        %6719 = vmatprep.subr.bf16.mxu0 %v5851
        %6720 = vmatpush1.bf16.msra.mxu0 %v5850
        %6721 = vmatprep.subr.bf16.mxu0 %v5859
        %6722 = vmatpush1.bf16.msra.mxu0 %v5858
        %6723 = vmatprep.subr.bf16.mxu0 %v5867
        %6724 = vmatpush1.bf16.msra.mxu0 %v5866
        %6725 = vmatprep.subr.bf16.mxu0 %v5875
        %6726 = vmatpush1.bf16.msra.mxu0 %v5874
        %6727 = vmatprep.subr.bf16.mxu0 %v5883
        %6728 = vmatpush1.bf16.msra.mxu0 %v5882
        %6729 = vmatprep.subr.bf16.mxu0 %v5891
        %6730 = vmatpush1.bf16.msra.mxu0 %v5890
        %6731 = vmatprep.subr.bf16.mxu0 %v5899
        %6732 = vmatpush1.bf16.msra.mxu0 %v5898
        %6733 = vmatprep.subr.bf16.mxu0 %v5907
        %6734 = vmatpush1.bf16.msra.mxu0 %v5906
        %6735 = vmatprep.subr.bf16.mxu0 %v5915
        %6736 = vmatpush1.bf16.msra.mxu0 %v5914
        %6737 = vmatprep.subr.bf16.mxu0 %v5923
        %6738 = vmatpush1.bf16.msra.mxu0 %v5922
        %6739 = vmatprep.subr.bf16.mxu0 %v5931
        %6740 = vmatpush1.bf16.msra.mxu0 %v5930
        %6741 = vmatprep.subr.bf16.mxu0 %v5939
        %6742 = vmatpush1.bf16.msra.mxu0 %v5938
        %6743 = vmatprep.subr.bf16.mxu0 %v5947
        %6744 = vmatpush1.bf16.msra.mxu0 %v5946
        %6745 = vmatprep.subr.bf16.mxu0 %v5955
        %6746 = vmatpush1.bf16.msra.mxu0 %v5954
        %6747 = vmatprep.subr.bf16.mxu0 %v5963
        %6748 = vmatpush1.bf16.msra.mxu0 %v5962
        %6749 = vmatprep.mubr.bf16.mxu0 %v2221
        %6750 = vmatmul.mubr.bf16.gmra.mrb[0].mxu0 %v2220
        %v6751 = vpop.f32.mrb[0].mxu0
        %v6752 = vadd.f32 %v6709, %v6751
        %v6753 = vpop.f32.mrb[0].mxu0
        %v6754 = vadd.f32 %v6711, %v6753
        %v6755 = vpop.f32.mrb[0].mxu0
        %v6756 = vadd.f32 %v6713, %v6755
        %v6757 = vpop.f32.mrb[0].mxu0
        %v6758 = vadd.f32 %v6715, %v6757
        %6759 = vdwg.mxu0
        %6760 = vmatprep.subr.bf16.mxu0 %v5971
        %6761 = vmatpush1.bf16.msra.mxu0 %v5970
        %6762 = vmatprep.subr.bf16.mxu0 %v5979
        %6763 = vmatpush1.bf16.msra.mxu0 %v5978
        %6764 = vmatprep.subr.bf16.mxu0 %v5987
        %6765 = vmatpush1.bf16.msra.mxu0 %v5986
        %6766 = vmatprep.subr.bf16.mxu0 %v5995
        %6767 = vmatpush1.bf16.msra.mxu0 %v5994
        %6768 = vmatprep.subr.bf16.mxu0 0
        %6769 = vmatpush1.bf16.msra.mxu0 0
        %6770 = vmatprep.subr.bf16.mxu0 0
        %6771 = vmatpush1.bf16.msra.mxu0 0
        %6772 = vmatprep.subr.bf16.mxu0 0
        %6773 = vmatpush1.bf16.msra.mxu0 0
        %6774 = vmatprep.subr.bf16.mxu0 0
        %6775 = vmatpush1.bf16.msra.mxu0 0
        %6776 = vmatprep.subr.bf16.mxu0 0
        %6777 = vmatpush1.bf16.msra.mxu0 0
        %6778 = vmatprep.subr.bf16.mxu0 0
        %6779 = vmatpush1.bf16.msra.mxu0 0
        %6780 = vmatprep.subr.bf16.mxu0 0
        %6781 = vmatpush1.bf16.msra.mxu0 0
        %6782 = vmatprep.subr.bf16.mxu0 0
        %6783 = vmatpush1.bf16.msra.mxu0 0
        %6784 = vmatprep.subr.bf16.mxu0 0
        %6785 = vmatpush1.bf16.msra.mxu0 0
        %6786 = vmatprep.subr.bf16.mxu0 0
        %6787 = vmatpush1.bf16.msra.mxu0 0
        %6788 = vmatprep.subr.bf16.mxu0 0
        %6789 = vmatpush1.bf16.msra.mxu0 0
        %6790 = vmatprep.subr.bf16.mxu0 0
        %6791 = vmatpush1.bf16.msra.mxu0 0
        %6792 = vmatprep.mubr.bf16.mxu0 0
        %6793 = vmatmul.mubr.bf16.gmra.mrb[0].mxu0 %v6285
        %v6794 = vpop.f32.mrb[0].mxu0
        %v6795 = vadd.f32 %v6752, %v6794
        %v6796 = vpop.f32.mrb[0].mxu0
        %v6797 = vadd.f32 %v6754, %v6796
        %v6798 = vpop.f32.mrb[0].mxu0
        %v6799 = vadd.f32 %v6756, %v6798
        %v6800 = vpop.f32.mrb[0].mxu0
        %v6801 = vadd.f32 %v6758, %v6800
        %6802 = vdwg.mxu0
        %v6803 = vld [vmem:[#allocation2] sm:$0xfc]
        %v6804 = vld [vmem:[#allocation2 + $0x8] sm:$0xfc]
        %v6805 = vld [vmem:[#allocation2 + $0x10] sm:$0xfc]
        %v6806 = vld [vmem:[#allocation2 + $0x18] sm:$0xfc]
        %v6807 = vld [vmem:[#allocation2 + $0x20] sm:$0xfc]
        %v6808 = vld [vmem:[#allocation2 + $0x50] sm:$0x3]
        %v6809 = vld [vmem:[#allocation2 + $0x58] sm:$0x3]
        %v6810 = vld [vmem:[#allocation2 + $0x60] sm:$0x3]
        %v6811 = vld [vmem:[#allocation2 + $0x68] sm:$0x3]
        %v6812 = vld [vmem:[#allocation2 + $0x70] sm:$0x3]
        %v6813 = vpack.c.bf16 %v2213, %v6803
        %v6814 = vpack.c.bf16 %v2214, %v6804
        %v6815 = vpack.c.bf16 %v2215, %v6805
        %v6816 = vpack.c.bf16 %v2216, %v6806
        %v6817 = vpack.c.bf16 %v2217, %v6807
        %v6818 = vpack.c.bf16 %v6808, %v6808
        %v6819 = vpack.c.bf16 %v6809, %v6809
        %v6820 = vpack.c.bf16 %v6810, %v6810
        %v6821 = vpack.c.bf16 %v6811, %v6811
        %v6822 = vpack.c.bf16 %v6812, %v6812
        %s6823 = scalar_lea.vmem [#allocation7], 4608
        %v6824 = vld [vmem:[%s6823] sm:$0xff]
        %v6825 = vld [vmem:[%s6823 + $0x8] sm:$0xff]
        %v6826 = vld [vmem:[%s6823 + $0x10] sm:$0xff]
        %v6827 = vld [vmem:[%s6823 + $0x18] sm:$0xff]
        %v6828 = vld [vmem:[%s6823 + $0x20] sm:$0xff]
        %v6829 = vld [vmem:[%s6823 + $0x28] sm:$0xff]
        %v6830 = vld [vmem:[%s6823 + $0x30] sm:$0xff]
        %v6831 = vld [vmem:[%s6823 + $0x38] sm:$0xff]
        %v6832 = vld [vmem:[%s6823 + $0x40] sm:$0xff]
        %v6833 = vld [vmem:[%s6823 + $0x48] sm:$0xff]
        %v6834 = vld [vmem:[%s6823 + $0x50] sm:$0xff]
        %v6835 = vld [vmem:[%s6823 + $0x58] sm:$0xff]
        %v6836 = vld [vmem:[%s6823 + $0x60] sm:$0xff]
        %v6837 = vld [vmem:[%s6823 + $0x68] sm:$0xff]
        %v6838 = vld [vmem:[%s6823 + $0x70] sm:$0xff]
        %v6839 = vld [vmem:[%s6823 + $0x78] sm:$0xff]
        %v6840 = vld [vmem:[%s6823 + $0x80] sm:$0xff]
        %v6841 = vld [vmem:[%s6823 + $0x88] sm:$0xff]
        %v6842 = vld [vmem:[%s6823 + $0x90] sm:$0xff]
        %v6843 = vld [vmem:[%s6823 + $0x98] sm:$0xff]
        %v6844 = vld [vmem:[%s6823 + $0xa0] sm:$0xff]
        %v6845 = vld [vmem:[%s6823 + $0xa8] sm:$0xff]
        %v6846 = vld [vmem:[%s6823 + $0xb0] sm:$0xff]
        %v6847 = vld [vmem:[%s6823 + $0xb8] sm:$0xff]
        %v6848 = vld [vmem:[%s6823 + $0xc0] sm:$0xff]
        %v6849 = vld [vmem:[%s6823 + $0xc8] sm:$0xff]
        %v6850 = vld [vmem:[%s6823 + $0xd0] sm:$0xff]
        %v6851 = vld [vmem:[%s6823 + $0xd8] sm:$0xff]
        %v6852 = vld [vmem:[%s6823 + $0xe0] sm:$0xff]
        %v6853 = vld [vmem:[%s6823 + $0xe8] sm:$0xff]
        %v6854 = vld [vmem:[%s6823 + $0xf0] sm:$0xff]
        %v6855 = vld [vmem:[%s6823 + $0xf8] sm:$0xff]
        %v6856 = vld [vmem:[%s6823 + $0x100] sm:$0xff]
        %v6857 = vld [vmem:[%s6823 + $0x108] sm:$0xff]
        %v6858 = vld [vmem:[%s6823 + $0x110] sm:$0xff]
        %v6859 = vld [vmem:[%s6823 + $0x118] sm:$0xff]
        %v6860 = vld [vmem:[%s6823 + $0x120] sm:$0xff]
        %v6861 = vld [vmem:[%s6823 + $0x128] sm:$0xff]
        %v6862 = vld [vmem:[%s6823 + $0x130] sm:$0xff]
        %v6863 = vld [vmem:[%s6823 + $0x138] sm:$0xff]
        %v6864 = vld [vmem:[%s6823 + $0x140] sm:$0xff]
        %v6865 = vld [vmem:[%s6823 + $0x148] sm:$0xff]
        %v6866 = vld [vmem:[%s6823 + $0x150] sm:$0xff]
        %v6867 = vld [vmem:[%s6823 + $0x158] sm:$0xff]
        %v6868 = vld [vmem:[%s6823 + $0x160] sm:$0xff]
        %v6869 = vld [vmem:[%s6823 + $0x168] sm:$0xff]
        %v6870 = vld [vmem:[%s6823 + $0x170] sm:$0xff]
        %v6871 = vld [vmem:[%s6823 + $0x178] sm:$0xff]
        %v6872 = vld [vmem:[%s6823 + $0x180] sm:$0xff]
        %v6873 = vld [vmem:[%s6823 + $0x188] sm:$0xff]
        %v6874 = vld [vmem:[%s6823 + $0x190] sm:$0xff]
        %v6875 = vld [vmem:[%s6823 + $0x198] sm:$0xff]
        %v6876 = vld [vmem:[%s6823 + $0x1a0] sm:$0xff]
        %v6877 = vld [vmem:[%s6823 + $0x1a8] sm:$0xff]
        %v6878 = vld [vmem:[%s6823 + $0x1b0] sm:$0xff]
        %v6879 = vld [vmem:[%s6823 + $0x1b8] sm:$0xff]
        %v6880 = vld [vmem:[%s6823 + $0x1c0] sm:$0xff]
        %v6881 = vld [vmem:[%s6823 + $0x1c8] sm:$0xff]
        %v6882 = vld [vmem:[%s6823 + $0x1d0] sm:$0xff]
        %v6883 = vld [vmem:[%s6823 + $0x1d8] sm:$0xff]
        %v6884 = vld [vmem:[%s6823 + $0x1e0] sm:$0xff]
        %v6885 = vld [vmem:[%s6823 + $0x1e8] sm:$0xff]
        %v6886 = vld [vmem:[%s6823 + $0x1f0] sm:$0xff]
        %v6887 = vld [vmem:[%s6823 + $0x1f8] sm:$0xff]
        %v6888 = vld [vmem:[%s6823 + $0x200] sm:$0xff]
        %v6889 = vld [vmem:[%s6823 + $0x208] sm:$0xff]
        %v6890 = vld [vmem:[%s6823 + $0x210] sm:$0xff]
        %v6891 = vld [vmem:[%s6823 + $0x218] sm:$0xff]
        %v6892 = vld [vmem:[%s6823 + $0x220] sm:$0xff]
        %v6893 = vld [vmem:[%s6823 + $0x228] sm:$0xff]
        %v6894 = vld [vmem:[%s6823 + $0x230] sm:$0xff]
        %v6895 = vld [vmem:[%s6823 + $0x238] sm:$0xff]
        %v6896 = vld [vmem:[%s6823 + $0x240] sm:$0xff]
        %v6897 = vld [vmem:[%s6823 + $0x248] sm:$0xff]
        %v6898 = vld [vmem:[%s6823 + $0x250] sm:$0xff]
        %v6899 = vld [vmem:[%s6823 + $0x258] sm:$0xff]
        %v6900 = vld [vmem:[%s6823 + $0x260] sm:$0xff]
        %v6901 = vld [vmem:[%s6823 + $0x268] sm:$0xff]
        %v6902 = vld [vmem:[%s6823 + $0x270] sm:$0xff]
        %v6903 = vld [vmem:[%s6823 + $0x278] sm:$0xff]
        %v6904 = vld [vmem:[%s6823 + $0x280] sm:$0xff]
        %v6905 = vld [vmem:[%s6823 + $0x288] sm:$0xff]
        %v6906 = vld [vmem:[%s6823 + $0x290] sm:$0xff]
        %v6907 = vld [vmem:[%s6823 + $0x298] sm:$0xff]
        %v6908 = vld [vmem:[%s6823 + $0x2a0] sm:$0xff]
        %v6909 = vld [vmem:[%s6823 + $0x2a8] sm:$0xff]
        %v6910 = vld [vmem:[%s6823 + $0x2b0] sm:$0xff]
        %v6911 = vld [vmem:[%s6823 + $0x2b8] sm:$0xff]
        %v6912 = vld [vmem:[%s6823 + $0x2c0] sm:$0xff]
        %v6913 = vld [vmem:[%s6823 + $0x2c8] sm:$0xff]
        %v6914 = vld [vmem:[%s6823 + $0x2d0] sm:$0xff]
        %v6915 = vld [vmem:[%s6823 + $0x2d8] sm:$0xff]
        %v6916 = vld [vmem:[%s6823 + $0x2e0] sm:$0xff]
        %v6917 = vld [vmem:[%s6823 + $0x2e8] sm:$0xff]
        %v6918 = vld [vmem:[%s6823 + $0x2f0] sm:$0xff]
        %v6919 = vld [vmem:[%s6823 + $0x2f8] sm:$0xff]
        %v6920 = vld [vmem:[%s6823 + $0x300] sm:$0xff]
        %v6921 = vld [vmem:[%s6823 + $0x308] sm:$0xff]
        %v6922 = vld [vmem:[%s6823 + $0x310] sm:$0xff]
        %v6923 = vld [vmem:[%s6823 + $0x318] sm:$0xff]
        %v6924 = vld [vmem:[%s6823 + $0x320] sm:$0xff]
        %v6925 = vld [vmem:[%s6823 + $0x328] sm:$0xff]
        %v6926 = vld [vmem:[%s6823 + $0x330] sm:$0xff]
        %v6927 = vld [vmem:[%s6823 + $0x338] sm:$0xff]
        %v6928 = vld [vmem:[%s6823 + $0x340] sm:$0xff]
        %v6929 = vld [vmem:[%s6823 + $0x348] sm:$0xff]
        %v6930 = vld [vmem:[%s6823 + $0x350] sm:$0xff]
        %v6931 = vld [vmem:[%s6823 + $0x358] sm:$0xff]
        %v6932 = vld [vmem:[%s6823 + $0x360] sm:$0xff]
        %v6933 = vld [vmem:[%s6823 + $0x368] sm:$0xff]
        %v6934 = vld [vmem:[%s6823 + $0x370] sm:$0xff]
        %v6935 = vld [vmem:[%s6823 + $0x378] sm:$0xff]
        %v6936 = vld [vmem:[%s6823 + $0x380] sm:$0xff]
        %v6937 = vld [vmem:[%s6823 + $0x388] sm:$0xff]
        %v6938 = vld [vmem:[%s6823 + $0x390] sm:$0xff]
        %v6939 = vld [vmem:[%s6823 + $0x398] sm:$0xff]
        %v6940 = vld [vmem:[%s6823 + $0x3a0] sm:$0xff]
        %v6941 = vld [vmem:[%s6823 + $0x3a8] sm:$0xff]
        %v6942 = vld [vmem:[%s6823 + $0x3b0] sm:$0xff]
        %v6943 = vld [vmem:[%s6823 + $0x3b8] sm:$0xff]
        %v6944 = vld [vmem:[%s6823 + $0x3c0] sm:$0xff]
        %v6945 = vld [vmem:[%s6823 + $0x3c8] sm:$0xff]
        %v6946 = vld [vmem:[%s6823 + $0x3d0] sm:$0xff]
        %v6947 = vld [vmem:[%s6823 + $0x3d8] sm:$0xff]
        %v6948 = vld [vmem:[%s6823 + $0x3e0] sm:$0xff]
        %v6949 = vld [vmem:[%s6823 + $0x3e8] sm:$0xff]
        %v6950 = vld [vmem:[%s6823 + $0x3f0] sm:$0xff]
        %v6951 = vld [vmem:[%s6823 + $0x3f8] sm:$0xff]
        %v6952 = vld [vmem:[%s6823 + $0x400] sm:$0xff]
        %v6953 = vld [vmem:[%s6823 + $0x408] sm:$0xff]
        %v6954 = vld [vmem:[%s6823 + $0x410] sm:$0xff]
        %v6955 = vld [vmem:[%s6823 + $0x418] sm:$0xff]
        %v6956 = vld [vmem:[%s6823 + $0x420] sm:$0xff]
        %v6957 = vld [vmem:[%s6823 + $0x428] sm:$0xff]
        %v6958 = vld [vmem:[%s6823 + $0x430] sm:$0xff]
        %v6959 = vld [vmem:[%s6823 + $0x438] sm:$0xff]
        %v6960 = vld [vmem:[%s6823 + $0x440] sm:$0xff]
        %v6961 = vld [vmem:[%s6823 + $0x448] sm:$0xff]
        %v6962 = vld [vmem:[%s6823 + $0x450] sm:$0xff]
        %v6963 = vld [vmem:[%s6823 + $0x458] sm:$0xff]
        %v6964 = vld [vmem:[%s6823 + $0x460] sm:$0xff]
        %v6965 = vld [vmem:[%s6823 + $0x468] sm:$0xff]
        %v6966 = vld [vmem:[%s6823 + $0x470] sm:$0xff]
        %v6967 = vld [vmem:[%s6823 + $0x478] sm:$0xff]
        %v6968 = vld [vmem:[%s6823 + $0x480] sm:$0xff]
        %v6969 = vld [vmem:[%s6823 + $0x488] sm:$0xff]
        %v6970 = vld [vmem:[%s6823 + $0x490] sm:$0xff]
        %v6971 = vld [vmem:[%s6823 + $0x498] sm:$0xff]
        %v6972 = vld [vmem:[%s6823 + $0x4a0] sm:$0xff]
        %v6973 = vld [vmem:[%s6823 + $0x4a8] sm:$0xff]
        %v6974 = vld [vmem:[%s6823 + $0x4b0] sm:$0xff]
        %v6975 = vld [vmem:[%s6823 + $0x4b8] sm:$0xff]
        %v6976 = vld [vmem:[%s6823 + $0x4c0] sm:$0xff]
        %v6977 = vld [vmem:[%s6823 + $0x4c8] sm:$0xff]
        %v6978 = vld [vmem:[%s6823 + $0x4d0] sm:$0xff]
        %v6979 = vld [vmem:[%s6823 + $0x4d8] sm:$0xff]
        %v6980 = vld [vmem:[%s6823 + $0x4e0] sm:$0xff]
        %v6981 = vld [vmem:[%s6823 + $0x4e8] sm:$0xff]
        %v6982 = vld [vmem:[%s6823 + $0x4f0] sm:$0xff]
        %v6983 = vld [vmem:[%s6823 + $0x4f8] sm:$0xff]
        %v6984 = vld [vmem:[%s6823 + $0x500] sm:$0xff]
        %v6985 = vld [vmem:[%s6823 + $0x508] sm:$0xff]
        %v6986 = vld [vmem:[%s6823 + $0x510] sm:$0xff]
        %v6987 = vld [vmem:[%s6823 + $0x518] sm:$0xff]
        %v6988 = vld [vmem:[%s6823 + $0x520] sm:$0xff]
        %v6989 = vld [vmem:[%s6823 + $0x528] sm:$0xff]
        %v6990 = vld [vmem:[%s6823 + $0x530] sm:$0xff]
        %v6991 = vld [vmem:[%s6823 + $0x538] sm:$0xff]
        %v6992 = vld [vmem:[%s6823 + $0x540] sm:$0xff]
        %v6993 = vld [vmem:[%s6823 + $0x548] sm:$0xff]
        %v6994 = vld [vmem:[%s6823 + $0x550] sm:$0xff]
        %v6995 = vld [vmem:[%s6823 + $0x558] sm:$0xff]
        %v6996 = vld [vmem:[%s6823 + $0x560] sm:$0xff]
        %v6997 = vld [vmem:[%s6823 + $0x568] sm:$0xff]
        %v6998 = vld [vmem:[%s6823 + $0x570] sm:$0xff]
        %v6999 = vld [vmem:[%s6823 + $0x578] sm:$0xff]
        %v7000 = vld [vmem:[%s6823 + $0x580] sm:$0xff]
        %v7001 = vld [vmem:[%s6823 + $0x588] sm:$0xff]
        %v7002 = vld [vmem:[%s6823 + $0x590] sm:$0xff]
        %v7003 = vld [vmem:[%s6823 + $0x598] sm:$0xff]
        %v7004 = vld [vmem:[%s6823 + $0x5a0] sm:$0xff]
        %v7005 = vld [vmem:[%s6823 + $0x5a8] sm:$0xff]
        %v7006 = vld [vmem:[%s6823 + $0x5b0] sm:$0xff]
        %v7007 = vld [vmem:[%s6823 + $0x5b8] sm:$0xff]
        %v7008 = vld [vmem:[%s6823 + $0x5c0] sm:$0xff]
        %v7009 = vld [vmem:[%s6823 + $0x5c8] sm:$0xff]
        %v7010 = vld [vmem:[%s6823 + $0x5d0] sm:$0xff]
        %v7011 = vld [vmem:[%s6823 + $0x5d8] sm:$0xff]
        %v7012 = vld [vmem:[%s6823 + $0x5e0] sm:$0xff]
        %v7013 = vld [vmem:[%s6823 + $0x5e8] sm:$0xff]
        %v7014 = vld [vmem:[%s6823 + $0x5f0] sm:$0xff]
        %v7015 = vld [vmem:[%s6823 + $0x5f8] sm:$0xff]
        %v7016 = vld [vmem:[%s6823 + $0x600] sm:$0xff]
        %v7017 = vld [vmem:[%s6823 + $0x608] sm:$0xff]
        %v7018 = vld [vmem:[%s6823 + $0x610] sm:$0xff]
        %v7019 = vld [vmem:[%s6823 + $0x618] sm:$0xff]
        %v7020 = vld [vmem:[%s6823 + $0x620] sm:$0xff]
        %v7021 = vld [vmem:[%s6823 + $0x628] sm:$0xff]
        %v7022 = vld [vmem:[%s6823 + $0x630] sm:$0xff]
        %v7023 = vld [vmem:[%s6823 + $0x638] sm:$0xff]
        %v7024 = vld [vmem:[%s6823 + $0x640] sm:$0xff]
        %v7025 = vld [vmem:[%s6823 + $0x648] sm:$0xff]
        %v7026 = vld [vmem:[%s6823 + $0x650] sm:$0xff]
        %v7027 = vld [vmem:[%s6823 + $0x658] sm:$0xff]
        %v7028 = vld [vmem:[%s6823 + $0x660] sm:$0xff]
        %v7029 = vld [vmem:[%s6823 + $0x668] sm:$0xff]
        %v7030 = vld [vmem:[%s6823 + $0x670] sm:$0xff]
        %v7031 = vld [vmem:[%s6823 + $0x678] sm:$0xff]
        %v7032 = vld [vmem:[%s6823 + $0x680] sm:$0xff]
        %v7033 = vld [vmem:[%s6823 + $0x688] sm:$0xff]
        %v7034 = vld [vmem:[%s6823 + $0x690] sm:$0xff]
        %v7035 = vld [vmem:[%s6823 + $0x698] sm:$0xff]
        %v7036 = vld [vmem:[%s6823 + $0x6a0] sm:$0xff]
        %v7037 = vld [vmem:[%s6823 + $0x6a8] sm:$0xff]
        %v7038 = vld [vmem:[%s6823 + $0x6b0] sm:$0xff]
        %v7039 = vld [vmem:[%s6823 + $0x6b8] sm:$0xff]
        %v7040 = vld [vmem:[%s6823 + $0x6c0] sm:$0xff]
        %v7041 = vld [vmem:[%s6823 + $0x6c8] sm:$0xff]
        %v7042 = vld [vmem:[%s6823 + $0x6d0] sm:$0xff]
        %v7043 = vld [vmem:[%s6823 + $0x6d8] sm:$0xff]
        %v7044 = vld [vmem:[%s6823 + $0x6e0] sm:$0xff]
        %v7045 = vld [vmem:[%s6823 + $0x6e8] sm:$0xff]
        %v7046 = vld [vmem:[%s6823 + $0x6f0] sm:$0xff]
        %v7047 = vld [vmem:[%s6823 + $0x6f8] sm:$0xff]
        %v7048 = vld [vmem:[%s6823 + $0x700] sm:$0xff]
        %v7049 = vld [vmem:[%s6823 + $0x708] sm:$0xff]
        %v7050 = vld [vmem:[%s6823 + $0x710] sm:$0xff]
        %v7051 = vld [vmem:[%s6823 + $0x718] sm:$0xff]
        %v7052 = vld [vmem:[%s6823 + $0x720] sm:$0xff]
        %v7053 = vld [vmem:[%s6823 + $0x728] sm:$0xff]
        %v7054 = vld [vmem:[%s6823 + $0x730] sm:$0xff]
        %v7055 = vld [vmem:[%s6823 + $0x738] sm:$0xff]
        %v7056 = vld [vmem:[%s6823 + $0x740] sm:$0xff]
        %v7057 = vld [vmem:[%s6823 + $0x748] sm:$0xff]
        %v7058 = vld [vmem:[%s6823 + $0x750] sm:$0xff]
        %v7059 = vld [vmem:[%s6823 + $0x758] sm:$0xff]
        %v7060 = vld [vmem:[%s6823 + $0x760] sm:$0xff]
        %v7061 = vld [vmem:[%s6823 + $0x768] sm:$0xff]
        %v7062 = vld [vmem:[%s6823 + $0x770] sm:$0xff]
        %v7063 = vld [vmem:[%s6823 + $0x778] sm:$0xff]
        %v7064 = vld [vmem:[%s6823 + $0x780] sm:$0xff]
        %v7065 = vld [vmem:[%s6823 + $0x788] sm:$0xff]
        %v7066 = vld [vmem:[%s6823 + $0x790] sm:$0xff]
        %v7067 = vld [vmem:[%s6823 + $0x798] sm:$0xff]
        %v7068 = vld [vmem:[%s6823 + $0x7a0] sm:$0xff]
        %v7069 = vld [vmem:[%s6823 + $0x7a8] sm:$0xff]
        %v7070 = vld [vmem:[%s6823 + $0x7b0] sm:$0xff]
        %v7071 = vld [vmem:[%s6823 + $0x7b8] sm:$0xff]
        %v7072 = vld [vmem:[%s6823 + $0x7c0] sm:$0xff]
        %v7073 = vld [vmem:[%s6823 + $0x7c8] sm:$0xff]
        %v7074 = vld [vmem:[%s6823 + $0x7d0] sm:$0xff]
        %v7075 = vld [vmem:[%s6823 + $0x7d8] sm:$0xff]
        %v7076 = vld [vmem:[%s6823 + $0x7e0] sm:$0xff]
        %v7077 = vld [vmem:[%s6823 + $0x7e8] sm:$0xff]
        %v7078 = vld [vmem:[%s6823 + $0x7f0] sm:$0xff]
        %v7079 = vld [vmem:[%s6823 + $0x7f8] sm:$0xff]
        %v7080 = vld [vmem:[%s6823 + $0x800] sm:$0xff]
        %v7081 = vld [vmem:[%s6823 + $0x808] sm:$0xff]
        %v7082 = vld [vmem:[%s6823 + $0x810] sm:$0xff]
        %v7083 = vld [vmem:[%s6823 + $0x818] sm:$0xff]
        %v7084 = vld [vmem:[%s6823 + $0x820] sm:$0xff]
        %v7085 = vld [vmem:[%s6823 + $0x828] sm:$0xff]
        %v7086 = vld [vmem:[%s6823 + $0x830] sm:$0xff]
        %v7087 = vld [vmem:[%s6823 + $0x838] sm:$0xff]
        %v7088 = vld [vmem:[%s6823 + $0x840] sm:$0xff]
        %v7089 = vld [vmem:[%s6823 + $0x848] sm:$0xff]
        %v7090 = vld [vmem:[%s6823 + $0x850] sm:$0xff]
        %v7091 = vld [vmem:[%s6823 + $0x858] sm:$0xff]
        %v7092 = vld [vmem:[%s6823 + $0x860] sm:$0xff]
        %v7093 = vld [vmem:[%s6823 + $0x868] sm:$0xff]
        %v7094 = vld [vmem:[%s6823 + $0x870] sm:$0xff]
        %v7095 = vld [vmem:[%s6823 + $0x878] sm:$0xff]
        %v7096 = vld [vmem:[%s6823 + $0x880] sm:$0xff]
        %v7097 = vld [vmem:[%s6823 + $0x888] sm:$0xff]
        %v7098 = vld [vmem:[%s6823 + $0x890] sm:$0xff]
        %v7099 = vld [vmem:[%s6823 + $0x898] sm:$0xff]
        %v7100 = vld [vmem:[%s6823 + $0x8a0] sm:$0xff]
        %v7101 = vld [vmem:[%s6823 + $0x8a8] sm:$0xff]
        %v7102 = vld [vmem:[%s6823 + $0x8b0] sm:$0xff]
        %v7103 = vld [vmem:[%s6823 + $0x8b8] sm:$0xff]
        %v7104 = vld [vmem:[%s6823 + $0x8c0] sm:$0xff]
        %v7105 = vld [vmem:[%s6823 + $0x8c8] sm:$0xff]
        %v7106 = vld [vmem:[%s6823 + $0x8d0] sm:$0xff]
        %v7107 = vld [vmem:[%s6823 + $0x8d8] sm:$0xff]
        %v7108 = vld [vmem:[%s6823 + $0x8e0] sm:$0xff]
        %v7109 = vld [vmem:[%s6823 + $0x8e8] sm:$0xff]
        %v7110 = vld [vmem:[%s6823 + $0x8f0] sm:$0xff]
        %v7111 = vld [vmem:[%s6823 + $0x8f8] sm:$0xff]
        %vm7122 = vcmask 1046528
        %v7123 = vrot.slane %v6813, 1
        %v7124 = vrot.slane %v6818, 1
        %v7125 = vsel %vm7122, %v7123, %v7124
        %v7126 = vrot.slane %v6814, 1
        %v7127 = vrot.slane %v6819, 1
        %v7128 = vsel %vm7122, %v7126, %v7127
        %v7129 = vrot.slane %v6815, 1
        %v7130 = vrot.slane %v6820, 1
        %v7131 = vsel %vm7122, %v7129, %v7130
        %v7132 = vrot.slane %v6816, 1
        %v7133 = vrot.slane %v6821, 1
        %v7134 = vsel %vm7122, %v7132, %v7133
        %v7135 = vrot.slane %v6817, 1
        %v7136 = vrot.slane %v6822, 1
        %v7137 = vsel %vm7122, %v7135, %v7136
        %v7430 = vunpack.c.l.b16 %v6824
        %v7431 = vunpack.c.h.b16 %v6824
        %v7432 = vunpack.c.l.b16 %v6825
        %v7433 = vunpack.c.h.b16 %v6825
        %v7434 = vunpack.c.l.b16 %v6826
        %v7435 = vunpack.c.h.b16 %v6826
        %v7436 = vunpack.c.l.b16 %v6827
        %v7437 = vunpack.c.h.b16 %v6827
        %v7438 = vunpack.c.l.b16 %v6828
        %v7439 = vunpack.c.h.b16 %v6828
        %v7440 = vunpack.c.l.b16 %v6829
        %v7441 = vunpack.c.h.b16 %v6829
        %v7442 = vunpack.c.l.b16 %v6830
        %v7443 = vunpack.c.h.b16 %v6830
        %v7444 = vunpack.c.l.b16 %v6831
        %v7445 = vunpack.c.h.b16 %v6831
        %v7446 = vunpack.c.l.b16 %v6832
        %v7447 = vunpack.c.h.b16 %v6832
        %v7448 = vunpack.c.l.b16 %v6833
        %v7449 = vunpack.c.h.b16 %v6833
        %v7450 = vunpack.c.l.b16 %v6834
        %v7451 = vunpack.c.h.b16 %v6834
        %v7452 = vunpack.c.l.b16 %v6835
        %v7453 = vunpack.c.h.b16 %v6835
        %v7454 = vunpack.c.l.b16 %v6836
        %v7455 = vunpack.c.h.b16 %v6836
        %v7456 = vunpack.c.l.b16 %v6837
        %v7457 = vunpack.c.h.b16 %v6837
        %v7458 = vunpack.c.l.b16 %v6838
        %v7459 = vunpack.c.h.b16 %v6838
        %v7460 = vunpack.c.l.b16 %v6839
        %v7461 = vunpack.c.h.b16 %v6839
        %v7462 = vunpack.c.l.b16 %v6840
        %v7463 = vunpack.c.h.b16 %v6840
        %v7464 = vunpack.c.l.b16 %v6841
        %v7465 = vunpack.c.h.b16 %v6841
        %v7466 = vunpack.c.l.b16 %v6842
        %v7467 = vunpack.c.h.b16 %v6842
        %v7468 = vunpack.c.l.b16 %v6843
        %v7469 = vunpack.c.h.b16 %v6843
        %v7470 = vunpack.c.l.b16 %v6844
        %v7471 = vunpack.c.h.b16 %v6844
        %v7472 = vunpack.c.l.b16 %v6845
        %v7473 = vunpack.c.h.b16 %v6845
        %v7474 = vunpack.c.l.b16 %v6846
        %v7475 = vunpack.c.h.b16 %v6846
        %v7476 = vunpack.c.l.b16 %v6847
        %v7477 = vunpack.c.h.b16 %v6847
        %v7478 = vunpack.c.l.b16 %v6848
        %v7479 = vunpack.c.h.b16 %v6848
        %v7480 = vunpack.c.l.b16 %v6849
        %v7481 = vunpack.c.h.b16 %v6849
        %v7482 = vunpack.c.l.b16 %v6850
        %v7483 = vunpack.c.h.b16 %v6850
        %v7484 = vunpack.c.l.b16 %v6851
        %v7485 = vunpack.c.h.b16 %v6851
        %v7486 = vunpack.c.l.b16 %v6852
        %v7487 = vunpack.c.h.b16 %v6852
        %v7488 = vunpack.c.l.b16 %v6853
        %v7489 = vunpack.c.h.b16 %v6853
        %v7490 = vunpack.c.l.b16 %v6854
        %v7491 = vunpack.c.h.b16 %v6854
        %v7492 = vunpack.c.l.b16 %v6855
        %v7493 = vunpack.c.h.b16 %v6855
        %v7494 = vunpack.c.l.b16 %v6856
        %v7495 = vunpack.c.h.b16 %v6856
        %v7496 = vunpack.c.l.b16 %v6857
        %v7497 = vunpack.c.h.b16 %v6857
        %v7498 = vunpack.c.l.b16 %v6858
        %v7499 = vunpack.c.h.b16 %v6858
        %v7500 = vunpack.c.l.b16 %v6859
        %v7501 = vunpack.c.h.b16 %v6859
        %v7502 = vunpack.c.l.b16 %v6860
        %v7503 = vunpack.c.h.b16 %v6860
        %v7504 = vunpack.c.l.b16 %v6861
        %v7505 = vunpack.c.h.b16 %v6861
        %v7506 = vunpack.c.l.b16 %v6862
        %v7507 = vunpack.c.h.b16 %v6862
        %v7508 = vunpack.c.l.b16 %v6863
        %v7509 = vunpack.c.h.b16 %v6863
        %v7510 = vunpack.c.l.b16 %v6864
        %v7511 = vunpack.c.h.b16 %v6864
        %v7512 = vunpack.c.l.b16 %v6865
        %v7513 = vunpack.c.h.b16 %v6865
        %v7514 = vunpack.c.l.b16 %v6866
        %v7515 = vunpack.c.h.b16 %v6866
        %v7516 = vunpack.c.l.b16 %v6867
        %v7517 = vunpack.c.h.b16 %v6867
        %v7518 = vunpack.c.l.b16 %v6868
        %v7519 = vunpack.c.h.b16 %v6868
        %v7520 = vunpack.c.l.b16 %v6869
        %v7521 = vunpack.c.h.b16 %v6869
        %v7522 = vunpack.c.l.b16 %v6870
        %v7523 = vunpack.c.h.b16 %v6870
        %v7524 = vunpack.c.l.b16 %v6871
        %v7525 = vunpack.c.h.b16 %v6871
        %v7526 = vunpack.c.l.b16 %v6872
        %v7527 = vunpack.c.h.b16 %v6872
        %v7528 = vunpack.c.l.b16 %v6873
        %v7529 = vunpack.c.h.b16 %v6873
        %v7530 = vunpack.c.l.b16 %v6874
        %v7531 = vunpack.c.h.b16 %v6874
        %v7532 = vunpack.c.l.b16 %v6875
        %v7533 = vunpack.c.h.b16 %v6875
        %v7534 = vunpack.c.l.b16 %v6876
        %v7535 = vunpack.c.h.b16 %v6876
        %v7536 = vunpack.c.l.b16 %v6877
        %v7537 = vunpack.c.h.b16 %v6877
        %v7538 = vunpack.c.l.b16 %v6878
        %v7539 = vunpack.c.h.b16 %v6878
        %v7540 = vunpack.c.l.b16 %v6879
        %v7541 = vunpack.c.h.b16 %v6879
        %v7542 = vunpack.c.l.b16 %v6880
        %v7543 = vunpack.c.h.b16 %v6880
        %v7544 = vunpack.c.l.b16 %v6881
        %v7545 = vunpack.c.h.b16 %v6881
        %v7546 = vunpack.c.l.b16 %v6882
        %v7547 = vunpack.c.h.b16 %v6882
        %v7548 = vunpack.c.l.b16 %v6883
        %v7549 = vunpack.c.h.b16 %v6883
        %v7550 = vunpack.c.l.b16 %v6884
        %v7551 = vunpack.c.h.b16 %v6884
        %v7552 = vunpack.c.l.b16 %v6885
        %v7553 = vunpack.c.h.b16 %v6885
        %v7554 = vunpack.c.l.b16 %v6886
        %v7555 = vunpack.c.h.b16 %v6886
        %v7556 = vunpack.c.l.b16 %v6887
        %v7557 = vunpack.c.h.b16 %v6887
        %v7558 = vunpack.c.l.b16 %v6888
        %v7559 = vunpack.c.h.b16 %v6888
        %v7560 = vunpack.c.l.b16 %v6889
        %v7561 = vunpack.c.h.b16 %v6889
        %v7562 = vunpack.c.l.b16 %v6890
        %v7563 = vunpack.c.h.b16 %v6890
        %v7564 = vunpack.c.l.b16 %v6891
        %v7565 = vunpack.c.h.b16 %v6891
        %v7566 = vunpack.c.l.b16 %v6892
        %v7567 = vunpack.c.h.b16 %v6892
        %v7568 = vunpack.c.l.b16 %v6893
        %v7569 = vunpack.c.h.b16 %v6893
        %v7570 = vunpack.c.l.b16 %v6894
        %v7571 = vunpack.c.h.b16 %v6894
        %v7572 = vunpack.c.l.b16 %v6895
        %v7573 = vunpack.c.h.b16 %v6895
        %v7574 = vunpack.c.l.b16 %v6896
        %v7575 = vunpack.c.h.b16 %v6896
        %v7576 = vunpack.c.l.b16 %v6897
        %v7577 = vunpack.c.h.b16 %v6897
        %v7578 = vunpack.c.l.b16 %v6898
        %v7579 = vunpack.c.h.b16 %v6898
        %v7580 = vunpack.c.l.b16 %v6899
        %v7581 = vunpack.c.h.b16 %v6899
        %v7582 = vunpack.c.l.b16 %v6900
        %v7583 = vunpack.c.h.b16 %v6900
        %v7584 = vunpack.c.l.b16 %v6901
        %v7585 = vunpack.c.h.b16 %v6901
        %v7586 = vunpack.c.l.b16 %v6902
        %v7587 = vunpack.c.h.b16 %v6902
        %v7588 = vunpack.c.l.b16 %v6903
        %v7589 = vunpack.c.h.b16 %v6903
        %v7590 = vunpack.c.l.b16 %v6904
        %v7591 = vunpack.c.h.b16 %v6904
        %v7592 = vunpack.c.l.b16 %v6905
        %v7593 = vunpack.c.h.b16 %v6905
        %v7594 = vunpack.c.l.b16 %v6906
        %v7595 = vunpack.c.h.b16 %v6906
        %v7596 = vunpack.c.l.b16 %v6907
        %v7597 = vunpack.c.h.b16 %v6907
        %v7598 = vunpack.c.l.b16 %v6908
        %v7599 = vunpack.c.h.b16 %v6908
        %v7600 = vunpack.c.l.b16 %v6909
        %v7601 = vunpack.c.h.b16 %v6909
        %v7602 = vunpack.c.l.b16 %v6910
        %v7603 = vunpack.c.h.b16 %v6910
        %v7604 = vunpack.c.l.b16 %v6911
        %v7605 = vunpack.c.h.b16 %v6911
        %v7606 = vunpack.c.l.b16 %v6912
        %v7607 = vunpack.c.h.b16 %v6912
        %v7608 = vunpack.c.l.b16 %v6913
        %v7609 = vunpack.c.h.b16 %v6913
        %v7610 = vunpack.c.l.b16 %v6914
        %v7611 = vunpack.c.h.b16 %v6914
        %v7612 = vunpack.c.l.b16 %v6915
        %v7613 = vunpack.c.h.b16 %v6915
        %v7614 = vunpack.c.l.b16 %v6916
        %v7615 = vunpack.c.h.b16 %v6916
        %v7616 = vunpack.c.l.b16 %v6917
        %v7617 = vunpack.c.h.b16 %v6917
        %v7618 = vunpack.c.l.b16 %v6918
        %v7619 = vunpack.c.h.b16 %v6918
        %v7620 = vunpack.c.l.b16 %v6919
        %v7621 = vunpack.c.h.b16 %v6919
        %v7622 = vunpack.c.l.b16 %v6920
        %v7623 = vunpack.c.h.b16 %v6920
        %v7624 = vunpack.c.l.b16 %v6921
        %v7625 = vunpack.c.h.b16 %v6921
        %v7626 = vunpack.c.l.b16 %v6922
        %v7627 = vunpack.c.h.b16 %v6922
        %v7628 = vunpack.c.l.b16 %v6923
        %v7629 = vunpack.c.h.b16 %v6923
        %v7630 = vunpack.c.l.b16 %v6924
        %v7631 = vunpack.c.h.b16 %v6924
        %v7632 = vunpack.c.l.b16 %v6925
        %v7633 = vunpack.c.h.b16 %v6925
        %v7634 = vunpack.c.l.b16 %v6926
        %v7635 = vunpack.c.h.b16 %v6926
        %v7636 = vunpack.c.l.b16 %v6927
        %v7637 = vunpack.c.h.b16 %v6927
        %v7638 = vunpack.c.l.b16 %v6928
        %v7639 = vunpack.c.h.b16 %v6928
        %v7640 = vunpack.c.l.b16 %v6929
        %v7641 = vunpack.c.h.b16 %v6929
        %v7642 = vunpack.c.l.b16 %v6930
        %v7643 = vunpack.c.h.b16 %v6930
        %v7644 = vunpack.c.l.b16 %v6931
        %v7645 = vunpack.c.h.b16 %v6931
        %v7646 = vunpack.c.l.b16 %v6932
        %v7647 = vunpack.c.h.b16 %v6932
        %v7648 = vunpack.c.l.b16 %v6933
        %v7649 = vunpack.c.h.b16 %v6933
        %v7650 = vunpack.c.l.b16 %v6934
        %v7651 = vunpack.c.h.b16 %v6934
        %v7652 = vunpack.c.l.b16 %v6935
        %v7653 = vunpack.c.h.b16 %v6935
        %v7654 = vunpack.c.l.b16 %v6936
        %v7655 = vunpack.c.h.b16 %v6936
        %v7656 = vunpack.c.l.b16 %v6937
        %v7657 = vunpack.c.h.b16 %v6937
        %v7658 = vunpack.c.l.b16 %v6938
        %v7659 = vunpack.c.h.b16 %v6938
        %v7660 = vunpack.c.l.b16 %v6939
        %v7661 = vunpack.c.h.b16 %v6939
        %v7662 = vunpack.c.l.b16 %v6940
        %v7663 = vunpack.c.h.b16 %v6940
        %v7664 = vunpack.c.l.b16 %v6941
        %v7665 = vunpack.c.h.b16 %v6941
        %v7666 = vunpack.c.l.b16 %v6942
        %v7667 = vunpack.c.h.b16 %v6942
        %v7668 = vunpack.c.l.b16 %v6943
        %v7669 = vunpack.c.h.b16 %v6943
        %v7670 = vunpack.c.l.b16 %v6944
        %v7671 = vunpack.c.h.b16 %v6944
        %v7672 = vunpack.c.l.b16 %v6945
        %v7673 = vunpack.c.h.b16 %v6945
        %v7674 = vunpack.c.l.b16 %v6946
        %v7675 = vunpack.c.h.b16 %v6946
        %v7676 = vunpack.c.l.b16 %v6947
        %v7677 = vunpack.c.h.b16 %v6947
        %v7678 = vunpack.c.l.b16 %v6948
        %v7679 = vunpack.c.h.b16 %v6948
        %v7680 = vunpack.c.l.b16 %v6949
        %v7681 = vunpack.c.h.b16 %v6949
        %v7682 = vunpack.c.l.b16 %v6950
        %v7683 = vunpack.c.h.b16 %v6950
        %v7684 = vunpack.c.l.b16 %v6951
        %v7685 = vunpack.c.h.b16 %v6951
        %v7686 = vunpack.c.l.b16 %v6952
        %v7687 = vunpack.c.h.b16 %v6952
        %v7688 = vunpack.c.l.b16 %v6953
        %v7689 = vunpack.c.h.b16 %v6953
        %v7690 = vunpack.c.l.b16 %v6954
        %v7691 = vunpack.c.h.b16 %v6954
        %v7692 = vunpack.c.l.b16 %v6955
        %v7693 = vunpack.c.h.b16 %v6955
        %v7694 = vunpack.c.l.b16 %v6956
        %v7695 = vunpack.c.h.b16 %v6956
        %v7696 = vunpack.c.l.b16 %v6957
        %v7697 = vunpack.c.h.b16 %v6957
        %v7698 = vunpack.c.l.b16 %v6958
        %v7699 = vunpack.c.h.b16 %v6958
        %v7700 = vunpack.c.l.b16 %v6959
        %v7701 = vunpack.c.h.b16 %v6959
        %v7702 = vunpack.c.l.b16 %v6960
        %v7703 = vunpack.c.h.b16 %v6960
        %v7704 = vunpack.c.l.b16 %v6961
        %v7705 = vunpack.c.h.b16 %v6961
        %v7706 = vunpack.c.l.b16 %v6962
        %v7707 = vunpack.c.h.b16 %v6962
        %v7708 = vunpack.c.l.b16 %v6963
        %v7709 = vunpack.c.h.b16 %v6963
        %v7710 = vunpack.c.l.b16 %v6964
        %v7711 = vunpack.c.h.b16 %v6964
        %v7712 = vunpack.c.l.b16 %v6965
        %v7713 = vunpack.c.h.b16 %v6965
        %v7714 = vunpack.c.l.b16 %v6966
        %v7715 = vunpack.c.h.b16 %v6966
        %v7716 = vunpack.c.l.b16 %v6967
        %v7717 = vunpack.c.h.b16 %v6967
        %v7718 = vunpack.c.l.b16 %v6968
        %v7719 = vunpack.c.h.b16 %v6968
        %v7720 = vunpack.c.l.b16 %v6969
        %v7721 = vunpack.c.h.b16 %v6969
        %v7722 = vunpack.c.l.b16 %v6970
        %v7723 = vunpack.c.h.b16 %v6970
        %v7724 = vunpack.c.l.b16 %v6971
        %v7725 = vunpack.c.h.b16 %v6971
        %v7726 = vunpack.c.l.b16 %v6972
        %v7727 = vunpack.c.h.b16 %v6972
        %v7728 = vunpack.c.l.b16 %v6973
        %v7729 = vunpack.c.h.b16 %v6973
        %v7730 = vunpack.c.l.b16 %v6974
        %v7731 = vunpack.c.h.b16 %v6974
        %v7732 = vunpack.c.l.b16 %v6975
        %v7733 = vunpack.c.h.b16 %v6975
        %v7734 = vunpack.c.l.b16 %v6976
        %v7735 = vunpack.c.h.b16 %v6976
        %v7736 = vunpack.c.l.b16 %v6977
        %v7737 = vunpack.c.h.b16 %v6977
        %v7738 = vunpack.c.l.b16 %v6978
        %v7739 = vunpack.c.h.b16 %v6978
        %v7740 = vunpack.c.l.b16 %v6979
        %v7741 = vunpack.c.h.b16 %v6979
        %v7742 = vunpack.c.l.b16 %v6980
        %v7743 = vunpack.c.h.b16 %v6980
        %v7744 = vunpack.c.l.b16 %v6981
        %v7745 = vunpack.c.h.b16 %v6981
        %v7746 = vunpack.c.l.b16 %v6982
        %v7747 = vunpack.c.h.b16 %v6982
        %v7748 = vunpack.c.l.b16 %v6983
        %v7749 = vunpack.c.h.b16 %v6983
        %v7750 = vunpack.c.l.b16 %v6984
        %v7751 = vunpack.c.h.b16 %v6984
        %v7752 = vunpack.c.l.b16 %v6985
        %v7753 = vunpack.c.h.b16 %v6985
        %v7754 = vunpack.c.l.b16 %v6986
        %v7755 = vunpack.c.h.b16 %v6986
        %v7756 = vunpack.c.l.b16 %v6987
        %v7757 = vunpack.c.h.b16 %v6987
        %v7758 = vunpack.c.l.b16 %v6988
        %v7759 = vunpack.c.h.b16 %v6988
        %v7760 = vunpack.c.l.b16 %v6989
        %v7761 = vunpack.c.h.b16 %v6989
        %v7762 = vunpack.c.l.b16 %v6990
        %v7763 = vunpack.c.h.b16 %v6990
        %v7764 = vunpack.c.l.b16 %v6991
        %v7765 = vunpack.c.h.b16 %v6991
        %v7766 = vunpack.c.l.b16 %v6992
        %v7767 = vunpack.c.h.b16 %v6992
        %v7768 = vunpack.c.l.b16 %v6993
        %v7769 = vunpack.c.h.b16 %v6993
        %v7770 = vunpack.c.l.b16 %v6994
        %v7771 = vunpack.c.h.b16 %v6994
        %v7772 = vunpack.c.l.b16 %v6995
        %v7773 = vunpack.c.h.b16 %v6995
        %v7774 = vunpack.c.l.b16 %v6996
        %v7775 = vunpack.c.h.b16 %v6996
        %v7776 = vunpack.c.l.b16 %v6997
        %v7777 = vunpack.c.h.b16 %v6997
        %v7778 = vunpack.c.l.b16 %v6998
        %v7779 = vunpack.c.h.b16 %v6998
        %v7780 = vunpack.c.l.b16 %v6999
        %v7781 = vunpack.c.h.b16 %v6999
        %v7782 = vunpack.c.l.b16 %v7000
        %v7783 = vunpack.c.h.b16 %v7000
        %v7784 = vunpack.c.l.b16 %v7001
        %v7785 = vunpack.c.h.b16 %v7001
        %v7786 = vunpack.c.l.b16 %v7002
        %v7787 = vunpack.c.h.b16 %v7002
        %v7788 = vunpack.c.l.b16 %v7003
        %v7789 = vunpack.c.h.b16 %v7003
        %v7790 = vunpack.c.l.b16 %v7004
        %v7791 = vunpack.c.h.b16 %v7004
        %v7792 = vunpack.c.l.b16 %v7005
        %v7793 = vunpack.c.h.b16 %v7005
        %v7794 = vunpack.c.l.b16 %v7006
        %v7795 = vunpack.c.h.b16 %v7006
        %v7796 = vunpack.c.l.b16 %v7007
        %v7797 = vunpack.c.h.b16 %v7007
        %v7798 = vunpack.c.l.b16 %v7008
        %v7799 = vunpack.c.h.b16 %v7008
        %v7800 = vunpack.c.l.b16 %v7009
        %v7801 = vunpack.c.h.b16 %v7009
        %v7802 = vunpack.c.l.b16 %v7010
        %v7803 = vunpack.c.h.b16 %v7010
        %v7804 = vunpack.c.l.b16 %v7011
        %v7805 = vunpack.c.h.b16 %v7011
        %v7806 = vunpack.c.l.b16 %v7012
        %v7807 = vunpack.c.h.b16 %v7012
        %v7808 = vunpack.c.l.b16 %v7013
        %v7809 = vunpack.c.h.b16 %v7013
        %v7810 = vunpack.c.l.b16 %v7014
        %v7811 = vunpack.c.h.b16 %v7014
        %v7812 = vunpack.c.l.b16 %v7015
        %v7813 = vunpack.c.h.b16 %v7015
        %v7814 = vunpack.c.l.b16 %v7016
        %v7815 = vunpack.c.h.b16 %v7016
        %v7816 = vunpack.c.l.b16 %v7017
        %v7817 = vunpack.c.h.b16 %v7017
        %v7818 = vunpack.c.l.b16 %v7018
        %v7819 = vunpack.c.h.b16 %v7018
        %v7820 = vunpack.c.l.b16 %v7019
        %v7821 = vunpack.c.h.b16 %v7019
        %v7822 = vunpack.c.l.b16 %v7020
        %v7823 = vunpack.c.h.b16 %v7020
        %v7824 = vunpack.c.l.b16 %v7021
        %v7825 = vunpack.c.h.b16 %v7021
        %v7826 = vunpack.c.l.b16 %v7022
        %v7827 = vunpack.c.h.b16 %v7022
        %v7828 = vunpack.c.l.b16 %v7023
        %v7829 = vunpack.c.h.b16 %v7023
        %v7830 = vunpack.c.l.b16 %v7024
        %v7831 = vunpack.c.h.b16 %v7024
        %v7832 = vunpack.c.l.b16 %v7025
        %v7833 = vunpack.c.h.b16 %v7025
        %v7834 = vunpack.c.l.b16 %v7026
        %v7835 = vunpack.c.h.b16 %v7026
        %v7836 = vunpack.c.l.b16 %v7027
        %v7837 = vunpack.c.h.b16 %v7027
        %v7838 = vunpack.c.l.b16 %v7028
        %v7839 = vunpack.c.h.b16 %v7028
        %v7840 = vunpack.c.l.b16 %v7029
        %v7841 = vunpack.c.h.b16 %v7029
        %v7842 = vunpack.c.l.b16 %v7030
        %v7843 = vunpack.c.h.b16 %v7030
        %v7844 = vunpack.c.l.b16 %v7031
        %v7845 = vunpack.c.h.b16 %v7031
        %v7846 = vunpack.c.l.b16 %v7032
        %v7847 = vunpack.c.h.b16 %v7032
        %v7848 = vunpack.c.l.b16 %v7033
        %v7849 = vunpack.c.h.b16 %v7033
        %v7850 = vunpack.c.l.b16 %v7034
        %v7851 = vunpack.c.h.b16 %v7034
        %v7852 = vunpack.c.l.b16 %v7035
        %v7853 = vunpack.c.h.b16 %v7035
        %v7854 = vunpack.c.l.b16 %v7036
        %v7855 = vunpack.c.h.b16 %v7036
        %v7856 = vunpack.c.l.b16 %v7037
        %v7857 = vunpack.c.h.b16 %v7037
        %v7858 = vunpack.c.l.b16 %v7038
        %v7859 = vunpack.c.h.b16 %v7038
        %v7860 = vunpack.c.l.b16 %v7039
        %v7861 = vunpack.c.h.b16 %v7039
        %v7862 = vunpack.c.l.b16 %v7040
        %v7863 = vunpack.c.h.b16 %v7040
        %v7864 = vunpack.c.l.b16 %v7041
        %v7865 = vunpack.c.h.b16 %v7041
        %v7866 = vunpack.c.l.b16 %v7042
        %v7867 = vunpack.c.h.b16 %v7042
        %v7868 = vunpack.c.l.b16 %v7043
        %v7869 = vunpack.c.h.b16 %v7043
        %v7870 = vunpack.c.l.b16 %v7044
        %v7871 = vunpack.c.h.b16 %v7044
        %v7872 = vunpack.c.l.b16 %v7045
        %v7873 = vunpack.c.h.b16 %v7045
        %v7874 = vunpack.c.l.b16 %v7046
        %v7875 = vunpack.c.h.b16 %v7046
        %v7876 = vunpack.c.l.b16 %v7047
        %v7877 = vunpack.c.h.b16 %v7047
        %v7878 = vunpack.c.l.b16 %v7048
        %v7879 = vunpack.c.h.b16 %v7048
        %v7880 = vunpack.c.l.b16 %v7049
        %v7881 = vunpack.c.h.b16 %v7049
        %v7882 = vunpack.c.l.b16 %v7050
        %v7883 = vunpack.c.h.b16 %v7050
        %v7884 = vunpack.c.l.b16 %v7051
        %v7885 = vunpack.c.h.b16 %v7051
        %v7886 = vunpack.c.l.b16 %v7052
        %v7887 = vunpack.c.h.b16 %v7052
        %v7888 = vunpack.c.l.b16 %v7053
        %v7889 = vunpack.c.h.b16 %v7053
        %v7890 = vunpack.c.l.b16 %v7054
        %v7891 = vunpack.c.h.b16 %v7054
        %v7892 = vunpack.c.l.b16 %v7055
        %v7893 = vunpack.c.h.b16 %v7055
        %v7894 = vunpack.c.l.b16 %v7056
        %v7895 = vunpack.c.h.b16 %v7056
        %v7896 = vunpack.c.l.b16 %v7057
        %v7897 = vunpack.c.h.b16 %v7057
        %v7898 = vunpack.c.l.b16 %v7058
        %v7899 = vunpack.c.h.b16 %v7058
        %v7900 = vunpack.c.l.b16 %v7059
        %v7901 = vunpack.c.h.b16 %v7059
        %v7902 = vunpack.c.l.b16 %v7060
        %v7903 = vunpack.c.h.b16 %v7060
        %v7904 = vunpack.c.l.b16 %v7061
        %v7905 = vunpack.c.h.b16 %v7061
        %v7906 = vunpack.c.l.b16 %v7062
        %v7907 = vunpack.c.h.b16 %v7062
        %v7908 = vunpack.c.l.b16 %v7063
        %v7909 = vunpack.c.h.b16 %v7063
        %v7910 = vunpack.c.l.b16 %v7064
        %v7911 = vunpack.c.h.b16 %v7064
        %v7912 = vunpack.c.l.b16 %v7065
        %v7913 = vunpack.c.h.b16 %v7065
        %v7914 = vunpack.c.l.b16 %v7066
        %v7915 = vunpack.c.h.b16 %v7066
        %v7916 = vunpack.c.l.b16 %v7067
        %v7917 = vunpack.c.h.b16 %v7067
        %v7918 = vunpack.c.l.b16 %v7068
        %v7919 = vunpack.c.h.b16 %v7068
        %v7920 = vunpack.c.l.b16 %v7069
        %v7921 = vunpack.c.h.b16 %v7069
        %v7922 = vunpack.c.l.b16 %v7070
        %v7923 = vunpack.c.h.b16 %v7070
        %v7924 = vunpack.c.l.b16 %v7071
        %v7925 = vunpack.c.h.b16 %v7071
        %v7926 = vunpack.c.l.b16 %v7072
        %v7927 = vunpack.c.h.b16 %v7072
        %v7928 = vunpack.c.l.b16 %v7073
        %v7929 = vunpack.c.h.b16 %v7073
        %v7930 = vunpack.c.l.b16 %v7074
        %v7931 = vunpack.c.h.b16 %v7074
        %v7932 = vunpack.c.l.b16 %v7075
        %v7933 = vunpack.c.h.b16 %v7075
        %v7934 = vunpack.c.l.b16 %v7076
        %v7935 = vunpack.c.h.b16 %v7076
        %v7936 = vunpack.c.l.b16 %v7077
        %v7937 = vunpack.c.h.b16 %v7077
        %v7938 = vunpack.c.l.b16 %v7078
        %v7939 = vunpack.c.h.b16 %v7078
        %v7940 = vunpack.c.l.b16 %v7079
        %v7941 = vunpack.c.h.b16 %v7079
        %v7942 = vunpack.c.l.b16 %v7080
        %v7943 = vunpack.c.h.b16 %v7080
        %v7944 = vunpack.c.l.b16 %v7081
        %v7945 = vunpack.c.h.b16 %v7081
        %v7946 = vunpack.c.l.b16 %v7082
        %v7947 = vunpack.c.h.b16 %v7082
        %v7948 = vunpack.c.l.b16 %v7083
        %v7949 = vunpack.c.h.b16 %v7083
        %v7950 = vunpack.c.l.b16 %v7084
        %v7951 = vunpack.c.h.b16 %v7084
        %v7952 = vunpack.c.l.b16 %v7085
        %v7953 = vunpack.c.h.b16 %v7085
        %v7954 = vunpack.c.l.b16 %v7086
        %v7955 = vunpack.c.h.b16 %v7086
        %v7956 = vunpack.c.l.b16 %v7087
        %v7957 = vunpack.c.h.b16 %v7087
        %v7958 = vunpack.c.l.b16 %v7088
        %v7959 = vunpack.c.h.b16 %v7088
        %v7960 = vunpack.c.l.b16 %v7089
        %v7961 = vunpack.c.h.b16 %v7089
        %v7962 = vunpack.c.l.b16 %v7090
        %v7963 = vunpack.c.h.b16 %v7090
        %v7964 = vunpack.c.l.b16 %v7091
        %v7965 = vunpack.c.h.b16 %v7091
        %v7966 = vunpack.c.l.b16 %v7092
        %v7967 = vunpack.c.h.b16 %v7092
        %v7968 = vunpack.c.l.b16 %v7093
        %v7969 = vunpack.c.h.b16 %v7093
        %v7970 = vunpack.c.l.b16 %v7094
        %v7971 = vunpack.c.h.b16 %v7094
        %v7972 = vunpack.c.l.b16 %v7095
        %v7973 = vunpack.c.h.b16 %v7095
        %v7974 = vunpack.c.l.b16 %v7096
        %v7975 = vunpack.c.h.b16 %v7096
        %v7976 = vunpack.c.l.b16 %v7097
        %v7977 = vunpack.c.h.b16 %v7097
        %v7978 = vunpack.c.l.b16 %v7098
        %v7979 = vunpack.c.h.b16 %v7098
        %v7980 = vunpack.c.l.b16 %v7099
        %v7981 = vunpack.c.h.b16 %v7099
        %v7982 = vunpack.c.l.b16 %v7100
        %v7983 = vunpack.c.h.b16 %v7100
        %v7984 = vunpack.c.l.b16 %v7101
        %v7985 = vunpack.c.h.b16 %v7101
        %v7986 = vunpack.c.l.b16 %v7102
        %v7987 = vunpack.c.h.b16 %v7102
        %v7988 = vunpack.c.l.b16 %v7103
        %v7989 = vunpack.c.h.b16 %v7103
        %v7990 = vunpack.c.l.b16 %v7104
        %v7991 = vunpack.c.h.b16 %v7104
        %v7992 = vunpack.c.l.b16 %v7105
        %v7993 = vunpack.c.h.b16 %v7105
        %v7994 = vunpack.c.l.b16 %v7106
        %v7995 = vunpack.c.h.b16 %v7106
        %v7996 = vunpack.c.l.b16 %v7107
        %v7997 = vunpack.c.h.b16 %v7107
        %v7998 = vunpack.c.l.b16 %v7108
        %v7999 = vunpack.c.h.b16 %v7108
        %v8000 = vunpack.c.l.b16 %v7109
        %v8001 = vunpack.c.h.b16 %v7109
        %v8002 = vunpack.c.l.b16 %v7110
        %v8003 = vunpack.c.h.b16 %v7110
        %v8004 = vunpack.c.l.b16 %v7111
        %v8005 = vunpack.c.h.b16 %v7111
        %v8006 = vpack.c.b16 %v7438, %v7430
        %v8007 = vpack.c.b16 %v7439, %v7431
        %v8008 = vpack.c.b16 %v7440, %v7432
        %v8009 = vpack.c.b16 %v7441, %v7433
        %v8010 = vpack.c.b16 %v7442, %v7434
        %v8011 = vpack.c.b16 %v7443, %v7435
        %v8012 = vpack.c.b16 %v7444, %v7436
        %v8013 = vpack.c.b16 %v7445, %v7437
        %v8014 = vpack.c.b16 %v7454, %v7446
        %v8015 = vpack.c.b16 %v7455, %v7447
        %v8016 = vpack.c.b16 %v7456, %v7448
        %v8017 = vpack.c.b16 %v7457, %v7449
        %v8018 = vpack.c.b16 %v7458, %v7450
        %v8019 = vpack.c.b16 %v7459, %v7451
        %v8020 = vpack.c.b16 %v7460, %v7452
        %v8021 = vpack.c.b16 %v7461, %v7453
        %v8022 = vpack.c.b16 %v7470, %v7462
        %v8023 = vpack.c.b16 %v7471, %v7463
        %v8024 = vpack.c.b16 %v7472, %v7464
        %v8025 = vpack.c.b16 %v7473, %v7465
        %v8026 = vpack.c.b16 %v7474, %v7466
        %v8027 = vpack.c.b16 %v7475, %v7467
        %v8028 = vpack.c.b16 %v7476, %v7468
        %v8029 = vpack.c.b16 %v7477, %v7469
        %v8030 = vpack.c.b16 %v7486, %v7478
        %v8031 = vpack.c.b16 %v7487, %v7479
        %v8032 = vpack.c.b16 %v7488, %v7480
        %v8033 = vpack.c.b16 %v7489, %v7481
        %v8034 = vpack.c.b16 %v7490, %v7482
        %v8035 = vpack.c.b16 %v7491, %v7483
        %v8036 = vpack.c.b16 %v7492, %v7484
        %v8037 = vpack.c.b16 %v7493, %v7485
        %v8038 = vpack.c.b16 %v7502, %v7494
        %v8039 = vpack.c.b16 %v7503, %v7495
        %v8040 = vpack.c.b16 %v7504, %v7496
        %v8041 = vpack.c.b16 %v7505, %v7497
        %v8042 = vpack.c.b16 %v7506, %v7498
        %v8043 = vpack.c.b16 %v7507, %v7499
        %v8044 = vpack.c.b16 %v7508, %v7500
        %v8045 = vpack.c.b16 %v7509, %v7501
        %v8046 = vpack.c.b16 %v7518, %v7510
        %v8047 = vpack.c.b16 %v7519, %v7511
        %v8048 = vpack.c.b16 %v7520, %v7512
        %v8049 = vpack.c.b16 %v7521, %v7513
        %v8050 = vpack.c.b16 %v7522, %v7514
        %v8051 = vpack.c.b16 %v7523, %v7515
        %v8052 = vpack.c.b16 %v7524, %v7516
        %v8053 = vpack.c.b16 %v7525, %v7517
        %v8054 = vpack.c.b16 %v7534, %v7526
        %v8055 = vpack.c.b16 %v7535, %v7527
        %v8056 = vpack.c.b16 %v7536, %v7528
        %v8057 = vpack.c.b16 %v7537, %v7529
        %v8058 = vpack.c.b16 %v7538, %v7530
        %v8059 = vpack.c.b16 %v7539, %v7531
        %v8060 = vpack.c.b16 %v7540, %v7532
        %v8061 = vpack.c.b16 %v7541, %v7533
        %v8062 = vpack.c.b16 %v7550, %v7542
        %v8063 = vpack.c.b16 %v7551, %v7543
        %v8064 = vpack.c.b16 %v7552, %v7544
        %v8065 = vpack.c.b16 %v7553, %v7545
        %v8066 = vpack.c.b16 %v7554, %v7546
        %v8067 = vpack.c.b16 %v7555, %v7547
        %v8068 = vpack.c.b16 %v7556, %v7548
        %v8069 = vpack.c.b16 %v7557, %v7549
        %v8070 = vpack.c.b16 %v7566, %v7558
        %v8071 = vpack.c.b16 %v7567, %v7559
        %v8072 = vpack.c.b16 %v7568, %v7560
        %v8073 = vpack.c.b16 %v7569, %v7561
        %v8074 = vpack.c.b16 %v7570, %v7562
        %v8075 = vpack.c.b16 %v7571, %v7563
        %v8076 = vpack.c.b16 %v7572, %v7564
        %v8077 = vpack.c.b16 %v7573, %v7565
        %v8078 = vpack.c.b16 %v7582, %v7574
        %v8079 = vpack.c.b16 %v7583, %v7575
        %v8080 = vpack.c.b16 %v7584, %v7576
        %v8081 = vpack.c.b16 %v7585, %v7577
        %v8082 = vpack.c.b16 %v7586, %v7578
        %v8083 = vpack.c.b16 %v7587, %v7579
        %v8084 = vpack.c.b16 %v7588, %v7580
        %v8085 = vpack.c.b16 %v7589, %v7581
        %v8086 = vpack.c.b16 %v7598, %v7590
        %v8087 = vpack.c.b16 %v7599, %v7591
        %v8088 = vpack.c.b16 %v7600, %v7592
        %v8089 = vpack.c.b16 %v7601, %v7593
        %v8090 = vpack.c.b16 %v7602, %v7594
        %v8091 = vpack.c.b16 %v7603, %v7595
        %v8092 = vpack.c.b16 %v7604, %v7596
        %v8093 = vpack.c.b16 %v7605, %v7597
        %v8094 = vpack.c.b16 %v7614, %v7606
        %v8095 = vpack.c.b16 %v7615, %v7607
        %v8096 = vpack.c.b16 %v7616, %v7608
        %v8097 = vpack.c.b16 %v7617, %v7609
        %v8098 = vpack.c.b16 %v7618, %v7610
        %v8099 = vpack.c.b16 %v7619, %v7611
        %v8100 = vpack.c.b16 %v7620, %v7612
        %v8101 = vpack.c.b16 %v7621, %v7613
        %v8102 = vpack.c.b16 %v7630, %v7622
        %v8103 = vpack.c.b16 %v7631, %v7623
        %v8104 = vpack.c.b16 %v7632, %v7624
        %v8105 = vpack.c.b16 %v7633, %v7625
        %v8106 = vpack.c.b16 %v7634, %v7626
        %v8107 = vpack.c.b16 %v7635, %v7627
        %v8108 = vpack.c.b16 %v7636, %v7628
        %v8109 = vpack.c.b16 %v7637, %v7629
        %v8110 = vpack.c.b16 %v7646, %v7638
        %v8111 = vpack.c.b16 %v7647, %v7639
        %v8112 = vpack.c.b16 %v7648, %v7640
        %v8113 = vpack.c.b16 %v7649, %v7641
        %v8114 = vpack.c.b16 %v7650, %v7642
        %v8115 = vpack.c.b16 %v7651, %v7643
        %v8116 = vpack.c.b16 %v7652, %v7644
        %v8117 = vpack.c.b16 %v7653, %v7645
        %v8118 = vpack.c.b16 %v7662, %v7654
        %v8119 = vpack.c.b16 %v7663, %v7655
        %v8120 = vpack.c.b16 %v7664, %v7656
        %v8121 = vpack.c.b16 %v7665, %v7657
        %v8122 = vpack.c.b16 %v7666, %v7658
        %v8123 = vpack.c.b16 %v7667, %v7659
        %v8124 = vpack.c.b16 %v7668, %v7660
        %v8125 = vpack.c.b16 %v7669, %v7661
        %v8126 = vpack.c.b16 %v7678, %v7670
        %v8127 = vpack.c.b16 %v7679, %v7671
        %v8128 = vpack.c.b16 %v7680, %v7672
        %v8129 = vpack.c.b16 %v7681, %v7673
        %v8130 = vpack.c.b16 %v7682, %v7674
        %v8131 = vpack.c.b16 %v7683, %v7675
        %v8132 = vpack.c.b16 %v7684, %v7676
        %v8133 = vpack.c.b16 %v7685, %v7677
        %v8134 = vpack.c.b16 %v7694, %v7686
        %v8135 = vpack.c.b16 %v7695, %v7687
        %v8136 = vpack.c.b16 %v7696, %v7688
        %v8137 = vpack.c.b16 %v7697, %v7689
        %v8138 = vpack.c.b16 %v7698, %v7690
        %v8139 = vpack.c.b16 %v7699, %v7691
        %v8140 = vpack.c.b16 %v7700, %v7692
        %v8141 = vpack.c.b16 %v7701, %v7693
        %v8142 = vpack.c.b16 %v7710, %v7702
        %v8143 = vpack.c.b16 %v7711, %v7703
        %v8144 = vpack.c.b16 %v7712, %v7704
        %v8145 = vpack.c.b16 %v7713, %v7705
        %v8146 = vpack.c.b16 %v7714, %v7706
        %v8147 = vpack.c.b16 %v7715, %v7707
        %v8148 = vpack.c.b16 %v7716, %v7708
        %v8149 = vpack.c.b16 %v7717, %v7709
        %v8150 = vpack.c.b16 %v7726, %v7718
        %v8151 = vpack.c.b16 %v7727, %v7719
        %v8152 = vpack.c.b16 %v7728, %v7720
        %v8153 = vpack.c.b16 %v7729, %v7721
        %v8154 = vpack.c.b16 %v7730, %v7722
        %v8155 = vpack.c.b16 %v7731, %v7723
        %v8156 = vpack.c.b16 %v7732, %v7724
        %v8157 = vpack.c.b16 %v7733, %v7725
        %v8158 = vpack.c.b16 %v7742, %v7734
        %v8159 = vpack.c.b16 %v7743, %v7735
        %v8160 = vpack.c.b16 %v7744, %v7736
        %v8161 = vpack.c.b16 %v7745, %v7737
        %v8162 = vpack.c.b16 %v7746, %v7738
        %v8163 = vpack.c.b16 %v7747, %v7739
        %v8164 = vpack.c.b16 %v7748, %v7740
        %v8165 = vpack.c.b16 %v7749, %v7741
        %v8166 = vpack.c.b16 %v7758, %v7750
        %v8167 = vpack.c.b16 %v7759, %v7751
        %v8168 = vpack.c.b16 %v7760, %v7752
        %v8169 = vpack.c.b16 %v7761, %v7753
        %v8170 = vpack.c.b16 %v7762, %v7754
        %v8171 = vpack.c.b16 %v7763, %v7755
        %v8172 = vpack.c.b16 %v7764, %v7756
        %v8173 = vpack.c.b16 %v7765, %v7757
        %v8174 = vpack.c.b16 %v7774, %v7766
        %v8175 = vpack.c.b16 %v7775, %v7767
        %v8176 = vpack.c.b16 %v7776, %v7768
        %v8177 = vpack.c.b16 %v7777, %v7769
        %v8178 = vpack.c.b16 %v7778, %v7770
        %v8179 = vpack.c.b16 %v7779, %v7771
        %v8180 = vpack.c.b16 %v7780, %v7772
        %v8181 = vpack.c.b16 %v7781, %v7773
        %v8182 = vpack.c.b16 %v7790, %v7782
        %v8183 = vpack.c.b16 %v7791, %v7783
        %v8184 = vpack.c.b16 %v7792, %v7784
        %v8185 = vpack.c.b16 %v7793, %v7785
        %v8186 = vpack.c.b16 %v7794, %v7786
        %v8187 = vpack.c.b16 %v7795, %v7787
        %v8188 = vpack.c.b16 %v7796, %v7788
        %v8189 = vpack.c.b16 %v7797, %v7789
        %v8190 = vpack.c.b16 %v7806, %v7798
        %v8191 = vpack.c.b16 %v7807, %v7799
        %v8192 = vpack.c.b16 %v7808, %v7800
        %v8193 = vpack.c.b16 %v7809, %v7801
        %v8194 = vpack.c.b16 %v7810, %v7802
        %v8195 = vpack.c.b16 %v7811, %v7803
        %v8196 = vpack.c.b16 %v7812, %v7804
        %v8197 = vpack.c.b16 %v7813, %v7805
        %v8198 = vpack.c.b16 %v7822, %v7814
        %v8199 = vpack.c.b16 %v7823, %v7815
        %v8200 = vpack.c.b16 %v7824, %v7816
        %v8201 = vpack.c.b16 %v7825, %v7817
        %v8202 = vpack.c.b16 %v7826, %v7818
        %v8203 = vpack.c.b16 %v7827, %v7819
        %v8204 = vpack.c.b16 %v7828, %v7820
        %v8205 = vpack.c.b16 %v7829, %v7821
        %v8206 = vpack.c.b16 %v7838, %v7830
        %v8207 = vpack.c.b16 %v7839, %v7831
        %v8208 = vpack.c.b16 %v7840, %v7832
        %v8209 = vpack.c.b16 %v7841, %v7833
        %v8210 = vpack.c.b16 %v7842, %v7834
        %v8211 = vpack.c.b16 %v7843, %v7835
        %v8212 = vpack.c.b16 %v7844, %v7836
        %v8213 = vpack.c.b16 %v7845, %v7837
        %v8214 = vpack.c.b16 %v7854, %v7846
        %v8215 = vpack.c.b16 %v7855, %v7847
        %v8216 = vpack.c.b16 %v7856, %v7848
        %v8217 = vpack.c.b16 %v7857, %v7849
        %v8218 = vpack.c.b16 %v7858, %v7850
        %v8219 = vpack.c.b16 %v7859, %v7851
        %v8220 = vpack.c.b16 %v7860, %v7852
        %v8221 = vpack.c.b16 %v7861, %v7853
        %v8222 = vpack.c.b16 %v7870, %v7862
        %v8223 = vpack.c.b16 %v7871, %v7863
        %v8224 = vpack.c.b16 %v7872, %v7864
        %v8225 = vpack.c.b16 %v7873, %v7865
        %v8226 = vpack.c.b16 %v7874, %v7866
        %v8227 = vpack.c.b16 %v7875, %v7867
        %v8228 = vpack.c.b16 %v7876, %v7868
        %v8229 = vpack.c.b16 %v7877, %v7869
        %v8230 = vpack.c.b16 %v7886, %v7878
        %v8231 = vpack.c.b16 %v7887, %v7879
        %v8232 = vpack.c.b16 %v7888, %v7880
        %v8233 = vpack.c.b16 %v7889, %v7881
        %v8234 = vpack.c.b16 %v7890, %v7882
        %v8235 = vpack.c.b16 %v7891, %v7883
        %v8236 = vpack.c.b16 %v7892, %v7884
        %v8237 = vpack.c.b16 %v7893, %v7885
        %v8238 = vpack.c.b16 %v7902, %v7894
        %v8239 = vpack.c.b16 %v7903, %v7895
        %v8240 = vpack.c.b16 %v7904, %v7896
        %v8241 = vpack.c.b16 %v7905, %v7897
        %v8242 = vpack.c.b16 %v7906, %v7898
        %v8243 = vpack.c.b16 %v7907, %v7899
        %v8244 = vpack.c.b16 %v7908, %v7900
        %v8245 = vpack.c.b16 %v7909, %v7901
        %v8246 = vpack.c.b16 %v7918, %v7910
        %v8247 = vpack.c.b16 %v7919, %v7911
        %v8248 = vpack.c.b16 %v7920, %v7912
        %v8249 = vpack.c.b16 %v7921, %v7913
        %v8250 = vpack.c.b16 %v7922, %v7914
        %v8251 = vpack.c.b16 %v7923, %v7915
        %v8252 = vpack.c.b16 %v7924, %v7916
        %v8253 = vpack.c.b16 %v7925, %v7917
        %v8254 = vpack.c.b16 %v7934, %v7926
        %v8255 = vpack.c.b16 %v7935, %v7927
        %v8256 = vpack.c.b16 %v7936, %v7928
        %v8257 = vpack.c.b16 %v7937, %v7929
        %v8258 = vpack.c.b16 %v7938, %v7930
        %v8259 = vpack.c.b16 %v7939, %v7931
        %v8260 = vpack.c.b16 %v7940, %v7932
        %v8261 = vpack.c.b16 %v7941, %v7933
        %v8262 = vpack.c.b16 %v7950, %v7942
        %v8263 = vpack.c.b16 %v7951, %v7943
        %v8264 = vpack.c.b16 %v7952, %v7944
        %v8265 = vpack.c.b16 %v7953, %v7945
        %v8266 = vpack.c.b16 %v7954, %v7946
        %v8267 = vpack.c.b16 %v7955, %v7947
        %v8268 = vpack.c.b16 %v7956, %v7948
        %v8269 = vpack.c.b16 %v7957, %v7949
        %v8270 = vpack.c.b16 %v7966, %v7958
        %v8271 = vpack.c.b16 %v7967, %v7959
        %v8272 = vpack.c.b16 %v7968, %v7960
        %v8273 = vpack.c.b16 %v7969, %v7961
        %v8274 = vpack.c.b16 %v7970, %v7962
        %v8275 = vpack.c.b16 %v7971, %v7963
        %v8276 = vpack.c.b16 %v7972, %v7964
        %v8277 = vpack.c.b16 %v7973, %v7965
        %v8278 = vpack.c.b16 %v7982, %v7974
        %v8279 = vpack.c.b16 %v7983, %v7975
        %v8280 = vpack.c.b16 %v7984, %v7976
        %v8281 = vpack.c.b16 %v7985, %v7977
        %v8282 = vpack.c.b16 %v7986, %v7978
        %v8283 = vpack.c.b16 %v7987, %v7979
        %v8284 = vpack.c.b16 %v7988, %v7980
        %v8285 = vpack.c.b16 %v7989, %v7981
        %v8286 = vpack.c.b16 %v7998, %v7990
        %v8287 = vpack.c.b16 %v7999, %v7991
        %v8288 = vpack.c.b16 %v8000, %v7992
        %v8289 = vpack.c.b16 %v8001, %v7993
        %v8290 = vpack.c.b16 %v8002, %v7994
        %v8291 = vpack.c.b16 %v8003, %v7995
        %v8292 = vpack.c.b16 %v8004, %v7996
        %v8293 = vpack.c.b16 %v8005, %v7997
        %v8583 = vsel %vm2200, %v7137, 0
        %8585 = vmatprep.subr.bf16.mxu0 %v8007
        %8586 = vmatpush1.bf16.msra.mxu0 %v8006
        %8587 = vmatprep.subr.bf16.mxu0 %v8015
        %8588 = vmatpush1.bf16.msra.mxu0 %v8014
        %8589 = vmatprep.subr.bf16.mxu0 %v8023
        %8590 = vmatpush1.bf16.msra.mxu0 %v8022
        %8591 = vmatprep.subr.bf16.mxu0 %v8031
        %8592 = vmatpush1.bf16.msra.mxu0 %v8030
        %8593 = vmatprep.subr.bf16.mxu0 %v8039
        %8594 = vmatpush1.bf16.msra.mxu0 %v8038
        %8595 = vmatprep.subr.bf16.mxu0 %v8047
        %8596 = vmatpush1.bf16.msra.mxu0 %v8046
        %8597 = vmatprep.subr.bf16.mxu0 %v8055
        %8598 = vmatpush1.bf16.msra.mxu0 %v8054
        %8599 = vmatprep.subr.bf16.mxu0 %v8063
        %8600 = vmatpush1.bf16.msra.mxu0 %v8062
        %8601 = vmatprep.subr.bf16.mxu0 %v8071
        %8602 = vmatpush1.bf16.msra.mxu0 %v8070
        %8603 = vmatprep.subr.bf16.mxu0 %v8079
        %8604 = vmatpush1.bf16.msra.mxu0 %v8078
        %8605 = vmatprep.subr.bf16.mxu0 %v8087
        %8606 = vmatpush1.bf16.msra.mxu0 %v8086
        %8607 = vmatprep.subr.bf16.mxu0 %v8095
        %8608 = vmatpush1.bf16.msra.mxu0 %v8094
        %8609 = vmatprep.subr.bf16.mxu0 %v8103
        %8610 = vmatpush1.bf16.msra.mxu0 %v8102
        %8611 = vmatprep.subr.bf16.mxu0 %v8111
        %8612 = vmatpush1.bf16.msra.mxu0 %v8110
        %8613 = vmatprep.subr.bf16.mxu0 %v8119
        %8614 = vmatpush1.bf16.msra.mxu0 %v8118
        %8615 = vmatprep.subr.bf16.mxu0 %v8127
        %8616 = vmatpush1.bf16.msra.mxu0 %v8126
        %8617 = vmatprep.mubr.bf16.mxu0 %v7128
        %8618 = vmatmul.mubr.bf16.gmra.mrb[0].mxu0 %v7125
        %v8619 = vpop.f32.mrb[0].mxu0
        %v8620 = vadd.f32 0.0, %v8619
        %v8621 = vpop.f32.mrb[0].mxu0
        %v8622 = vadd.f32 0.0, %v8621
        %v8623 = vpop.f32.mrb[0].mxu0
        %v8624 = vadd.f32 0.0, %v8623
        %v8625 = vpop.f32.mrb[0].mxu0
        %v8626 = vadd.f32 0.0, %v8625
        %8627 = vdwg.mxu0
        %8628 = vmatprep.subr.bf16.mxu0 %v8135
        %8629 = vmatpush1.bf16.msra.mxu0 %v8134
        %8630 = vmatprep.subr.bf16.mxu0 %v8143
        %8631 = vmatpush1.bf16.msra.mxu0 %v8142
        %8632 = vmatprep.subr.bf16.mxu0 %v8151
        %8633 = vmatpush1.bf16.msra.mxu0 %v8150
        %8634 = vmatprep.subr.bf16.mxu0 %v8159
        %8635 = vmatpush1.bf16.msra.mxu0 %v8158
        %8636 = vmatprep.subr.bf16.mxu0 %v8167
        %8637 = vmatpush1.bf16.msra.mxu0 %v8166
        %8638 = vmatprep.subr.bf16.mxu0 %v8175
        %8639 = vmatpush1.bf16.msra.mxu0 %v8174
        %8640 = vmatprep.subr.bf16.mxu0 %v8183
        %8641 = vmatpush1.bf16.msra.mxu0 %v8182
        %8642 = vmatprep.subr.bf16.mxu0 %v8191
        %8643 = vmatpush1.bf16.msra.mxu0 %v8190
        %8644 = vmatprep.subr.bf16.mxu0 %v8199
        %8645 = vmatpush1.bf16.msra.mxu0 %v8198
        %8646 = vmatprep.subr.bf16.mxu0 %v8207
        %8647 = vmatpush1.bf16.msra.mxu0 %v8206
        %8648 = vmatprep.subr.bf16.mxu0 %v8215
        %8649 = vmatpush1.bf16.msra.mxu0 %v8214
        %8650 = vmatprep.subr.bf16.mxu0 %v8223
        %8651 = vmatpush1.bf16.msra.mxu0 %v8222
        %8652 = vmatprep.subr.bf16.mxu0 %v8231
        %8653 = vmatpush1.bf16.msra.mxu0 %v8230
        %8654 = vmatprep.subr.bf16.mxu0 %v8239
        %8655 = vmatpush1.bf16.msra.mxu0 %v8238
        %8656 = vmatprep.subr.bf16.mxu0 %v8247
        %8657 = vmatpush1.bf16.msra.mxu0 %v8246
        %8658 = vmatprep.subr.bf16.mxu0 %v8255
        %8659 = vmatpush1.bf16.msra.mxu0 %v8254
        %8660 = vmatprep.mubr.bf16.mxu0 %v7134
        %8661 = vmatmul.mubr.bf16.gmra.mrb[0].mxu0 %v7131
        %v8662 = vpop.f32.mrb[0].mxu0
        %v8663 = vadd.f32 %v8620, %v8662
        %v8664 = vpop.f32.mrb[0].mxu0
        %v8665 = vadd.f32 %v8622, %v8664
        %v8666 = vpop.f32.mrb[0].mxu0
        %v8667 = vadd.f32 %v8624, %v8666
        %v8668 = vpop.f32.mrb[0].mxu0
        %v8669 = vadd.f32 %v8626, %v8668
        %8670 = vdwg.mxu0
        %8671 = vmatprep.subr.bf16.mxu0 %v8263
        %8672 = vmatpush1.bf16.msra.mxu0 %v8262
        %8673 = vmatprep.subr.bf16.mxu0 %v8271
        %8674 = vmatpush1.bf16.msra.mxu0 %v8270
        %8675 = vmatprep.subr.bf16.mxu0 %v8279
        %8676 = vmatpush1.bf16.msra.mxu0 %v8278
        %8677 = vmatprep.subr.bf16.mxu0 %v8287
        %8678 = vmatpush1.bf16.msra.mxu0 %v8286
        %8679 = vmatprep.subr.bf16.mxu0 0
        %8680 = vmatpush1.bf16.msra.mxu0 0
        %8681 = vmatprep.subr.bf16.mxu0 0
        %8682 = vmatpush1.bf16.msra.mxu0 0
        %8683 = vmatprep.subr.bf16.mxu0 0
        %8684 = vmatpush1.bf16.msra.mxu0 0
        %8685 = vmatprep.subr.bf16.mxu0 0
        %8686 = vmatpush1.bf16.msra.mxu0 0
        %8687 = vmatprep.subr.bf16.mxu0 0
        %8688 = vmatpush1.bf16.msra.mxu0 0
        %8689 = vmatprep.subr.bf16.mxu0 0
        %8690 = vmatpush1.bf16.msra.mxu0 0
        %8691 = vmatprep.subr.bf16.mxu0 0
        %8692 = vmatpush1.bf16.msra.mxu0 0
        %8693 = vmatprep.subr.bf16.mxu0 0
        %8694 = vmatpush1.bf16.msra.mxu0 0
        %8695 = vmatprep.subr.bf16.mxu0 0
        %8696 = vmatpush1.bf16.msra.mxu0 0
        %8697 = vmatprep.subr.bf16.mxu0 0
        %8698 = vmatpush1.bf16.msra.mxu0 0
        %8699 = vmatprep.subr.bf16.mxu0 0
        %8700 = vmatpush1.bf16.msra.mxu0 0
        %8701 = vmatprep.subr.bf16.mxu0 0
        %8702 = vmatpush1.bf16.msra.mxu0 0
        %8703 = vmatprep.mubr.bf16.mxu0 0
        %8704 = vmatmul.mubr.bf16.gmra.mrb[0].mxu0 %v8583
        %v8705 = vpop.f32.mrb[0].mxu0
        %v8706 = vadd.f32 %v8663, %v8705
        %v8707 = vpop.f32.mrb[0].mxu0
        %v8708 = vadd.f32 %v8665, %v8707
        %v8709 = vpop.f32.mrb[0].mxu0
        %v8710 = vadd.f32 %v8667, %v8709
        %v8711 = vpop.f32.mrb[0].mxu0
        %v8712 = vadd.f32 %v8669, %v8711
        %8713 = vdwg.mxu0
        %8714 = vmatprep.subr.bf16.mxu0 %v8009
        %8715 = vmatpush1.bf16.msra.mxu0 %v8008
        %8716 = vmatprep.subr.bf16.mxu0 %v8017
        %8717 = vmatpush1.bf16.msra.mxu0 %v8016
        %8718 = vmatprep.subr.bf16.mxu0 %v8025
        %8719 = vmatpush1.bf16.msra.mxu0 %v8024
        %8720 = vmatprep.subr.bf16.mxu0 %v8033
        %8721 = vmatpush1.bf16.msra.mxu0 %v8032
        %8722 = vmatprep.subr.bf16.mxu0 %v8041
        %8723 = vmatpush1.bf16.msra.mxu0 %v8040
        %8724 = vmatprep.subr.bf16.mxu0 %v8049
        %8725 = vmatpush1.bf16.msra.mxu0 %v8048
        %8726 = vmatprep.subr.bf16.mxu0 %v8057
        %8727 = vmatpush1.bf16.msra.mxu0 %v8056
        %8728 = vmatprep.subr.bf16.mxu0 %v8065
        %8729 = vmatpush1.bf16.msra.mxu0 %v8064
        %8730 = vmatprep.subr.bf16.mxu0 %v8073
        %8731 = vmatpush1.bf16.msra.mxu0 %v8072
        %8732 = vmatprep.subr.bf16.mxu0 %v8081
        %8733 = vmatpush1.bf16.msra.mxu0 %v8080
        %8734 = vmatprep.subr.bf16.mxu0 %v8089
        %8735 = vmatpush1.bf16.msra.mxu0 %v8088
        %8736 = vmatprep.subr.bf16.mxu0 %v8097
        %8737 = vmatpush1.bf16.msra.mxu0 %v8096
        %8738 = vmatprep.subr.bf16.mxu0 %v8105
        %8739 = vmatpush1.bf16.msra.mxu0 %v8104
        %8740 = vmatprep.subr.bf16.mxu0 %v8113
        %8741 = vmatpush1.bf16.msra.mxu0 %v8112
        %8742 = vmatprep.subr.bf16.mxu0 %v8121
        %8743 = vmatpush1.bf16.msra.mxu0 %v8120
        %8744 = vmatprep.subr.bf16.mxu0 %v8129
        %8745 = vmatpush1.bf16.msra.mxu0 %v8128
        %8746 = vmatprep.mubr.bf16.mxu0 %v7128
        %8747 = vmatmul.mubr.bf16.gmra.mrb[0].mxu0 %v7125
        %v8748 = vpop.f32.mrb[0].mxu0
        %v8749 = vadd.f32 0.0, %v8748
        %v8750 = vpop.f32.mrb[0].mxu0
        %v8751 = vadd.f32 0.0, %v8750
        %v8752 = vpop.f32.mrb[0].mxu0
        %v8753 = vadd.f32 0.0, %v8752
        %v8754 = vpop.f32.mrb[0].mxu0
        %v8755 = vadd.f32 0.0, %v8754
        %8756 = vdwg.mxu0
        %8757 = vmatprep.subr.bf16.mxu0 %v8137
        %8758 = vmatpush1.bf16.msra.mxu0 %v8136
        %8759 = vmatprep.subr.bf16.mxu0 %v8145
        %8760 = vmatpush1.bf16.msra.mxu0 %v8144
        %8761 = vmatprep.subr.bf16.mxu0 %v8153
        %8762 = vmatpush1.bf16.msra.mxu0 %v8152
        %8763 = vmatprep.subr.bf16.mxu0 %v8161
        %8764 = vmatpush1.bf16.msra.mxu0 %v8160
        %8765 = vmatprep.subr.bf16.mxu0 %v8169
        %8766 = vmatpush1.bf16.msra.mxu0 %v8168
        %8767 = vmatprep.subr.bf16.mxu0 %v8177
        %8768 = vmatpush1.bf16.msra.mxu0 %v8176
        %8769 = vmatprep.subr.bf16.mxu0 %v8185
        %8770 = vmatpush1.bf16.msra.mxu0 %v8184
        %8771 = vmatprep.subr.bf16.mxu0 %v8193
        %8772 = vmatpush1.bf16.msra.mxu0 %v8192
        %8773 = vmatprep.subr.bf16.mxu0 %v8201
        %8774 = vmatpush1.bf16.msra.mxu0 %v8200
        %8775 = vmatprep.subr.bf16.mxu0 %v8209
        %8776 = vmatpush1.bf16.msra.mxu0 %v8208
        %8777 = vmatprep.subr.bf16.mxu0 %v8217
        %8778 = vmatpush1.bf16.msra.mxu0 %v8216
        %8779 = vmatprep.subr.bf16.mxu0 %v8225
        %8780 = vmatpush1.bf16.msra.mxu0 %v8224
        %8781 = vmatprep.subr.bf16.mxu0 %v8233
        %8782 = vmatpush1.bf16.msra.mxu0 %v8232
        %8783 = vmatprep.subr.bf16.mxu0 %v8241
        %8784 = vmatpush1.bf16.msra.mxu0 %v8240
        %8785 = vmatprep.subr.bf16.mxu0 %v8249
        %8786 = vmatpush1.bf16.msra.mxu0 %v8248
        %8787 = vmatprep.subr.bf16.mxu0 %v8257
        %8788 = vmatpush1.bf16.msra.mxu0 %v8256
        %8789 = vmatprep.mubr.bf16.mxu0 %v7134
        %8790 = vmatmul.mubr.bf16.gmra.mrb[0].mxu0 %v7131
        %v8791 = vpop.f32.mrb[0].mxu0
        %v8792 = vadd.f32 %v8749, %v8791
        %v8793 = vpop.f32.mrb[0].mxu0
        %v8794 = vadd.f32 %v8751, %v8793
        %v8795 = vpop.f32.mrb[0].mxu0
        %v8796 = vadd.f32 %v8753, %v8795
        %v8797 = vpop.f32.mrb[0].mxu0
        %v8798 = vadd.f32 %v8755, %v8797
        %8799 = vdwg.mxu0
        %8800 = vmatprep.subr.bf16.mxu0 %v8265
        %8801 = vmatpush1.bf16.msra.mxu0 %v8264
        %8802 = vmatprep.subr.bf16.mxu0 %v8273
        %8803 = vmatpush1.bf16.msra.mxu0 %v8272
        %8804 = vmatprep.subr.bf16.mxu0 %v8281
        %8805 = vmatpush1.bf16.msra.mxu0 %v8280
        %8806 = vmatprep.subr.bf16.mxu0 %v8289
        %8807 = vmatpush1.bf16.msra.mxu0 %v8288
        %8808 = vmatprep.subr.bf16.mxu0 0
        %8809 = vmatpush1.bf16.msra.mxu0 0
        %8810 = vmatprep.subr.bf16.mxu0 0
        %8811 = vmatpush1.bf16.msra.mxu0 0
        %8812 = vmatprep.subr.bf16.mxu0 0
        %8813 = vmatpush1.bf16.msra.mxu0 0
        %8814 = vmatprep.subr.bf16.mxu0 0
        %8815 = vmatpush1.bf16.msra.mxu0 0
        %8816 = vmatprep.subr.bf16.mxu0 0
        %8817 = vmatpush1.bf16.msra.mxu0 0
        %8818 = vmatprep.subr.bf16.mxu0 0
        %8819 = vmatpush1.bf16.msra.mxu0 0
        %8820 = vmatprep.subr.bf16.mxu0 0
        %8821 = vmatpush1.bf16.msra.mxu0 0
        %8822 = vmatprep.subr.bf16.mxu0 0
        %8823 = vmatpush1.bf16.msra.mxu0 0
        %8824 = vmatprep.subr.bf16.mxu0 0
        %8825 = vmatpush1.bf16.msra.mxu0 0
        %8826 = vmatprep.subr.bf16.mxu0 0
        %8827 = vmatpush1.bf16.msra.mxu0 0
        %8828 = vmatprep.subr.bf16.mxu0 0
        %8829 = vmatpush1.bf16.msra.mxu0 0
        %8830 = vmatprep.subr.bf16.mxu0 0
        %8831 = vmatpush1.bf16.msra.mxu0 0
        %8832 = vmatprep.mubr.bf16.mxu0 0
        %8833 = vmatmul.mubr.bf16.gmra.mrb[0].mxu0 %v8583
        %v8834 = vpop.f32.mrb[0].mxu0
        %v8835 = vadd.f32 %v8792, %v8834
        %v8836 = vpop.f32.mrb[0].mxu0
        %v8837 = vadd.f32 %v8794, %v8836
        %v8838 = vpop.f32.mrb[0].mxu0
        %v8839 = vadd.f32 %v8796, %v8838
        %v8840 = vpop.f32.mrb[0].mxu0
        %v8841 = vadd.f32 %v8798, %v8840
        %8842 = vdwg.mxu0
        %8843 = vmatprep.subr.bf16.mxu0 %v8011
        %8844 = vmatpush1.bf16.msra.mxu0 %v8010
        %8845 = vmatprep.subr.bf16.mxu0 %v8019
        %8846 = vmatpush1.bf16.msra.mxu0 %v8018
        %8847 = vmatprep.subr.bf16.mxu0 %v8027
        %8848 = vmatpush1.bf16.msra.mxu0 %v8026
        %8849 = vmatprep.subr.bf16.mxu0 %v8035
        %8850 = vmatpush1.bf16.msra.mxu0 %v8034
        %8851 = vmatprep.subr.bf16.mxu0 %v8043
        %8852 = vmatpush1.bf16.msra.mxu0 %v8042
        %8853 = vmatprep.subr.bf16.mxu0 %v8051
        %8854 = vmatpush1.bf16.msra.mxu0 %v8050
        %8855 = vmatprep.subr.bf16.mxu0 %v8059
        %8856 = vmatpush1.bf16.msra.mxu0 %v8058
        %8857 = vmatprep.subr.bf16.mxu0 %v8067
        %8858 = vmatpush1.bf16.msra.mxu0 %v8066
        %8859 = vmatprep.subr.bf16.mxu0 %v8075
        %8860 = vmatpush1.bf16.msra.mxu0 %v8074
        %8861 = vmatprep.subr.bf16.mxu0 %v8083
        %8862 = vmatpush1.bf16.msra.mxu0 %v8082
        %8863 = vmatprep.subr.bf16.mxu0 %v8091
        %8864 = vmatpush1.bf16.msra.mxu0 %v8090
        %8865 = vmatprep.subr.bf16.mxu0 %v8099
        %8866 = vmatpush1.bf16.msra.mxu0 %v8098
        %8867 = vmatprep.subr.bf16.mxu0 %v8107
        %8868 = vmatpush1.bf16.msra.mxu0 %v8106
        %8869 = vmatprep.subr.bf16.mxu0 %v8115
        %8870 = vmatpush1.bf16.msra.mxu0 %v8114
        %8871 = vmatprep.subr.bf16.mxu0 %v8123
        %8872 = vmatpush1.bf16.msra.mxu0 %v8122
        %8873 = vmatprep.subr.bf16.mxu0 %v8131
        %8874 = vmatpush1.bf16.msra.mxu0 %v8130
        %8875 = vmatprep.mubr.bf16.mxu0 %v7128
        %8876 = vmatmul.mubr.bf16.gmra.mrb[0].mxu0 %v7125
        %v8877 = vpop.f32.mrb[0].mxu0
        %v8878 = vadd.f32 0.0, %v8877
        %v8879 = vpop.f32.mrb[0].mxu0
        %v8880 = vadd.f32 0.0, %v8879
        %v8881 = vpop.f32.mrb[0].mxu0
        %v8882 = vadd.f32 0.0, %v8881
        %v8883 = vpop.f32.mrb[0].mxu0
        %v8884 = vadd.f32 0.0, %v8883
        %8885 = vdwg.mxu0
        %8886 = vmatprep.subr.bf16.mxu0 %v8139
        %8887 = vmatpush1.bf16.msra.mxu0 %v8138
        %8888 = vmatprep.subr.bf16.mxu0 %v8147
        %8889 = vmatpush1.bf16.msra.mxu0 %v8146
        %8890 = vmatprep.subr.bf16.mxu0 %v8155
        %8891 = vmatpush1.bf16.msra.mxu0 %v8154
        %8892 = vmatprep.subr.bf16.mxu0 %v8163
        %8893 = vmatpush1.bf16.msra.mxu0 %v8162
        %8894 = vmatprep.subr.bf16.mxu0 %v8171
        %8895 = vmatpush1.bf16.msra.mxu0 %v8170
        %8896 = vmatprep.subr.bf16.mxu0 %v8179
        %8897 = vmatpush1.bf16.msra.mxu0 %v8178
        %8898 = vmatprep.subr.bf16.mxu0 %v8187
        %8899 = vmatpush1.bf16.msra.mxu0 %v8186
        %8900 = vmatprep.subr.bf16.mxu0 %v8195
        %8901 = vmatpush1.bf16.msra.mxu0 %v8194
        %8902 = vmatprep.subr.bf16.mxu0 %v8203
        %8903 = vmatpush1.bf16.msra.mxu0 %v8202
        %8904 = vmatprep.subr.bf16.mxu0 %v8211
        %8905 = vmatpush1.bf16.msra.mxu0 %v8210
        %8906 = vmatprep.subr.bf16.mxu0 %v8219
        %8907 = vmatpush1.bf16.msra.mxu0 %v8218
        %8908 = vmatprep.subr.bf16.mxu0 %v8227
        %8909 = vmatpush1.bf16.msra.mxu0 %v8226
        %8910 = vmatprep.subr.bf16.mxu0 %v8235
        %8911 = vmatpush1.bf16.msra.mxu0 %v8234
        %8912 = vmatprep.subr.bf16.mxu0 %v8243
        %8913 = vmatpush1.bf16.msra.mxu0 %v8242
        %8914 = vmatprep.subr.bf16.mxu0 %v8251
        %8915 = vmatpush1.bf16.msra.mxu0 %v8250
        %8916 = vmatprep.subr.bf16.mxu0 %v8259
        %8917 = vmatpush1.bf16.msra.mxu0 %v8258
        %8918 = vmatprep.mubr.bf16.mxu0 %v7134
        %8919 = vmatmul.mubr.bf16.gmra.mrb[0].mxu0 %v7131
        %v8920 = vpop.f32.mrb[0].mxu0
        %v8921 = vadd.f32 %v8878, %v8920
        %v8922 = vpop.f32.mrb[0].mxu0
        %v8923 = vadd.f32 %v8880, %v8922
        %v8924 = vpop.f32.mrb[0].mxu0
        %v8925 = vadd.f32 %v8882, %v8924
        %v8926 = vpop.f32.mrb[0].mxu0
        %v8927 = vadd.f32 %v8884, %v8926
        %8928 = vdwg.mxu0
        %8929 = vmatprep.subr.bf16.mxu0 %v8267
        %8930 = vmatpush1.bf16.msra.mxu0 %v8266
        %8931 = vmatprep.subr.bf16.mxu0 %v8275
        %8932 = vmatpush1.bf16.msra.mxu0 %v8274
        %8933 = vmatprep.subr.bf16.mxu0 %v8283
        %8934 = vmatpush1.bf16.msra.mxu0 %v8282
        %8935 = vmatprep.subr.bf16.mxu0 %v8291
        %8936 = vmatpush1.bf16.msra.mxu0 %v8290
        %8937 = vmatprep.subr.bf16.mxu0 0
        %8938 = vmatpush1.bf16.msra.mxu0 0
        %8939 = vmatprep.subr.bf16.mxu0 0
        %8940 = vmatpush1.bf16.msra.mxu0 0
        %8941 = vmatprep.subr.bf16.mxu0 0
        %8942 = vmatpush1.bf16.msra.mxu0 0
        %8943 = vmatprep.subr.bf16.mxu0 0
        %8944 = vmatpush1.bf16.msra.mxu0 0
        %8945 = vmatprep.subr.bf16.mxu0 0
        %8946 = vmatpush1.bf16.msra.mxu0 0
        %8947 = vmatprep.subr.bf16.mxu0 0
        %8948 = vmatpush1.bf16.msra.mxu0 0
        %8949 = vmatprep.subr.bf16.mxu0 0
        %8950 = vmatpush1.bf16.msra.mxu0 0
        %8951 = vmatprep.subr.bf16.mxu0 0
        %8952 = vmatpush1.bf16.msra.mxu0 0
        %8953 = vmatprep.subr.bf16.mxu0 0
        %8954 = vmatpush1.bf16.msra.mxu0 0
        %8955 = vmatprep.subr.bf16.mxu0 0
        %8956 = vmatpush1.bf16.msra.mxu0 0
        %8957 = vmatprep.subr.bf16.mxu0 0
        %8958 = vmatpush1.bf16.msra.mxu0 0
        %8959 = vmatprep.subr.bf16.mxu0 0
        %8960 = vmatpush1.bf16.msra.mxu0 0
        %8961 = vmatprep.mubr.bf16.mxu0 0
        %8962 = vmatmul.mubr.bf16.gmra.mrb[0].mxu0 %v8583
        %v8963 = vpop.f32.mrb[0].mxu0
        %v8964 = vadd.f32 %v8921, %v8963
        %v8965 = vpop.f32.mrb[0].mxu0
        %v8966 = vadd.f32 %v8923, %v8965
        %v8967 = vpop.f32.mrb[0].mxu0
        %v8968 = vadd.f32 %v8925, %v8967
        %v8969 = vpop.f32.mrb[0].mxu0
        %v8970 = vadd.f32 %v8927, %v8969
        %8971 = vdwg.mxu0
        %8972 = vmatprep.subr.bf16.mxu0 %v8013
        %8973 = vmatpush1.bf16.msra.mxu0 %v8012
        %8974 = vmatprep.subr.bf16.mxu0 %v8021
        %8975 = vmatpush1.bf16.msra.mxu0 %v8020
        %8976 = vmatprep.subr.bf16.mxu0 %v8029
        %8977 = vmatpush1.bf16.msra.mxu0 %v8028
        %8978 = vmatprep.subr.bf16.mxu0 %v8037
        %8979 = vmatpush1.bf16.msra.mxu0 %v8036
        %8980 = vmatprep.subr.bf16.mxu0 %v8045
        %8981 = vmatpush1.bf16.msra.mxu0 %v8044
        %8982 = vmatprep.subr.bf16.mxu0 %v8053
        %8983 = vmatpush1.bf16.msra.mxu0 %v8052
        %8984 = vmatprep.subr.bf16.mxu0 %v8061
        %8985 = vmatpush1.bf16.msra.mxu0 %v8060
        %8986 = vmatprep.subr.bf16.mxu0 %v8069
        %8987 = vmatpush1.bf16.msra.mxu0 %v8068
        %8988 = vmatprep.subr.bf16.mxu0 %v8077
        %8989 = vmatpush1.bf16.msra.mxu0 %v8076
        %8990 = vmatprep.subr.bf16.mxu0 %v8085
        %8991 = vmatpush1.bf16.msra.mxu0 %v8084
        %8992 = vmatprep.subr.bf16.mxu0 %v8093
        %8993 = vmatpush1.bf16.msra.mxu0 %v8092
        %8994 = vmatprep.subr.bf16.mxu0 %v8101
        %8995 = vmatpush1.bf16.msra.mxu0 %v8100
        %8996 = vmatprep.subr.bf16.mxu0 %v8109
        %8997 = vmatpush1.bf16.msra.mxu0 %v8108
        %8998 = vmatprep.subr.bf16.mxu0 %v8117
        %8999 = vmatpush1.bf16.msra.mxu0 %v8116
        %9000 = vmatprep.subr.bf16.mxu0 %v8125
        %9001 = vmatpush1.bf16.msra.mxu0 %v8124
        %9002 = vmatprep.subr.bf16.mxu0 %v8133
        %9003 = vmatpush1.bf16.msra.mxu0 %v8132
        %9004 = vmatprep.mubr.bf16.mxu0 %v7128
        %9005 = vmatmul.mubr.bf16.gmra.mrb[0].mxu0 %v7125
        %v9006 = vpop.f32.mrb[0].mxu0
        %v9007 = vadd.f32 0.0, %v9006
        %v9008 = vpop.f32.mrb[0].mxu0
        %v9009 = vadd.f32 0.0, %v9008
        %v9010 = vpop.f32.mrb[0].mxu0
        %v9011 = vadd.f32 0.0, %v9010
        %v9012 = vpop.f32.mrb[0].mxu0
        %v9013 = vadd.f32 0.0, %v9012
        %9014 = vdwg.mxu0
        %9015 = vmatprep.subr.bf16.mxu0 %v8141
        %9016 = vmatpush1.bf16.msra.mxu0 %v8140
        %9017 = vmatprep.subr.bf16.mxu0 %v8149
        %9018 = vmatpush1.bf16.msra.mxu0 %v8148
        %9019 = vmatprep.subr.bf16.mxu0 %v8157
        %9020 = vmatpush1.bf16.msra.mxu0 %v8156
        %9021 = vmatprep.subr.bf16.mxu0 %v8165
        %9022 = vmatpush1.bf16.msra.mxu0 %v8164
        %9023 = vmatprep.subr.bf16.mxu0 %v8173
        %9024 = vmatpush1.bf16.msra.mxu0 %v8172
        %9025 = vmatprep.subr.bf16.mxu0 %v8181
        %9026 = vmatpush1.bf16.msra.mxu0 %v8180
        %9027 = vmatprep.subr.bf16.mxu0 %v8189
        %9028 = vmatpush1.bf16.msra.mxu0 %v8188
        %9029 = vmatprep.subr.bf16.mxu0 %v8197
        %9030 = vmatpush1.bf16.msra.mxu0 %v8196
        %9031 = vmatprep.subr.bf16.mxu0 %v8205
        %9032 = vmatpush1.bf16.msra.mxu0 %v8204
        %9033 = vmatprep.subr.bf16.mxu0 %v8213
        %9034 = vmatpush1.bf16.msra.mxu0 %v8212
        %9035 = vmatprep.subr.bf16.mxu0 %v8221
        %9036 = vmatpush1.bf16.msra.mxu0 %v8220
        %9037 = vmatprep.subr.bf16.mxu0 %v8229
        %9038 = vmatpush1.bf16.msra.mxu0 %v8228
        %9039 = vmatprep.subr.bf16.mxu0 %v8237
        %9040 = vmatpush1.bf16.msra.mxu0 %v8236
        %9041 = vmatprep.subr.bf16.mxu0 %v8245
        %9042 = vmatpush1.bf16.msra.mxu0 %v8244
        %9043 = vmatprep.subr.bf16.mxu0 %v8253
        %9044 = vmatpush1.bf16.msra.mxu0 %v8252
        %9045 = vmatprep.subr.bf16.mxu0 %v8261
        %9046 = vmatpush1.bf16.msra.mxu0 %v8260
        %9047 = vmatprep.mubr.bf16.mxu0 %v7134
        %9048 = vmatmul.mubr.bf16.gmra.mrb[0].mxu0 %v7131
        %v9049 = vpop.f32.mrb[0].mxu0
        %v9050 = vadd.f32 %v9007, %v9049
        %v9051 = vpop.f32.mrb[0].mxu0
        %v9052 = vadd.f32 %v9009, %v9051
        %v9053 = vpop.f32.mrb[0].mxu0
        %v9054 = vadd.f32 %v9011, %v9053
        %v9055 = vpop.f32.mrb[0].mxu0
        %v9056 = vadd.f32 %v9013, %v9055
        %9057 = vdwg.mxu0
        %9058 = vmatprep.subr.bf16.mxu0 %v8269
        %9059 = vmatpush1.bf16.msra.mxu0 %v8268
        %9060 = vmatprep.subr.bf16.mxu0 %v8277
        %9061 = vmatpush1.bf16.msra.mxu0 %v8276
        %9062 = vmatprep.subr.bf16.mxu0 %v8285
        %9063 = vmatpush1.bf16.msra.mxu0 %v8284
        %9064 = vmatprep.subr.bf16.mxu0 %v8293
        %9065 = vmatpush1.bf16.msra.mxu0 %v8292
        %9066 = vmatprep.subr.bf16.mxu0 0
        %9067 = vmatpush1.bf16.msra.mxu0 0
        %9068 = vmatprep.subr.bf16.mxu0 0
        %9069 = vmatpush1.bf16.msra.mxu0 0
        %9070 = vmatprep.subr.bf16.mxu0 0
        %9071 = vmatpush1.bf16.msra.mxu0 0
        %9072 = vmatprep.subr.bf16.mxu0 0
        %9073 = vmatpush1.bf16.msra.mxu0 0
        %9074 = vmatprep.subr.bf16.mxu0 0
        %9075 = vmatpush1.bf16.msra.mxu0 0
        %9076 = vmatprep.subr.bf16.mxu0 0
        %9077 = vmatpush1.bf16.msra.mxu0 0
        %9078 = vmatprep.subr.bf16.mxu0 0
        %9079 = vmatpush1.bf16.msra.mxu0 0
        %9080 = vmatprep.subr.bf16.mxu0 0
        %9081 = vmatpush1.bf16.msra.mxu0 0
        %9082 = vmatprep.subr.bf16.mxu0 0
        %9083 = vmatpush1.bf16.msra.mxu0 0
        %9084 = vmatprep.subr.bf16.mxu0 0
        %9085 = vmatpush1.bf16.msra.mxu0 0
        %9086 = vmatprep.subr.bf16.mxu0 0
        %9087 = vmatpush1.bf16.msra.mxu0 0
        %9088 = vmatprep.subr.bf16.mxu0 0
        %9089 = vmatpush1.bf16.msra.mxu0 0
        %9090 = vmatprep.mubr.bf16.mxu0 0
        %9091 = vmatmul.mubr.bf16.gmra.mrb[0].mxu0 %v8583
        %v9092 = vpop.f32.mrb[0].mxu0
        %v9093 = vadd.f32 %v9050, %v9092
        %v9094 = vpop.f32.mrb[0].mxu0
        %v9095 = vadd.f32 %v9052, %v9094
        %v9096 = vpop.f32.mrb[0].mxu0
        %v9097 = vadd.f32 %v9054, %v9096
        %v9098 = vpop.f32.mrb[0].mxu0
        %v9099 = vadd.f32 %v9056, %v9098
        %9100 = vdwg.mxu0
        %v9101 = vadd.f32 %v6408, %v8706
        %v9102 = vadd.f32 %v6410, %v8708
        %v9103 = vadd.f32 %v6537, %v8835
        %v9104 = vadd.f32 %v6539, %v8837
        %v9105 = vadd.f32 %v6666, %v8964
        %v9106 = vadd.f32 %v6668, %v8966
        %v9107 = vadd.f32 %v6795, %v9093
        %v9108 = vadd.f32 %v6797, %v9095
        %v9109 = vadd.f32 %v6412, %v8710
        %v9110 = vadd.f32 %v6414, %v8712
        %v9111 = vadd.f32 %v6541, %v8839
        %v9112 = vadd.f32 %v6543, %v8841
        %v9113 = vadd.f32 %v6670, %v8968
        %v9114 = vadd.f32 %v6672, %v8970
        %v9115 = vadd.f32 %v6799, %v9097
        %v9116 = vadd.f32 %v6801, %v9099
        %v9117 = vld [vmem:[#allocation8] sm:$0xff]
        %v9119 = vlaneseq
        %v9120 = vshrl.u32 %v9119, 7
        %v9121 = vsub.s32 0, %v9120
        %v9122 = vrot.slane %v9117, %v9121
        %v9123 = vlaneseq
        %v9124 = vshrl.u32 %v9123, 7
        %v9125 = vsub.s32 1, %v9124
        %v9126 = vrot.slane %v9117, %v9125
        %v9127 = vlaneseq
        %v9128 = vshrl.u32 %v9127, 7
        %v9129 = vsub.s32 2, %v9128
        %v9130 = vrot.slane %v9117, %v9129
        %v9131 = vlaneseq
        %v9132 = vshrl.u32 %v9131, 7
        %v9133 = vsub.s32 3, %v9132
        %v9134 = vrot.slane %v9117, %v9133
        %v9135 = vlaneseq
        %v9136 = vshrl.u32 %v9135, 7
        %v9137 = vsub.s32 4, %v9136
        %v9138 = vrot.slane %v9117, %v9137
        %v9139 = vlaneseq
        %v9140 = vshrl.u32 %v9139, 7
        %v9141 = vsub.s32 5, %v9140
        %v9142 = vrot.slane %v9117, %v9141
        %v9143 = vlaneseq
        %v9144 = vshrl.u32 %v9143, 7
        %v9145 = vsub.s32 6, %v9144
        %v9146 = vrot.slane %v9117, %v9145
        %v9147 = vlaneseq
        %v9148 = vshrl.u32 %v9147, 7
        %v9149 = vsub.s32 7, %v9148
        %v9150 = vrot.slane %v9117, %v9149
        %v9159 = vadd.f32 %v9101, %v9122
        %v9160 = vadd.f32 %v9102, %v9126
        %v9161 = vadd.f32 %v9103, %v9130
        %v9162 = vadd.f32 %v9104, %v9134
        %v9163 = vadd.f32 %v9105, %v9138
        %v9164 = vadd.f32 %v9106, %v9142
        %v9165 = vadd.f32 %v9107, %v9146
        %v9166 = vadd.f32 %v9108, %v9150
        %v9167 = vadd.f32 %v9109, %v9122
        %v9168 = vadd.f32 %v9110, %v9126
        %v9169 = vadd.f32 %v9111, %v9130
        %v9170 = vadd.f32 %v9112, %v9134
        %v9171 = vadd.f32 %v9113, %v9138
        %v9172 = vadd.f32 %v9114, %v9142
        %v9173 = vadd.f32 %v9115, %v9146
        %v9174 = vadd.f32 %v9116, %v9150
        %v9175 = vmax.f32 %v9159, 0.0
        %v9176 = vmax.f32 %v9160, 0.0
        %v9177 = vmax.f32 %v9161, 0.0
        %v9178 = vmax.f32 %v9162, 0.0
        %v9179 = vmax.f32 %v9163, 0.0
        %v9180 = vmax.f32 %v9164, 0.0
        %v9181 = vmax.f32 %v9165, 0.0
        %v9182 = vmax.f32 %v9166, 0.0
        %v9183 = vmax.f32 %v9167, 0.0
        %v9184 = vmax.f32 %v9168, 0.0
        %v9185 = vmax.f32 %v9169, 0.0
        %v9186 = vmax.f32 %v9170, 0.0
        %v9187 = vmax.f32 %v9171, 0.0
        %v9188 = vmax.f32 %v9172, 0.0
        %v9189 = vmax.f32 %v9173, 0.0
        %v9190 = vmax.f32 %v9174, 0.0
        %v9191 = vpack.c.bf16 %v9183, %v9175
        %v9192 = vpack.c.bf16 %v9184, %v9176
        %v9193 = vpack.c.bf16 %v9185, %v9177
        %v9194 = vpack.c.bf16 %v9186, %v9178
        %v9195 = vpack.c.bf16 %v9187, %v9179
        %v9196 = vpack.c.bf16 %v9188, %v9180
        %v9197 = vpack.c.bf16 %v9189, %v9181
        %v9198 = vpack.c.bf16 %v9190, %v9182
        %v9199 = vld [vmem:[#allocation10] sm:$0xff]
        %v9200 = vld [vmem:[#allocation10 + $0x8] sm:$0xff]
        %v9201 = vld [vmem:[#allocation10 + $0x10] sm:$0xff]
        %v9202 = vld [vmem:[#allocation10 + $0x18] sm:$0xff]
        %v9203 = vld [vmem:[#allocation10 + $0x20] sm:$0xff]
        %v9204 = vld [vmem:[#allocation10 + $0x28] sm:$0xff]
        %v9205 = vld [vmem:[#allocation10 + $0x30] sm:$0xff]
        %v9206 = vld [vmem:[#allocation10 + $0x38] sm:$0xff]
        %v9207 = vld [vmem:[#allocation10 + $0x40] sm:$0xff]
        %v9208 = vld [vmem:[#allocation10 + $0x48] sm:$0xff]
        %v9209 = vld [vmem:[#allocation10 + $0x50] sm:$0xff]
        %v9210 = vld [vmem:[#allocation10 + $0x58] sm:$0xff]
        %v9211 = vld [vmem:[#allocation10 + $0x60] sm:$0xff]
        %v9212 = vld [vmem:[#allocation10 + $0x68] sm:$0xff]
        %v9213 = vld [vmem:[#allocation10 + $0x70] sm:$0xff]
        %v9214 = vld [vmem:[#allocation10 + $0x78] sm:$0xff]
        %v9215 = vld [vmem:[#allocation10 + $0x80] sm:$0xff]
        %v9216 = vld [vmem:[#allocation10 + $0x88] sm:$0xff]
        %v9217 = vld [vmem:[#allocation10 + $0x90] sm:$0xff]
        %v9218 = vld [vmem:[#allocation10 + $0x98] sm:$0xff]
        %v9219 = vld [vmem:[#allocation10 + $0xa0] sm:$0xff]
        %v9220 = vld [vmem:[#allocation10 + $0xa8] sm:$0xff]
        %v9221 = vld [vmem:[#allocation10 + $0xb0] sm:$0xff]
        %v9222 = vld [vmem:[#allocation10 + $0xb8] sm:$0xff]
        %v9223 = vld [vmem:[#allocation10 + $0xc0] sm:$0xff]
        %v9224 = vld [vmem:[#allocation10 + $0xc8] sm:$0xff]
        %v9225 = vld [vmem:[#allocation10 + $0xd0] sm:$0xff]
        %v9226 = vld [vmem:[#allocation10 + $0xd8] sm:$0xff]
        %v9227 = vld [vmem:[#allocation10 + $0xe0] sm:$0xff]
        %v9228 = vld [vmem:[#allocation10 + $0xe8] sm:$0xff]
        %v9229 = vld [vmem:[#allocation10 + $0xf0] sm:$0xff]
        %v9230 = vld [vmem:[#allocation10 + $0xf8] sm:$0xff]
        %v9231 = vld [vmem:[#allocation10 + $0x100] sm:$0xff]
        %v9232 = vld [vmem:[#allocation10 + $0x108] sm:$0xff]
        %v9233 = vld [vmem:[#allocation10 + $0x110] sm:$0xff]
        %v9234 = vld [vmem:[#allocation10 + $0x118] sm:$0xff]
        %v9235 = vld [vmem:[#allocation10 + $0x120] sm:$0xff]
        %v9236 = vld [vmem:[#allocation10 + $0x128] sm:$0xff]
        %v9237 = vld [vmem:[#allocation10 + $0x130] sm:$0xff]
        %v9238 = vld [vmem:[#allocation10 + $0x138] sm:$0xff]
        %v9239 = vld [vmem:[#allocation10 + $0x140] sm:$0xff]
        %v9240 = vld [vmem:[#allocation10 + $0x148] sm:$0xff]
        %v9241 = vld [vmem:[#allocation10 + $0x150] sm:$0xff]
        %v9242 = vld [vmem:[#allocation10 + $0x158] sm:$0xff]
        %v9243 = vld [vmem:[#allocation10 + $0x160] sm:$0xff]
        %v9244 = vld [vmem:[#allocation10 + $0x168] sm:$0xff]
        %v9245 = vld [vmem:[#allocation10 + $0x170] sm:$0xff]
        %v9246 = vld [vmem:[#allocation10 + $0x178] sm:$0xff]
        %v9247 = vld [vmem:[#allocation10 + $0x180] sm:$0xff]
        %v9248 = vld [vmem:[#allocation10 + $0x188] sm:$0xff]
        %v9249 = vld [vmem:[#allocation10 + $0x190] sm:$0xff]
        %v9250 = vld [vmem:[#allocation10 + $0x198] sm:$0xff]
        %v9251 = vld [vmem:[#allocation10 + $0x1a0] sm:$0xff]
        %v9252 = vld [vmem:[#allocation10 + $0x1a8] sm:$0xff]
        %v9253 = vld [vmem:[#allocation10 + $0x1b0] sm:$0xff]
        %v9254 = vld [vmem:[#allocation10 + $0x1b8] sm:$0xff]
        %v9255 = vld [vmem:[#allocation10 + $0x1c0] sm:$0xff]
        %v9256 = vld [vmem:[#allocation10 + $0x1c8] sm:$0xff]
        %v9257 = vld [vmem:[#allocation10 + $0x1d0] sm:$0xff]
        %v9258 = vld [vmem:[#allocation10 + $0x1d8] sm:$0xff]
        %v9259 = vld [vmem:[#allocation10 + $0x1e0] sm:$0xff]
        %v9260 = vld [vmem:[#allocation10 + $0x1e8] sm:$0xff]
        %v9261 = vld [vmem:[#allocation10 + $0x1f0] sm:$0xff]
        %v9262 = vld [vmem:[#allocation10 + $0x1f8] sm:$0xff]
        %v9263 = vld [vmem:[#allocation10 + $0x200] sm:$0xff]
        %v9264 = vld [vmem:[#allocation10 + $0x208] sm:$0xff]
        %v9265 = vld [vmem:[#allocation10 + $0x210] sm:$0xff]
        %v9266 = vld [vmem:[#allocation10 + $0x218] sm:$0xff]
        %v9267 = vld [vmem:[#allocation10 + $0x220] sm:$0xff]
        %v9268 = vld [vmem:[#allocation10 + $0x228] sm:$0xff]
        %v9269 = vld [vmem:[#allocation10 + $0x230] sm:$0xff]
        %v9270 = vld [vmem:[#allocation10 + $0x238] sm:$0xff]
        %v9271 = vld [vmem:[#allocation10 + $0x240] sm:$0xff]
        %v9272 = vld [vmem:[#allocation10 + $0x248] sm:$0xff]
        %v9273 = vld [vmem:[#allocation10 + $0x250] sm:$0xff]
        %v9274 = vld [vmem:[#allocation10 + $0x258] sm:$0xff]
        %v9275 = vld [vmem:[#allocation10 + $0x260] sm:$0xff]
        %v9276 = vld [vmem:[#allocation10 + $0x268] sm:$0xff]
        %v9277 = vld [vmem:[#allocation10 + $0x270] sm:$0xff]
        %v9278 = vld [vmem:[#allocation10 + $0x278] sm:$0xff]
        %v9279 = vld [vmem:[#allocation10 + $0x280] sm:$0xff]
        %v9280 = vld [vmem:[#allocation10 + $0x288] sm:$0xff]
        %v9281 = vld [vmem:[#allocation10 + $0x290] sm:$0xff]
        %v9282 = vld [vmem:[#allocation10 + $0x298] sm:$0xff]
        %v9283 = vld [vmem:[#allocation10 + $0x2a0] sm:$0xff]
        %v9284 = vld [vmem:[#allocation10 + $0x2a8] sm:$0xff]
        %v9285 = vld [vmem:[#allocation10 + $0x2b0] sm:$0xff]
        %v9286 = vld [vmem:[#allocation10 + $0x2b8] sm:$0xff]
        %v9287 = vld [vmem:[#allocation10 + $0x2c0] sm:$0xff]
        %v9288 = vld [vmem:[#allocation10 + $0x2c8] sm:$0xff]
        %v9289 = vld [vmem:[#allocation10 + $0x2d0] sm:$0xff]
        %v9290 = vld [vmem:[#allocation10 + $0x2d8] sm:$0xff]
        %v9291 = vld [vmem:[#allocation10 + $0x2e0] sm:$0xff]
        %v9292 = vld [vmem:[#allocation10 + $0x2e8] sm:$0xff]
        %v9293 = vld [vmem:[#allocation10 + $0x2f0] sm:$0xff]
        %v9294 = vld [vmem:[#allocation10 + $0x2f8] sm:$0xff]
        %v9295 = vld [vmem:[#allocation10 + $0x300] sm:$0xff]
        %v9296 = vld [vmem:[#allocation10 + $0x308] sm:$0xff]
        %v9297 = vld [vmem:[#allocation10 + $0x310] sm:$0xff]
        %v9298 = vld [vmem:[#allocation10 + $0x318] sm:$0xff]
        %v9299 = vld [vmem:[#allocation10 + $0x320] sm:$0xff]
        %v9300 = vld [vmem:[#allocation10 + $0x328] sm:$0xff]
        %v9301 = vld [vmem:[#allocation10 + $0x330] sm:$0xff]
        %v9302 = vld [vmem:[#allocation10 + $0x338] sm:$0xff]
        %v9303 = vld [vmem:[#allocation10 + $0x340] sm:$0xff]
        %v9304 = vld [vmem:[#allocation10 + $0x348] sm:$0xff]
        %v9305 = vld [vmem:[#allocation10 + $0x350] sm:$0xff]
        %v9306 = vld [vmem:[#allocation10 + $0x358] sm:$0xff]
        %v9307 = vld [vmem:[#allocation10 + $0x360] sm:$0xff]
        %v9308 = vld [vmem:[#allocation10 + $0x368] sm:$0xff]
        %v9309 = vld [vmem:[#allocation10 + $0x370] sm:$0xff]
        %v9310 = vld [vmem:[#allocation10 + $0x378] sm:$0xff]
        %v9311 = vld [vmem:[#allocation10 + $0x380] sm:$0xff]
        %v9312 = vld [vmem:[#allocation10 + $0x388] sm:$0xff]
        %v9313 = vld [vmem:[#allocation10 + $0x390] sm:$0xff]
        %v9314 = vld [vmem:[#allocation10 + $0x398] sm:$0xff]
        %v9315 = vld [vmem:[#allocation10 + $0x3a0] sm:$0xff]
        %v9316 = vld [vmem:[#allocation10 + $0x3a8] sm:$0xff]
        %v9317 = vld [vmem:[#allocation10 + $0x3b0] sm:$0xff]
        %v9318 = vld [vmem:[#allocation10 + $0x3b8] sm:$0xff]
        %v9319 = vld [vmem:[#allocation10 + $0x3c0] sm:$0xff]
        %v9320 = vld [vmem:[#allocation10 + $0x3c8] sm:$0xff]
        %v9321 = vld [vmem:[#allocation10 + $0x3d0] sm:$0xff]
        %v9322 = vld [vmem:[#allocation10 + $0x3d8] sm:$0xff]
        %v9323 = vld [vmem:[#allocation10 + $0x3e0] sm:$0xff]
        %v9324 = vld [vmem:[#allocation10 + $0x3e8] sm:$0xff]
        %v9325 = vld [vmem:[#allocation10 + $0x3f0] sm:$0xff]
        %v9326 = vld [vmem:[#allocation10 + $0x3f8] sm:$0xff]
        %v9327 = vld [vmem:[#allocation10 + $0x400] sm:$0xff]
        %v9328 = vld [vmem:[#allocation10 + $0x408] sm:$0xff]
        %v9329 = vld [vmem:[#allocation10 + $0x410] sm:$0xff]
        %v9330 = vld [vmem:[#allocation10 + $0x418] sm:$0xff]
        %v9331 = vld [vmem:[#allocation10 + $0x420] sm:$0xff]
        %v9332 = vld [vmem:[#allocation10 + $0x428] sm:$0xff]
        %v9333 = vld [vmem:[#allocation10 + $0x430] sm:$0xff]
        %v9334 = vld [vmem:[#allocation10 + $0x438] sm:$0xff]
        %v9335 = vld [vmem:[#allocation10 + $0x440] sm:$0xff]
        %v9336 = vld [vmem:[#allocation10 + $0x448] sm:$0xff]
        %v9337 = vld [vmem:[#allocation10 + $0x450] sm:$0xff]
        %v9338 = vld [vmem:[#allocation10 + $0x458] sm:$0xff]
        %v9339 = vld [vmem:[#allocation10 + $0x460] sm:$0xff]
        %v9340 = vld [vmem:[#allocation10 + $0x468] sm:$0xff]
        %v9341 = vld [vmem:[#allocation10 + $0x470] sm:$0xff]
        %v9342 = vld [vmem:[#allocation10 + $0x478] sm:$0xff]
        %v9343 = vld [vmem:[#allocation10 + $0x480] sm:$0xff]
        %v9344 = vld [vmem:[#allocation10 + $0x488] sm:$0xff]
        %v9345 = vld [vmem:[#allocation10 + $0x490] sm:$0xff]
        %v9346 = vld [vmem:[#allocation10 + $0x498] sm:$0xff]
        %v9347 = vld [vmem:[#allocation10 + $0x4a0] sm:$0xff]
        %v9348 = vld [vmem:[#allocation10 + $0x4a8] sm:$0xff]
        %v9349 = vld [vmem:[#allocation10 + $0x4b0] sm:$0xff]
        %v9350 = vld [vmem:[#allocation10 + $0x4b8] sm:$0xff]
        %v9351 = vld [vmem:[#allocation10 + $0x4c0] sm:$0xff]
        %v9352 = vld [vmem:[#allocation10 + $0x4c8] sm:$0xff]
        %v9353 = vld [vmem:[#allocation10 + $0x4d0] sm:$0xff]
        %v9354 = vld [vmem:[#allocation10 + $0x4d8] sm:$0xff]
        %v9355 = vld [vmem:[#allocation10 + $0x4e0] sm:$0xff]
        %v9356 = vld [vmem:[#allocation10 + $0x4e8] sm:$0xff]
        %v9357 = vld [vmem:[#allocation10 + $0x4f0] sm:$0xff]
        %v9358 = vld [vmem:[#allocation10 + $0x4f8] sm:$0xff]
        %v9359 = vld [vmem:[#allocation10 + $0x500] sm:$0xff]
        %v9360 = vld [vmem:[#allocation10 + $0x508] sm:$0xff]
        %v9361 = vld [vmem:[#allocation10 + $0x510] sm:$0xff]
        %v9362 = vld [vmem:[#allocation10 + $0x518] sm:$0xff]
        %v9363 = vld [vmem:[#allocation10 + $0x520] sm:$0xff]
        %v9364 = vld [vmem:[#allocation10 + $0x528] sm:$0xff]
        %v9365 = vld [vmem:[#allocation10 + $0x530] sm:$0xff]
        %v9366 = vld [vmem:[#allocation10 + $0x538] sm:$0xff]
        %v9367 = vld [vmem:[#allocation10 + $0x540] sm:$0xff]
        %v9368 = vld [vmem:[#allocation10 + $0x548] sm:$0xff]
        %v9369 = vld [vmem:[#allocation10 + $0x550] sm:$0xff]
        %v9370 = vld [vmem:[#allocation10 + $0x558] sm:$0xff]
        %v9371 = vld [vmem:[#allocation10 + $0x560] sm:$0xff]
        %v9372 = vld [vmem:[#allocation10 + $0x568] sm:$0xff]
        %v9373 = vld [vmem:[#allocation10 + $0x570] sm:$0xff]
        %v9374 = vld [vmem:[#allocation10 + $0x578] sm:$0xff]
        %v9375 = vld [vmem:[#allocation10 + $0x580] sm:$0xff]
        %v9376 = vld [vmem:[#allocation10 + $0x588] sm:$0xff]
        %v9377 = vld [vmem:[#allocation10 + $0x590] sm:$0xff]
        %v9378 = vld [vmem:[#allocation10 + $0x598] sm:$0xff]
        %v9379 = vld [vmem:[#allocation10 + $0x5a0] sm:$0xff]
        %v9380 = vld [vmem:[#allocation10 + $0x5a8] sm:$0xff]
        %v9381 = vld [vmem:[#allocation10 + $0x5b0] sm:$0xff]
        %v9382 = vld [vmem:[#allocation10 + $0x5b8] sm:$0xff]
        %v9383 = vld [vmem:[#allocation10 + $0x5c0] sm:$0xff]
        %v9384 = vld [vmem:[#allocation10 + $0x5c8] sm:$0xff]
        %v9385 = vld [vmem:[#allocation10 + $0x5d0] sm:$0xff]
        %v9386 = vld [vmem:[#allocation10 + $0x5d8] sm:$0xff]
        %v9387 = vld [vmem:[#allocation10 + $0x5e0] sm:$0xff]
        %v9388 = vld [vmem:[#allocation10 + $0x5e8] sm:$0xff]
        %v9389 = vld [vmem:[#allocation10 + $0x5f0] sm:$0xff]
        %v9390 = vld [vmem:[#allocation10 + $0x5f8] sm:$0xff]
        %v9391 = vld [vmem:[#allocation10 + $0x600] sm:$0xff]
        %v9392 = vld [vmem:[#allocation10 + $0x608] sm:$0xff]
        %v9393 = vld [vmem:[#allocation10 + $0x610] sm:$0xff]
        %v9394 = vld [vmem:[#allocation10 + $0x618] sm:$0xff]
        %v9395 = vld [vmem:[#allocation10 + $0x620] sm:$0xff]
        %v9396 = vld [vmem:[#allocation10 + $0x628] sm:$0xff]
        %v9397 = vld [vmem:[#allocation10 + $0x630] sm:$0xff]
        %v9398 = vld [vmem:[#allocation10 + $0x638] sm:$0xff]
        %v9399 = vld [vmem:[#allocation10 + $0x640] sm:$0xff]
        %v9400 = vld [vmem:[#allocation10 + $0x648] sm:$0xff]
        %v9401 = vld [vmem:[#allocation10 + $0x650] sm:$0xff]
        %v9402 = vld [vmem:[#allocation10 + $0x658] sm:$0xff]
        %v9403 = vld [vmem:[#allocation10 + $0x660] sm:$0xff]
        %v9404 = vld [vmem:[#allocation10 + $0x668] sm:$0xff]
        %v9405 = vld [vmem:[#allocation10 + $0x670] sm:$0xff]
        %v9406 = vld [vmem:[#allocation10 + $0x678] sm:$0xff]
        %v9407 = vld [vmem:[#allocation10 + $0x680] sm:$0xff]
        %v9408 = vld [vmem:[#allocation10 + $0x688] sm:$0xff]
        %v9409 = vld [vmem:[#allocation10 + $0x690] sm:$0xff]
        %v9410 = vld [vmem:[#allocation10 + $0x698] sm:$0xff]
        %v9411 = vld [vmem:[#allocation10 + $0x6a0] sm:$0xff]
        %v9412 = vld [vmem:[#allocation10 + $0x6a8] sm:$0xff]
        %v9413 = vld [vmem:[#allocation10 + $0x6b0] sm:$0xff]
        %v9414 = vld [vmem:[#allocation10 + $0x6b8] sm:$0xff]
        %v9415 = vld [vmem:[#allocation10 + $0x6c0] sm:$0xff]
        %v9416 = vld [vmem:[#allocation10 + $0x6c8] sm:$0xff]
        %v9417 = vld [vmem:[#allocation10 + $0x6d0] sm:$0xff]
        %v9418 = vld [vmem:[#allocation10 + $0x6d8] sm:$0xff]
        %v9419 = vld [vmem:[#allocation10 + $0x6e0] sm:$0xff]
        %v9420 = vld [vmem:[#allocation10 + $0x6e8] sm:$0xff]
        %v9421 = vld [vmem:[#allocation10 + $0x6f0] sm:$0xff]
        %v9422 = vld [vmem:[#allocation10 + $0x6f8] sm:$0xff]
        %v9423 = vld [vmem:[#allocation10 + $0x700] sm:$0xff]
        %v9424 = vld [vmem:[#allocation10 + $0x708] sm:$0xff]
        %v9425 = vld [vmem:[#allocation10 + $0x710] sm:$0xff]
        %v9426 = vld [vmem:[#allocation10 + $0x718] sm:$0xff]
        %v9427 = vld [vmem:[#allocation10 + $0x720] sm:$0xff]
        %v9428 = vld [vmem:[#allocation10 + $0x728] sm:$0xff]
        %v9429 = vld [vmem:[#allocation10 + $0x730] sm:$0xff]
        %v9430 = vld [vmem:[#allocation10 + $0x738] sm:$0xff]
        %v9431 = vld [vmem:[#allocation10 + $0x740] sm:$0xff]
        %v9432 = vld [vmem:[#allocation10 + $0x748] sm:$0xff]
        %v9433 = vld [vmem:[#allocation10 + $0x750] sm:$0xff]
        %v9434 = vld [vmem:[#allocation10 + $0x758] sm:$0xff]
        %v9435 = vld [vmem:[#allocation10 + $0x760] sm:$0xff]
        %v9436 = vld [vmem:[#allocation10 + $0x768] sm:$0xff]
        %v9437 = vld [vmem:[#allocation10 + $0x770] sm:$0xff]
        %v9438 = vld [vmem:[#allocation10 + $0x778] sm:$0xff]
        %v9439 = vld [vmem:[#allocation10 + $0x780] sm:$0xff]
        %v9440 = vld [vmem:[#allocation10 + $0x788] sm:$0xff]
        %v9441 = vld [vmem:[#allocation10 + $0x790] sm:$0xff]
        %v9442 = vld [vmem:[#allocation10 + $0x798] sm:$0xff]
        %v9443 = vld [vmem:[#allocation10 + $0x7a0] sm:$0xff]
        %v9444 = vld [vmem:[#allocation10 + $0x7a8] sm:$0xff]
        %v9445 = vld [vmem:[#allocation10 + $0x7b0] sm:$0xff]
        %v9446 = vld [vmem:[#allocation10 + $0x7b8] sm:$0xff]
        %v9447 = vld [vmem:[#allocation10 + $0x7c0] sm:$0xff]
        %v9448 = vld [vmem:[#allocation10 + $0x7c8] sm:$0xff]
        %v9449 = vld [vmem:[#allocation10 + $0x7d0] sm:$0xff]
        %v9450 = vld [vmem:[#allocation10 + $0x7d8] sm:$0xff]
        %v9451 = vld [vmem:[#allocation10 + $0x7e0] sm:$0xff]
        %v9452 = vld [vmem:[#allocation10 + $0x7e8] sm:$0xff]
        %v9453 = vld [vmem:[#allocation10 + $0x7f0] sm:$0xff]
        %v9454 = vld [vmem:[#allocation10 + $0x7f8] sm:$0xff]
        %v9455 = vld [vmem:[#allocation11] sm:$0xf]
        %v9457 = vlaneseq
        %v9458 = vshrl.u32 %v9457, 7
        %v9459 = vsub.s32 0, %v9458
        %v9460 = vrot.slane %v9455, %v9459
        %v9461 = vlaneseq
        %v9462 = vshrl.u32 %v9461, 7
        %v9463 = vsub.s32 1, %v9462
        %v9464 = vrot.slane %v9455, %v9463
        %v9465 = vlaneseq
        %v9466 = vshrl.u32 %v9465, 7
        %v9467 = vsub.s32 2, %v9466
        %v9468 = vrot.slane %v9455, %v9467
        %v9469 = vlaneseq
        %v9470 = vshrl.u32 %v9469, 7
        %v9471 = vsub.s32 3, %v9470
        %v9472 = vrot.slane %v9455, %v9471
        %v9733 = vunpack.c.l.b16 %v9199
        %v9734 = vunpack.c.h.b16 %v9199
        %v9735 = vunpack.c.l.b16 %v9200
        %v9736 = vunpack.c.h.b16 %v9200
        %v9737 = vunpack.c.l.b16 %v9201
        %v9738 = vunpack.c.h.b16 %v9201
        %v9739 = vunpack.c.l.b16 %v9202
        %v9740 = vunpack.c.h.b16 %v9202
        %v9741 = vunpack.c.l.b16 %v9203
        %v9742 = vunpack.c.h.b16 %v9203
        %v9743 = vunpack.c.l.b16 %v9204
        %v9744 = vunpack.c.h.b16 %v9204
        %v9745 = vunpack.c.l.b16 %v9205
        %v9746 = vunpack.c.h.b16 %v9205
        %v9747 = vunpack.c.l.b16 %v9206
        %v9748 = vunpack.c.h.b16 %v9206
        %v9749 = vunpack.c.l.b16 %v9207
        %v9750 = vunpack.c.h.b16 %v9207
        %v9751 = vunpack.c.l.b16 %v9208
        %v9752 = vunpack.c.h.b16 %v9208
        %v9753 = vunpack.c.l.b16 %v9209
        %v9754 = vunpack.c.h.b16 %v9209
        %v9755 = vunpack.c.l.b16 %v9210
        %v9756 = vunpack.c.h.b16 %v9210
        %v9757 = vunpack.c.l.b16 %v9211
        %v9758 = vunpack.c.h.b16 %v9211
        %v9759 = vunpack.c.l.b16 %v9212
        %v9760 = vunpack.c.h.b16 %v9212
        %v9761 = vunpack.c.l.b16 %v9213
        %v9762 = vunpack.c.h.b16 %v9213
        %v9763 = vunpack.c.l.b16 %v9214
        %v9764 = vunpack.c.h.b16 %v9214
        %v9765 = vunpack.c.l.b16 %v9215
        %v9766 = vunpack.c.h.b16 %v9215
        %v9767 = vunpack.c.l.b16 %v9216
        %v9768 = vunpack.c.h.b16 %v9216
        %v9769 = vunpack.c.l.b16 %v9217
        %v9770 = vunpack.c.h.b16 %v9217
        %v9771 = vunpack.c.l.b16 %v9218
        %v9772 = vunpack.c.h.b16 %v9218
        %v9773 = vunpack.c.l.b16 %v9219
        %v9774 = vunpack.c.h.b16 %v9219
        %v9775 = vunpack.c.l.b16 %v9220
        %v9776 = vunpack.c.h.b16 %v9220
        %v9777 = vunpack.c.l.b16 %v9221
        %v9778 = vunpack.c.h.b16 %v9221
        %v9779 = vunpack.c.l.b16 %v9222
        %v9780 = vunpack.c.h.b16 %v9222
        %v9781 = vunpack.c.l.b16 %v9223
        %v9782 = vunpack.c.h.b16 %v9223
        %v9783 = vunpack.c.l.b16 %v9224
        %v9784 = vunpack.c.h.b16 %v9224
        %v9785 = vunpack.c.l.b16 %v9225
        %v9786 = vunpack.c.h.b16 %v9225
        %v9787 = vunpack.c.l.b16 %v9226
        %v9788 = vunpack.c.h.b16 %v9226
        %v9789 = vunpack.c.l.b16 %v9227
        %v9790 = vunpack.c.h.b16 %v9227
        %v9791 = vunpack.c.l.b16 %v9228
        %v9792 = vunpack.c.h.b16 %v9228
        %v9793 = vunpack.c.l.b16 %v9229
        %v9794 = vunpack.c.h.b16 %v9229
        %v9795 = vunpack.c.l.b16 %v9230
        %v9796 = vunpack.c.h.b16 %v9230
        %v9797 = vunpack.c.l.b16 %v9231
        %v9798 = vunpack.c.h.b16 %v9231
        %v9799 = vunpack.c.l.b16 %v9232
        %v9800 = vunpack.c.h.b16 %v9232
        %v9801 = vunpack.c.l.b16 %v9233
        %v9802 = vunpack.c.h.b16 %v9233
        %v9803 = vunpack.c.l.b16 %v9234
        %v9804 = vunpack.c.h.b16 %v9234
        %v9805 = vunpack.c.l.b16 %v9235
        %v9806 = vunpack.c.h.b16 %v9235
        %v9807 = vunpack.c.l.b16 %v9236
        %v9808 = vunpack.c.h.b16 %v9236
        %v9809 = vunpack.c.l.b16 %v9237
        %v9810 = vunpack.c.h.b16 %v9237
        %v9811 = vunpack.c.l.b16 %v9238
        %v9812 = vunpack.c.h.b16 %v9238
        %v9813 = vunpack.c.l.b16 %v9239
        %v9814 = vunpack.c.h.b16 %v9239
        %v9815 = vunpack.c.l.b16 %v9240
        %v9816 = vunpack.c.h.b16 %v9240
        %v9817 = vunpack.c.l.b16 %v9241
        %v9818 = vunpack.c.h.b16 %v9241
        %v9819 = vunpack.c.l.b16 %v9242
        %v9820 = vunpack.c.h.b16 %v9242
        %v9821 = vunpack.c.l.b16 %v9243
        %v9822 = vunpack.c.h.b16 %v9243
        %v9823 = vunpack.c.l.b16 %v9244
        %v9824 = vunpack.c.h.b16 %v9244
        %v9825 = vunpack.c.l.b16 %v9245
        %v9826 = vunpack.c.h.b16 %v9245
        %v9827 = vunpack.c.l.b16 %v9246
        %v9828 = vunpack.c.h.b16 %v9246
        %v9829 = vunpack.c.l.b16 %v9247
        %v9830 = vunpack.c.h.b16 %v9247
        %v9831 = vunpack.c.l.b16 %v9248
        %v9832 = vunpack.c.h.b16 %v9248
        %v9833 = vunpack.c.l.b16 %v9249
        %v9834 = vunpack.c.h.b16 %v9249
        %v9835 = vunpack.c.l.b16 %v9250
        %v9836 = vunpack.c.h.b16 %v9250
        %v9837 = vunpack.c.l.b16 %v9251
        %v9838 = vunpack.c.h.b16 %v9251
        %v9839 = vunpack.c.l.b16 %v9252
        %v9840 = vunpack.c.h.b16 %v9252
        %v9841 = vunpack.c.l.b16 %v9253
        %v9842 = vunpack.c.h.b16 %v9253
        %v9843 = vunpack.c.l.b16 %v9254
        %v9844 = vunpack.c.h.b16 %v9254
        %v9845 = vunpack.c.l.b16 %v9255
        %v9846 = vunpack.c.h.b16 %v9255
        %v9847 = vunpack.c.l.b16 %v9256
        %v9848 = vunpack.c.h.b16 %v9256
        %v9849 = vunpack.c.l.b16 %v9257
        %v9850 = vunpack.c.h.b16 %v9257
        %v9851 = vunpack.c.l.b16 %v9258
        %v9852 = vunpack.c.h.b16 %v9258
        %v9853 = vunpack.c.l.b16 %v9259
        %v9854 = vunpack.c.h.b16 %v9259
        %v9855 = vunpack.c.l.b16 %v9260
        %v9856 = vunpack.c.h.b16 %v9260
        %v9857 = vunpack.c.l.b16 %v9261
        %v9858 = vunpack.c.h.b16 %v9261
        %v9859 = vunpack.c.l.b16 %v9262
        %v9860 = vunpack.c.h.b16 %v9262
        %v9861 = vunpack.c.l.b16 %v9263
        %v9862 = vunpack.c.h.b16 %v9263
        %v9863 = vunpack.c.l.b16 %v9264
        %v9864 = vunpack.c.h.b16 %v9264
        %v9865 = vunpack.c.l.b16 %v9265
        %v9866 = vunpack.c.h.b16 %v9265
        %v9867 = vunpack.c.l.b16 %v9266
        %v9868 = vunpack.c.h.b16 %v9266
        %v9869 = vunpack.c.l.b16 %v9267
        %v9870 = vunpack.c.h.b16 %v9267
        %v9871 = vunpack.c.l.b16 %v9268
        %v9872 = vunpack.c.h.b16 %v9268
        %v9873 = vunpack.c.l.b16 %v9269
        %v9874 = vunpack.c.h.b16 %v9269
        %v9875 = vunpack.c.l.b16 %v9270
        %v9876 = vunpack.c.h.b16 %v9270
        %v9877 = vunpack.c.l.b16 %v9271
        %v9878 = vunpack.c.h.b16 %v9271
        %v9879 = vunpack.c.l.b16 %v9272
        %v9880 = vunpack.c.h.b16 %v9272
        %v9881 = vunpack.c.l.b16 %v9273
        %v9882 = vunpack.c.h.b16 %v9273
        %v9883 = vunpack.c.l.b16 %v9274
        %v9884 = vunpack.c.h.b16 %v9274
        %v9885 = vunpack.c.l.b16 %v9275
        %v9886 = vunpack.c.h.b16 %v9275
        %v9887 = vunpack.c.l.b16 %v9276
        %v9888 = vunpack.c.h.b16 %v9276
        %v9889 = vunpack.c.l.b16 %v9277
        %v9890 = vunpack.c.h.b16 %v9277
        %v9891 = vunpack.c.l.b16 %v9278
        %v9892 = vunpack.c.h.b16 %v9278
        %v9893 = vunpack.c.l.b16 %v9279
        %v9894 = vunpack.c.h.b16 %v9279
        %v9895 = vunpack.c.l.b16 %v9280
        %v9896 = vunpack.c.h.b16 %v9280
        %v9897 = vunpack.c.l.b16 %v9281
        %v9898 = vunpack.c.h.b16 %v9281
        %v9899 = vunpack.c.l.b16 %v9282
        %v9900 = vunpack.c.h.b16 %v9282
        %v9901 = vunpack.c.l.b16 %v9283
        %v9902 = vunpack.c.h.b16 %v9283
        %v9903 = vunpack.c.l.b16 %v9284
        %v9904 = vunpack.c.h.b16 %v9284
        %v9905 = vunpack.c.l.b16 %v9285
        %v9906 = vunpack.c.h.b16 %v9285
        %v9907 = vunpack.c.l.b16 %v9286
        %v9908 = vunpack.c.h.b16 %v9286
        %v9909 = vunpack.c.l.b16 %v9287
        %v9910 = vunpack.c.h.b16 %v9287
        %v9911 = vunpack.c.l.b16 %v9288
        %v9912 = vunpack.c.h.b16 %v9288
        %v9913 = vunpack.c.l.b16 %v9289
        %v9914 = vunpack.c.h.b16 %v9289
        %v9915 = vunpack.c.l.b16 %v9290
        %v9916 = vunpack.c.h.b16 %v9290
        %v9917 = vunpack.c.l.b16 %v9291
        %v9918 = vunpack.c.h.b16 %v9291
        %v9919 = vunpack.c.l.b16 %v9292
        %v9920 = vunpack.c.h.b16 %v9292
        %v9921 = vunpack.c.l.b16 %v9293
        %v9922 = vunpack.c.h.b16 %v9293
        %v9923 = vunpack.c.l.b16 %v9294
        %v9924 = vunpack.c.h.b16 %v9294
        %v9925 = vunpack.c.l.b16 %v9295
        %v9926 = vunpack.c.h.b16 %v9295
        %v9927 = vunpack.c.l.b16 %v9296
        %v9928 = vunpack.c.h.b16 %v9296
        %v9929 = vunpack.c.l.b16 %v9297
        %v9930 = vunpack.c.h.b16 %v9297
        %v9931 = vunpack.c.l.b16 %v9298
        %v9932 = vunpack.c.h.b16 %v9298
        %v9933 = vunpack.c.l.b16 %v9299
        %v9934 = vunpack.c.h.b16 %v9299
        %v9935 = vunpack.c.l.b16 %v9300
        %v9936 = vunpack.c.h.b16 %v9300
        %v9937 = vunpack.c.l.b16 %v9301
        %v9938 = vunpack.c.h.b16 %v9301
        %v9939 = vunpack.c.l.b16 %v9302
        %v9940 = vunpack.c.h.b16 %v9302
        %v9941 = vunpack.c.l.b16 %v9303
        %v9942 = vunpack.c.h.b16 %v9303
        %v9943 = vunpack.c.l.b16 %v9304
        %v9944 = vunpack.c.h.b16 %v9304
        %v9945 = vunpack.c.l.b16 %v9305
        %v9946 = vunpack.c.h.b16 %v9305
        %v9947 = vunpack.c.l.b16 %v9306
        %v9948 = vunpack.c.h.b16 %v9306
        %v9949 = vunpack.c.l.b16 %v9307
        %v9950 = vunpack.c.h.b16 %v9307
        %v9951 = vunpack.c.l.b16 %v9308
        %v9952 = vunpack.c.h.b16 %v9308
        %v9953 = vunpack.c.l.b16 %v9309
        %v9954 = vunpack.c.h.b16 %v9309
        %v9955 = vunpack.c.l.b16 %v9310
        %v9956 = vunpack.c.h.b16 %v9310
        %v9957 = vunpack.c.l.b16 %v9311
        %v9958 = vunpack.c.h.b16 %v9311
        %v9959 = vunpack.c.l.b16 %v9312
        %v9960 = vunpack.c.h.b16 %v9312
        %v9961 = vunpack.c.l.b16 %v9313
        %v9962 = vunpack.c.h.b16 %v9313
        %v9963 = vunpack.c.l.b16 %v9314
        %v9964 = vunpack.c.h.b16 %v9314
        %v9965 = vunpack.c.l.b16 %v9315
        %v9966 = vunpack.c.h.b16 %v9315
        %v9967 = vunpack.c.l.b16 %v9316
        %v9968 = vunpack.c.h.b16 %v9316
        %v9969 = vunpack.c.l.b16 %v9317
        %v9970 = vunpack.c.h.b16 %v9317
        %v9971 = vunpack.c.l.b16 %v9318
        %v9972 = vunpack.c.h.b16 %v9318
        %v9973 = vunpack.c.l.b16 %v9319
        %v9974 = vunpack.c.h.b16 %v9319
        %v9975 = vunpack.c.l.b16 %v9320
        %v9976 = vunpack.c.h.b16 %v9320
        %v9977 = vunpack.c.l.b16 %v9321
        %v9978 = vunpack.c.h.b16 %v9321
        %v9979 = vunpack.c.l.b16 %v9322
        %v9980 = vunpack.c.h.b16 %v9322
        %v9981 = vunpack.c.l.b16 %v9323
        %v9982 = vunpack.c.h.b16 %v9323
        %v9983 = vunpack.c.l.b16 %v9324
        %v9984 = vunpack.c.h.b16 %v9324
        %v9985 = vunpack.c.l.b16 %v9325
        %v9986 = vunpack.c.h.b16 %v9325
        %v9987 = vunpack.c.l.b16 %v9326
        %v9988 = vunpack.c.h.b16 %v9326
        %v9989 = vunpack.c.l.b16 %v9327
        %v9990 = vunpack.c.h.b16 %v9327
        %v9991 = vunpack.c.l.b16 %v9328
        %v9992 = vunpack.c.h.b16 %v9328
        %v9993 = vunpack.c.l.b16 %v9329
        %v9994 = vunpack.c.h.b16 %v9329
        %v9995 = vunpack.c.l.b16 %v9330
        %v9996 = vunpack.c.h.b16 %v9330
        %v9997 = vunpack.c.l.b16 %v9331
        %v9998 = vunpack.c.h.b16 %v9331
        %v9999 = vunpack.c.l.b16 %v9332
        %v10000 = vunpack.c.h.b16 %v9332
        %v10001 = vunpack.c.l.b16 %v9333
        %v10002 = vunpack.c.h.b16 %v9333
        %v10003 = vunpack.c.l.b16 %v9334
        %v10004 = vunpack.c.h.b16 %v9334
        %v10005 = vunpack.c.l.b16 %v9335
        %v10006 = vunpack.c.h.b16 %v9335
        %v10007 = vunpack.c.l.b16 %v9336
        %v10008 = vunpack.c.h.b16 %v9336
        %v10009 = vunpack.c.l.b16 %v9337
        %v10010 = vunpack.c.h.b16 %v9337
        %v10011 = vunpack.c.l.b16 %v9338
        %v10012 = vunpack.c.h.b16 %v9338
        %v10013 = vunpack.c.l.b16 %v9339
        %v10014 = vunpack.c.h.b16 %v9339
        %v10015 = vunpack.c.l.b16 %v9340
        %v10016 = vunpack.c.h.b16 %v9340
        %v10017 = vunpack.c.l.b16 %v9341
        %v10018 = vunpack.c.h.b16 %v9341
        %v10019 = vunpack.c.l.b16 %v9342
        %v10020 = vunpack.c.h.b16 %v9342
        %v10021 = vunpack.c.l.b16 %v9343
        %v10022 = vunpack.c.h.b16 %v9343
        %v10023 = vunpack.c.l.b16 %v9344
        %v10024 = vunpack.c.h.b16 %v9344
        %v10025 = vunpack.c.l.b16 %v9345
        %v10026 = vunpack.c.h.b16 %v9345
        %v10027 = vunpack.c.l.b16 %v9346
        %v10028 = vunpack.c.h.b16 %v9346
        %v10029 = vunpack.c.l.b16 %v9347
        %v10030 = vunpack.c.h.b16 %v9347
        %v10031 = vunpack.c.l.b16 %v9348
        %v10032 = vunpack.c.h.b16 %v9348
        %v10033 = vunpack.c.l.b16 %v9349
        %v10034 = vunpack.c.h.b16 %v9349
        %v10035 = vunpack.c.l.b16 %v9350
        %v10036 = vunpack.c.h.b16 %v9350
        %v10037 = vunpack.c.l.b16 %v9351
        %v10038 = vunpack.c.h.b16 %v9351
        %v10039 = vunpack.c.l.b16 %v9352
        %v10040 = vunpack.c.h.b16 %v9352
        %v10041 = vunpack.c.l.b16 %v9353
        %v10042 = vunpack.c.h.b16 %v9353
        %v10043 = vunpack.c.l.b16 %v9354
        %v10044 = vunpack.c.h.b16 %v9354
        %v10045 = vunpack.c.l.b16 %v9355
        %v10046 = vunpack.c.h.b16 %v9355
        %v10047 = vunpack.c.l.b16 %v9356
        %v10048 = vunpack.c.h.b16 %v9356
        %v10049 = vunpack.c.l.b16 %v9357
        %v10050 = vunpack.c.h.b16 %v9357
        %v10051 = vunpack.c.l.b16 %v9358
        %v10052 = vunpack.c.h.b16 %v9358
        %v10053 = vunpack.c.l.b16 %v9359
        %v10054 = vunpack.c.h.b16 %v9359
        %v10055 = vunpack.c.l.b16 %v9360
        %v10056 = vunpack.c.h.b16 %v9360
        %v10057 = vunpack.c.l.b16 %v9361
        %v10058 = vunpack.c.h.b16 %v9361
        %v10059 = vunpack.c.l.b16 %v9362
        %v10060 = vunpack.c.h.b16 %v9362
        %v10061 = vunpack.c.l.b16 %v9363
        %v10062 = vunpack.c.h.b16 %v9363
        %v10063 = vunpack.c.l.b16 %v9364
        %v10064 = vunpack.c.h.b16 %v9364
        %v10065 = vunpack.c.l.b16 %v9365
        %v10066 = vunpack.c.h.b16 %v9365
        %v10067 = vunpack.c.l.b16 %v9366
        %v10068 = vunpack.c.h.b16 %v9366
        %v10069 = vunpack.c.l.b16 %v9367
        %v10070 = vunpack.c.h.b16 %v9367
        %v10071 = vunpack.c.l.b16 %v9368
        %v10072 = vunpack.c.h.b16 %v9368
        %v10073 = vunpack.c.l.b16 %v9369
        %v10074 = vunpack.c.h.b16 %v9369
        %v10075 = vunpack.c.l.b16 %v9370
        %v10076 = vunpack.c.h.b16 %v9370
        %v10077 = vunpack.c.l.b16 %v9371
        %v10078 = vunpack.c.h.b16 %v9371
        %v10079 = vunpack.c.l.b16 %v9372
        %v10080 = vunpack.c.h.b16 %v9372
        %v10081 = vunpack.c.l.b16 %v9373
        %v10082 = vunpack.c.h.b16 %v9373
        %v10083 = vunpack.c.l.b16 %v9374
        %v10084 = vunpack.c.h.b16 %v9374
        %v10085 = vunpack.c.l.b16 %v9375
        %v10086 = vunpack.c.h.b16 %v9375
        %v10087 = vunpack.c.l.b16 %v9376
        %v10088 = vunpack.c.h.b16 %v9376
        %v10089 = vunpack.c.l.b16 %v9377
        %v10090 = vunpack.c.h.b16 %v9377
        %v10091 = vunpack.c.l.b16 %v9378
        %v10092 = vunpack.c.h.b16 %v9378
        %v10093 = vunpack.c.l.b16 %v9379
        %v10094 = vunpack.c.h.b16 %v9379
        %v10095 = vunpack.c.l.b16 %v9380
        %v10096 = vunpack.c.h.b16 %v9380
        %v10097 = vunpack.c.l.b16 %v9381
        %v10098 = vunpack.c.h.b16 %v9381
        %v10099 = vunpack.c.l.b16 %v9382
        %v10100 = vunpack.c.h.b16 %v9382
        %v10101 = vunpack.c.l.b16 %v9383
        %v10102 = vunpack.c.h.b16 %v9383
        %v10103 = vunpack.c.l.b16 %v9384
        %v10104 = vunpack.c.h.b16 %v9384
        %v10105 = vunpack.c.l.b16 %v9385
        %v10106 = vunpack.c.h.b16 %v9385
        %v10107 = vunpack.c.l.b16 %v9386
        %v10108 = vunpack.c.h.b16 %v9386
        %v10109 = vunpack.c.l.b16 %v9387
        %v10110 = vunpack.c.h.b16 %v9387
        %v10111 = vunpack.c.l.b16 %v9388
        %v10112 = vunpack.c.h.b16 %v9388
        %v10113 = vunpack.c.l.b16 %v9389
        %v10114 = vunpack.c.h.b16 %v9389
        %v10115 = vunpack.c.l.b16 %v9390
        %v10116 = vunpack.c.h.b16 %v9390
        %v10117 = vunpack.c.l.b16 %v9391
        %v10118 = vunpack.c.h.b16 %v9391
        %v10119 = vunpack.c.l.b16 %v9392
        %v10120 = vunpack.c.h.b16 %v9392
        %v10121 = vunpack.c.l.b16 %v9393
        %v10122 = vunpack.c.h.b16 %v9393
        %v10123 = vunpack.c.l.b16 %v9394
        %v10124 = vunpack.c.h.b16 %v9394
        %v10125 = vunpack.c.l.b16 %v9395
        %v10126 = vunpack.c.h.b16 %v9395
        %v10127 = vunpack.c.l.b16 %v9396
        %v10128 = vunpack.c.h.b16 %v9396
        %v10129 = vunpack.c.l.b16 %v9397
        %v10130 = vunpack.c.h.b16 %v9397
        %v10131 = vunpack.c.l.b16 %v9398
        %v10132 = vunpack.c.h.b16 %v9398
        %v10133 = vunpack.c.l.b16 %v9399
        %v10134 = vunpack.c.h.b16 %v9399
        %v10135 = vunpack.c.l.b16 %v9400
        %v10136 = vunpack.c.h.b16 %v9400
        %v10137 = vunpack.c.l.b16 %v9401
        %v10138 = vunpack.c.h.b16 %v9401
        %v10139 = vunpack.c.l.b16 %v9402
        %v10140 = vunpack.c.h.b16 %v9402
        %v10141 = vunpack.c.l.b16 %v9403
        %v10142 = vunpack.c.h.b16 %v9403
        %v10143 = vunpack.c.l.b16 %v9404
        %v10144 = vunpack.c.h.b16 %v9404
        %v10145 = vunpack.c.l.b16 %v9405
        %v10146 = vunpack.c.h.b16 %v9405
        %v10147 = vunpack.c.l.b16 %v9406
        %v10148 = vunpack.c.h.b16 %v9406
        %v10149 = vunpack.c.l.b16 %v9407
        %v10150 = vunpack.c.h.b16 %v9407
        %v10151 = vunpack.c.l.b16 %v9408
        %v10152 = vunpack.c.h.b16 %v9408
        %v10153 = vunpack.c.l.b16 %v9409
        %v10154 = vunpack.c.h.b16 %v9409
        %v10155 = vunpack.c.l.b16 %v9410
        %v10156 = vunpack.c.h.b16 %v9410
        %v10157 = vunpack.c.l.b16 %v9411
        %v10158 = vunpack.c.h.b16 %v9411
        %v10159 = vunpack.c.l.b16 %v9412
        %v10160 = vunpack.c.h.b16 %v9412
        %v10161 = vunpack.c.l.b16 %v9413
        %v10162 = vunpack.c.h.b16 %v9413
        %v10163 = vunpack.c.l.b16 %v9414
        %v10164 = vunpack.c.h.b16 %v9414
        %v10165 = vunpack.c.l.b16 %v9415
        %v10166 = vunpack.c.h.b16 %v9415
        %v10167 = vunpack.c.l.b16 %v9416
        %v10168 = vunpack.c.h.b16 %v9416
        %v10169 = vunpack.c.l.b16 %v9417
        %v10170 = vunpack.c.h.b16 %v9417
        %v10171 = vunpack.c.l.b16 %v9418
        %v10172 = vunpack.c.h.b16 %v9418
        %v10173 = vunpack.c.l.b16 %v9419
        %v10174 = vunpack.c.h.b16 %v9419
        %v10175 = vunpack.c.l.b16 %v9420
        %v10176 = vunpack.c.h.b16 %v9420
        %v10177 = vunpack.c.l.b16 %v9421
        %v10178 = vunpack.c.h.b16 %v9421
        %v10179 = vunpack.c.l.b16 %v9422
        %v10180 = vunpack.c.h.b16 %v9422
        %v10181 = vunpack.c.l.b16 %v9423
        %v10182 = vunpack.c.h.b16 %v9423
        %v10183 = vunpack.c.l.b16 %v9424
        %v10184 = vunpack.c.h.b16 %v9424
        %v10185 = vunpack.c.l.b16 %v9425
        %v10186 = vunpack.c.h.b16 %v9425
        %v10187 = vunpack.c.l.b16 %v9426
        %v10188 = vunpack.c.h.b16 %v9426
        %v10189 = vunpack.c.l.b16 %v9427
        %v10190 = vunpack.c.h.b16 %v9427
        %v10191 = vunpack.c.l.b16 %v9428
        %v10192 = vunpack.c.h.b16 %v9428
        %v10193 = vunpack.c.l.b16 %v9429
        %v10194 = vunpack.c.h.b16 %v9429
        %v10195 = vunpack.c.l.b16 %v9430
        %v10196 = vunpack.c.h.b16 %v9430
        %v10197 = vunpack.c.l.b16 %v9431
        %v10198 = vunpack.c.h.b16 %v9431
        %v10199 = vunpack.c.l.b16 %v9432
        %v10200 = vunpack.c.h.b16 %v9432
        %v10201 = vunpack.c.l.b16 %v9433
        %v10202 = vunpack.c.h.b16 %v9433
        %v10203 = vunpack.c.l.b16 %v9434
        %v10204 = vunpack.c.h.b16 %v9434
        %v10205 = vunpack.c.l.b16 %v9435
        %v10206 = vunpack.c.h.b16 %v9435
        %v10207 = vunpack.c.l.b16 %v9436
        %v10208 = vunpack.c.h.b16 %v9436
        %v10209 = vunpack.c.l.b16 %v9437
        %v10210 = vunpack.c.h.b16 %v9437
        %v10211 = vunpack.c.l.b16 %v9438
        %v10212 = vunpack.c.h.b16 %v9438
        %v10213 = vunpack.c.l.b16 %v9439
        %v10214 = vunpack.c.h.b16 %v9439
        %v10215 = vunpack.c.l.b16 %v9440
        %v10216 = vunpack.c.h.b16 %v9440
        %v10217 = vunpack.c.l.b16 %v9441
        %v10218 = vunpack.c.h.b16 %v9441
        %v10219 = vunpack.c.l.b16 %v9442
        %v10220 = vunpack.c.h.b16 %v9442
        %v10221 = vunpack.c.l.b16 %v9443
        %v10222 = vunpack.c.h.b16 %v9443
        %v10223 = vunpack.c.l.b16 %v9444
        %v10224 = vunpack.c.h.b16 %v9444
        %v10225 = vunpack.c.l.b16 %v9445
        %v10226 = vunpack.c.h.b16 %v9445
        %v10227 = vunpack.c.l.b16 %v9446
        %v10228 = vunpack.c.h.b16 %v9446
        %v10229 = vunpack.c.l.b16 %v9447
        %v10230 = vunpack.c.h.b16 %v9447
        %v10231 = vunpack.c.l.b16 %v9448
        %v10232 = vunpack.c.h.b16 %v9448
        %v10233 = vunpack.c.l.b16 %v9449
        %v10234 = vunpack.c.h.b16 %v9449
        %v10235 = vunpack.c.l.b16 %v9450
        %v10236 = vunpack.c.h.b16 %v9450
        %v10237 = vunpack.c.l.b16 %v9451
        %v10238 = vunpack.c.h.b16 %v9451
        %v10239 = vunpack.c.l.b16 %v9452
        %v10240 = vunpack.c.h.b16 %v9452
        %v10241 = vunpack.c.l.b16 %v9453
        %v10242 = vunpack.c.h.b16 %v9453
        %v10243 = vunpack.c.l.b16 %v9454
        %v10244 = vunpack.c.h.b16 %v9454
        %v10245 = vpack.c.b16 %v9737, %v9733
        %v10246 = vpack.c.b16 %v9738, %v9734
        %v10247 = vpack.c.b16 %v9739, %v9735
        %v10248 = vpack.c.b16 %v9740, %v9736
        %v10249 = vpack.c.b16 %v9745, %v9741
        %v10250 = vpack.c.b16 %v9746, %v9742
        %v10251 = vpack.c.b16 %v9747, %v9743
        %v10252 = vpack.c.b16 %v9748, %v9744
        %v10253 = vpack.c.b16 %v9753, %v9749
        %v10254 = vpack.c.b16 %v9754, %v9750
        %v10255 = vpack.c.b16 %v9755, %v9751
        %v10256 = vpack.c.b16 %v9756, %v9752
        %v10257 = vpack.c.b16 %v9761, %v9757
        %v10258 = vpack.c.b16 %v9762, %v9758
        %v10259 = vpack.c.b16 %v9763, %v9759
        %v10260 = vpack.c.b16 %v9764, %v9760
        %v10261 = vpack.c.b16 %v9769, %v9765
        %v10262 = vpack.c.b16 %v9770, %v9766
        %v10263 = vpack.c.b16 %v9771, %v9767
        %v10264 = vpack.c.b16 %v9772, %v9768
        %v10265 = vpack.c.b16 %v9777, %v9773
        %v10266 = vpack.c.b16 %v9778, %v9774
        %v10267 = vpack.c.b16 %v9779, %v9775
        %v10268 = vpack.c.b16 %v9780, %v9776
        %v10269 = vpack.c.b16 %v9785, %v9781
        %v10270 = vpack.c.b16 %v9786, %v9782
        %v10271 = vpack.c.b16 %v9787, %v9783
        %v10272 = vpack.c.b16 %v9788, %v9784
        %v10273 = vpack.c.b16 %v9793, %v9789
        %v10274 = vpack.c.b16 %v9794, %v9790
        %v10275 = vpack.c.b16 %v9795, %v9791
        %v10276 = vpack.c.b16 %v9796, %v9792
        %v10277 = vpack.c.b16 %v9801, %v9797
        %v10278 = vpack.c.b16 %v9802, %v9798
        %v10279 = vpack.c.b16 %v9803, %v9799
        %v10280 = vpack.c.b16 %v9804, %v9800
        %v10281 = vpack.c.b16 %v9809, %v9805
        %v10282 = vpack.c.b16 %v9810, %v9806
        %v10283 = vpack.c.b16 %v9811, %v9807
        %v10284 = vpack.c.b16 %v9812, %v9808
        %v10285 = vpack.c.b16 %v9817, %v9813
        %v10286 = vpack.c.b16 %v9818, %v9814
        %v10287 = vpack.c.b16 %v9819, %v9815
        %v10288 = vpack.c.b16 %v9820, %v9816
        %v10289 = vpack.c.b16 %v9825, %v9821
        %v10290 = vpack.c.b16 %v9826, %v9822
        %v10291 = vpack.c.b16 %v9827, %v9823
        %v10292 = vpack.c.b16 %v9828, %v9824
        %v10293 = vpack.c.b16 %v9833, %v9829
        %v10294 = vpack.c.b16 %v9834, %v9830
        %v10295 = vpack.c.b16 %v9835, %v9831
        %v10296 = vpack.c.b16 %v9836, %v9832
        %v10297 = vpack.c.b16 %v9841, %v9837
        %v10298 = vpack.c.b16 %v9842, %v9838
        %v10299 = vpack.c.b16 %v9843, %v9839
        %v10300 = vpack.c.b16 %v9844, %v9840
        %v10301 = vpack.c.b16 %v9849, %v9845
        %v10302 = vpack.c.b16 %v9850, %v9846
        %v10303 = vpack.c.b16 %v9851, %v9847
        %v10304 = vpack.c.b16 %v9852, %v9848
        %v10305 = vpack.c.b16 %v9857, %v9853
        %v10306 = vpack.c.b16 %v9858, %v9854
        %v10307 = vpack.c.b16 %v9859, %v9855
        %v10308 = vpack.c.b16 %v9860, %v9856
        %v10309 = vpack.c.b16 %v9865, %v9861
        %v10310 = vpack.c.b16 %v9866, %v9862
        %v10311 = vpack.c.b16 %v9867, %v9863
        %v10312 = vpack.c.b16 %v9868, %v9864
        %v10313 = vpack.c.b16 %v9873, %v9869
        %v10314 = vpack.c.b16 %v9874, %v9870
        %v10315 = vpack.c.b16 %v9875, %v9871
        %v10316 = vpack.c.b16 %v9876, %v9872
        %v10317 = vpack.c.b16 %v9881, %v9877
        %v10318 = vpack.c.b16 %v9882, %v9878
        %v10319 = vpack.c.b16 %v9883, %v9879
        %v10320 = vpack.c.b16 %v9884, %v9880
        %v10321 = vpack.c.b16 %v9889, %v9885
        %v10322 = vpack.c.b16 %v9890, %v9886
        %v10323 = vpack.c.b16 %v9891, %v9887
        %v10324 = vpack.c.b16 %v9892, %v9888
        %v10325 = vpack.c.b16 %v9897, %v9893
        %v10326 = vpack.c.b16 %v9898, %v9894
        %v10327 = vpack.c.b16 %v9899, %v9895
        %v10328 = vpack.c.b16 %v9900, %v9896
        %v10329 = vpack.c.b16 %v9905, %v9901
        %v10330 = vpack.c.b16 %v9906, %v9902
        %v10331 = vpack.c.b16 %v9907, %v9903
        %v10332 = vpack.c.b16 %v9908, %v9904
        %v10333 = vpack.c.b16 %v9913, %v9909
        %v10334 = vpack.c.b16 %v9914, %v9910
        %v10335 = vpack.c.b16 %v9915, %v9911
        %v10336 = vpack.c.b16 %v9916, %v9912
        %v10337 = vpack.c.b16 %v9921, %v9917
        %v10338 = vpack.c.b16 %v9922, %v9918
        %v10339 = vpack.c.b16 %v9923, %v9919
        %v10340 = vpack.c.b16 %v9924, %v9920
        %v10341 = vpack.c.b16 %v9929, %v9925
        %v10342 = vpack.c.b16 %v9930, %v9926
        %v10343 = vpack.c.b16 %v9931, %v9927
        %v10344 = vpack.c.b16 %v9932, %v9928
        %v10345 = vpack.c.b16 %v9937, %v9933
        %v10346 = vpack.c.b16 %v9938, %v9934
        %v10347 = vpack.c.b16 %v9939, %v9935
        %v10348 = vpack.c.b16 %v9940, %v9936
        %v10349 = vpack.c.b16 %v9945, %v9941
        %v10350 = vpack.c.b16 %v9946, %v9942
        %v10351 = vpack.c.b16 %v9947, %v9943
        %v10352 = vpack.c.b16 %v9948, %v9944
        %v10353 = vpack.c.b16 %v9953, %v9949
        %v10354 = vpack.c.b16 %v9954, %v9950
        %v10355 = vpack.c.b16 %v9955, %v9951
        %v10356 = vpack.c.b16 %v9956, %v9952
        %v10357 = vpack.c.b16 %v9961, %v9957
        %v10358 = vpack.c.b16 %v9962, %v9958
        %v10359 = vpack.c.b16 %v9963, %v9959
        %v10360 = vpack.c.b16 %v9964, %v9960
        %v10361 = vpack.c.b16 %v9969, %v9965
        %v10362 = vpack.c.b16 %v9970, %v9966
        %v10363 = vpack.c.b16 %v9971, %v9967
        %v10364 = vpack.c.b16 %v9972, %v9968
        %v10365 = vpack.c.b16 %v9977, %v9973
        %v10366 = vpack.c.b16 %v9978, %v9974
        %v10367 = vpack.c.b16 %v9979, %v9975
        %v10368 = vpack.c.b16 %v9980, %v9976
        %v10369 = vpack.c.b16 %v9985, %v9981
        %v10370 = vpack.c.b16 %v9986, %v9982
        %v10371 = vpack.c.b16 %v9987, %v9983
        %v10372 = vpack.c.b16 %v9988, %v9984
        %v10373 = vpack.c.b16 %v9993, %v9989
        %v10374 = vpack.c.b16 %v9994, %v9990
        %v10375 = vpack.c.b16 %v9995, %v9991
        %v10376 = vpack.c.b16 %v9996, %v9992
        %v10377 = vpack.c.b16 %v10001, %v9997
        %v10378 = vpack.c.b16 %v10002, %v9998
        %v10379 = vpack.c.b16 %v10003, %v9999
        %v10380 = vpack.c.b16 %v10004, %v10000
        %v10381 = vpack.c.b16 %v10009, %v10005
        %v10382 = vpack.c.b16 %v10010, %v10006
        %v10383 = vpack.c.b16 %v10011, %v10007
        %v10384 = vpack.c.b16 %v10012, %v10008
        %v10385 = vpack.c.b16 %v10017, %v10013
        %v10386 = vpack.c.b16 %v10018, %v10014
        %v10387 = vpack.c.b16 %v10019, %v10015
        %v10388 = vpack.c.b16 %v10020, %v10016
        %v10389 = vpack.c.b16 %v10025, %v10021
        %v10390 = vpack.c.b16 %v10026, %v10022
        %v10391 = vpack.c.b16 %v10027, %v10023
        %v10392 = vpack.c.b16 %v10028, %v10024
        %v10393 = vpack.c.b16 %v10033, %v10029
        %v10394 = vpack.c.b16 %v10034, %v10030
        %v10395 = vpack.c.b16 %v10035, %v10031
        %v10396 = vpack.c.b16 %v10036, %v10032
        %v10397 = vpack.c.b16 %v10041, %v10037
        %v10398 = vpack.c.b16 %v10042, %v10038
        %v10399 = vpack.c.b16 %v10043, %v10039
        %v10400 = vpack.c.b16 %v10044, %v10040
        %v10401 = vpack.c.b16 %v10049, %v10045
        %v10402 = vpack.c.b16 %v10050, %v10046
        %v10403 = vpack.c.b16 %v10051, %v10047
        %v10404 = vpack.c.b16 %v10052, %v10048
        %v10405 = vpack.c.b16 %v10057, %v10053
        %v10406 = vpack.c.b16 %v10058, %v10054
        %v10407 = vpack.c.b16 %v10059, %v10055
        %v10408 = vpack.c.b16 %v10060, %v10056
        %v10409 = vpack.c.b16 %v10065, %v10061
        %v10410 = vpack.c.b16 %v10066, %v10062
        %v10411 = vpack.c.b16 %v10067, %v10063
        %v10412 = vpack.c.b16 %v10068, %v10064
        %v10413 = vpack.c.b16 %v10073, %v10069
        %v10414 = vpack.c.b16 %v10074, %v10070
        %v10415 = vpack.c.b16 %v10075, %v10071
        %v10416 = vpack.c.b16 %v10076, %v10072
        %v10417 = vpack.c.b16 %v10081, %v10077
        %v10418 = vpack.c.b16 %v10082, %v10078
        %v10419 = vpack.c.b16 %v10083, %v10079
        %v10420 = vpack.c.b16 %v10084, %v10080
        %v10421 = vpack.c.b16 %v10089, %v10085
        %v10422 = vpack.c.b16 %v10090, %v10086
        %v10423 = vpack.c.b16 %v10091, %v10087
        %v10424 = vpack.c.b16 %v10092, %v10088
        %v10425 = vpack.c.b16 %v10097, %v10093
        %v10426 = vpack.c.b16 %v10098, %v10094
        %v10427 = vpack.c.b16 %v10099, %v10095
        %v10428 = vpack.c.b16 %v10100, %v10096
        %v10429 = vpack.c.b16 %v10105, %v10101
        %v10430 = vpack.c.b16 %v10106, %v10102
        %v10431 = vpack.c.b16 %v10107, %v10103
        %v10432 = vpack.c.b16 %v10108, %v10104
        %v10433 = vpack.c.b16 %v10113, %v10109
        %v10434 = vpack.c.b16 %v10114, %v10110
        %v10435 = vpack.c.b16 %v10115, %v10111
        %v10436 = vpack.c.b16 %v10116, %v10112
        %v10437 = vpack.c.b16 %v10121, %v10117
        %v10438 = vpack.c.b16 %v10122, %v10118
        %v10439 = vpack.c.b16 %v10123, %v10119
        %v10440 = vpack.c.b16 %v10124, %v10120
        %v10441 = vpack.c.b16 %v10129, %v10125
        %v10442 = vpack.c.b16 %v10130, %v10126
        %v10443 = vpack.c.b16 %v10131, %v10127
        %v10444 = vpack.c.b16 %v10132, %v10128
        %v10445 = vpack.c.b16 %v10137, %v10133
        %v10446 = vpack.c.b16 %v10138, %v10134
        %v10447 = vpack.c.b16 %v10139, %v10135
        %v10448 = vpack.c.b16 %v10140, %v10136
        %v10449 = vpack.c.b16 %v10145, %v10141
        %v10450 = vpack.c.b16 %v10146, %v10142
        %v10451 = vpack.c.b16 %v10147, %v10143
        %v10452 = vpack.c.b16 %v10148, %v10144
        %v10453 = vpack.c.b16 %v10153, %v10149
        %v10454 = vpack.c.b16 %v10154, %v10150
        %v10455 = vpack.c.b16 %v10155, %v10151
        %v10456 = vpack.c.b16 %v10156, %v10152
        %v10457 = vpack.c.b16 %v10161, %v10157
        %v10458 = vpack.c.b16 %v10162, %v10158
        %v10459 = vpack.c.b16 %v10163, %v10159
        %v10460 = vpack.c.b16 %v10164, %v10160
        %v10461 = vpack.c.b16 %v10169, %v10165
        %v10462 = vpack.c.b16 %v10170, %v10166
        %v10463 = vpack.c.b16 %v10171, %v10167
        %v10464 = vpack.c.b16 %v10172, %v10168
        %v10465 = vpack.c.b16 %v10177, %v10173
        %v10466 = vpack.c.b16 %v10178, %v10174
        %v10467 = vpack.c.b16 %v10179, %v10175
        %v10468 = vpack.c.b16 %v10180, %v10176
        %v10469 = vpack.c.b16 %v10185, %v10181
        %v10470 = vpack.c.b16 %v10186, %v10182
        %v10471 = vpack.c.b16 %v10187, %v10183
        %v10472 = vpack.c.b16 %v10188, %v10184
        %v10473 = vpack.c.b16 %v10193, %v10189
        %v10474 = vpack.c.b16 %v10194, %v10190
        %v10475 = vpack.c.b16 %v10195, %v10191
        %v10476 = vpack.c.b16 %v10196, %v10192
        %v10477 = vpack.c.b16 %v10201, %v10197
        %v10478 = vpack.c.b16 %v10202, %v10198
        %v10479 = vpack.c.b16 %v10203, %v10199
        %v10480 = vpack.c.b16 %v10204, %v10200
        %v10481 = vpack.c.b16 %v10209, %v10205
        %v10482 = vpack.c.b16 %v10210, %v10206
        %v10483 = vpack.c.b16 %v10211, %v10207
        %v10484 = vpack.c.b16 %v10212, %v10208
        %v10485 = vpack.c.b16 %v10217, %v10213
        %v10486 = vpack.c.b16 %v10218, %v10214
        %v10487 = vpack.c.b16 %v10219, %v10215
        %v10488 = vpack.c.b16 %v10220, %v10216
        %v10489 = vpack.c.b16 %v10225, %v10221
        %v10490 = vpack.c.b16 %v10226, %v10222
        %v10491 = vpack.c.b16 %v10227, %v10223
        %v10492 = vpack.c.b16 %v10228, %v10224
        %v10493 = vpack.c.b16 %v10233, %v10229
        %v10494 = vpack.c.b16 %v10234, %v10230
        %v10495 = vpack.c.b16 %v10235, %v10231
        %v10496 = vpack.c.b16 %v10236, %v10232
        %v10497 = vpack.c.b16 %v10241, %v10237
        %v10498 = vpack.c.b16 %v10242, %v10238
        %v10499 = vpack.c.b16 %v10243, %v10239
        %v10500 = vpack.c.b16 %v10244, %v10240
        %10757 = vmatprep.subr.bf16.mxu0 %v10246
        %10758 = vmatpush1.bf16.msra.mxu0 %v10245
        %10759 = vmatprep.subr.bf16.mxu0 %v10250
        %10760 = vmatpush1.bf16.msra.mxu0 %v10249
        %10761 = vmatprep.subr.bf16.mxu0 %v10254
        %10762 = vmatpush1.bf16.msra.mxu0 %v10253
        %10763 = vmatprep.subr.bf16.mxu0 %v10258
        %10764 = vmatpush1.bf16.msra.mxu0 %v10257
        %10765 = vmatprep.subr.bf16.mxu0 %v10262
        %10766 = vmatpush1.bf16.msra.mxu0 %v10261
        %10767 = vmatprep.subr.bf16.mxu0 %v10266
        %10768 = vmatpush1.bf16.msra.mxu0 %v10265
        %10769 = vmatprep.subr.bf16.mxu0 %v10270
        %10770 = vmatpush1.bf16.msra.mxu0 %v10269
        %10771 = vmatprep.subr.bf16.mxu0 %v10274
        %10772 = vmatpush1.bf16.msra.mxu0 %v10273
        %10773 = vmatprep.subr.bf16.mxu0 %v10278
        %10774 = vmatpush1.bf16.msra.mxu0 %v10277
        %10775 = vmatprep.subr.bf16.mxu0 %v10282
        %10776 = vmatpush1.bf16.msra.mxu0 %v10281
        %10777 = vmatprep.subr.bf16.mxu0 %v10286
        %10778 = vmatpush1.bf16.msra.mxu0 %v10285
        %10779 = vmatprep.subr.bf16.mxu0 %v10290
        %10780 = vmatpush1.bf16.msra.mxu0 %v10289
        %10781 = vmatprep.subr.bf16.mxu0 %v10294
        %10782 = vmatpush1.bf16.msra.mxu0 %v10293
        %10783 = vmatprep.subr.bf16.mxu0 %v10298
        %10784 = vmatpush1.bf16.msra.mxu0 %v10297
        %10785 = vmatprep.subr.bf16.mxu0 %v10302
        %10786 = vmatpush1.bf16.msra.mxu0 %v10301
        %10787 = vmatprep.subr.bf16.mxu0 %v10306
        %10788 = vmatpush1.bf16.msra.mxu0 %v10305
        %10789 = vmatprep.mubr.bf16.mxu0 %v9192
        %10790 = vmatmul.mubr.bf16.gmra.mrb[0].mxu0 %v9191
        %v10791 = vpop.f32.mrb[0].mxu0
        %v10792 = vadd.f32 %v9460, %v10791
        %v10793 = vpop.f32.mrb[0].mxu0
        %v10794 = vadd.f32 %v9464, %v10793
        %v10795 = vpop.f32.mrb[0].mxu0
        %v10796 = vadd.f32 %v9460, %v10795
        %v10797 = vpop.f32.mrb[0].mxu0
        %v10798 = vadd.f32 %v9464, %v10797
        %10799 = vdwg.mxu0
        %10800 = vmatprep.subr.bf16.mxu0 %v10310
        %10801 = vmatpush1.bf16.msra.mxu0 %v10309
        %10802 = vmatprep.subr.bf16.mxu0 %v10314
        %10803 = vmatpush1.bf16.msra.mxu0 %v10313
        %10804 = vmatprep.subr.bf16.mxu0 %v10318
        %10805 = vmatpush1.bf16.msra.mxu0 %v10317
        %10806 = vmatprep.subr.bf16.mxu0 %v10322
        %10807 = vmatpush1.bf16.msra.mxu0 %v10321
        %10808 = vmatprep.subr.bf16.mxu0 %v10326
        %10809 = vmatpush1.bf16.msra.mxu0 %v10325
        %10810 = vmatprep.subr.bf16.mxu0 %v10330
        %10811 = vmatpush1.bf16.msra.mxu0 %v10329
        %10812 = vmatprep.subr.bf16.mxu0 %v10334
        %10813 = vmatpush1.bf16.msra.mxu0 %v10333
        %10814 = vmatprep.subr.bf16.mxu0 %v10338
        %10815 = vmatpush1.bf16.msra.mxu0 %v10337
        %10816 = vmatprep.subr.bf16.mxu0 %v10342
        %10817 = vmatpush1.bf16.msra.mxu0 %v10341
        %10818 = vmatprep.subr.bf16.mxu0 %v10346
        %10819 = vmatpush1.bf16.msra.mxu0 %v10345
        %10820 = vmatprep.subr.bf16.mxu0 %v10350
        %10821 = vmatpush1.bf16.msra.mxu0 %v10349
        %10822 = vmatprep.subr.bf16.mxu0 %v10354
        %10823 = vmatpush1.bf16.msra.mxu0 %v10353
        %10824 = vmatprep.subr.bf16.mxu0 %v10358
        %10825 = vmatpush1.bf16.msra.mxu0 %v10357
        %10826 = vmatprep.subr.bf16.mxu0 %v10362
        %10827 = vmatpush1.bf16.msra.mxu0 %v10361
        %10828 = vmatprep.subr.bf16.mxu0 %v10366
        %10829 = vmatpush1.bf16.msra.mxu0 %v10365
        %10830 = vmatprep.subr.bf16.mxu0 %v10370
        %10831 = vmatpush1.bf16.msra.mxu0 %v10369
        %10832 = vmatprep.mubr.bf16.mxu0 %v9194
        %10833 = vmatmul.mubr.bf16.gmra.mrb[0].mxu0 %v9193
        %v10834 = vpop.f32.mrb[0].mxu0
        %v10835 = vadd.f32 %v10792, %v10834
        %v10836 = vpop.f32.mrb[0].mxu0
        %v10837 = vadd.f32 %v10794, %v10836
        %v10838 = vpop.f32.mrb[0].mxu0
        %v10839 = vadd.f32 %v10796, %v10838
        %v10840 = vpop.f32.mrb[0].mxu0
        %v10841 = vadd.f32 %v10798, %v10840
        %10842 = vdwg.mxu0
        %10843 = vmatprep.subr.bf16.mxu0 %v10374
        %10844 = vmatpush1.bf16.msra.mxu0 %v10373
        %10845 = vmatprep.subr.bf16.mxu0 %v10378
        %10846 = vmatpush1.bf16.msra.mxu0 %v10377
        %10847 = vmatprep.subr.bf16.mxu0 %v10382
        %10848 = vmatpush1.bf16.msra.mxu0 %v10381
        %10849 = vmatprep.subr.bf16.mxu0 %v10386
        %10850 = vmatpush1.bf16.msra.mxu0 %v10385
        %10851 = vmatprep.subr.bf16.mxu0 %v10390
        %10852 = vmatpush1.bf16.msra.mxu0 %v10389
        %10853 = vmatprep.subr.bf16.mxu0 %v10394
        %10854 = vmatpush1.bf16.msra.mxu0 %v10393
        %10855 = vmatprep.subr.bf16.mxu0 %v10398
        %10856 = vmatpush1.bf16.msra.mxu0 %v10397
        %10857 = vmatprep.subr.bf16.mxu0 %v10402
        %10858 = vmatpush1.bf16.msra.mxu0 %v10401
        %10859 = vmatprep.subr.bf16.mxu0 %v10406
        %10860 = vmatpush1.bf16.msra.mxu0 %v10405
        %10861 = vmatprep.subr.bf16.mxu0 %v10410
        %10862 = vmatpush1.bf16.msra.mxu0 %v10409
        %10863 = vmatprep.subr.bf16.mxu0 %v10414
        %10864 = vmatpush1.bf16.msra.mxu0 %v10413
        %10865 = vmatprep.subr.bf16.mxu0 %v10418
        %10866 = vmatpush1.bf16.msra.mxu0 %v10417
        %10867 = vmatprep.subr.bf16.mxu0 %v10422
        %10868 = vmatpush1.bf16.msra.mxu0 %v10421
        %10869 = vmatprep.subr.bf16.mxu0 %v10426
        %10870 = vmatpush1.bf16.msra.mxu0 %v10425
        %10871 = vmatprep.subr.bf16.mxu0 %v10430
        %10872 = vmatpush1.bf16.msra.mxu0 %v10429
        %10873 = vmatprep.subr.bf16.mxu0 %v10434
        %10874 = vmatpush1.bf16.msra.mxu0 %v10433
        %10875 = vmatprep.mubr.bf16.mxu0 %v9196
        %10876 = vmatmul.mubr.bf16.gmra.mrb[0].mxu0 %v9195
        %v10877 = vpop.f32.mrb[0].mxu0
        %v10878 = vadd.f32 %v10835, %v10877
        %v10879 = vpop.f32.mrb[0].mxu0
        %v10880 = vadd.f32 %v10837, %v10879
        %v10881 = vpop.f32.mrb[0].mxu0
        %v10882 = vadd.f32 %v10839, %v10881
        %v10883 = vpop.f32.mrb[0].mxu0
        %v10884 = vadd.f32 %v10841, %v10883
        %10885 = vdwg.mxu0
        %10886 = vmatprep.subr.bf16.mxu0 %v10438
        %10887 = vmatpush1.bf16.msra.mxu0 %v10437
        %10888 = vmatprep.subr.bf16.mxu0 %v10442
        %10889 = vmatpush1.bf16.msra.mxu0 %v10441
        %10890 = vmatprep.subr.bf16.mxu0 %v10446
        %10891 = vmatpush1.bf16.msra.mxu0 %v10445
        %10892 = vmatprep.subr.bf16.mxu0 %v10450
        %10893 = vmatpush1.bf16.msra.mxu0 %v10449
        %10894 = vmatprep.subr.bf16.mxu0 %v10454
        %10895 = vmatpush1.bf16.msra.mxu0 %v10453
        %10896 = vmatprep.subr.bf16.mxu0 %v10458
        %10897 = vmatpush1.bf16.msra.mxu0 %v10457
        %10898 = vmatprep.subr.bf16.mxu0 %v10462
        %10899 = vmatpush1.bf16.msra.mxu0 %v10461
        %10900 = vmatprep.subr.bf16.mxu0 %v10466
        %10901 = vmatpush1.bf16.msra.mxu0 %v10465
        %10902 = vmatprep.subr.bf16.mxu0 %v10470
        %10903 = vmatpush1.bf16.msra.mxu0 %v10469
        %10904 = vmatprep.subr.bf16.mxu0 %v10474
        %10905 = vmatpush1.bf16.msra.mxu0 %v10473
        %10906 = vmatprep.subr.bf16.mxu0 %v10478
        %10907 = vmatpush1.bf16.msra.mxu0 %v10477
        %10908 = vmatprep.subr.bf16.mxu0 %v10482
        %10909 = vmatpush1.bf16.msra.mxu0 %v10481
        %10910 = vmatprep.subr.bf16.mxu0 %v10486
        %10911 = vmatpush1.bf16.msra.mxu0 %v10485
        %10912 = vmatprep.subr.bf16.mxu0 %v10490
        %10913 = vmatpush1.bf16.msra.mxu0 %v10489
        %10914 = vmatprep.subr.bf16.mxu0 %v10494
        %10915 = vmatpush1.bf16.msra.mxu0 %v10493
        %10916 = vmatprep.subr.bf16.mxu0 %v10498
        %10917 = vmatpush1.bf16.msra.mxu0 %v10497
        %10918 = vmatprep.mubr.bf16.mxu0 %v9198
        %10919 = vmatmul.mubr.bf16.gmra.mrb[0].mxu0 %v9197
        %v10920 = vpop.f32.mrb[0].mxu0
        %v10921 = vadd.f32 %v10878, %v10920
        %v10922 = vpop.f32.mrb[0].mxu0
        %v10923 = vadd.f32 %v10880, %v10922
        %v10924 = vpop.f32.mrb[0].mxu0
        %v10925 = vadd.f32 %v10882, %v10924
        %v10926 = vpop.f32.mrb[0].mxu0
        %v10927 = vadd.f32 %v10884, %v10926
        %10928 = vdwg.mxu0
        %10929 = vmatprep.subr.bf16.mxu0 %v10248
        %10930 = vmatpush1.bf16.msra.mxu0 %v10247
        %10931 = vmatprep.subr.bf16.mxu0 %v10252
        %10932 = vmatpush1.bf16.msra.mxu0 %v10251
        %10933 = vmatprep.subr.bf16.mxu0 %v10256
        %10934 = vmatpush1.bf16.msra.mxu0 %v10255
        %10935 = vmatprep.subr.bf16.mxu0 %v10260
        %10936 = vmatpush1.bf16.msra.mxu0 %v10259
        %10937 = vmatprep.subr.bf16.mxu0 %v10264
        %10938 = vmatpush1.bf16.msra.mxu0 %v10263
        %10939 = vmatprep.subr.bf16.mxu0 %v10268
        %10940 = vmatpush1.bf16.msra.mxu0 %v10267
        %10941 = vmatprep.subr.bf16.mxu0 %v10272
        %10942 = vmatpush1.bf16.msra.mxu0 %v10271
        %10943 = vmatprep.subr.bf16.mxu0 %v10276
        %10944 = vmatpush1.bf16.msra.mxu0 %v10275
        %10945 = vmatprep.subr.bf16.mxu0 %v10280
        %10946 = vmatpush1.bf16.msra.mxu0 %v10279
        %10947 = vmatprep.subr.bf16.mxu0 %v10284
        %10948 = vmatpush1.bf16.msra.mxu0 %v10283
        %10949 = vmatprep.subr.bf16.mxu0 %v10288
        %10950 = vmatpush1.bf16.msra.mxu0 %v10287
        %10951 = vmatprep.subr.bf16.mxu0 %v10292
        %10952 = vmatpush1.bf16.msra.mxu0 %v10291
        %10953 = vmatprep.subr.bf16.mxu0 %v10296
        %10954 = vmatpush1.bf16.msra.mxu0 %v10295
        %10955 = vmatprep.subr.bf16.mxu0 %v10300
        %10956 = vmatpush1.bf16.msra.mxu0 %v10299
        %10957 = vmatprep.subr.bf16.mxu0 %v10304
        %10958 = vmatpush1.bf16.msra.mxu0 %v10303
        %10959 = vmatprep.subr.bf16.mxu0 %v10308
        %10960 = vmatpush1.bf16.msra.mxu0 %v10307
        %10961 = vmatprep.mubr.bf16.mxu0 %v9192
        %10962 = vmatmul.mubr.bf16.gmra.mrb[0].mxu0 %v9191
        %v10963 = vpop.f32.mrb[0].mxu0
        %v10964 = vadd.f32 %v9468, %v10963
        %v10965 = vpop.f32.mrb[0].mxu0
        %v10966 = vadd.f32 %v9472, %v10965
        %v10967 = vpop.f32.mrb[0].mxu0
        %v10968 = vadd.f32 %v9468, %v10967
        %v10969 = vpop.f32.mrb[0].mxu0
        %v10970 = vadd.f32 %v9472, %v10969
        %10971 = vdwg.mxu0
        %10972 = vmatprep.subr.bf16.mxu0 %v10312
        %10973 = vmatpush1.bf16.msra.mxu0 %v10311
        %10974 = vmatprep.subr.bf16.mxu0 %v10316
        %10975 = vmatpush1.bf16.msra.mxu0 %v10315
        %10976 = vmatprep.subr.bf16.mxu0 %v10320
        %10977 = vmatpush1.bf16.msra.mxu0 %v10319
        %10978 = vmatprep.subr.bf16.mxu0 %v10324
        %10979 = vmatpush1.bf16.msra.mxu0 %v10323
        %10980 = vmatprep.subr.bf16.mxu0 %v10328
        %10981 = vmatpush1.bf16.msra.mxu0 %v10327
        %10982 = vmatprep.subr.bf16.mxu0 %v10332
        %10983 = vmatpush1.bf16.msra.mxu0 %v10331
        %10984 = vmatprep.subr.bf16.mxu0 %v10336
        %10985 = vmatpush1.bf16.msra.mxu0 %v10335
        %10986 = vmatprep.subr.bf16.mxu0 %v10340
        %10987 = vmatpush1.bf16.msra.mxu0 %v10339
        %10988 = vmatprep.subr.bf16.mxu0 %v10344
        %10989 = vmatpush1.bf16.msra.mxu0 %v10343
        %10990 = vmatprep.subr.bf16.mxu0 %v10348
        %10991 = vmatpush1.bf16.msra.mxu0 %v10347
        %10992 = vmatprep.subr.bf16.mxu0 %v10352
        %10993 = vmatpush1.bf16.msra.mxu0 %v10351
        %10994 = vmatprep.subr.bf16.mxu0 %v10356
        %10995 = vmatpush1.bf16.msra.mxu0 %v10355
        %10996 = vmatprep.subr.bf16.mxu0 %v10360
        %10997 = vmatpush1.bf16.msra.mxu0 %v10359
        %10998 = vmatprep.subr.bf16.mxu0 %v10364
        %10999 = vmatpush1.bf16.msra.mxu0 %v10363
        %11000 = vmatprep.subr.bf16.mxu0 %v10368
        %11001 = vmatpush1.bf16.msra.mxu0 %v10367
        %11002 = vmatprep.subr.bf16.mxu0 %v10372
        %11003 = vmatpush1.bf16.msra.mxu0 %v10371
        %11004 = vmatprep.mubr.bf16.mxu0 %v9194
        %11005 = vmatmul.mubr.bf16.gmra.mrb[0].mxu0 %v9193
        %v11006 = vpop.f32.mrb[0].mxu0
        %v11007 = vadd.f32 %v10964, %v11006
        %v11008 = vpop.f32.mrb[0].mxu0
        %v11009 = vadd.f32 %v10966, %v11008
        %v11010 = vpop.f32.mrb[0].mxu0
        %v11011 = vadd.f32 %v10968, %v11010
        %v11012 = vpop.f32.mrb[0].mxu0
        %v11013 = vadd.f32 %v10970, %v11012
        %11014 = vdwg.mxu0
        %11015 = vmatprep.subr.bf16.mxu0 %v10376
        %11016 = vmatpush1.bf16.msra.mxu0 %v10375
        %11017 = vmatprep.subr.bf16.mxu0 %v10380
        %11018 = vmatpush1.bf16.msra.mxu0 %v10379
        %11019 = vmatprep.subr.bf16.mxu0 %v10384
        %11020 = vmatpush1.bf16.msra.mxu0 %v10383
        %11021 = vmatprep.subr.bf16.mxu0 %v10388
        %11022 = vmatpush1.bf16.msra.mxu0 %v10387
        %11023 = vmatprep.subr.bf16.mxu0 %v10392
        %11024 = vmatpush1.bf16.msra.mxu0 %v10391
        %11025 = vmatprep.subr.bf16.mxu0 %v10396
        %11026 = vmatpush1.bf16.msra.mxu0 %v10395
        %11027 = vmatprep.subr.bf16.mxu0 %v10400
        %11028 = vmatpush1.bf16.msra.mxu0 %v10399
        %11029 = vmatprep.subr.bf16.mxu0 %v10404
        %11030 = vmatpush1.bf16.msra.mxu0 %v10403
        %11031 = vmatprep.subr.bf16.mxu0 %v10408
        %11032 = vmatpush1.bf16.msra.mxu0 %v10407
        %11033 = vmatprep.subr.bf16.mxu0 %v10412
        %11034 = vmatpush1.bf16.msra.mxu0 %v10411
        %11035 = vmatprep.subr.bf16.mxu0 %v10416
        %11036 = vmatpush1.bf16.msra.mxu0 %v10415
        %11037 = vmatprep.subr.bf16.mxu0 %v10420
        %11038 = vmatpush1.bf16.msra.mxu0 %v10419
        %11039 = vmatprep.subr.bf16.mxu0 %v10424
        %11040 = vmatpush1.bf16.msra.mxu0 %v10423
        %11041 = vmatprep.subr.bf16.mxu0 %v10428
        %11042 = vmatpush1.bf16.msra.mxu0 %v10427
        %11043 = vmatprep.subr.bf16.mxu0 %v10432
        %11044 = vmatpush1.bf16.msra.mxu0 %v10431
        %11045 = vmatprep.subr.bf16.mxu0 %v10436
        %11046 = vmatpush1.bf16.msra.mxu0 %v10435
        %11047 = vmatprep.mubr.bf16.mxu0 %v9196
        %11048 = vmatmul.mubr.bf16.gmra.mrb[0].mxu0 %v9195
        %v11049 = vpop.f32.mrb[0].mxu0
        %v11050 = vadd.f32 %v11007, %v11049
        %v11051 = vpop.f32.mrb[0].mxu0
        %v11052 = vadd.f32 %v11009, %v11051
        %v11053 = vpop.f32.mrb[0].mxu0
        %v11054 = vadd.f32 %v11011, %v11053
        %v11055 = vpop.f32.mrb[0].mxu0
        %v11056 = vadd.f32 %v11013, %v11055
        %11057 = vdwg.mxu0
        %11058 = vmatprep.subr.bf16.mxu0 %v10440
        %11059 = vmatpush1.bf16.msra.mxu0 %v10439
        %11060 = vmatprep.subr.bf16.mxu0 %v10444
        %11061 = vmatpush1.bf16.msra.mxu0 %v10443
        %11062 = vmatprep.subr.bf16.mxu0 %v10448
        %11063 = vmatpush1.bf16.msra.mxu0 %v10447
        %11064 = vmatprep.subr.bf16.mxu0 %v10452
        %11065 = vmatpush1.bf16.msra.mxu0 %v10451
        %11066 = vmatprep.subr.bf16.mxu0 %v10456
        %11067 = vmatpush1.bf16.msra.mxu0 %v10455
        %11068 = vmatprep.subr.bf16.mxu0 %v10460
        %11069 = vmatpush1.bf16.msra.mxu0 %v10459
        %11070 = vmatprep.subr.bf16.mxu0 %v10464
        %11071 = vmatpush1.bf16.msra.mxu0 %v10463
        %11072 = vmatprep.subr.bf16.mxu0 %v10468
        %11073 = vmatpush1.bf16.msra.mxu0 %v10467
        %11074 = vmatprep.subr.bf16.mxu0 %v10472
        %11075 = vmatpush1.bf16.msra.mxu0 %v10471
        %11076 = vmatprep.subr.bf16.mxu0 %v10476
        %11077 = vmatpush1.bf16.msra.mxu0 %v10475
        %11078 = vmatprep.subr.bf16.mxu0 %v10480
        %11079 = vmatpush1.bf16.msra.mxu0 %v10479
        %11080 = vmatprep.subr.bf16.mxu0 %v10484
        %11081 = vmatpush1.bf16.msra.mxu0 %v10483
        %11082 = vmatprep.subr.bf16.mxu0 %v10488
        %11083 = vmatpush1.bf16.msra.mxu0 %v10487
        %11084 = vmatprep.subr.bf16.mxu0 %v10492
        %11085 = vmatpush1.bf16.msra.mxu0 %v10491
        %11086 = vmatprep.subr.bf16.mxu0 %v10496
        %11087 = vmatpush1.bf16.msra.mxu0 %v10495
        %11088 = vmatprep.subr.bf16.mxu0 %v10500
        %11089 = vmatpush1.bf16.msra.mxu0 %v10499
        %11090 = vmatprep.mubr.bf16.mxu0 %v9198
        %11091 = vmatmul.mubr.bf16.gmra.mrb[0].mxu0 %v9197
        %v11092 = vpop.f32.mrb[0].mxu0
        %v11093 = vadd.f32 %v11050, %v11092
        %v11094 = vpop.f32.mrb[0].mxu0
        %v11095 = vadd.f32 %v11052, %v11094
        %v11096 = vpop.f32.mrb[0].mxu0
        %v11097 = vadd.f32 %v11054, %v11096
        %v11098 = vpop.f32.mrb[0].mxu0
        %v11099 = vadd.f32 %v11056, %v11098
        %11100 = vdwg.mxu0
        %11101 = vst [vmem:[%s360] sm:$0xff] %v10921
        %11102 = vst [vmem:[%s360 + $0x8] sm:$0xff] %v10923
        %11103 = vst [vmem:[%s360 + $0x10] sm:$0xff] %v11093
        %11104 = vst [vmem:[%s360 + $0x18] sm:$0xff] %v11095
        %11105 = vst [vmem:[%s360 + $0x20] sm:$0xff] %v10925
        %11106 = vst [vmem:[%s360 + $0x28] sm:$0xff] %v10927
        %11107 = vst [vmem:[%s360 + $0x30] sm:$0xff] %v11097
        %11108 = vst [vmem:[%s360 + $0x38] sm:$0xff] %v11099
        %p11109 = scmp.lt.s32.totalorder %s22, 1
        %s11110 = scalar_select %p11109, %s22, 1
        %s11111 = smul.addr %s11110, 8
        %s11112 = smul.addr %s11111, 8
        %s11113 = scalar_lea.vmem %s7, %s11112
        // Predicated region
        $region73: #{_flow_encoder_forward.1} parent=47 // pred_check
          %p11114 = pneg %p192
        $region74: #{_flow_encoder_forward.1} parent=47 // pred_check_branch
          %11116 = sbr.rel (%p11114) target = $region76
        $region75: #{_flow_encoder_forward.1} parent=47 // pred_region
          _
        $region76: #{_flow_encoder_forward.1} parent=47 // pred_fallthru
          _
      $region48: #{_flow_encoder_forward.1} parent=5 // pred_fallthru
        _
      %p11117 = scmp.le.s32.totalorder 2, %s17
      // Predicated region
      $region77: #{_flow_encoder_forward.1} parent=5 // pred_check
        %p11118 = pneg %p11117
      $region78: #{_flow_encoder_forward.1} parent=5 // pred_check_branch
        %11120 = sbr.rel (%p11118) target = $region80
      $region79: #{_flow_encoder_forward.1} parent=5 // pred_region
        %s11121 = ssub.s32 %s17, 2
        // Predicated region
        $region81: #{_flow_encoder_forward.1} parent=79 // pred_check
          %p11122 = pneg %p198
        $region82: #{_flow_encoder_forward.1} parent=79 // pred_check_branch
          %11124 = sbr.rel (%p11122) target = $region84
        $region83: #{_flow_encoder_forward.1} parent=79 // pred_region
          %p11125 = scmp.lt.s32.totalorder %s23, 1
          %s11126 = scalar_select %p11125, %s23, 1
          %s11127 = smul.addr %s11126, 8
          %s11128 = smul.addr %s11127, 8
          %s11129 = scalar_lea.vmem %s7, %s11128
        $region84: #{_flow_encoder_forward.1} parent=79 // pred_fallthru
          _
      $region80: #{_flow_encoder_forward.1} parent=5 // pred_fallthru
        _
    $region6: #{_flow_encoder_forward.1} parent=1 // loop_footer
      %s21 = sadd.s32 1, %s17
    $region7: #{_flow_encoder_forward.1} parent=1 // loop_footer_branch
      %16 = sbr.rel target = $region3
    $region8: #{_flow_encoder_forward.1} parent=1 // loop_exit
      _
    %11130 = vsyncpa [#allocation4], 1
    %s11131 = scalar_lea.sflag [#allocation4], 1
    %11132 = vsyncpa %s11131, 1
    %11133 = vsyncpa [#allocation6], 1
    %11134 = vsyncpa [#allocation9], 1
    %11135 = vsyncpa [#allocation12], 1

</llo_original>
